<compile_context>
chip_gen: v7x
topology: tpu7x:2x2x1
jax: 0.10.0
libtpu: 0.0.40
codegen_flags: <defaults>
</compile_context>

<pallas_src>
import numpy as np
import jax
import jax.numpy as jnp
from jax import lax
from jax.experimental import pallas as pl
from jax.experimental.pallas import tpu as pltpu

NEG_SLOPE = 0.01  # F.leaky_relu default


def _leaky(v):
    return jnp.where(v >= 0.0, v, NEG_SLOPE * v)


# --------------------------- fused block kernel -----------------------------

def _make_block_kernel(*, s, Wq, M1, Ho, Wo, P, has_downsample):
    """Fused BasicBlock kernel body for one batch element.

    Input x arrives zero-padded, phase-split by stride `s` and flattened to
    (s, s, Hq*Wq, Cin); conv1 tap (di,dj) is the contiguous row-slab of length
    M1 at offset (di//s)*Wq + dj//s inside phase (di%s, dj%s).  Valid conv1
    outputs (i,j) live at slab row i*Wq + j.  The conv2 input is repacked in
    VMEM into a zero-padded flat (Ho+2, Wo+2) grid so conv2 uses the same
    shift-and-matmul trick with row stride W2 = Wo+2.
    """
    W2 = Wo + 2                      # padded width of the conv2 input grid
    M2 = (Ho - 1) * W2 + Wo          # rows of the conv2 "virtual output" slab
    M2p = (Ho + 2) * W2              # rows of the flattened padded conv2 input
    taps = [(di, dj) for di in range(3) for dj in range(3)]

    def kernel(*refs):
        if has_downsample:
            (x_ref, w1_ref, b1_ref, w2_ref, b2_ref, wd_ref, bd_ref,
             o_ref, h1_ref, res_ref, h2_ref, c2_ref) = refs
        else:
            (x_ref, w1_ref, b1_ref, w2_ref, b2_ref,
             o_ref, h1_ref, res_ref, h2_ref, c2_ref) = refs

        def x_slab(di, dj):
            off = (di // s) * Wq + (dj // s)
            return x_ref[0, di % s, dj % s, pl.ds(off, M1), :]

        # ---- conv1 (3x3, stride s, pad 1) + bn1 + leaky_relu ---------------
        acc = jnp.zeros((M1, P), jnp.float32)
        for t, (di, dj) in enumerate(taps):
            a = x_slab(di, dj).astype(jnp.bfloat16)
            acc = acc + jnp.dot(a, w1_ref[t],
                                preferred_element_type=jnp.float32)
        h1_ref[...] = _leaky(acc + b1_ref[...])

        # ---- residual: identity or (1x1 conv, stride s) + bn ---------------
        a11 = x_slab(1, 1)                       # rows hold x[s*i, s*j, :]
        if has_downsample:
            res = jnp.dot(a11.astype(jnp.bfloat16), wd_ref[...],
                          preferred_element_type=jnp.float32)
            res_ref[...] = res + bd_ref[...]
        else:
            res_ref[...] = a11                   # exact f32 identity

        # ---- repack conv1 output into a zero-padded flat (Ho+2, W2) slab ---
        h2_ref[...] = jnp.zeros((M2p, P), jnp.float32)
        for r in range(Ho):
            h2_ref[pl.ds((r + 1) * W2 + 1, Wo), :] = h1_ref[pl.ds(r * Wq, Wo), :]

        # ---- conv2 (3x3, stride 1, pad 1) + bn2 -----------------------------
        acc2 = jnp.zeros((M2, P), jnp.float32)
        for t, (di, dj) in enumerate(taps):
            a2 = h2_ref[pl.ds(di * W2 + dj, M2), :].astype(jnp.bfloat16)
            acc2 = acc2 + jnp.dot(a2, w2_ref[t],
                                  preferred_element_type=jnp.float32)
        c2_ref[...] = acc2 + b2_ref[...]

        # ---- residual add + leaky_relu, store the Ho*Wo valid rows ----------
        for r in range(Ho):
            v = c2_ref[pl.ds(r * W2, Wo), :] + res_ref[pl.ds(r * Wq, Wo), :]
            o_ref[0, pl.ds(r * Wo, Wo), :] = _leaky(v)

    return kernel


# ------------------------------ host wrapper --------------------------------

def _phase_split_flat(x_pad, s):
    """(B,Hp,Wp,C) -> (B,s,s,Hq*Wq,C) with phase[p,q][a,b] = x_pad[p+s*a, q+s*b]."""
    B, Hp, Wp, C = x_pad.shape
    Hq, Wq = -(-Hp // s), -(-Wp // s)
    x_pad = jnp.pad(x_pad, ((0, 0), (0, Hq * s - Hp), (0, Wq * s - Wp), (0, 0)))
    x_ph = x_pad.reshape(B, Hq, s, Wq, s, C).transpose(0, 2, 4, 1, 3, 5)
    return x_ph.reshape(B, s, s, Hq * Wq, C), Hq, Wq


def basic_block_forward(x_nhwc, blk):
    """Fused BasicBlock forward: (B,H,W,Cin) f32 -> (B,Ho,Wo,planes) f32."""
    B, H, W, Cin = x_nhwc.shape
    s = blk["stride"]
    P = blk["planes"]
    Ho = (H + 2 - 3) // s + 1
    Wo = (W + 2 - 3) // s + 1

    # Fold inference-mode BatchNorm into conv weights (bf16) and bias (f32).
    def fold(w_oikk, bn):
        scale = bn["gamma"] / jnp.sqrt(bn["var"] + bn["eps"])
        shift = bn["beta"] - bn["mean"] * scale
        o, i, kh, kw = w_oikk.shape
        w = jnp.transpose(w_oikk, (2, 3, 1, 0)).reshape(kh * kw, i, o) * scale
        return w.astype(jnp.bfloat16), shift.reshape(1, o).astype(jnp.float32)

    w1, b1 = fold(blk["conv1_w"], blk["bn1"])
    w2, b2 = fold(blk["conv2_w"], blk["bn2"])

    x_pad = jnp.pad(x_nhwc.astype(jnp.float32),
                    ((0, 0), (1, 1), (1, 1), (0, 0)))
    x_ph, Hq, Wq = _phase_split_flat(x_pad, s)
    M1 = (Ho - 1) * Wq + Wo
    W2 = Wo + 2
    M2 = (Ho - 1) * W2 + Wo
    M2p = (Ho + 2) * W2
    # every tap slab must stay inside the flattened phase buffer
    assert (2 // s) * Wq + (2 // s) + M1 <= Hq * Wq

    has_ds = blk["downsample"] is not None
    if not has_ds:
        assert s == 1 and Cin == P, "identity residual needs matching shapes"

    args = [x_ph, w1, b1, w2, b2]
    in_specs = [
        pl.BlockSpec((1, s, s, Hq * Wq, Cin), lambda b: (b, 0, 0, 0, 0)),
        pl.BlockSpec((9, Cin, P), lambda b: (0, 0, 0)),
        pl.BlockSpec((1, P), lambda b: (0, 0)),
        pl.BlockSpec((9, P, P), lambda b: (0, 0, 0)),
        pl.BlockSpec((1, P), lambda b: (0, 0)),
    ]
    if has_ds:
        ds_w, ds_bn = blk["downsample"]
        wd, bd = fold(ds_w, ds_bn)                      # (1,Cin,P), (1,P)
        args += [wd.reshape(Cin, P), bd]
        in_specs += [pl.BlockSpec((Cin, P), lambda b: (0, 0)),
                     pl.BlockSpec((1, P), lambda b: (0, 0))]

    kernel = _make_block_kernel(s=s, Wq=Wq, M1=M1, Ho=Ho, Wo=Wo, P=P,
                                has_downsample=has_ds)
    out = pl.pallas_call(
        kernel,
        grid=(B,),
        in_specs=in_specs,
        out_specs=pl.BlockSpec((1, Ho * Wo, P), lambda b: (b, 0, 0)),
        out_shape=jax.ShapeDtypeStruct((B, Ho * Wo, P), jnp.float32),
        scratch_shapes=[
            pltpu.VMEM((M1, P), jnp.float32),    # conv1+bn1+leaky output
            pltpu.VMEM((M1, P), jnp.float32),    # residual
            pltpu.VMEM((M2p, P), jnp.float32),   # zero-padded conv2 input
            pltpu.VMEM((M2, P), jnp.float32),    # conv2+bn2 output
        ],
        compiler_params=pltpu.CompilerParams(
            dimension_semantics=("parallel",)),
    )(*args)
    return out.reshape(B, Ho, Wo, P)


def basic_block_apply(x_nchw, blk):
    """PyTorch-layout wrapper: NCHW in, NCHW out."""
    x = jnp.transpose(x_nchw, (0, 2, 3, 1))
    y = basic_block_forward(x, blk)
    return jnp.transpose(y, (0, 3, 1, 2))


# ------------------------ parameters & pure-JAX ref --------------------------

def init_basic_block(key, inplanes, planes, stride):
    ks = jax.random.split(key, 6)

    def conv_w(k, o, i, ksz):
        std = np.sqrt(2.0 / (o * ksz * ksz))          # kaiming_normal fan_out
        return std * jax.random.normal(k, (o, i, ksz, ksz), jnp.float32)

    def bn(k, c):
        kg, kb, km, kv = jax.random.split(k, 4)
        return dict(gamma=jax.random.uniform(kg, (c,), jnp.float32, 0.5, 1.5),
                    beta=0.1 * jax.random.normal(kb, (c,), jnp.float32),
                    mean=0.1 * jax.random.normal(km, (c,), jnp.float32),
                    var=jax.random.uniform(kv, (c,), jnp.float32, 0.5, 1.5),
                    eps=1e-5)

    blk = dict(stride=stride, planes=planes,
               conv1_w=conv_w(ks[0], planes, inplanes, 3), bn1=bn(ks[1], planes),
               conv2_w=conv_w(ks[2], planes, planes, 3), bn2=bn(ks[3], planes),
               downsample=None)
    if stride != 1 or inplanes != planes:
        blk["downsample"] = (conv_w(ks[4], planes, inplanes, 1), bn(ks[5], planes))
    return blk


def _conv_bn_ref(x, w, bn, stride, pad):
    y = lax.conv_general_dilated(
        x, w, window_strides=(stride, stride),
        padding=[(pad, pad), (pad, pad)],
        dimension_numbers=("NHWC", "OIHW", "NHWC"))
    scale = bn["gamma"] / jnp.sqrt(bn["var"] + bn["eps"])
    return y * scale + (bn["beta"] - bn["mean"] * scale)


def basic_block_ref(x_nchw, blk):
    x = jnp.transpose(x_nchw, (0, 2, 3, 1)).astype(jnp.float32)
    if blk["downsample"] is not None:
        dw, dbn = blk["downsample"]
        identity = _conv_bn_ref(x, dw, dbn, blk["stride"], 0)
    else:
        identity = x
    h = _conv_bn_ref(x, blk["conv1_w"], blk["bn1"], blk["stride"], 1)
    h = _leaky(h)
    h = _conv_bn_ref(h, blk["conv2_w"], blk["bn2"], 1, 1)
    h = _leaky(h + identity)
    return jnp.transpose(h, (0, 3, 1, 2))


# ----------------------------------- main ------------------------------------

if __name__ == "__main__":
    key = jax.random.PRNGKey(0)
    kx, kb1, kb2 = jax.random.split(key, 3)

    B, Cin, H, W = 2, 7, 32, 32  # placeholder, real test shapes below
    B, Cin, H, W = 2, 64, 16, 16
    x = jax.random.normal(kx, (B, Cin, H, W), jnp.float32)        # NCHW input

    # Block 1: stride-2 layer-transition block with 1x1-conv downsample.
    blk1 = init_basic_block(kb1, inplanes=Cin, planes=128, stride=2)
    # Block 2: stride-1 identity-residual block.
    blk2 = init_basic_block(kb2, inplanes=128, planes=128, stride=1)

    fwd = jax.jit(lambda a: basic_block_apply(basic_block_apply(a, blk1), blk2))
    y = jax.block_until_ready(fwd(x))
    assert y.shape == (B, 128, H // 2, W // 2) and y.dtype == jnp.float32

    # correctness vs. a pure-JAX f32 reference (bf16 MXU -> loose tolerance)
    y_ref = basic_block_ref(basic_block_ref(x, blk1), blk2)
    err = float(jnp.max(jnp.abs(y - y_ref)))
    ref_scale = float(jnp.max(jnp.abs(y_ref)))
    assert err <= 0.05 * ref_scale + 1e-4, f"max abs err {err} (scale {ref_scale})"

    print("KERNEL_OK")
</pallas_src>

<mosaic_0001>
module attributes {stable_mosaic.version = 11 : i64} {
  func.func @kernel(%arg0: i32, %arg1: memref<1x2x2x81x64xf32, #tpu.memory_space<vmem>>, %arg2: memref<9x64x128xbf16, #tpu.memory_space<vmem>>, %arg3: memref<1x128xf32, #tpu.memory_space<vmem>>, %arg4: memref<9x128x128xbf16, #tpu.memory_space<vmem>>, %arg5: memref<1x128xf32, #tpu.memory_space<vmem>>, %arg6: memref<64x128xbf16, #tpu.memory_space<vmem>>, %arg7: memref<1x128xf32, #tpu.memory_space<vmem>>, %arg8: memref<1x64x128xf32, #tpu.memory_space<vmem>>, %arg9: memref<71x128xf32, #tpu.memory_space<vmem>>, %arg10: memref<71x128xf32, #tpu.memory_space<vmem>>, %arg11: memref<100x128xf32, #tpu.memory_space<vmem>>, %arg12: memref<78x128xf32, #tpu.memory_space<vmem>>) attributes {dimension_semantics = [#tpu.dimension_semantics<parallel>], iteration_bounds = array<i64: 2>, scalar_prefetch = 0 : i64, scratch_operands = 4 : i64, tpu.core_type = #tpu.core_type<tc>, window_params = [{transform_indices = @transform_0, window_bounds = array<i64: 1, 2, 2, 81, 64>}, {pipeline_mode = #tpu.pipeline_mode<synchronous>, transform_indices = @transform_1, window_bounds = array<i64: 9, 64, 128>}, {pipeline_mode = #tpu.pipeline_mode<synchronous>, transform_indices = @transform_2, window_bounds = array<i64: 1, 128>}, {pipeline_mode = #tpu.pipeline_mode<synchronous>, transform_indices = @transform_3, window_bounds = array<i64: 9, 128, 128>}, {pipeline_mode = #tpu.pipeline_mode<synchronous>, transform_indices = @transform_4, window_bounds = array<i64: 1, 128>}, {pipeline_mode = #tpu.pipeline_mode<synchronous>, transform_indices = @transform_5, window_bounds = array<i64: 64, 128>}, {pipeline_mode = #tpu.pipeline_mode<synchronous>, transform_indices = @transform_6, window_bounds = array<i64: 1, 128>}, {transform_indices = @transform_7, window_bounds = array<i64: 1, 64, 128>}]} {
    %cst = arith.constant 0.000000e+00 : f32
    %0 = vector.broadcast %cst : f32 to vector<71x128xf32>
    %c0 = arith.constant 0 : index
    %c0_0 = arith.constant 0 : index
    %c0_1 = arith.constant 0 : index
    %c0_2 = arith.constant 0 : index
    %c0_3 = arith.constant 0 : index
    %1 = vector.load %arg1[%c0, %c0_0, %c0_1, %c0_2, %c0_3] : memref<1x2x2x81x64xf32, #tpu.memory_space<vmem>>, vector<1x1x1x71x64xf32>
    %2 = vector.shape_cast %1 : vector<1x1x1x71x64xf32> to vector<71x64xf32>
    %3 = arith.truncf %2 : vector<71x64xf32> to vector<71x64xbf16>
    %c0_4 = arith.constant 0 : index
    %c0_5 = arith.constant 0 : index
    %c0_6 = arith.constant 0 : index
    %4 = vector.load %arg2[%c0_4, %c0_5, %c0_6] : memref<9x64x128xbf16, #tpu.memory_space<vmem>>, vector<1x64x128xbf16>
    %5 = vector.shape_cast %4 : vector<1x64x128xbf16> to vector<64x128xbf16>
    %cst_7 = arith.constant dense<0.000000e+00> : vector<71x128xf32>
    %6 = tpu.matmul %3, %5, %cst_7 {dimension_numbers = #tpu.dot_dimension_numbers<[1], [0], [0], [1], [0, 0, 1, 1], [], []>} : vector<71x64xbf16>, vector<64x128xbf16>, vector<71x128xf32> -> vector<71x128xf32>
    %7 = arith.addf %0, %6 : vector<71x128xf32>
    %c0_8 = arith.constant 0 : index
    %c0_9 = arith.constant 0 : index
    %c1 = arith.constant 1 : index
    %c0_10 = arith.constant 0 : index
    %c0_11 = arith.constant 0 : index
    %8 = vector.load %arg1[%c0_8, %c0_9, %c1, %c0_10, %c0_11] : memref<1x2x2x81x64xf32, #tpu.memory_space<vmem>>, vector<1x1x1x71x64xf32>
    %9 = vector.shape_cast %8 : vector<1x1x1x71x64xf32> to vector<71x64xf32>
    %10 = arith.truncf %9 : vector<71x64xf32> to vector<71x64xbf16>
    %c1_12 = arith.constant 1 : index
    %c0_13 = arith.constant 0 : index
    %c0_14 = arith.constant 0 : index
    %11 = vector.load %arg2[%c1_12, %c0_13, %c0_14] : memref<9x64x128xbf16, #tpu.memory_space<vmem>>, vector<1x64x128xbf16>
    %12 = vector.shape_cast %11 : vector<1x64x128xbf16> to vector<64x128xbf16>
    %cst_15 = arith.constant dense<0.000000e+00> : vector<71x128xf32>
    %13 = tpu.matmul %10, %12, %cst_15 {dimension_numbers = #tpu.dot_dimension_numbers<[1], [0], [0], [1], [0, 0, 1, 1], [], []>} : vector<71x64xbf16>, vector<64x128xbf16>, vector<71x128xf32> -> vector<71x128xf32>
    %14 = arith.addf %7, %13 : vector<71x128xf32>
    %c0_16 = arith.constant 0 : index
    %c0_17 = arith.constant 0 : index
    %c0_18 = arith.constant 0 : index
    %c1_19 = arith.constant 1 : index
    %c0_20 = arith.constant 0 : index
    %15 = vector.load %arg1[%c0_16, %c0_17, %c0_18, %c1_19, %c0_20] : memref<1x2x2x81x64xf32, #tpu.memory_space<vmem>>, vector<1x1x1x71x64xf32>
    %16 = vector.shape_cast %15 : vector<1x1x1x71x64xf32> to vector<71x64xf32>
    %17 = arith.truncf %16 : vector<71x64xf32> to vector<71x64xbf16>
    %c2 = arith.constant 2 : index
    %c0_21 = arith.constant 0 : index
    %c0_22 = arith.constant 0 : index
    %18 = vector.load %arg2[%c2, %c0_21, %c0_22] : memref<9x64x128xbf16, #tpu.memory_space<vmem>>, vector<1x64x128xbf16>
    %19 = vector.shape_cast %18 : vector<1x64x128xbf16> to vector<64x128xbf16>
    %cst_23 = arith.constant dense<0.000000e+00> : vector<71x128xf32>
    %20 = tpu.matmul %17, %19, %cst_23 {dimension_numbers = #tpu.dot_dimension_numbers<[1], [0], [0], [1], [0, 0, 1, 1], [], []>} : vector<71x64xbf16>, vector<64x128xbf16>, vector<71x128xf32> -> vector<71x128xf32>
    %21 = arith.addf %14, %20 : vector<71x128xf32>
    %c0_24 = arith.constant 0 : index
    %c1_25 = arith.constant 1 : index
    %c0_26 = arith.constant 0 : index
    %c0_27 = arith.constant 0 : index
    %c0_28 = arith.constant 0 : index
    %22 = vector.load %arg1[%c0_24, %c1_25, %c0_26, %c0_27, %c0_28] : memref<1x2x2x81x64xf32, #tpu.memory_space<vmem>>, vector<1x1x1x71x64xf32>
    %23 = vector.shape_cast %22 : vector<1x1x1x71x64xf32> to vector<71x64xf32>
    %24 = arith.truncf %23 : vector<71x64xf32> to vector<71x64xbf16>
    %c3 = arith.constant 3 : index
    %c0_29 = arith.constant 0 : index
    %c0_30 = arith.constant 0 : index
    %25 = vector.load %arg2[%c3, %c0_29, %c0_30] : memref<9x64x128xbf16, #tpu.memory_space<vmem>>, vector<1x64x128xbf16>
    %26 = vector.shape_cast %25 : vector<1x64x128xbf16> to vector<64x128xbf16>
    %cst_31 = arith.constant dense<0.000000e+00> : vector<71x128xf32>
    %27 = tpu.matmul %24, %26, %cst_31 {dimension_numbers = #tpu.dot_dimension_numbers<[1], [0], [0], [1], [0, 0, 1, 1], [], []>} : vector<71x64xbf16>, vector<64x128xbf16>, vector<71x128xf32> -> vector<71x128xf32>
    %28 = arith.addf %21, %27 : vector<71x128xf32>
    %c0_32 = arith.constant 0 : index
    %c1_33 = arith.constant 1 : index
    %c1_34 = arith.constant 1 : index
    %c0_35 = arith.constant 0 : index
    %c0_36 = arith.constant 0 : index
    %29 = vector.load %arg1[%c0_32, %c1_33, %c1_34, %c0_35, %c0_36] : memref<1x2x2x81x64xf32, #tpu.memory_space<vmem>>, vector<1x1x1x71x64xf32>
    %30 = vector.shape_cast %29 : vector<1x1x1x71x64xf32> to vector<71x64xf32>
    %31 = arith.truncf %30 : vector<71x64xf32> to vector<71x64xbf16>
    %c4 = arith.constant 4 : index
    %c0_37 = arith.constant 0 : index
    %c0_38 = arith.constant 0 : index
    %32 = vector.load %arg2[%c4, %c0_37, %c0_38] : memref<9x64x128xbf16, #tpu.memory_space<vmem>>, vector<1x64x128xbf16>
    %33 = vector.shape_cast %32 : vector<1x64x128xbf16> to vector<64x128xbf16>
    %cst_39 = arith.constant dense<0.000000e+00> : vector<71x128xf32>
    %34 = tpu.matmul %31, %33, %cst_39 {dimension_numbers = #tpu.dot_dimension_numbers<[1], [0], [0], [1], [0, 0, 1, 1], [], []>} : vector<71x64xbf16>, vector<64x128xbf16>, vector<71x128xf32> -> vector<71x128xf32>
    %35 = arith.addf %28, %34 : vector<71x128xf32>
    %c0_40 = arith.constant 0 : index
    %c1_41 = arith.constant 1 : index
    %c0_42 = arith.constant 0 : index
    %c1_43 = arith.constant 1 : index
    %c0_44 = arith.constant 0 : index
    %36 = vector.load %arg1[%c0_40, %c1_41, %c0_42, %c1_43, %c0_44] : memref<1x2x2x81x64xf32, #tpu.memory_space<vmem>>, vector<1x1x1x71x64xf32>
    %37 = vector.shape_cast %36 : vector<1x1x1x71x64xf32> to vector<71x64xf32>
    %38 = arith.truncf %37 : vector<71x64xf32> to vector<71x64xbf16>
    %c5 = arith.constant 5 : index
    %c0_45 = arith.constant 0 : index
    %c0_46 = arith.constant 0 : index
    %39 = vector.load %arg2[%c5, %c0_45, %c0_46] : memref<9x64x128xbf16, #tpu.memory_space<vmem>>, vector<1x64x128xbf16>
    %40 = vector.shape_cast %39 : vector<1x64x128xbf16> to vector<64x128xbf16>
    %cst_47 = arith.constant dense<0.000000e+00> : vector<71x128xf32>
    %41 = tpu.matmul %38, %40, %cst_47 {dimension_numbers = #tpu.dot_dimension_numbers<[1], [0], [0], [1], [0, 0, 1, 1], [], []>} : vector<71x64xbf16>, vector<64x128xbf16>, vector<71x128xf32> -> vector<71x128xf32>
    %42 = arith.addf %35, %41 : vector<71x128xf32>
    %c0_48 = arith.constant 0 : index
    %c0_49 = arith.constant 0 : index
    %c0_50 = arith.constant 0 : index
    %c9 = arith.constant 9 : index
    %c0_51 = arith.constant 0 : index
    %43 = vector.load %arg1[%c0_48, %c0_49, %c0_50, %c9, %c0_51] : memref<1x2x2x81x64xf32, #tpu.memory_space<vmem>>, vector<1x1x1x71x64xf32>
    %44 = vector.shape_cast %43 : vector<1x1x1x71x64xf32> to vector<71x64xf32>
    %45 = arith.truncf %44 : vector<71x64xf32> to vector<71x64xbf16>
    %c6 = arith.constant 6 : index
    %c0_52 = arith.constant 0 : index
    %c0_53 = arith.constant 0 : index
    %46 = vector.load %arg2[%c6, %c0_52, %c0_53] : memref<9x64x128xbf16, #tpu.memory_space<vmem>>, vector<1x64x128xbf16>
    %47 = vector.shape_cast %46 : vector<1x64x128xbf16> to vector<64x128xbf16>
    %cst_54 = arith.constant dense<0.000000e+00> : vector<71x128xf32>
    %48 = tpu.matmul %45, %47, %cst_54 {dimension_numbers = #tpu.dot_dimension_numbers<[1], [0], [0], [1], [0, 0, 1, 1], [], []>} : vector<71x64xbf16>, vector<64x128xbf16>, vector<71x128xf32> -> vector<71x128xf32>
    %49 = arith.addf %42, %48 : vector<71x128xf32>
    %c0_55 = arith.constant 0 : index
    %c0_56 = arith.constant 0 : index
    %c1_57 = arith.constant 1 : index
    %c9_58 = arith.constant 9 : index
    %c0_59 = arith.constant 0 : index
    %50 = vector.load %arg1[%c0_55, %c0_56, %c1_57, %c9_58, %c0_59] : memref<1x2x2x81x64xf32, #tpu.memory_space<vmem>>, vector<1x1x1x71x64xf32>
    %51 = vector.shape_cast %50 : vector<1x1x1x71x64xf32> to vector<71x64xf32>
    %52 = arith.truncf %51 : vector<71x64xf32> to vector<71x64xbf16>
    %c7 = arith.constant 7 : index
    %c0_60 = arith.constant 0 : index
    %c0_61 = arith.constant 0 : index
    %53 = vector.load %arg2[%c7, %c0_60, %c0_61] : memref<9x64x128xbf16, #tpu.memory_space<vmem>>, vector<1x64x128xbf16>
    %54 = vector.shape_cast %53 : vector<1x64x128xbf16> to vector<64x128xbf16>
    %cst_62 = arith.constant dense<0.000000e+00> : vector<71x128xf32>
    %55 = tpu.matmul %52, %54, %cst_62 {dimension_numbers = #tpu.dot_dimension_numbers<[1], [0], [0], [1], [0, 0, 1, 1], [], []>} : vector<71x64xbf16>, vector<64x128xbf16>, vector<71x128xf32> -> vector<71x128xf32>
    %56 = arith.addf %49, %55 : vector<71x128xf32>
    %c0_63 = arith.constant 0 : index
    %c0_64 = arith.constant 0 : index
    %c0_65 = arith.constant 0 : index
    %c10 = arith.constant 10 : index
    %c0_66 = arith.constant 0 : index
    %57 = vector.load %arg1[%c0_63, %c0_64, %c0_65, %c10, %c0_66] : memref<1x2x2x81x64xf32, #tpu.memory_space<vmem>>, vector<1x1x1x71x64xf32>
    %58 = vector.shape_cast %57 : vector<1x1x1x71x64xf32> to vector<71x64xf32>
    %59 = arith.truncf %58 : vector<71x64xf32> to vector<71x64xbf16>
    %c8 = arith.constant 8 : index
    %c0_67 = arith.constant 0 : index
    %c0_68 = arith.constant 0 : index
    %60 = vector.load %arg2[%c8, %c0_67, %c0_68] : memref<9x64x128xbf16, #tpu.memory_space<vmem>>, vector<1x64x128xbf16>
    %61 = vector.shape_cast %60 : vector<1x64x128xbf16> to vector<64x128xbf16>
    %cst_69 = arith.constant dense<0.000000e+00> : vector<71x128xf32>
    %62 = tpu.matmul %59, %61, %cst_69 {dimension_numbers = #tpu.dot_dimension_numbers<[1], [0], [0], [1], [0, 0, 1, 1], [], []>} : vector<71x64xbf16>, vector<64x128xbf16>, vector<71x128xf32> -> vector<71x128xf32>
    %63 = arith.addf %56, %62 : vector<71x128xf32>
    %c0_70 = arith.constant 0 : index
    %c0_71 = arith.constant 0 : index
    %64 = vector.load %arg3[%c0_70, %c0_71] : memref<1x128xf32, #tpu.memory_space<vmem>>, vector<1x128xf32>
    %65 = vector.broadcast %64 : vector<1x128xf32> to vector<71x128xf32>
    %66 = arith.addf %63, %65 : vector<71x128xf32>
    %cst_72 = arith.constant 0.000000e+00 : f32
    %67 = vector.broadcast %cst_72 : f32 to vector<71x128xf32>
    %68 = arith.cmpf oge, %66, %67 : vector<71x128xf32>
    %cst_73 = arith.constant 0.00999999977 : f32
    %69 = vector.broadcast %cst_73 : f32 to vector<71x128xf32>
    %70 = arith.mulf %69, %66 : vector<71x128xf32>
    %71 = arith.select %68, %66, %70 : vector<71x128xi1>, vector<71x128xf32>
    %c0_74 = arith.constant 0 : index
    %c0_75 = arith.constant 0 : index
    %72 = vector.load %arg9[%c0_74, %c0_75] : memref<71x128xf32, #tpu.memory_space<vmem>>, vector<71x128xf32>
    tpu.vector_store %arg9[%c0_74, %c0_75], %71 {strides = array<i32>} : memref<71x128xf32, #tpu.memory_space<vmem>>, vector<71x128xf32>,
    %c0_76 = arith.constant 0 : index
    %c1_77 = arith.constant 1 : index
    %c1_78 = arith.constant 1 : index
    %c0_79 = arith.constant 0 : index
    %c0_80 = arith.constant 0 : index
    %73 = vector.load %arg1[%c0_76, %c1_77, %c1_78, %c0_79, %c0_80] : memref<1x2x2x81x64xf32, #tpu.memory_space<vmem>>, vector<1x1x1x71x64xf32>
    %74 = vector.shape_cast %73 : vector<1x1x1x71x64xf32> to vector<71x64xf32>
    %75 = arith.truncf %74 : vector<71x64xf32> to vector<71x64xbf16>
    %c0_81 = arith.constant 0 : index
    %c0_82 = arith.constant 0 : index
    %76 = vector.load %arg6[%c0_81, %c0_82] : memref<64x128xbf16, #tpu.memory_space<vmem>>, vector<64x128xbf16>
    %cst_83 = arith.constant dense<0.000000e+00> : vector<71x128xf32>
    %77 = tpu.matmul %75, %76, %cst_83 {dimension_numbers = #tpu.dot_dimension_numbers<[1], [0], [0], [1], [0, 0, 1, 1], [], []>} : vector<71x64xbf16>, vector<64x128xbf16>, vector<71x128xf32> -> vector<71x128xf32>
    %c0_84 = arith.constant 0 : index
    %c0_85 = arith.constant 0 : index
    %78 = vector.load %arg7[%c0_84, %c0_85] : memref<1x128xf32, #tpu.memory_space<vmem>>, vector<1x128xf32>
    %79 = vector.broadcast %78 : vector<1x128xf32> to vector<71x128xf32>
    %80 = arith.addf %77, %79 : vector<71x128xf32>
    %c0_86 = arith.constant 0 : index
    %c0_87 = arith.constant 0 : index
    %81 = vector.load %arg10[%c0_86, %c0_87] : memref<71x128xf32, #tpu.memory_space<vmem>>, vector<71x128xf32>
    tpu.vector_store %arg10[%c0_86, %c0_87], %80 {strides = array<i32>} : memref<71x128xf32, #tpu.memory_space<vmem>>, vector<71x128xf32>,
    %cst_88 = arith.constant 0.000000e+00 : f32
    %82 = vector.broadcast %cst_88 : f32 to vector<100x128xf32>
    %c0_89 = arith.constant 0 : index
    %c0_90 = arith.constant 0 : index
    %83 = vector.load %arg11[%c0_89, %c0_90] : memref<100x128xf32, #tpu.memory_space<vmem>>, vector<100x128xf32>
    tpu.vector_store %arg11[%c0_89, %c0_90], %82 {strides = array<i32>} : memref<100x128xf32, #tpu.memory_space<vmem>>, vector<100x128xf32>,
    %c0_91 = arith.constant 0 : index
    %c0_92 = arith.constant 0 : index
    %84 = vector.load %arg9[%c0_91, %c0_92] : memref<71x128xf32, #tpu.memory_space<vmem>>, vector<8x128xf32>
    %c11 = arith.constant 11 : index
    %c0_93 = arith.constant 0 : index
    %85 = vector.load %arg11[%c11, %c0_93] : memref<100x128xf32, #tpu.memory_space<vmem>>, vector<8x128xf32>
    tpu.vector_store %arg11[%c11, %c0_93], %84 {strides = array<i32>} : memref<100x128xf32, #tpu.memory_space<vmem>>, vector<8x128xf32>,
    %c9_94 = arith.constant 9 : index
    %c0_95 = arith.constant 0 : index
    %86 = vector.load %arg9[%c9_94, %c0_95] : memref<71x128xf32, #tpu.memory_space<vmem>>, vector<8x128xf32>
    %c21 = arith.constant 21 : index
    %c0_96 = arith.constant 0 : index
    %87 = vector.load %arg11[%c21, %c0_96] : memref<100x128xf32, #tpu.memory_space<vmem>>, vector<8x128xf32>
    tpu.vector_store %arg11[%c21, %c0_96], %86 {strides = array<i32>} : memref<100x128xf32, #tpu.memory_space<vmem>>, vector<8x128xf32>,
    %c18 = arith.constant 18 : index
    %c0_97 = arith.constant 0 : index
    %88 = vector.load %arg9[%c18, %c0_97] : memref<71x128xf32, #tpu.memory_space<vmem>>, vector<8x128xf32>
    %c31 = arith.constant 31 : index
    %c0_98 = arith.constant 0 : index
    %89 = vector.load %arg11[%c31, %c0_98] : memref<100x128xf32, #tpu.memory_space<vmem>>, vector<8x128xf32>
    tpu.vector_store %arg11[%c31, %c0_98], %88 {strides = array<i32>} : memref<100x128xf32, #tpu.memory_space<vmem>>, vector<8x128xf32>,
    %c27 = arith.constant 27 : index
    %c0_99 = arith.constant 0 : index
    %90 = vector.load %arg9[%c27, %c0_99] : memref<71x128xf32, #tpu.memory_space<vmem>>, vector<8x128xf32>
    %c41 = arith.constant 41 : index
    %c0_100 = arith.constant 0 : index
    %91 = vector.load %arg11[%c41, %c0_100] : memref<100x128xf32, #tpu.memory_space<vmem>>, vector<8x128xf32>
    tpu.vector_store %arg11[%c41, %c0_100], %90 {strides = array<i32>} : memref<100x128xf32, #tpu.memory_space<vmem>>, vector<8x128xf32>,
    %c36 = arith.constant 36 : index
    %c0_101 = arith.constant 0 : index
    %92 = vector.load %arg9[%c36, %c0_101] : memref<71x128xf32, #tpu.memory_space<vmem>>, vector<8x128xf32>
    %c51 = arith.constant 51 : index
    %c0_102 = arith.constant 0 : index
    %93 = vector.load %arg11[%c51, %c0_102] : memref<100x128xf32, #tpu.memory_space<vmem>>, vector<8x128xf32>
    tpu.vector_store %arg11[%c51, %c0_102], %92 {strides = array<i32>} : memref<100x128xf32, #tpu.memory_space<vmem>>, vector<8x128xf32>,
    %c45 = arith.constant 45 : index
    %c0_103 = arith.constant 0 : index
    %94 = vector.load %arg9[%c45, %c0_103] : memref<71x128xf32, #tpu.memory_space<vmem>>, vector<8x128xf32>
    %c61 = arith.constant 61 : index
    %c0_104 = arith.constant 0 : index
    %95 = vector.load %arg11[%c61, %c0_104] : memref<100x128xf32, #tpu.memory_space<vmem>>, vector<8x128xf32>
    tpu.vector_store %arg11[%c61, %c0_104], %94 {strides = array<i32>} : memref<100x128xf32, #tpu.memory_space<vmem>>, vector<8x128xf32>,
    %c54 = arith.constant 54 : index
    %c0_105 = arith.constant 0 : index
    %96 = vector.load %arg9[%c54, %c0_105] : memref<71x128xf32, #tpu.memory_space<vmem>>, vector<8x128xf32>
    %c71 = arith.constant 71 : index
    %c0_106 = arith.constant 0 : index
    %97 = vector.load %arg11[%c71, %c0_106] : memref<100x128xf32, #tpu.memory_space<vmem>>, vector<8x128xf32>
    tpu.vector_store %arg11[%c71, %c0_106], %96 {strides = array<i32>} : memref<100x128xf32, #tpu.memory_space<vmem>>, vector<8x128xf32>,
    %c63 = arith.constant 63 : index
    %c0_107 = arith.constant 0 : index
    %98 = vector.load %arg9[%c63, %c0_107] : memref<71x128xf32, #tpu.memory_space<vmem>>, vector<8x128xf32>
    %c81 = arith.constant 81 : index
    %c0_108 = arith.constant 0 : index
    %99 = vector.load %arg11[%c81, %c0_108] : memref<100x128xf32, #tpu.memory_space<vmem>>, vector<8x128xf32>
    tpu.vector_store %arg11[%c81, %c0_108], %98 {strides = array<i32>} : memref<100x128xf32, #tpu.memory_space<vmem>>, vector<8x128xf32>,
    %cst_109 = arith.constant 0.000000e+00 : f32
    %100 = vector.broadcast %cst_109 : f32 to vector<78x128xf32>
    %c0_110 = arith.constant 0 : index
    %c0_111 = arith.constant 0 : index
    %101 = vector.load %arg11[%c0_110, %c0_111] : memref<100x128xf32, #tpu.memory_space<vmem>>, vector<78x128xf32>
    %102 = arith.truncf %101 : vector<78x128xf32> to vector<78x128xbf16>
    %c0_112 = arith.constant 0 : index
    %c0_113 = arith.constant 0 : index
    %c0_114 = arith.constant 0 : index
    %103 = vector.load %arg4[%c0_112, %c0_113, %c0_114] : memref<9x128x128xbf16, #tpu.memory_space<vmem>>, vector<1x128x128xbf16>
    %104 = vector.shape_cast %103 : vector<1x128x128xbf16> to vector<128x128xbf16>
    %cst_115 = arith.constant dense<0.000000e+00> : vector<78x128xf32>
    %105 = tpu.matmul %102, %104, %cst_115 {dimension_numbers = #tpu.dot_dimension_numbers<[1], [0], [0], [1], [0, 0, 1, 1], [], []>} : vector<78x128xbf16>, vector<128x128xbf16>, vector<78x128xf32> -> vector<78x128xf32>
    %106 = arith.addf %100, %105 : vector<78x128xf32>
    %c1_116 = arith.constant 1 : index
    %c0_117 = arith.constant 0 : index
    %107 = vector.load %arg11[%c1_116, %c0_117] : memref<100x128xf32, #tpu.memory_space<vmem>>, vector<78x128xf32>
    %108 = arith.truncf %107 : vector<78x128xf32> to vector<78x128xbf16>
    %c1_118 = arith.constant 1 : index
    %c0_119 = arith.constant 0 : index
    %c0_120 = arith.constant 0 : index
    %109 = vector.load %arg4[%c1_118, %c0_119, %c0_120] : memref<9x128x128xbf16, #tpu.memory_space<vmem>>, vector<1x128x128xbf16>
    %110 = vector.shape_cast %109 : vector<1x128x128xbf16> to vector<128x128xbf16>
    %cst_121 = arith.constant dense<0.000000e+00> : vector<78x128xf32>
    %111 = tpu.matmul %108, %110, %cst_121 {dimension_numbers = #tpu.dot_dimension_numbers<[1], [0], [0], [1], [0, 0, 1, 1], [], []>} : vector<78x128xbf16>, vector<128x128xbf16>, vector<78x128xf32> -> vector<78x128xf32>
    %112 = arith.addf %106, %111 : vector<78x128xf32>
    %c2_122 = arith.constant 2 : index
    %c0_123 = arith.constant 0 : index
    %113 = vector.load %arg11[%c2_122, %c0_123] : memref<100x128xf32, #tpu.memory_space<vmem>>, vector<78x128xf32>
    %114 = arith.truncf %113 : vector<78x128xf32> to vector<78x128xbf16>
    %c2_124 = arith.constant 2 : index
    %c0_125 = arith.constant 0 : index
    %c0_126 = arith.constant 0 : index
    %115 = vector.load %arg4[%c2_124, %c0_125, %c0_126] : memref<9x128x128xbf16, #tpu.memory_space<vmem>>, vector<1x128x128xbf16>
    %116 = vector.shape_cast %115 : vector<1x128x128xbf16> to vector<128x128xbf16>
    %cst_127 = arith.constant dense<0.000000e+00> : vector<78x128xf32>
    %117 = tpu.matmul %114, %116, %cst_127 {dimension_numbers = #tpu.dot_dimension_numbers<[1], [0], [0], [1], [0, 0, 1, 1], [], []>} : vector<78x128xbf16>, vector<128x128xbf16>, vector<78x128xf32> -> vector<78x128xf32>
    %118 = arith.addf %112, %117 : vector<78x128xf32>
    %c10_128 = arith.constant 10 : index
    %c0_129 = arith.constant 0 : index
    %119 = vector.load %arg11[%c10_128, %c0_129] : memref<100x128xf32, #tpu.memory_space<vmem>>, vector<78x128xf32>
    %120 = arith.truncf %119 : vector<78x128xf32> to vector<78x128xbf16>
    %c3_130 = arith.constant 3 : index
    %c0_131 = arith.constant 0 : index
    %c0_132 = arith.constant 0 : index
    %121 = vector.load %arg4[%c3_130, %c0_131, %c0_132] : memref<9x128x128xbf16, #tpu.memory_space<vmem>>, vector<1x128x128xbf16>
    %122 = vector.shape_cast %121 : vector<1x128x128xbf16> to vector<128x128xbf16>
    %cst_133 = arith.constant dense<0.000000e+00> : vector<78x128xf32>
    %123 = tpu.matmul %120, %122, %cst_133 {dimension_numbers = #tpu.dot_dimension_numbers<[1], [0], [0], [1], [0, 0, 1, 1], [], []>} : vector<78x128xbf16>, vector<128x128xbf16>, vector<78x128xf32> -> vector<78x128xf32>
    %124 = arith.addf %118, %123 : vector<78x128xf32>
    %c11_134 = arith.constant 11 : index
    %c0_135 = arith.constant 0 : index
    %125 = vector.load %arg11[%c11_134, %c0_135] : memref<100x128xf32, #tpu.memory_space<vmem>>, vector<78x128xf32>
    %126 = arith.truncf %125 : vector<78x128xf32> to vector<78x128xbf16>
    %c4_136 = arith.constant 4 : index
    %c0_137 = arith.constant 0 : index
    %c0_138 = arith.constant 0 : index
    %127 = vector.load %arg4[%c4_136, %c0_137, %c0_138] : memref<9x128x128xbf16, #tpu.memory_space<vmem>>, vector<1x128x128xbf16>
    %128 = vector.shape_cast %127 : vector<1x128x128xbf16> to vector<128x128xbf16>
    %cst_139 = arith.constant dense<0.000000e+00> : vector<78x128xf32>
    %129 = tpu.matmul %126, %128, %cst_139 {dimension_numbers = #tpu.dot_dimension_numbers<[1], [0], [0], [1], [0, 0, 1, 1], [], []>} : vector<78x128xbf16>, vector<128x128xbf16>, vector<78x128xf32> -> vector<78x128xf32>
    %130 = arith.addf %124, %129 : vector<78x128xf32>
    %c12 = arith.constant 12 : index
    %c0_140 = arith.constant 0 : index
    %131 = vector.load %arg11[%c12, %c0_140] : memref<100x128xf32, #tpu.memory_space<vmem>>, vector<78x128xf32>
    %132 = arith.truncf %131 : vector<78x128xf32> to vector<78x128xbf16>
    %c5_141 = arith.constant 5 : index
    %c0_142 = arith.constant 0 : index
    %c0_143 = arith.constant 0 : index
    %133 = vector.load %arg4[%c5_141, %c0_142, %c0_143] : memref<9x128x128xbf16, #tpu.memory_space<vmem>>, vector<1x128x128xbf16>
    %134 = vector.shape_cast %133 : vector<1x128x128xbf16> to vector<128x128xbf16>
    %cst_144 = arith.constant dense<0.000000e+00> : vector<78x128xf32>
    %135 = tpu.matmul %132, %134, %cst_144 {dimension_numbers = #tpu.dot_dimension_numbers<[1], [0], [0], [1], [0, 0, 1, 1], [], []>} : vector<78x128xbf16>, vector<128x128xbf16>, vector<78x128xf32> -> vector<78x128xf32>
    %136 = arith.addf %130, %135 : vector<78x128xf32>
    %c20 = arith.constant 20 : index
    %c0_145 = arith.constant 0 : index
    %137 = vector.load %arg11[%c20, %c0_145] : memref<100x128xf32, #tpu.memory_space<vmem>>, vector<78x128xf32>
    %138 = arith.truncf %137 : vector<78x128xf32> to vector<78x128xbf16>
    %c6_146 = arith.constant 6 : index
    %c0_147 = arith.constant 0 : index
    %c0_148 = arith.constant 0 : index
    %139 = vector.load %arg4[%c6_146, %c0_147, %c0_148] : memref<9x128x128xbf16, #tpu.memory_space<vmem>>, vector<1x128x128xbf16>
    %140 = vector.shape_cast %139 : vector<1x128x128xbf16> to vector<128x128xbf16>
    %cst_149 = arith.constant dense<0.000000e+00> : vector<78x128xf32>
    %141 = tpu.matmul %138, %140, %cst_149 {dimension_numbers = #tpu.dot_dimension_numbers<[1], [0], [0], [1], [0, 0, 1, 1], [], []>} : vector<78x128xbf16>, vector<128x128xbf16>, vector<78x128xf32> -> vector<78x128xf32>
    %142 = arith.addf %136, %141 : vector<78x128xf32>
    %c21_150 = arith.constant 21 : index
    %c0_151 = arith.constant 0 : index
    %143 = vector.load %arg11[%c21_150, %c0_151] : memref<100x128xf32, #tpu.memory_space<vmem>>, vector<78x128xf32>
    %144 = arith.truncf %143 : vector<78x128xf32> to vector<78x128xbf16>
    %c7_152 = arith.constant 7 : index
    %c0_153 = arith.constant 0 : index
    %c0_154 = arith.constant 0 : index
    %145 = vector.load %arg4[%c7_152, %c0_153, %c0_154] : memref<9x128x128xbf16, #tpu.memory_space<vmem>>, vector<1x128x128xbf16>
    %146 = vector.shape_cast %145 : vector<1x128x128xbf16> to vector<128x128xbf16>
    %cst_155 = arith.constant dense<0.000000e+00> : vector<78x128xf32>
    %147 = tpu.matmul %144, %146, %cst_155 {dimension_numbers = #tpu.dot_dimension_numbers<[1], [0], [0], [1], [0, 0, 1, 1], [], []>} : vector<78x128xbf16>, vector<128x128xbf16>, vector<78x128xf32> -> vector<78x128xf32>
    %148 = arith.addf %142, %147 : vector<78x128xf32>
    %c22 = arith.constant 22 : index
    %c0_156 = arith.constant 0 : index
    %149 = vector.load %arg11[%c22, %c0_156] : memref<100x128xf32, #tpu.memory_space<vmem>>, vector<78x128xf32>
    %150 = arith.truncf %149 : vector<78x128xf32> to vector<78x128xbf16>
    %c8_157 = arith.constant 8 : index
    %c0_158 = arith.constant 0 : index
    %c0_159 = arith.constant 0 : index
    %151 = vector.load %arg4[%c8_157, %c0_158, %c0_159] : memref<9x128x128xbf16, #tpu.memory_space<vmem>>, vector<1x128x128xbf16>
    %152 = vector.shape_cast %151 : vector<1x128x128xbf16> to vector<128x128xbf16>
    %cst_160 = arith.constant dense<0.000000e+00> : vector<78x128xf32>
    %153 = tpu.matmul %150, %152, %cst_160 {dimension_numbers = #tpu.dot_dimension_numbers<[1], [0], [0], [1], [0, 0, 1, 1], [], []>} : vector<78x128xbf16>, vector<128x128xbf16>, vector<78x128xf32> -> vector<78x128xf32>
    %154 = arith.addf %148, %153 : vector<78x128xf32>
    %c0_161 = arith.constant 0 : index
    %c0_162 = arith.constant 0 : index
    %155 = vector.load %arg5[%c0_161, %c0_162] : memref<1x128xf32, #tpu.memory_space<vmem>>, vector<1x128xf32>
    %156 = vector.broadcast %155 : vector<1x128xf32> to vector<78x128xf32>
    %157 = arith.addf %154, %156 : vector<78x128xf32>
    %c0_163 = arith.constant 0 : index
    %c0_164 = arith.constant 0 : index
    %158 = vector.load %arg12[%c0_163, %c0_164] : memref<78x128xf32, #tpu.memory_space<vmem>>, vector<78x128xf32>
    tpu.vector_store %arg12[%c0_163, %c0_164], %157 {strides = array<i32>} : memref<78x128xf32, #tpu.memory_space<vmem>>, vector<78x128xf32>,
    %c0_165 = arith.constant 0 : index
    %c0_166 = arith.constant 0 : index
    %159 = vector.load %arg12[%c0_165, %c0_166] : memref<78x128xf32, #tpu.memory_space<vmem>>, vector<8x128xf32>
    %c0_167 = arith.constant 0 : index
    %c0_168 = arith.constant 0 : index
    %160 = vector.load %arg10[%c0_167, %c0_168] : memref<71x128xf32, #tpu.memory_space<vmem>>, vector<8x128xf32>
    %161 = arith.addf %159, %160 : vector<8x128xf32>
    %cst_169 = arith.constant 0.000000e+00 : f32
    %162 = vector.broadcast %cst_169 : f32 to vector<8x128xf32>
    %163 = arith.cmpf oge, %161, %162 : vector<8x128xf32>
    %cst_170 = arith.constant 0.00999999977 : f32
    %164 = vector.broadcast %cst_170 : f32 to vector<8x128xf32>
    %165 = arith.mulf %164, %161 : vector<8x128xf32>
    %166 = arith.select %163, %161, %165 : vector<8x128xi1>, vector<8x128xf32>
    %c0_171 = arith.constant 0 : index
    %c0_172 = arith.constant 0 : index
    %c0_173 = arith.constant 0 : index
    %167 = vector.load %arg8[%c0_171, %c0_172, %c0_173] : memref<1x64x128xf32, #tpu.memory_space<vmem>>, vector<1x8x128xf32>
    %168 = vector.shape_cast %167 : vector<1x8x128xf32> to vector<8x128xf32>
    %169 = vector.shape_cast %166 : vector<8x128xf32> to vector<1x8x128xf32>
    tpu.vector_store %arg8[%c0_171, %c0_172, %c0_173], %169 {strides = array<i32>} : memref<1x64x128xf32, #tpu.memory_space<vmem>>, vector<1x8x128xf32>,
    %c10_174 = arith.constant 10 : index
    %c0_175 = arith.constant 0 : index
    %170 = vector.load %arg12[%c10_174, %c0_175] : memref<78x128xf32, #tpu.memory_space<vmem>>, vector<8x128xf32>
    %c9_176 = arith.constant 9 : index
    %c0_177 = arith.constant 0 : index
    %171 = vector.load %arg10[%c9_176, %c0_177] : memref<71x128xf32, #tpu.memory_space<vmem>>, vector<8x128xf32>
    %172 = arith.addf %170, %171 : vector<8x128xf32>
    %cst_178 = arith.constant 0.000000e+00 : f32
    %173 = vector.broadcast %cst_178 : f32 to vector<8x128xf32>
    %174 = arith.cmpf oge, %172, %173 : vector<8x128xf32>
    %cst_179 = arith.constant 0.00999999977 : f32
    %175 = vector.broadcast %cst_179 : f32 to vector<8x128xf32>
    %176 = arith.mulf %175, %172 : vector<8x128xf32>
    %177 = arith.select %174, %172, %176 : vector<8x128xi1>, vector<8x128xf32>
    %c0_180 = arith.constant 0 : index
    %c8_181 = arith.constant 8 : index
    %c0_182 = arith.constant 0 : index
    %178 = vector.load %arg8[%c0_180, %c8_181, %c0_182] : memref<1x64x128xf32, #tpu.memory_space<vmem>>, vector<1x8x128xf32>
    %179 = vector.shape_cast %178 : vector<1x8x128xf32> to vector<8x128xf32>
    %180 = vector.shape_cast %177 : vector<8x128xf32> to vector<1x8x128xf32>
    tpu.vector_store %arg8[%c0_180, %c8_181, %c0_182], %180 {strides = array<i32>} : memref<1x64x128xf32, #tpu.memory_space<vmem>>, vector<1x8x128xf32>,
    %c20_183 = arith.constant 20 : index
    %c0_184 = arith.constant 0 : index
    %181 = vector.load %arg12[%c20_183, %c0_184] : memref<78x128xf32, #tpu.memory_space<vmem>>, vector<8x128xf32>
    %c18_185 = arith.constant 18 : index
    %c0_186 = arith.constant 0 : index
    %182 = vector.load %arg10[%c18_185, %c0_186] : memref<71x128xf32, #tpu.memory_space<vmem>>, vector<8x128xf32>
    %183 = arith.addf %181, %182 : vector<8x128xf32>
    %cst_187 = arith.constant 0.000000e+00 : f32
    %184 = vector.broadcast %cst_187 : f32 to vector<8x128xf32>
    %185 = arith.cmpf oge, %183, %184 : vector<8x128xf32>
    %cst_188 = arith.constant 0.00999999977 : f32
    %186 = vector.broadcast %cst_188 : f32 to vector<8x128xf32>
    %187 = arith.mulf %186, %183 : vector<8x128xf32>
    %188 = arith.select %185, %183, %187 : vector<8x128xi1>, vector<8x128xf32>
    %c0_189 = arith.constant 0 : index
    %c16 = arith.constant 16 : index
    %c0_190 = arith.constant 0 : index
    %189 = vector.load %arg8[%c0_189, %c16, %c0_190] : memref<1x64x128xf32, #tpu.memory_space<vmem>>, vector<1x8x128xf32>
    %190 = vector.shape_cast %189 : vector<1x8x128xf32> to vector<8x128xf32>
    %191 = vector.shape_cast %188 : vector<8x128xf32> to vector<1x8x128xf32>
    tpu.vector_store %arg8[%c0_189, %c16, %c0_190], %191 {strides = array<i32>} : memref<1x64x128xf32, #tpu.memory_space<vmem>>, vector<1x8x128xf32>,
    %c30 = arith.constant 30 : index
    %c0_191 = arith.constant 0 : index
    %192 = vector.load %arg12[%c30, %c0_191] : memref<78x128xf32, #tpu.memory_space<vmem>>, vector<8x128xf32>
    %c27_192 = arith.constant 27 : index
    %c0_193 = arith.constant 0 : index
    %193 = vector.load %arg10[%c27_192, %c0_193] : memref<71x128xf32, #tpu.memory_space<vmem>>, vector<8x128xf32>
    %194 = arith.addf %192, %193 : vector<8x128xf32>
    %cst_194 = arith.constant 0.000000e+00 : f32
    %195 = vector.broadcast %cst_194 : f32 to vector<8x128xf32>
    %196 = arith.cmpf oge, %194, %195 : vector<8x128xf32>
    %cst_195 = arith.constant 0.00999999977 : f32
    %197 = vector.broadcast %cst_195 : f32 to vector<8x128xf32>
    %198 = arith.mulf %197, %194 : vector<8x128xf32>
    %199 = arith.select %196, %194, %198 : vector<8x128xi1>, vector<8x128xf32>
    %c0_196 = arith.constant 0 : index
    %c24 = arith.constant 24 : index
    %c0_197 = arith.constant 0 : index
    %200 = vector.load %arg8[%c0_196, %c24, %c0_197] : memref<1x64x128xf32, #tpu.memory_space<vmem>>, vector<1x8x128xf32>
    %201 = vector.shape_cast %200 : vector<1x8x128xf32> to vector<8x128xf32>
    %202 = vector.shape_cast %199 : vector<8x128xf32> to vector<1x8x128xf32>
    tpu.vector_store %arg8[%c0_196, %c24, %c0_197], %202 {strides = array<i32>} : memref<1x64x128xf32, #tpu.memory_space<vmem>>, vector<1x8x128xf32>,
    %c40 = arith.constant 40 : index
    %c0_198 = arith.constant 0 : index
    %203 = vector.load %arg12[%c40, %c0_198] : memref<78x128xf32, #tpu.memory_space<vmem>>, vector<8x128xf32>
    %c36_199 = arith.constant 36 : index
    %c0_200 = arith.constant 0 : index
    %204 = vector.load %arg10[%c36_199, %c0_200] : memref<71x128xf32, #tpu.memory_space<vmem>>, vector<8x128xf32>
    %205 = arith.addf %203, %204 : vector<8x128xf32>
    %cst_201 = arith.constant 0.000000e+00 : f32
    %206 = vector.broadcast %cst_201 : f32 to vector<8x128xf32>
    %207 = arith.cmpf oge, %205, %206 : vector<8x128xf32>
    %cst_202 = arith.constant 0.00999999977 : f32
    %208 = vector.broadcast %cst_202 : f32 to vector<8x128xf32>
    %209 = arith.mulf %208, %205 : vector<8x128xf32>
    %210 = arith.select %207, %205, %209 : vector<8x128xi1>, vector<8x128xf32>
    %c0_203 = arith.constant 0 : index
    %c32 = arith.constant 32 : index
    %c0_204 = arith.constant 0 : index
    %211 = vector.load %arg8[%c0_203, %c32, %c0_204] : memref<1x64x128xf32, #tpu.memory_space<vmem>>, vector<1x8x128xf32>
    %212 = vector.shape_cast %211 : vector<1x8x128xf32> to vector<8x128xf32>
    %213 = vector.shape_cast %210 : vector<8x128xf32> to vector<1x8x128xf32>
    tpu.vector_store %arg8[%c0_203, %c32, %c0_204], %213 {strides = array<i32>} : memref<1x64x128xf32, #tpu.memory_space<vmem>>, vector<1x8x128xf32>,
    %c50 = arith.constant 50 : index
    %c0_205 = arith.constant 0 : index
    %214 = vector.load %arg12[%c50, %c0_205] : memref<78x128xf32, #tpu.memory_space<vmem>>, vector<8x128xf32>
    %c45_206 = arith.constant 45 : index
    %c0_207 = arith.constant 0 : index
    %215 = vector.load %arg10[%c45_206, %c0_207] : memref<71x128xf32, #tpu.memory_space<vmem>>, vector<8x128xf32>
    %216 = arith.addf %214, %215 : vector<8x128xf32>
    %cst_208 = arith.constant 0.000000e+00 : f32
    %217 = vector.broadcast %cst_208 : f32 to vector<8x128xf32>
    %218 = arith.cmpf oge, %216, %217 : vector<8x128xf32>
    %cst_209 = arith.constant 0.00999999977 : f32
    %219 = vector.broadcast %cst_209 : f32 to vector<8x128xf32>
    %220 = arith.mulf %219, %216 : vector<8x128xf32>
    %221 = arith.select %218, %216, %220 : vector<8x128xi1>, vector<8x128xf32>
    %c0_210 = arith.constant 0 : index
    %c40_211 = arith.constant 40 : index
    %c0_212 = arith.constant 0 : index
    %222 = vector.load %arg8[%c0_210, %c40_211, %c0_212] : memref<1x64x128xf32, #tpu.memory_space<vmem>>, vector<1x8x128xf32>
    %223 = vector.shape_cast %222 : vector<1x8x128xf32> to vector<8x128xf32>
    %224 = vector.shape_cast %221 : vector<8x128xf32> to vector<1x8x128xf32>
    tpu.vector_store %arg8[%c0_210, %c40_211, %c0_212], %224 {strides = array<i32>} : memref<1x64x128xf32, #tpu.memory_space<vmem>>, vector<1x8x128xf32>,
    %c60 = arith.constant 60 : index
    %c0_213 = arith.constant 0 : index
    %225 = vector.load %arg12[%c60, %c0_213] : memref<78x128xf32, #tpu.memory_space<vmem>>, vector<8x128xf32>
    %c54_214 = arith.constant 54 : index
    %c0_215 = arith.constant 0 : index
    %226 = vector.load %arg10[%c54_214, %c0_215] : memref<71x128xf32, #tpu.memory_space<vmem>>, vector<8x128xf32>
    %227 = arith.addf %225, %226 : vector<8x128xf32>
    %cst_216 = arith.constant 0.000000e+00 : f32
    %228 = vector.broadcast %cst_216 : f32 to vector<8x128xf32>
    %229 = arith.cmpf oge, %227, %228 : vector<8x128xf32>
    %cst_217 = arith.constant 0.00999999977 : f32
    %230 = vector.broadcast %cst_217 : f32 to vector<8x128xf32>
    %231 = arith.mulf %230, %227 : vector<8x128xf32>
    %232 = arith.select %229, %227, %231 : vector<8x128xi1>, vector<8x128xf32>
    %c0_218 = arith.constant 0 : index
    %c48 = arith.constant 48 : index
    %c0_219 = arith.constant 0 : index
    %233 = vector.load %arg8[%c0_218, %c48, %c0_219] : memref<1x64x128xf32, #tpu.memory_space<vmem>>, vector<1x8x128xf32>
    %234 = vector.shape_cast %233 : vector<1x8x128xf32> to vector<8x128xf32>
    %235 = vector.shape_cast %232 : vector<8x128xf32> to vector<1x8x128xf32>
    tpu.vector_store %arg8[%c0_218, %c48, %c0_219], %235 {strides = array<i32>} : memref<1x64x128xf32, #tpu.memory_space<vmem>>, vector<1x8x128xf32>,
    %c70 = arith.constant 70 : index
    %c0_220 = arith.constant 0 : index
    %236 = vector.load %arg12[%c70, %c0_220] : memref<78x128xf32, #tpu.memory_space<vmem>>, vector<8x128xf32>
    %c63_221 = arith.constant 63 : index
    %c0_222 = arith.constant 0 : index
    %237 = vector.load %arg10[%c63_221, %c0_222] : memref<71x128xf32, #tpu.memory_space<vmem>>, vector<8x128xf32>
    %238 = arith.addf %236, %237 : vector<8x128xf32>
    %cst_223 = arith.constant 0.000000e+00 : f32
    %239 = vector.broadcast %cst_223 : f32 to vector<8x128xf32>
    %240 = arith.cmpf oge, %238, %239 : vector<8x128xf32>
    %cst_224 = arith.constant 0.00999999977 : f32
    %241 = vector.broadcast %cst_224 : f32 to vector<8x128xf32>
    %242 = arith.mulf %241, %238 : vector<8x128xf32>
    %243 = arith.select %240, %238, %242 : vector<8x128xi1>, vector<8x128xf32>
    %c0_225 = arith.constant 0 : index
    %c56 = arith.constant 56 : index
    %c0_226 = arith.constant 0 : index
    %244 = vector.load %arg8[%c0_225, %c56, %c0_226] : memref<1x64x128xf32, #tpu.memory_space<vmem>>, vector<1x8x128xf32>
    %245 = vector.shape_cast %244 : vector<1x8x128xf32> to vector<8x128xf32>
    %246 = vector.shape_cast %243 : vector<8x128xf32> to vector<1x8x128xf32>
    tpu.vector_store %arg8[%c0_225, %c56, %c0_226], %246 {strides = array<i32>} : memref<1x64x128xf32, #tpu.memory_space<vmem>>, vector<1x8x128xf32>,
    return
  }
  func.func @transform_0(%arg0: i32) -> (i32, i32, i32, i32, i32) {
    %c0_i32 = arith.constant 0 : i32
    %c0_i32_0 = arith.constant 0 : i32
    %c0_i32_1 = arith.constant 0 : i32
    %c0_i32_2 = arith.constant 0 : i32
    %c0_i32_3 = arith.constant 0 : i32
    return %arg0, %c0_i32, %c0_i32_0, %c0_i32_1, %c0_i32_2 : i32, i32, i32, i32, i32
  }
  func.func @transform_1(%arg0: i32) -> (i32, i32, i32) {
    %c0_i32 = arith.constant 0 : i32
    %c0_i32_0 = arith.constant 0 : i32
    %c0_i32_1 = arith.constant 0 : i32
    %c0_i32_2 = arith.constant 0 : i32
    return %c0_i32, %c0_i32_0, %c0_i32_1 : i32, i32, i32
  }
  func.func @transform_2(%arg0: i32) -> (i32, i32) {
    %c0_i32 = arith.constant 0 : i32
    %c0_i32_0 = arith.constant 0 : i32
    %c0_i32_1 = arith.constant 0 : i32
    return %c0_i32, %c0_i32_0 : i32, i32
  }
  func.func @transform_3(%arg0: i32) -> (i32, i32, i32) {
    %c0_i32 = arith.constant 0 : i32
    %c0_i32_0 = arith.constant 0 : i32
    %c0_i32_1 = arith.constant 0 : i32
    %c0_i32_2 = arith.constant 0 : i32
    return %c0_i32, %c0_i32_0, %c0_i32_1 : i32, i32, i32
  }
  func.func @transform_4(%arg0: i32) -> (i32, i32) {
    %c0_i32 = arith.constant 0 : i32
    %c0_i32_0 = arith.constant 0 : i32
    %c0_i32_1 = arith.constant 0 : i32
    return %c0_i32, %c0_i32_0 : i32, i32
  }
  func.func @transform_5(%arg0: i32) -> (i32, i32) {
    %c0_i32 = arith.constant 0 : i32
    %c0_i32_0 = arith.constant 0 : i32
    %c0_i32_1 = arith.constant 0 : i32
    return %c0_i32, %c0_i32_0 : i32, i32
  }
  func.func @transform_6(%arg0: i32) -> (i32, i32) {
    %c0_i32 = arith.constant 0 : i32
    %c0_i32_0 = arith.constant 0 : i32
    %c0_i32_1 = arith.constant 0 : i32
    return %c0_i32, %c0_i32_0 : i32, i32
  }
  func.func @transform_7(%arg0: i32) -> (i32, i32, i32) {
    %c0_i32 = arith.constant 0 : i32
    %c0_i32_0 = arith.constant 0 : i32
    %c0_i32_1 = arith.constant 0 : i32
    return %arg0, %c0_i32, %c0_i32_0 : i32, i32, i32
  }
}

module attributes {stable_mosaic.version = 11 : i64} {
  func.func @kernel(%arg0: i32, %arg1: memref<1x1x1x100x128xf32, #tpu.memory_space<vmem>>, %arg2: memref<9x128x128xbf16, #tpu.memory_space<vmem>>, %arg3: memref<1x128xf32, #tpu.memory_space<vmem>>, %arg4: memref<9x128x128xbf16, #tpu.memory_space<vmem>>, %arg5: memref<1x128xf32, #tpu.memory_space<vmem>>, %arg6: memref<1x64x128xf32, #tpu.memory_space<vmem>>, %arg7: memref<78x128xf32, #tpu.memory_space<vmem>>, %arg8: memref<78x128xf32, #tpu.memory_space<vmem>>, %arg9: memref<100x128xf32, #tpu.memory_space<vmem>>, %arg10: memref<78x128xf32, #tpu.memory_space<vmem>>) attributes {dimension_semantics = [#tpu.dimension_semantics<parallel>], iteration_bounds = array<i64: 2>, scalar_prefetch = 0 : i64, scratch_operands = 4 : i64, tpu.core_type = #tpu.core_type<tc>, window_params = [{transform_indices = @transform_0, window_bounds = array<i64: 1, 1, 1, 100, 128>}, {pipeline_mode = #tpu.pipeline_mode<synchronous>, transform_indices = @transform_1, window_bounds = array<i64: 9, 128, 128>}, {pipeline_mode = #tpu.pipeline_mode<synchronous>, transform_indices = @transform_2, window_bounds = array<i64: 1, 128>}, {pipeline_mode = #tpu.pipeline_mode<synchronous>, transform_indices = @transform_3, window_bounds = array<i64: 9, 128, 128>}, {pipeline_mode = #tpu.pipeline_mode<synchronous>, transform_indices = @transform_4, window_bounds = array<i64: 1, 128>}, {transform_indices = @transform_5, window_bounds = array<i64: 1, 64, 128>}]} {
    %cst = arith.constant 0.000000e+00 : f32
    %0 = vector.broadcast %cst : f32 to vector<78x128xf32>
    %c0 = arith.constant 0 : index
    %c0_0 = arith.constant 0 : index
    %c0_1 = arith.constant 0 : index
    %c0_2 = arith.constant 0 : index
    %c0_3 = arith.constant 0 : index
    %1 = vector.load %arg1[%c0, %c0_0, %c0_1, %c0_2, %c0_3] : memref<1x1x1x100x128xf32, #tpu.memory_space<vmem>>, vector<1x1x1x78x128xf32>
    %2 = vector.shape_cast %1 : vector<1x1x1x78x128xf32> to vector<78x128xf32>
    %3 = arith.truncf %2 : vector<78x128xf32> to vector<78x128xbf16>
    %c0_4 = arith.constant 0 : index
    %c0_5 = arith.constant 0 : index
    %c0_6 = arith.constant 0 : index
    %4 = vector.load %arg2[%c0_4, %c0_5, %c0_6] : memref<9x128x128xbf16, #tpu.memory_space<vmem>>, vector<1x128x128xbf16>
    %5 = vector.shape_cast %4 : vector<1x128x128xbf16> to vector<128x128xbf16>
    %cst_7 = arith.constant dense<0.000000e+00> : vector<78x128xf32>
    %6 = tpu.matmul %3, %5, %cst_7 {dimension_numbers = #tpu.dot_dimension_numbers<[1], [0], [0], [1], [0, 0, 1, 1], [], []>} : vector<78x128xbf16>, vector<128x128xbf16>, vector<78x128xf32> -> vector<78x128xf32>
    %7 = arith.addf %0, %6 : vector<78x128xf32>
    %c0_8 = arith.constant 0 : index
    %c0_9 = arith.constant 0 : index
    %c0_10 = arith.constant 0 : index
    %c1 = arith.constant 1 : index
    %c0_11 = arith.constant 0 : index
    %8 = vector.load %arg1[%c0_8, %c0_9, %c0_10, %c1, %c0_11] : memref<1x1x1x100x128xf32, #tpu.memory_space<vmem>>, vector<1x1x1x78x128xf32>
    %9 = vector.shape_cast %8 : vector<1x1x1x78x128xf32> to vector<78x128xf32>
    %10 = arith.truncf %9 : vector<78x128xf32> to vector<78x128xbf16>
    %c1_12 = arith.constant 1 : index
    %c0_13 = arith.constant 0 : index
    %c0_14 = arith.constant 0 : index
    %11 = vector.load %arg2[%c1_12, %c0_13, %c0_14] : memref<9x128x128xbf16, #tpu.memory_space<vmem>>, vector<1x128x128xbf16>
    %12 = vector.shape_cast %11 : vector<1x128x128xbf16> to vector<128x128xbf16>
    %cst_15 = arith.constant dense<0.000000e+00> : vector<78x128xf32>
    %13 = tpu.matmul %10, %12, %cst_15 {dimension_numbers = #tpu.dot_dimension_numbers<[1], [0], [0], [1], [0, 0, 1, 1], [], []>} : vector<78x128xbf16>, vector<128x128xbf16>, vector<78x128xf32> -> vector<78x128xf32>
    %14 = arith.addf %7, %13 : vector<78x128xf32>
    %c0_16 = arith.constant 0 : index
    %c0_17 = arith.constant 0 : index
    %c0_18 = arith.constant 0 : index
    %c2 = arith.constant 2 : index
    %c0_19 = arith.constant 0 : index
    %15 = vector.load %arg1[%c0_16, %c0_17, %c0_18, %c2, %c0_19] : memref<1x1x1x100x128xf32, #tpu.memory_space<vmem>>, vector<1x1x1x78x128xf32>
    %16 = vector.shape_cast %15 : vector<1x1x1x78x128xf32> to vector<78x128xf32>
    %17 = arith.truncf %16 : vector<78x128xf32> to vector<78x128xbf16>
    %c2_20 = arith.constant 2 : index
    %c0_21 = arith.constant 0 : index
    %c0_22 = arith.constant 0 : index
    %18 = vector.load %arg2[%c2_20, %c0_21, %c0_22] : memref<9x128x128xbf16, #tpu.memory_space<vmem>>, vector<1x128x128xbf16>
    %19 = vector.shape_cast %18 : vector<1x128x128xbf16> to vector<128x128xbf16>
    %cst_23 = arith.constant dense<0.000000e+00> : vector<78x128xf32>
    %20 = tpu.matmul %17, %19, %cst_23 {dimension_numbers = #tpu.dot_dimension_numbers<[1], [0], [0], [1], [0, 0, 1, 1], [], []>} : vector<78x128xbf16>, vector<128x128xbf16>, vector<78x128xf32> -> vector<78x128xf32>
    %21 = arith.addf %14, %20 : vector<78x128xf32>
    %c0_24 = arith.constant 0 : index
    %c0_25 = arith.constant 0 : index
    %c0_26 = arith.constant 0 : index
    %c10 = arith.constant 10 : index
    %c0_27 = arith.constant 0 : index
    %22 = vector.load %arg1[%c0_24, %c0_25, %c0_26, %c10, %c0_27] : memref<1x1x1x100x128xf32, #tpu.memory_space<vmem>>, vector<1x1x1x78x128xf32>
    %23 = vector.shape_cast %22 : vector<1x1x1x78x128xf32> to vector<78x128xf32>
    %24 = arith.truncf %23 : vector<78x128xf32> to vector<78x128xbf16>
    %c3 = arith.constant 3 : index
    %c0_28 = arith.constant 0 : index
    %c0_29 = arith.constant 0 : index
    %25 = vector.load %arg2[%c3, %c0_28, %c0_29] : memref<9x128x128xbf16, #tpu.memory_space<vmem>>, vector<1x128x128xbf16>
    %26 = vector.shape_cast %25 : vector<1x128x128xbf16> to vector<128x128xbf16>
    %cst_30 = arith.constant dense<0.000000e+00> : vector<78x128xf32>
    %27 = tpu.matmul %24, %26, %cst_30 {dimension_numbers = #tpu.dot_dimension_numbers<[1], [0], [0], [1], [0, 0, 1, 1], [], []>} : vector<78x128xbf16>, vector<128x128xbf16>, vector<78x128xf32> -> vector<78x128xf32>
    %28 = arith.addf %21, %27 : vector<78x128xf32>
    %c0_31 = arith.constant 0 : index
    %c0_32 = arith.constant 0 : index
    %c0_33 = arith.constant 0 : index
    %c11 = arith.constant 11 : index
    %c0_34 = arith.constant 0 : index
    %29 = vector.load %arg1[%c0_31, %c0_32, %c0_33, %c11, %c0_34] : memref<1x1x1x100x128xf32, #tpu.memory_space<vmem>>, vector<1x1x1x78x128xf32>
    %30 = vector.shape_cast %29 : vector<1x1x1x78x128xf32> to vector<78x128xf32>
    %31 = arith.truncf %30 : vector<78x128xf32> to vector<78x128xbf16>
    %c4 = arith.constant 4 : index
    %c0_35 = arith.constant 0 : index
    %c0_36 = arith.constant 0 : index
    %32 = vector.load %arg2[%c4, %c0_35, %c0_36] : memref<9x128x128xbf16, #tpu.memory_space<vmem>>, vector<1x128x128xbf16>
    %33 = vector.shape_cast %32 : vector<1x128x128xbf16> to vector<128x128xbf16>
    %cst_37 = arith.constant dense<0.000000e+00> : vector<78x128xf32>
    %34 = tpu.matmul %31, %33, %cst_37 {dimension_numbers = #tpu.dot_dimension_numbers<[1], [0], [0], [1], [0, 0, 1, 1], [], []>} : vector<78x128xbf16>, vector<128x128xbf16>, vector<78x128xf32> -> vector<78x128xf32>
    %35 = arith.addf %28, %34 : vector<78x128xf32>
    %c0_38 = arith.constant 0 : index
    %c0_39 = arith.constant 0 : index
    %c0_40 = arith.constant 0 : index
    %c12 = arith.constant 12 : index
    %c0_41 = arith.constant 0 : index
    %36 = vector.load %arg1[%c0_38, %c0_39, %c0_40, %c12, %c0_41] : memref<1x1x1x100x128xf32, #tpu.memory_space<vmem>>, vector<1x1x1x78x128xf32>
    %37 = vector.shape_cast %36 : vector<1x1x1x78x128xf32> to vector<78x128xf32>
    %38 = arith.truncf %37 : vector<78x128xf32> to vector<78x128xbf16>
    %c5 = arith.constant 5 : index
    %c0_42 = arith.constant 0 : index
    %c0_43 = arith.constant 0 : index
    %39 = vector.load %arg2[%c5, %c0_42, %c0_43] : memref<9x128x128xbf16, #tpu.memory_space<vmem>>, vector<1x128x128xbf16>
    %40 = vector.shape_cast %39 : vector<1x128x128xbf16> to vector<128x128xbf16>
    %cst_44 = arith.constant dense<0.000000e+00> : vector<78x128xf32>
    %41 = tpu.matmul %38, %40, %cst_44 {dimension_numbers = #tpu.dot_dimension_numbers<[1], [0], [0], [1], [0, 0, 1, 1], [], []>} : vector<78x128xbf16>, vector<128x128xbf16>, vector<78x128xf32> -> vector<78x128xf32>
    %42 = arith.addf %35, %41 : vector<78x128xf32>
    %c0_45 = arith.constant 0 : index
    %c0_46 = arith.constant 0 : index
    %c0_47 = arith.constant 0 : index
    %c20 = arith.constant 20 : index
    %c0_48 = arith.constant 0 : index
    %43 = vector.load %arg1[%c0_45, %c0_46, %c0_47, %c20, %c0_48] : memref<1x1x1x100x128xf32, #tpu.memory_space<vmem>>, vector<1x1x1x78x128xf32>
    %44 = vector.shape_cast %43 : vector<1x1x1x78x128xf32> to vector<78x128xf32>
    %45 = arith.truncf %44 : vector<78x128xf32> to vector<78x128xbf16>
    %c6 = arith.constant 6 : index
    %c0_49 = arith.constant 0 : index
    %c0_50 = arith.constant 0 : index
    %46 = vector.load %arg2[%c6, %c0_49, %c0_50] : memref<9x128x128xbf16, #tpu.memory_space<vmem>>, vector<1x128x128xbf16>
    %47 = vector.shape_cast %46 : vector<1x128x128xbf16> to vector<128x128xbf16>
    %cst_51 = arith.constant dense<0.000000e+00> : vector<78x128xf32>
    %48 = tpu.matmul %45, %47, %cst_51 {dimension_numbers = #tpu.dot_dimension_numbers<[1], [0], [0], [1], [0, 0, 1, 1], [], []>} : vector<78x128xbf16>, vector<128x128xbf16>, vector<78x128xf32> -> vector<78x128xf32>
    %49 = arith.addf %42, %48 : vector<78x128xf32>
    %c0_52 = arith.constant 0 : index
    %c0_53 = arith.constant 0 : index
    %c0_54 = arith.constant 0 : index
    %c21 = arith.constant 21 : index
    %c0_55 = arith.constant 0 : index
    %50 = vector.load %arg1[%c0_52, %c0_53, %c0_54, %c21, %c0_55] : memref<1x1x1x100x128xf32, #tpu.memory_space<vmem>>, vector<1x1x1x78x128xf32>
    %51 = vector.shape_cast %50 : vector<1x1x1x78x128xf32> to vector<78x128xf32>
    %52 = arith.truncf %51 : vector<78x128xf32> to vector<78x128xbf16>
    %c7 = arith.constant 7 : index
    %c0_56 = arith.constant 0 : index
    %c0_57 = arith.constant 0 : index
    %53 = vector.load %arg2[%c7, %c0_56, %c0_57] : memref<9x128x128xbf16, #tpu.memory_space<vmem>>, vector<1x128x128xbf16>
    %54 = vector.shape_cast %53 : vector<1x128x128xbf16> to vector<128x128xbf16>
    %cst_58 = arith.constant dense<0.000000e+00> : vector<78x128xf32>
    %55 = tpu.matmul %52, %54, %cst_58 {dimension_numbers = #tpu.dot_dimension_numbers<[1], [0], [0], [1], [0, 0, 1, 1], [], []>} : vector<78x128xbf16>, vector<128x128xbf16>, vector<78x128xf32> -> vector<78x128xf32>
    %56 = arith.addf %49, %55 : vector<78x128xf32>
    %c0_59 = arith.constant 0 : index
    %c0_60 = arith.constant 0 : index
    %c0_61 = arith.constant 0 : index
    %c22 = arith.constant 22 : index
    %c0_62 = arith.constant 0 : index
    %57 = vector.load %arg1[%c0_59, %c0_60, %c0_61, %c22, %c0_62] : memref<1x1x1x100x128xf32, #tpu.memory_space<vmem>>, vector<1x1x1x78x128xf32>
    %58 = vector.shape_cast %57 : vector<1x1x1x78x128xf32> to vector<78x128xf32>
    %59 = arith.truncf %58 : vector<78x128xf32> to vector<78x128xbf16>
    %c8 = arith.constant 8 : index
    %c0_63 = arith.constant 0 : index
    %c0_64 = arith.constant 0 : index
    %60 = vector.load %arg2[%c8, %c0_63, %c0_64] : memref<9x128x128xbf16, #tpu.memory_space<vmem>>, vector<1x128x128xbf16>
    %61 = vector.shape_cast %60 : vector<1x128x128xbf16> to vector<128x128xbf16>
    %cst_65 = arith.constant dense<0.000000e+00> : vector<78x128xf32>
    %62 = tpu.matmul %59, %61, %cst_65 {dimension_numbers = #tpu.dot_dimension_numbers<[1], [0], [0], [1], [0, 0, 1, 1], [], []>} : vector<78x128xbf16>, vector<128x128xbf16>, vector<78x128xf32> -> vector<78x128xf32>
    %63 = arith.addf %56, %62 : vector<78x128xf32>
    %c0_66 = arith.constant 0 : index
    %c0_67 = arith.constant 0 : index
    %64 = vector.load %arg3[%c0_66, %c0_67] : memref<1x128xf32, #tpu.memory_space<vmem>>, vector<1x128xf32>
    %65 = vector.broadcast %64 : vector<1x128xf32> to vector<78x128xf32>
    %66 = arith.addf %63, %65 : vector<78x128xf32>
    %cst_68 = arith.constant 0.000000e+00 : f32
    %67 = vector.broadcast %cst_68 : f32 to vector<78x128xf32>
    %68 = arith.cmpf oge, %66, %67 : vector<78x128xf32>
    %cst_69 = arith.constant 0.00999999977 : f32
    %69 = vector.broadcast %cst_69 : f32 to vector<78x128xf32>
    %70 = arith.mulf %69, %66 : vector<78x128xf32>
    %71 = arith.select %68, %66, %70 : vector<78x128xi1>, vector<78x128xf32>
    %c0_70 = arith.constant 0 : index
    %c0_71 = arith.constant 0 : index
    %72 = vector.load %arg7[%c0_70, %c0_71] : memref<78x128xf32, #tpu.memory_space<vmem>>, vector<78x128xf32>
    tpu.vector_store %arg7[%c0_70, %c0_71], %71 {strides = array<i32>} : memref<78x128xf32, #tpu.memory_space<vmem>>, vector<78x128xf32>,
    %c0_72 = arith.constant 0 : index
    %c0_73 = arith.constant 0 : index
    %c0_74 = arith.constant 0 : index
    %c11_75 = arith.constant 11 : index
    %c0_76 = arith.constant 0 : index
    %73 = vector.load %arg1[%c0_72, %c0_73, %c0_74, %c11_75, %c0_76] : memref<1x1x1x100x128xf32, #tpu.memory_space<vmem>>, vector<1x1x1x78x128xf32>
    %74 = vector.shape_cast %73 : vector<1x1x1x78x128xf32> to vector<78x128xf32>
    %c0_77 = arith.constant 0 : index
    %c0_78 = arith.constant 0 : index
    %75 = vector.load %arg8[%c0_77, %c0_78] : memref<78x128xf32, #tpu.memory_space<vmem>>, vector<78x128xf32>
    tpu.vector_store %arg8[%c0_77, %c0_78], %74 {strides = array<i32>} : memref<78x128xf32, #tpu.memory_space<vmem>>, vector<78x128xf32>,
    %cst_79 = arith.constant 0.000000e+00 : f32
    %76 = vector.broadcast %cst_79 : f32 to vector<100x128xf32>
    %c0_80 = arith.constant 0 : index
    %c0_81 = arith.constant 0 : index
    %77 = vector.load %arg9[%c0_80, %c0_81] : memref<100x128xf32, #tpu.memory_space<vmem>>, vector<100x128xf32>
    tpu.vector_store %arg9[%c0_80, %c0_81], %76 {strides = array<i32>} : memref<100x128xf32, #tpu.memory_space<vmem>>, vector<100x128xf32>,
    %c0_82 = arith.constant 0 : index
    %c0_83 = arith.constant 0 : index
    %78 = vector.load %arg7[%c0_82, %c0_83] : memref<78x128xf32, #tpu.memory_space<vmem>>, vector<8x128xf32>
    %c11_84 = arith.constant 11 : index
    %c0_85 = arith.constant 0 : index
    %79 = vector.load %arg9[%c11_84, %c0_85] : memref<100x128xf32, #tpu.memory_space<vmem>>, vector<8x128xf32>
    tpu.vector_store %arg9[%c11_84, %c0_85], %78 {strides = array<i32>} : memref<100x128xf32, #tpu.memory_space<vmem>>, vector<8x128xf32>,
    %c10_86 = arith.constant 10 : index
    %c0_87 = arith.constant 0 : index
    %80 = vector.load %arg7[%c10_86, %c0_87] : memref<78x128xf32, #tpu.memory_space<vmem>>, vector<8x128xf32>
    %c21_88 = arith.constant 21 : index
    %c0_89 = arith.constant 0 : index
    %81 = vector.load %arg9[%c21_88, %c0_89] : memref<100x128xf32, #tpu.memory_space<vmem>>, vector<8x128xf32>
    tpu.vector_store %arg9[%c21_88, %c0_89], %80 {strides = array<i32>} : memref<100x128xf32, #tpu.memory_space<vmem>>, vector<8x128xf32>,
    %c20_90 = arith.constant 20 : index
    %c0_91 = arith.constant 0 : index
    %82 = vector.load %arg7[%c20_90, %c0_91] : memref<78x128xf32, #tpu.memory_space<vmem>>, vector<8x128xf32>
    %c31 = arith.constant 31 : index
    %c0_92 = arith.constant 0 : index
    %83 = vector.load %arg9[%c31, %c0_92] : memref<100x128xf32, #tpu.memory_space<vmem>>, vector<8x128xf32>
    tpu.vector_store %arg9[%c31, %c0_92], %82 {strides = array<i32>} : memref<100x128xf32, #tpu.memory_space<vmem>>, vector<8x128xf32>,
    %c30 = arith.constant 30 : index
    %c0_93 = arith.constant 0 : index
    %84 = vector.load %arg7[%c30, %c0_93] : memref<78x128xf32, #tpu.memory_space<vmem>>, vector<8x128xf32>
    %c41 = arith.constant 41 : index
    %c0_94 = arith.constant 0 : index
    %85 = vector.load %arg9[%c41, %c0_94] : memref<100x128xf32, #tpu.memory_space<vmem>>, vector<8x128xf32>
    tpu.vector_store %arg9[%c41, %c0_94], %84 {strides = array<i32>} : memref<100x128xf32, #tpu.memory_space<vmem>>, vector<8x128xf32>,
    %c40 = arith.constant 40 : index
    %c0_95 = arith.constant 0 : index
    %86 = vector.load %arg7[%c40, %c0_95] : memref<78x128xf32, #tpu.memory_space<vmem>>, vector<8x128xf32>
    %c51 = arith.constant 51 : index
    %c0_96 = arith.constant 0 : index
    %87 = vector.load %arg9[%c51, %c0_96] : memref<100x128xf32, #tpu.memory_space<vmem>>, vector<8x128xf32>
    tpu.vector_store %arg9[%c51, %c0_96], %86 {strides = array<i32>} : memref<100x128xf32, #tpu.memory_space<vmem>>, vector<8x128xf32>,
    %c50 = arith.constant 50 : index
    %c0_97 = arith.constant 0 : index
    %88 = vector.load %arg7[%c50, %c0_97] : memref<78x128xf32, #tpu.memory_space<vmem>>, vector<8x128xf32>
    %c61 = arith.constant 61 : index
    %c0_98 = arith.constant 0 : index
    %89 = vector.load %arg9[%c61, %c0_98] : memref<100x128xf32, #tpu.memory_space<vmem>>, vector<8x128xf32>
    tpu.vector_store %arg9[%c61, %c0_98], %88 {strides = array<i32>} : memref<100x128xf32, #tpu.memory_space<vmem>>, vector<8x128xf32>,
    %c60 = arith.constant 60 : index
    %c0_99 = arith.constant 0 : index
    %90 = vector.load %arg7[%c60, %c0_99] : memref<78x128xf32, #tpu.memory_space<vmem>>, vector<8x128xf32>
    %c71 = arith.constant 71 : index
    %c0_100 = arith.constant 0 : index
    %91 = vector.load %arg9[%c71, %c0_100] : memref<100x128xf32, #tpu.memory_space<vmem>>, vector<8x128xf32>
    tpu.vector_store %arg9[%c71, %c0_100], %90 {strides = array<i32>} : memref<100x128xf32, #tpu.memory_space<vmem>>, vector<8x128xf32>,
    %c70 = arith.constant 70 : index
    %c0_101 = arith.constant 0 : index
    %92 = vector.load %arg7[%c70, %c0_101] : memref<78x128xf32, #tpu.memory_space<vmem>>, vector<8x128xf32>
    %c81 = arith.constant 81 : index
    %c0_102 = arith.constant 0 : index
    %93 = vector.load %arg9[%c81, %c0_102] : memref<100x128xf32, #tpu.memory_space<vmem>>, vector<8x128xf32>
    tpu.vector_store %arg9[%c81, %c0_102], %92 {strides = array<i32>} : memref<100x128xf32, #tpu.memory_space<vmem>>, vector<8x128xf32>,
    %cst_103 = arith.constant 0.000000e+00 : f32
    %94 = vector.broadcast %cst_103 : f32 to vector<78x128xf32>
    %c0_104 = arith.constant 0 : index
    %c0_105 = arith.constant 0 : index
    %95 = vector.load %arg9[%c0_104, %c0_105] : memref<100x128xf32, #tpu.memory_space<vmem>>, vector<78x128xf32>
    %96 = arith.truncf %95 : vector<78x128xf32> to vector<78x128xbf16>
    %c0_106 = arith.constant 0 : index
    %c0_107 = arith.constant 0 : index
    %c0_108 = arith.constant 0 : index
    %97 = vector.load %arg4[%c0_106, %c0_107, %c0_108] : memref<9x128x128xbf16, #tpu.memory_space<vmem>>, vector<1x128x128xbf16>
    %98 = vector.shape_cast %97 : vector<1x128x128xbf16> to vector<128x128xbf16>
    %cst_109 = arith.constant dense<0.000000e+00> : vector<78x128xf32>
    %99 = tpu.matmul %96, %98, %cst_109 {dimension_numbers = #tpu.dot_dimension_numbers<[1], [0], [0], [1], [0, 0, 1, 1], [], []>} : vector<78x128xbf16>, vector<128x128xbf16>, vector<78x128xf32> -> vector<78x128xf32>
    %100 = arith.addf %94, %99 : vector<78x128xf32>
    %c1_110 = arith.constant 1 : index
    %c0_111 = arith.constant 0 : index
    %101 = vector.load %arg9[%c1_110, %c0_111] : memref<100x128xf32, #tpu.memory_space<vmem>>, vector<78x128xf32>
    %102 = arith.truncf %101 : vector<78x128xf32> to vector<78x128xbf16>
    %c1_112 = arith.constant 1 : index
    %c0_113 = arith.constant 0 : index
    %c0_114 = arith.constant 0 : index
    %103 = vector.load %arg4[%c1_112, %c0_113, %c0_114] : memref<9x128x128xbf16, #tpu.memory_space<vmem>>, vector<1x128x128xbf16>
    %104 = vector.shape_cast %103 : vector<1x128x128xbf16> to vector<128x128xbf16>
    %cst_115 = arith.constant dense<0.000000e+00> : vector<78x128xf32>
    %105 = tpu.matmul %102, %104, %cst_115 {dimension_numbers = #tpu.dot_dimension_numbers<[1], [0], [0], [1], [0, 0, 1, 1], [], []>} : vector<78x128xbf16>, vector<128x128xbf16>, vector<78x128xf32> -> vector<78x128xf32>
    %106 = arith.addf %100, %105 : vector<78x128xf32>
    %c2_116 = arith.constant 2 : index
    %c0_117 = arith.constant 0 : index
    %107 = vector.load %arg9[%c2_116, %c0_117] : memref<100x128xf32, #tpu.memory_space<vmem>>, vector<78x128xf32>
    %108 = arith.truncf %107 : vector<78x128xf32> to vector<78x128xbf16>
    %c2_118 = arith.constant 2 : index
    %c0_119 = arith.constant 0 : index
    %c0_120 = arith.constant 0 : index
    %109 = vector.load %arg4[%c2_118, %c0_119, %c0_120] : memref<9x128x128xbf16, #tpu.memory_space<vmem>>, vector<1x128x128xbf16>
    %110 = vector.shape_cast %109 : vector<1x128x128xbf16> to vector<128x128xbf16>
    %cst_121 = arith.constant dense<0.000000e+00> : vector<78x128xf32>
    %111 = tpu.matmul %108, %110, %cst_121 {dimension_numbers = #tpu.dot_dimension_numbers<[1], [0], [0], [1], [0, 0, 1, 1], [], []>} : vector<78x128xbf16>, vector<128x128xbf16>, vector<78x128xf32> -> vector<78x128xf32>
    %112 = arith.addf %106, %111 : vector<78x128xf32>
    %c10_122 = arith.constant 10 : index
    %c0_123 = arith.constant 0 : index
    %113 = vector.load %arg9[%c10_122, %c0_123] : memref<100x128xf32, #tpu.memory_space<vmem>>, vector<78x128xf32>
    %114 = arith.truncf %113 : vector<78x128xf32> to vector<78x128xbf16>
    %c3_124 = arith.constant 3 : index
    %c0_125 = arith.constant 0 : index
    %c0_126 = arith.constant 0 : index
    %115 = vector.load %arg4[%c3_124, %c0_125, %c0_126] : memref<9x128x128xbf16, #tpu.memory_space<vmem>>, vector<1x128x128xbf16>
    %116 = vector.shape_cast %115 : vector<1x128x128xbf16> to vector<128x128xbf16>
    %cst_127 = arith.constant dense<0.000000e+00> : vector<78x128xf32>
    %117 = tpu.matmul %114, %116, %cst_127 {dimension_numbers = #tpu.dot_dimension_numbers<[1], [0], [0], [1], [0, 0, 1, 1], [], []>} : vector<78x128xbf16>, vector<128x128xbf16>, vector<78x128xf32> -> vector<78x128xf32>
    %118 = arith.addf %112, %117 : vector<78x128xf32>
    %c11_128 = arith.constant 11 : index
    %c0_129 = arith.constant 0 : index
    %119 = vector.load %arg9[%c11_128, %c0_129] : memref<100x128xf32, #tpu.memory_space<vmem>>, vector<78x128xf32>
    %120 = arith.truncf %119 : vector<78x128xf32> to vector<78x128xbf16>
    %c4_130 = arith.constant 4 : index
    %c0_131 = arith.constant 0 : index
    %c0_132 = arith.constant 0 : index
    %121 = vector.load %arg4[%c4_130, %c0_131, %c0_132] : memref<9x128x128xbf16, #tpu.memory_space<vmem>>, vector<1x128x128xbf16>
    %122 = vector.shape_cast %121 : vector<1x128x128xbf16> to vector<128x128xbf16>
    %cst_133 = arith.constant dense<0.000000e+00> : vector<78x128xf32>
    %123 = tpu.matmul %120, %122, %cst_133 {dimension_numbers = #tpu.dot_dimension_numbers<[1], [0], [0], [1], [0, 0, 1, 1], [], []>} : vector<78x128xbf16>, vector<128x128xbf16>, vector<78x128xf32> -> vector<78x128xf32>
    %124 = arith.addf %118, %123 : vector<78x128xf32>
    %c12_134 = arith.constant 12 : index
    %c0_135 = arith.constant 0 : index
    %125 = vector.load %arg9[%c12_134, %c0_135] : memref<100x128xf32, #tpu.memory_space<vmem>>, vector<78x128xf32>
    %126 = arith.truncf %125 : vector<78x128xf32> to vector<78x128xbf16>
    %c5_136 = arith.constant 5 : index
    %c0_137 = arith.constant 0 : index
    %c0_138 = arith.constant 0 : index
    %127 = vector.load %arg4[%c5_136, %c0_137, %c0_138] : memref<9x128x128xbf16, #tpu.memory_space<vmem>>, vector<1x128x128xbf16>
    %128 = vector.shape_cast %127 : vector<1x128x128xbf16> to vector<128x128xbf16>
    %cst_139 = arith.constant dense<0.000000e+00> : vector<78x128xf32>
    %129 = tpu.matmul %126, %128, %cst_139 {dimension_numbers = #tpu.dot_dimension_numbers<[1], [0], [0], [1], [0, 0, 1, 1], [], []>} : vector<78x128xbf16>, vector<128x128xbf16>, vector<78x128xf32> -> vector<78x128xf32>
    %130 = arith.addf %124, %129 : vector<78x128xf32>
    %c20_140 = arith.constant 20 : index
    %c0_141 = arith.constant 0 : index
    %131 = vector.load %arg9[%c20_140, %c0_141] : memref<100x128xf32, #tpu.memory_space<vmem>>, vector<78x128xf32>
    %132 = arith.truncf %131 : vector<78x128xf32> to vector<78x128xbf16>
    %c6_142 = arith.constant 6 : index
    %c0_143 = arith.constant 0 : index
    %c0_144 = arith.constant 0 : index
    %133 = vector.load %arg4[%c6_142, %c0_143, %c0_144] : memref<9x128x128xbf16, #tpu.memory_space<vmem>>, vector<1x128x128xbf16>
    %134 = vector.shape_cast %133 : vector<1x128x128xbf16> to vector<128x128xbf16>
    %cst_145 = arith.constant dense<0.000000e+00> : vector<78x128xf32>
    %135 = tpu.matmul %132, %134, %cst_145 {dimension_numbers = #tpu.dot_dimension_numbers<[1], [0], [0], [1], [0, 0, 1, 1], [], []>} : vector<78x128xbf16>, vector<128x128xbf16>, vector<78x128xf32> -> vector<78x128xf32>
    %136 = arith.addf %130, %135 : vector<78x128xf32>
    %c21_146 = arith.constant 21 : index
    %c0_147 = arith.constant 0 : index
    %137 = vector.load %arg9[%c21_146, %c0_147] : memref<100x128xf32, #tpu.memory_space<vmem>>, vector<78x128xf32>
    %138 = arith.truncf %137 : vector<78x128xf32> to vector<78x128xbf16>
    %c7_148 = arith.constant 7 : index
    %c0_149 = arith.constant 0 : index
    %c0_150 = arith.constant 0 : index
    %139 = vector.load %arg4[%c7_148, %c0_149, %c0_150] : memref<9x128x128xbf16, #tpu.memory_space<vmem>>, vector<1x128x128xbf16>
    %140 = vector.shape_cast %139 : vector<1x128x128xbf16> to vector<128x128xbf16>
    %cst_151 = arith.constant dense<0.000000e+00> : vector<78x128xf32>
    %141 = tpu.matmul %138, %140, %cst_151 {dimension_numbers = #tpu.dot_dimension_numbers<[1], [0], [0], [1], [0, 0, 1, 1], [], []>} : vector<78x128xbf16>, vector<128x128xbf16>, vector<78x128xf32> -> vector<78x128xf32>
    %142 = arith.addf %136, %141 : vector<78x128xf32>
    %c22_152 = arith.constant 22 : index
    %c0_153 = arith.constant 0 : index
    %143 = vector.load %arg9[%c22_152, %c0_153] : memref<100x128xf32, #tpu.memory_space<vmem>>, vector<78x128xf32>
    %144 = arith.truncf %143 : vector<78x128xf32> to vector<78x128xbf16>
    %c8_154 = arith.constant 8 : index
    %c0_155 = arith.constant 0 : index
    %c0_156 = arith.constant 0 : index
    %145 = vector.load %arg4[%c8_154, %c0_155, %c0_156] : memref<9x128x128xbf16, #tpu.memory_space<vmem>>, vector<1x128x128xbf16>
    %146 = vector.shape_cast %145 : vector<1x128x128xbf16> to vector<128x128xbf16>
    %cst_157 = arith.constant dense<0.000000e+00> : vector<78x128xf32>
    %147 = tpu.matmul %144, %146, %cst_157 {dimension_numbers = #tpu.dot_dimension_numbers<[1], [0], [0], [1], [0, 0, 1, 1], [], []>} : vector<78x128xbf16>, vector<128x128xbf16>, vector<78x128xf32> -> vector<78x128xf32>
    %148 = arith.addf %142, %147 : vector<78x128xf32>
    %c0_158 = arith.constant 0 : index
    %c0_159 = arith.constant 0 : index
    %149 = vector.load %arg5[%c0_158, %c0_159] : memref<1x128xf32, #tpu.memory_space<vmem>>, vector<1x128xf32>
    %150 = vector.broadcast %149 : vector<1x128xf32> to vector<78x128xf32>
    %151 = arith.addf %148, %150 : vector<78x128xf32>
    %c0_160 = arith.constant 0 : index
    %c0_161 = arith.constant 0 : index
    %152 = vector.load %arg10[%c0_160, %c0_161] : memref<78x128xf32, #tpu.memory_space<vmem>>, vector<78x128xf32>
    tpu.vector_store %arg10[%c0_160, %c0_161], %151 {strides = array<i32>} : memref<78x128xf32, #tpu.memory_space<vmem>>, vector<78x128xf32>,
    %c0_162 = arith.constant 0 : index
    %c0_163 = arith.constant 0 : index
    %153 = vector.load %arg10[%c0_162, %c0_163] : memref<78x128xf32, #tpu.memory_space<vmem>>, vector<8x128xf32>
    %c0_164 = arith.constant 0 : index
    %c0_165 = arith.constant 0 : index
    %154 = vector.load %arg8[%c0_164, %c0_165] : memref<78x128xf32, #tpu.memory_space<vmem>>, vector<8x128xf32>
    %155 = arith.addf %153, %154 : vector<8x128xf32>
    %cst_166 = arith.constant 0.000000e+00 : f32
    %156 = vector.broadcast %cst_166 : f32 to vector<8x128xf32>
    %157 = arith.cmpf oge, %155, %156 : vector<8x128xf32>
    %cst_167 = arith.constant 0.00999999977 : f32
    %158 = vector.broadcast %cst_167 : f32 to vector<8x128xf32>
    %159 = arith.mulf %158, %155 : vector<8x128xf32>
    %160 = arith.select %157, %155, %159 : vector<8x128xi1>, vector<8x128xf32>
    %c0_168 = arith.constant 0 : index
    %c0_169 = arith.constant 0 : index
    %c0_170 = arith.constant 0 : index
    %161 = vector.load %arg6[%c0_168, %c0_169, %c0_170] : memref<1x64x128xf32, #tpu.memory_space<vmem>>, vector<1x8x128xf32>
    %162 = vector.shape_cast %161 : vector<1x8x128xf32> to vector<8x128xf32>
    %163 = vector.shape_cast %160 : vector<8x128xf32> to vector<1x8x128xf32>
    tpu.vector_store %arg6[%c0_168, %c0_169, %c0_170], %163 {strides = array<i32>} : memref<1x64x128xf32, #tpu.memory_space<vmem>>, vector<1x8x128xf32>,
    %c10_171 = arith.constant 10 : index
    %c0_172 = arith.constant 0 : index
    %164 = vector.load %arg10[%c10_171, %c0_172] : memref<78x128xf32, #tpu.memory_space<vmem>>, vector<8x128xf32>
    %c10_173 = arith.constant 10 : index
    %c0_174 = arith.constant 0 : index
    %165 = vector.load %arg8[%c10_173, %c0_174] : memref<78x128xf32, #tpu.memory_space<vmem>>, vector<8x128xf32>
    %166 = arith.addf %164, %165 : vector<8x128xf32>
    %cst_175 = arith.constant 0.000000e+00 : f32
    %167 = vector.broadcast %cst_175 : f32 to vector<8x128xf32>
    %168 = arith.cmpf oge, %166, %167 : vector<8x128xf32>
    %cst_176 = arith.constant 0.00999999977 : f32
    %169 = vector.broadcast %cst_176 : f32 to vector<8x128xf32>
    %170 = arith.mulf %169, %166 : vector<8x128xf32>
    %171 = arith.select %168, %166, %170 : vector<8x128xi1>, vector<8x128xf32>
    %c0_177 = arith.constant 0 : index
    %c8_178 = arith.constant 8 : index
    %c0_179 = arith.constant 0 : index
    %172 = vector.load %arg6[%c0_177, %c8_178, %c0_179] : memref<1x64x128xf32, #tpu.memory_space<vmem>>, vector<1x8x128xf32>
    %173 = vector.shape_cast %172 : vector<1x8x128xf32> to vector<8x128xf32>
    %174 = vector.shape_cast %171 : vector<8x128xf32> to vector<1x8x128xf32>
    tpu.vector_store %arg6[%c0_177, %c8_178, %c0_179], %174 {strides = array<i32>} : memref<1x64x128xf32, #tpu.memory_space<vmem>>, vector<1x8x128xf32>,
    %c20_180 = arith.constant 20 : index
    %c0_181 = arith.constant 0 : index
    %175 = vector.load %arg10[%c20_180, %c0_181] : memref<78x128xf32, #tpu.memory_space<vmem>>, vector<8x128xf32>
    %c20_182 = arith.constant 20 : index
    %c0_183 = arith.constant 0 : index
    %176 = vector.load %arg8[%c20_182, %c0_183] : memref<78x128xf32, #tpu.memory_space<vmem>>, vector<8x128xf32>
    %177 = arith.addf %175, %176 : vector<8x128xf32>
    %cst_184 = arith.constant 0.000000e+00 : f32
    %178 = vector.broadcast %cst_184 : f32 to vector<8x128xf32>
    %179 = arith.cmpf oge, %177, %178 : vector<8x128xf32>
    %cst_185 = arith.constant 0.00999999977 : f32
    %180 = vector.broadcast %cst_185 : f32 to vector<8x128xf32>
    %181 = arith.mulf %180, %177 : vector<8x128xf32>
    %182 = arith.select %179, %177, %181 : vector<8x128xi1>, vector<8x128xf32>
    %c0_186 = arith.constant 0 : index
    %c16 = arith.constant 16 : index
    %c0_187 = arith.constant 0 : index
    %183 = vector.load %arg6[%c0_186, %c16, %c0_187] : memref<1x64x128xf32, #tpu.memory_space<vmem>>, vector<1x8x128xf32>
    %184 = vector.shape_cast %183 : vector<1x8x128xf32> to vector<8x128xf32>
    %185 = vector.shape_cast %182 : vector<8x128xf32> to vector<1x8x128xf32>
    tpu.vector_store %arg6[%c0_186, %c16, %c0_187], %185 {strides = array<i32>} : memref<1x64x128xf32, #tpu.memory_space<vmem>>, vector<1x8x128xf32>,
    %c30_188 = arith.constant 30 : index
    %c0_189 = arith.constant 0 : index
    %186 = vector.load %arg10[%c30_188, %c0_189] : memref<78x128xf32, #tpu.memory_space<vmem>>, vector<8x128xf32>
    %c30_190 = arith.constant 30 : index
    %c0_191 = arith.constant 0 : index
    %187 = vector.load %arg8[%c30_190, %c0_191] : memref<78x128xf32, #tpu.memory_space<vmem>>, vector<8x128xf32>
    %188 = arith.addf %186, %187 : vector<8x128xf32>
    %cst_192 = arith.constant 0.000000e+00 : f32
    %189 = vector.broadcast %cst_192 : f32 to vector<8x128xf32>
    %190 = arith.cmpf oge, %188, %189 : vector<8x128xf32>
    %cst_193 = arith.constant 0.00999999977 : f32
    %191 = vector.broadcast %cst_193 : f32 to vector<8x128xf32>
    %192 = arith.mulf %191, %188 : vector<8x128xf32>
    %193 = arith.select %190, %188, %192 : vector<8x128xi1>, vector<8x128xf32>
    %c0_194 = arith.constant 0 : index
    %c24 = arith.constant 24 : index
    %c0_195 = arith.constant 0 : index
    %194 = vector.load %arg6[%c0_194, %c24, %c0_195] : memref<1x64x128xf32, #tpu.memory_space<vmem>>, vector<1x8x128xf32>
    %195 = vector.shape_cast %194 : vector<1x8x128xf32> to vector<8x128xf32>
    %196 = vector.shape_cast %193 : vector<8x128xf32> to vector<1x8x128xf32>
    tpu.vector_store %arg6[%c0_194, %c24, %c0_195], %196 {strides = array<i32>} : memref<1x64x128xf32, #tpu.memory_space<vmem>>, vector<1x8x128xf32>,
    %c40_196 = arith.constant 40 : index
    %c0_197 = arith.constant 0 : index
    %197 = vector.load %arg10[%c40_196, %c0_197] : memref<78x128xf32, #tpu.memory_space<vmem>>, vector<8x128xf32>
    %c40_198 = arith.constant 40 : index
    %c0_199 = arith.constant 0 : index
    %198 = vector.load %arg8[%c40_198, %c0_199] : memref<78x128xf32, #tpu.memory_space<vmem>>, vector<8x128xf32>
    %199 = arith.addf %197, %198 : vector<8x128xf32>
    %cst_200 = arith.constant 0.000000e+00 : f32
    %200 = vector.broadcast %cst_200 : f32 to vector<8x128xf32>
    %201 = arith.cmpf oge, %199, %200 : vector<8x128xf32>
    %cst_201 = arith.constant 0.00999999977 : f32
    %202 = vector.broadcast %cst_201 : f32 to vector<8x128xf32>
    %203 = arith.mulf %202, %199 : vector<8x128xf32>
    %204 = arith.select %201, %199, %203 : vector<8x128xi1>, vector<8x128xf32>
    %c0_202 = arith.constant 0 : index
    %c32 = arith.constant 32 : index
    %c0_203 = arith.constant 0 : index
    %205 = vector.load %arg6[%c0_202, %c32, %c0_203] : memref<1x64x128xf32, #tpu.memory_space<vmem>>, vector<1x8x128xf32>
    %206 = vector.shape_cast %205 : vector<1x8x128xf32> to vector<8x128xf32>
    %207 = vector.shape_cast %204 : vector<8x128xf32> to vector<1x8x128xf32>
    tpu.vector_store %arg6[%c0_202, %c32, %c0_203], %207 {strides = array<i32>} : memref<1x64x128xf32, #tpu.memory_space<vmem>>, vector<1x8x128xf32>,
    %c50_204 = arith.constant 50 : index
    %c0_205 = arith.constant 0 : index
    %208 = vector.load %arg10[%c50_204, %c0_205] : memref<78x128xf32, #tpu.memory_space<vmem>>, vector<8x128xf32>
    %c50_206 = arith.constant 50 : index
    %c0_207 = arith.constant 0 : index
    %209 = vector.load %arg8[%c50_206, %c0_207] : memref<78x128xf32, #tpu.memory_space<vmem>>, vector<8x128xf32>
    %210 = arith.addf %208, %209 : vector<8x128xf32>
    %cst_208 = arith.constant 0.000000e+00 : f32
    %211 = vector.broadcast %cst_208 : f32 to vector<8x128xf32>
    %212 = arith.cmpf oge, %210, %211 : vector<8x128xf32>
    %cst_209 = arith.constant 0.00999999977 : f32
    %213 = vector.broadcast %cst_209 : f32 to vector<8x128xf32>
    %214 = arith.mulf %213, %210 : vector<8x128xf32>
    %215 = arith.select %212, %210, %214 : vector<8x128xi1>, vector<8x128xf32>
    %c0_210 = arith.constant 0 : index
    %c40_211 = arith.constant 40 : index
    %c0_212 = arith.constant 0 : index
    %216 = vector.load %arg6[%c0_210, %c40_211, %c0_212] : memref<1x64x128xf32, #tpu.memory_space<vmem>>, vector<1x8x128xf32>
    %217 = vector.shape_cast %216 : vector<1x8x128xf32> to vector<8x128xf32>
    %218 = vector.shape_cast %215 : vector<8x128xf32> to vector<1x8x128xf32>
    tpu.vector_store %arg6[%c0_210, %c40_211, %c0_212], %218 {strides = array<i32>} : memref<1x64x128xf32, #tpu.memory_space<vmem>>, vector<1x8x128xf32>,
    %c60_213 = arith.constant 60 : index
    %c0_214 = arith.constant 0 : index
    %219 = vector.load %arg10[%c60_213, %c0_214] : memref<78x128xf32, #tpu.memory_space<vmem>>, vector<8x128xf32>
    %c60_215 = arith.constant 60 : index
    %c0_216 = arith.constant 0 : index
    %220 = vector.load %arg8[%c60_215, %c0_216] : memref<78x128xf32, #tpu.memory_space<vmem>>, vector<8x128xf32>
    %221 = arith.addf %219, %220 : vector<8x128xf32>
    %cst_217 = arith.constant 0.000000e+00 : f32
    %222 = vector.broadcast %cst_217 : f32 to vector<8x128xf32>
    %223 = arith.cmpf oge, %221, %222 : vector<8x128xf32>
    %cst_218 = arith.constant 0.00999999977 : f32
    %224 = vector.broadcast %cst_218 : f32 to vector<8x128xf32>
    %225 = arith.mulf %224, %221 : vector<8x128xf32>
    %226 = arith.select %223, %221, %225 : vector<8x128xi1>, vector<8x128xf32>
    %c0_219 = arith.constant 0 : index
    %c48 = arith.constant 48 : index
    %c0_220 = arith.constant 0 : index
    %227 = vector.load %arg6[%c0_219, %c48, %c0_220] : memref<1x64x128xf32, #tpu.memory_space<vmem>>, vector<1x8x128xf32>
    %228 = vector.shape_cast %227 : vector<1x8x128xf32> to vector<8x128xf32>
    %229 = vector.shape_cast %226 : vector<8x128xf32> to vector<1x8x128xf32>
    tpu.vector_store %arg6[%c0_219, %c48, %c0_220], %229 {strides = array<i32>} : memref<1x64x128xf32, #tpu.memory_space<vmem>>, vector<1x8x128xf32>,
    %c70_221 = arith.constant 70 : index
    %c0_222 = arith.constant 0 : index
    %230 = vector.load %arg10[%c70_221, %c0_222] : memref<78x128xf32, #tpu.memory_space<vmem>>, vector<8x128xf32>
    %c70_223 = arith.constant 70 : index
    %c0_224 = arith.constant 0 : index
    %231 = vector.load %arg8[%c70_223, %c0_224] : memref<78x128xf32, #tpu.memory_space<vmem>>, vector<8x128xf32>
    %232 = arith.addf %230, %231 : vector<8x128xf32>
    %cst_225 = arith.constant 0.000000e+00 : f32
    %233 = vector.broadcast %cst_225 : f32 to vector<8x128xf32>
    %234 = arith.cmpf oge, %232, %233 : vector<8x128xf32>
    %cst_226 = arith.constant 0.00999999977 : f32
    %235 = vector.broadcast %cst_226 : f32 to vector<8x128xf32>
    %236 = arith.mulf %235, %232 : vector<8x128xf32>
    %237 = arith.select %234, %232, %236 : vector<8x128xi1>, vector<8x128xf32>
    %c0_227 = arith.constant 0 : index
    %c56 = arith.constant 56 : index
    %c0_228 = arith.constant 0 : index
    %238 = vector.load %arg6[%c0_227, %c56, %c0_228] : memref<1x64x128xf32, #tpu.memory_space<vmem>>, vector<1x8x128xf32>
    %239 = vector.shape_cast %238 : vector<1x8x128xf32> to vector<8x128xf32>
    %240 = vector.shape_cast %237 : vector<8x128xf32> to vector<1x8x128xf32>
    tpu.vector_store %arg6[%c0_227, %c56, %c0_228], %240 {strides = array<i32>} : memref<1x64x128xf32, #tpu.memory_space<vmem>>, vector<1x8x128xf32>,
    return
  }
  func.func @transform_0(%arg0: i32) -> (i32, i32, i32, i32, i32) {
    %c0_i32 = arith.constant 0 : i32
    %c0_i32_0 = arith.constant 0 : i32
    %c0_i32_1 = arith.constant 0 : i32
    %c0_i32_2 = arith.constant 0 : i32
    %c0_i32_3 = arith.constant 0 : i32
    return %arg0, %c0_i32, %c0_i32_0, %c0_i32_1, %c0_i32_2 : i32, i32, i32, i32, i32
  }
  func.func @transform_1(%arg0: i32) -> (i32, i32, i32) {
    %c0_i32 = arith.constant 0 : i32
    %c0_i32_0 = arith.constant 0 : i32
    %c0_i32_1 = arith.constant 0 : i32
    %c0_i32_2 = arith.constant 0 : i32
    return %c0_i32, %c0_i32_0, %c0_i32_1 : i32, i32, i32
  }
  func.func @transform_2(%arg0: i32) -> (i32, i32) {
    %c0_i32 = arith.constant 0 : i32
    %c0_i32_0 = arith.constant 0 : i32
    %c0_i32_1 = arith.constant 0 : i32
    return %c0_i32, %c0_i32_0 : i32, i32
  }
  func.func @transform_3(%arg0: i32) -> (i32, i32, i32) {
    %c0_i32 = arith.constant 0 : i32
    %c0_i32_0 = arith.constant 0 : i32
    %c0_i32_1 = arith.constant 0 : i32
    %c0_i32_2 = arith.constant 0 : i32
    return %c0_i32, %c0_i32_0, %c0_i32_1 : i32, i32, i32
  }
  func.func @transform_4(%arg0: i32) -> (i32, i32) {
    %c0_i32 = arith.constant 0 : i32
    %c0_i32_0 = arith.constant 0 : i32
    %c0_i32_1 = arith.constant 0 : i32
    return %c0_i32, %c0_i32_0 : i32, i32
  }
  func.func @transform_5(%arg0: i32) -> (i32, i32, i32) {
    %c0_i32 = arith.constant 0 : i32
    %c0_i32_0 = arith.constant 0 : i32
    %c0_i32_1 = arith.constant 0 : i32
    return %arg0, %c0_i32, %c0_i32_0 : i32, i32, i32
  }
}

</mosaic_0001>

<llo_original>
// kernel: _lambda_.2
$region0: #{_lambda_.2}
  #allocation0 [shape = 'u32[]', space=smem, size = 0x4, offset = 0x4, fixed_abs, tag = 'smem constant byte address 0x4 - core index']
  #allocation1 [shape = 'u32[144,128]{1,0:T(1,128)}', space=vmem, size = 0x12000, scoped, tag = 'internal scratch']
  #allocation2 [shape = 'f32[71,128]{1,0:T(8,128)}', space=vmem, size = 0x9000, scoped, tag = 'scratch operand']
  #allocation3 [shape = 'f32[71,128]{1,0:T(8,128)}', space=vmem, size = 0x9000, scoped, tag = 'scratch operand']
  #allocation4 [shape = 'f32[100,128]{1,0:T(8,128)}', space=vmem, size = 0xd000, scoped, tag = 'scratch operand']
  #allocation5 [shape = 'f32[78,128]{1,0:T(8,128)}', space=vmem, size = 0xa000, scoped, tag = 'scratch operand']
  %s0 = inlined_call_operand.vmem [shape: f32[2,2,2,81,64], index: 0, kind: input, shape index: {}]
  %s1 = inlined_call_operand.vmem [shape: bf16[9,64,128], index: 1, kind: input, shape index: {}]
  %s2 = inlined_call_operand.vmem [shape: f32[1,128], index: 2, kind: input, shape index: {}]
  %s3 = inlined_call_operand.vmem [shape: bf16[9,128,128], index: 3, kind: input, shape index: {}]
  %s4 = inlined_call_operand.vmem [shape: f32[1,128], index: 4, kind: input, shape index: {}]
  %s5 = inlined_call_operand.vmem [shape: bf16[64,128], index: 5, kind: input, shape index: {}]
  %s6 = inlined_call_operand.vmem [shape: f32[1,128], index: 6, kind: input, shape index: {}]
  %s7 = inlined_call_operand.vmem [shape: f32[2,64,128], index: 7, kind: output, shape index: {}]
  %s8 = sld [smem:[#allocation0]]
  $region61: #{_lambda_.2} parent=0
    _
  %s10 = ssub.s32 1, %s8
  %s11 = scalar_select 0, %s10, %s8
  loop: start=0, step=1, limit=4
  $region2: #{_lambda_.2} parent=0 // loop_pre_header
    _
  $region3: #{_lambda_.2} parent=0 // loop_header
    %s13 = sphi 0, %s17
    %p14 = scmp.ge.s32.totalorder %s13, 4
    %s23 = sphi 0, %s25
    %s26 = sphi 0, %s23
    %s27 = sphi 0, %s26
    %s43 = sphi 0, %s27
    %s47 = sphi 0, %s47
    %s49 = sphi 0, %s47
    %s50 = sphi 0, %s49
    %s64 = sphi 0, %s50
    %s68 = sphi 0, %s68
    %s70 = sphi 0, %s68
    %s71 = sphi 0, %s70
    %s85 = sphi 0, %s71
    %s89 = sphi 0, %s89
    %s91 = sphi 0, %s89
    %s92 = sphi 0, %s91
    %s106 = sphi 0, %s92
    %s110 = sphi 0, %s110
    %s112 = sphi 0, %s110
    %s113 = sphi 0, %s112
    %s127 = sphi 0, %s113
    %s131 = sphi 0, %s131
    %s133 = sphi 0, %s131
    %s134 = sphi 0, %s133
    %s148 = sphi 0, %s134
    %s152 = sphi 0, %s152
    %s154 = sphi 0, %s152
    %s155 = sphi 0, %s154
    %s169 = sphi 0, %s155
    %s175 = sphi 0, %s177
    %s178 = sphi 0, %s175
    %s179 = sphi 0, %s178
    %s195 = sphi 0, %s179
  $region4: #{_lambda_.2} parent=0 // loop_header_branch
    %16 = sbr.rel (%p14) target = $region8
  $region5: #{_lambda_.2} parent=0 // loop_body
    %s18 = ssub.s32 %s13, 1
    %s19 = ssub.s32 %s13, 2
    %s20 = sadd.s32 %s13, 1
    %s21 = ssub.s32 %s13, %s20
    %p22 = scmp.eq.s32.totalorder %s21, 0
    %s24 = sadd.s32 %s23, 1
    %s25 = scalar_select %p22, %s23, %s24
    %p28 = pneg %p22
    %p29 = scmp.eq.s32.totalorder %s13, 1
    %p30 = por %p28, %p29
    %p31 = scmp.ne.s32.totalorder %s23, %s26
    %p32 = scmp.eq.s32.totalorder %s13, 0
    %p33 = por %p31, %p32
    %p34 = scmp.ne.s32.totalorder %s23, %s26
    %p35 = scmp.eq.s32.totalorder %s18, 1
    %p36 = por %p34, %p35
    %p37 = scmp.ne.s32.totalorder %s26, %s27
    %p38 = scmp.eq.s32.totalorder %s18, 0
    %p39 = por %p37, %p38
    %p40 = scmp.ne.s32.totalorder %s26, %s27
    %p41 = scmp.eq.s32.totalorder %s19, 1
    %p42 = por %p40, %p41
    %p44 = scmp.ne.s32.totalorder %s27, %s43
    %p45 = scmp.eq.s32.totalorder %s19, 0
    %p46 = por %p44, %p45
    %s48 = sadd.s32 %s47, 1
    %p51 = scmp.eq.s32.totalorder %s13, 1
    %p52 = scmp.ne.s32.totalorder %s47, %s49
    %p53 = scmp.eq.s32.totalorder %s13, 0
    %p54 = por %p52, %p53
    %p55 = scmp.ne.s32.totalorder %s47, %s49
    %p56 = scmp.eq.s32.totalorder %s18, 1
    %p57 = por %p55, %p56
    %p58 = scmp.ne.s32.totalorder %s49, %s50
    %p59 = scmp.eq.s32.totalorder %s18, 0
    %p60 = por %p58, %p59
    %p61 = scmp.ne.s32.totalorder %s49, %s50
    %p62 = scmp.eq.s32.totalorder %s19, 1
    %p63 = por %p61, %p62
    %p65 = scmp.ne.s32.totalorder %s50, %s64
    %p66 = scmp.eq.s32.totalorder %s19, 0
    %p67 = por %p65, %p66
    %s69 = sadd.s32 %s68, 1
    %p72 = scmp.eq.s32.totalorder %s13, 1
    %p73 = scmp.ne.s32.totalorder %s68, %s70
    %p74 = scmp.eq.s32.totalorder %s13, 0
    %p75 = por %p73, %p74
    %p76 = scmp.ne.s32.totalorder %s68, %s70
    %p77 = scmp.eq.s32.totalorder %s18, 1
    %p78 = por %p76, %p77
    %p79 = scmp.ne.s32.totalorder %s70, %s71
    %p80 = scmp.eq.s32.totalorder %s18, 0
    %p81 = por %p79, %p80
    %p82 = scmp.ne.s32.totalorder %s70, %s71
    %p83 = scmp.eq.s32.totalorder %s19, 1
    %p84 = por %p82, %p83
    %p86 = scmp.ne.s32.totalorder %s71, %s85
    %p87 = scmp.eq.s32.totalorder %s19, 0
    %p88 = por %p86, %p87
    %s90 = sadd.s32 %s89, 1
    %p93 = scmp.eq.s32.totalorder %s13, 1
    %p94 = scmp.ne.s32.totalorder %s89, %s91
    %p95 = scmp.eq.s32.totalorder %s13, 0
    %p96 = por %p94, %p95
    %p97 = scmp.ne.s32.totalorder %s89, %s91
    %p98 = scmp.eq.s32.totalorder %s18, 1
    %p99 = por %p97, %p98
    %p100 = scmp.ne.s32.totalorder %s91, %s92
    %p101 = scmp.eq.s32.totalorder %s18, 0
    %p102 = por %p100, %p101
    %p103 = scmp.ne.s32.totalorder %s91, %s92
    %p104 = scmp.eq.s32.totalorder %s19, 1
    %p105 = por %p103, %p104
    %p107 = scmp.ne.s32.totalorder %s92, %s106
    %p108 = scmp.eq.s32.totalorder %s19, 0
    %p109 = por %p107, %p108
    %s111 = sadd.s32 %s110, 1
    %p114 = scmp.eq.s32.totalorder %s13, 1
    %p115 = scmp.ne.s32.totalorder %s110, %s112
    %p116 = scmp.eq.s32.totalorder %s13, 0
    %p117 = por %p115, %p116
    %p118 = scmp.ne.s32.totalorder %s110, %s112
    %p119 = scmp.eq.s32.totalorder %s18, 1
    %p120 = por %p118, %p119
    %p121 = scmp.ne.s32.totalorder %s112, %s113
    %p122 = scmp.eq.s32.totalorder %s18, 0
    %p123 = por %p121, %p122
    %p124 = scmp.ne.s32.totalorder %s112, %s113
    %p125 = scmp.eq.s32.totalorder %s19, 1
    %p126 = por %p124, %p125
    %p128 = scmp.ne.s32.totalorder %s113, %s127
    %p129 = scmp.eq.s32.totalorder %s19, 0
    %p130 = por %p128, %p129
    %s132 = sadd.s32 %s131, 1
    %p135 = scmp.eq.s32.totalorder %s13, 1
    %p136 = scmp.ne.s32.totalorder %s131, %s133
    %p137 = scmp.eq.s32.totalorder %s13, 0
    %p138 = por %p136, %p137
    %p139 = scmp.ne.s32.totalorder %s131, %s133
    %p140 = scmp.eq.s32.totalorder %s18, 1
    %p141 = por %p139, %p140
    %p142 = scmp.ne.s32.totalorder %s133, %s134
    %p143 = scmp.eq.s32.totalorder %s18, 0
    %p144 = por %p142, %p143
    %p145 = scmp.ne.s32.totalorder %s133, %s134
    %p146 = scmp.eq.s32.totalorder %s19, 1
    %p147 = por %p145, %p146
    %p149 = scmp.ne.s32.totalorder %s134, %s148
    %p150 = scmp.eq.s32.totalorder %s19, 0
    %p151 = por %p149, %p150
    %s153 = sadd.s32 %s152, 1
    %p156 = scmp.eq.s32.totalorder %s13, 1
    %p157 = scmp.ne.s32.totalorder %s152, %s154
    %p158 = scmp.eq.s32.totalorder %s13, 0
    %p159 = por %p157, %p158
    %p160 = scmp.ne.s32.totalorder %s152, %s154
    %p161 = scmp.eq.s32.totalorder %s18, 1
    %p162 = por %p160, %p161
    %p163 = scmp.ne.s32.totalorder %s154, %s155
    %p164 = scmp.eq.s32.totalorder %s18, 0
    %p165 = por %p163, %p164
    %p166 = scmp.ne.s32.totalorder %s154, %s155
    %p167 = scmp.eq.s32.totalorder %s19, 1
    %p168 = por %p166, %p167
    %p170 = scmp.ne.s32.totalorder %s155, %s169
    %p171 = scmp.eq.s32.totalorder %s19, 0
    %p172 = por %p170, %p171
    %s173 = ssub.s32 %s13, %s20
    %p174 = scmp.eq.s32.totalorder %s173, 0
    %s176 = sadd.s32 %s175, 1
    %s177 = scalar_select %p174, %s175, %s176
    %p180 = pneg %p174
    %p181 = scmp.eq.s32.totalorder %s13, 1
    %p182 = por %p180, %p181
    %p183 = scmp.ne.s32.totalorder %s175, %s178
    %p184 = scmp.eq.s32.totalorder %s13, 0
    %p185 = por %p183, %p184
    %p186 = scmp.ne.s32.totalorder %s175, %s178
    %p187 = scmp.eq.s32.totalorder %s18, 1
    %p188 = por %p186, %p187
    %p189 = scmp.ne.s32.totalorder %s178, %s179
    %p190 = scmp.eq.s32.totalorder %s18, 0
    %p191 = por %p189, %p190
    %p192 = scmp.ne.s32.totalorder %s178, %s179
    %p193 = scmp.eq.s32.totalorder %s19, 1
    %p194 = por %p192, %p193
    %p196 = scmp.ne.s32.totalorder %s179, %s195
    %p197 = scmp.eq.s32.totalorder %s19, 0
    %p198 = por %p196, %p197
    %p199 = scmp.le.s32.totalorder 1, %s13
    %p200 = scmp.lt.s32.totalorder %s13, 3
    %p201 = pnand %p199, %p200
    %p202 = pneg %p201
    // Predicated region
    $region9: #{_lambda_.2} parent=5 // pred_check
      _
    $region10: #{_lambda_.2} parent=5 // pred_check_branch
      %204 = sbr.rel (%p201) target = $region12
    $region11: #{_lambda_.2} parent=5 // pred_region
      %s205 = ssub.s32 %s13, 1
      // Predicated region
      $region13: #{_lambda_.2} parent=11 // pred_check
        %p206 = pneg %p60
      $region14: #{_lambda_.2} parent=11 // pred_check_branch
        %208 = sbr.rel (%p206) target = $region16
      $region15: #{_lambda_.2} parent=11 // pred_region
        _
      $region16: #{_lambda_.2} parent=11 // pred_fallthru
        _
      // Predicated region
      $region17: #{_lambda_.2} parent=11 // pred_check
        %p209 = pneg %p81
      $region18: #{_lambda_.2} parent=11 // pred_check_branch
        %211 = sbr.rel (%p209) target = $region20
      $region19: #{_lambda_.2} parent=11 // pred_region
        _
      $region20: #{_lambda_.2} parent=11 // pred_fallthru
        _
      // Predicated region
      $region21: #{_lambda_.2} parent=11 // pred_check
        %p212 = pneg %p102
      $region22: #{_lambda_.2} parent=11 // pred_check_branch
        %214 = sbr.rel (%p212) target = $region24
      $region23: #{_lambda_.2} parent=11 // pred_region
        _
      $region24: #{_lambda_.2} parent=11 // pred_fallthru
        _
      // Predicated region
      $region25: #{_lambda_.2} parent=11 // pred_check
        %p215 = pneg %p123
      $region26: #{_lambda_.2} parent=11 // pred_check_branch
        %217 = sbr.rel (%p215) target = $region28
      $region27: #{_lambda_.2} parent=11 // pred_region
        _
      $region28: #{_lambda_.2} parent=11 // pred_fallthru
        _
      // Predicated region
      $region29: #{_lambda_.2} parent=11 // pred_check
        %p218 = pneg %p144
      $region30: #{_lambda_.2} parent=11 // pred_check_branch
        %220 = sbr.rel (%p218) target = $region32
      $region31: #{_lambda_.2} parent=11 // pred_region
        _
      $region32: #{_lambda_.2} parent=11 // pred_fallthru
        _
      // Predicated region
      $region33: #{_lambda_.2} parent=11 // pred_check
        %p221 = pneg %p165
      $region34: #{_lambda_.2} parent=11 // pred_check_branch
        %223 = sbr.rel (%p221) target = $region36
      $region35: #{_lambda_.2} parent=11 // pred_region
        _
      $region36: #{_lambda_.2} parent=11 // pred_fallthru
        _
    $region12: #{_lambda_.2} parent=5 // pred_fallthru
      _
    %p224 = scmp.lt.s32.totalorder %s13, 2
    // Predicated region
    $region37: #{_lambda_.2} parent=5 // pred_check
      %p225 = pneg %p224
    $region38: #{_lambda_.2} parent=5 // pred_check_branch
      %227 = sbr.rel (%p225) target = $region40
    $region39: #{_lambda_.2} parent=5 // pred_region
      // Predicated region
      $region41: #{_lambda_.2} parent=39 // pred_check
        %p228 = pneg %p33
      $region42: #{_lambda_.2} parent=39 // pred_check_branch
        %230 = sbr.rel (%p228) target = $region44
      $region43: #{_lambda_.2} parent=39 // pred_region
        %p231 = scmp.lt.s32.totalorder %s13, 1
        %s232 = scalar_select %p231, %s13, 1
        %s233 = smul.addr %s232, 44
        %s234 = smul.addr %s233, 8
        %s235 = scalar_lea.vmem %s0, %s234
      $region44: #{_lambda_.2} parent=39 // pred_fallthru
        _
    $region40: #{_lambda_.2} parent=5 // pred_fallthru
      _
    %p236 = scmp.le.s32.totalorder 1, %s13
    %p237 = scmp.lt.s32.totalorder %s13, 3
    %p238 = pnand %p236, %p237
    %p239 = pneg %p238
    // Predicated region
    $region45: #{_lambda_.2} parent=5 // pred_check
      _
    $region46: #{_lambda_.2} parent=5 // pred_check_branch
      %241 = sbr.rel (%p238) target = $region48
    $region47: #{_lambda_.2} parent=5 // pred_region
      %s242 = ssub.s32 %s13, 1
      %p243 = scmp.lt.s32.totalorder %s18, 1
      %s244 = scalar_select %p243, %s18, 1
      %s245 = smul.addr %s244, 44
      %s246 = smul.addr %s245, 8
      %s247 = scalar_lea.vmem %s0, %s246
      %p248 = pneg %p39
      %p249 = pneg %p36
      %p250 = pneg %p60
      %p251 = pneg %p57
      %p252 = pneg %p81
      %p253 = pneg %p78
      %p254 = pneg %p102
      %p255 = pneg %p99
      %p256 = pneg %p123
      %p257 = pneg %p120
      %p258 = pneg %p144
      %p259 = pneg %p141
      %p260 = pneg %p165
      %p261 = pneg %p162
      %p262 = pneg %p191
      %p263 = pneg %p188
      %p264 = scmp.lt.s32.totalorder %s18, 1
      %s265 = scalar_select %p264, %s18, 1
      %s266 = smul.addr %s265, 8
      %s267 = smul.addr %s266, 8
      %s268 = scalar_lea.vmem %s7, %s267
      %p269 = scmp.lt.s32.totalorder %s18, 1
      %s270 = scalar_select %p269, %s18, 1
      %s271 = smul.addr %s270, 44
      %s272 = smul.addr %s271, 8
      %s273 = scalar_lea.vmem %s0, %s272
      %p274 = scmp.lt.s32.totalorder %s18, 1
      %s275 = scalar_select %p274, %s18, 1
      %s276 = smul.addr %s275, 8
      %s277 = smul.addr %s276, 8
      %s278 = scalar_lea.vmem %s7, %s277
      %v280 = vld [vmem:[%s273] sm:$0xff]
      %v281 = vld [vmem:[%s273 + $0x8] sm:$0xff]
      %v282 = vld [vmem:[%s273 + $0x10] sm:$0xff]
      %v283 = vld [vmem:[%s273 + $0x18] sm:$0xff]
      %v284 = vld [vmem:[%s273 + $0x20] sm:$0xff]
      %v285 = vld [vmem:[%s273 + $0x28] sm:$0xff]
      %v286 = vld [vmem:[%s273 + $0x30] sm:$0xff]
      %v287 = vld [vmem:[%s273 + $0x38] sm:$0xff]
      %v288 = vld [vmem:[%s273 + $0x40] sm:$0x7f]
      %v289 = vpack.c.bf16 %v281, %v280
      %v290 = vpack.c.bf16 %v283, %v282
      %v291 = vpack.c.bf16 %v285, %v284
      %v292 = vpack.c.bf16 %v287, %v286
      %v293 = vpack.c.bf16 %v288, %v288
      %v294 = vld [vmem:[%s1] sm:$0xf]
      %v295 = vld [vmem:[%s1 + $0x4] sm:$0xf]
      %v296 = vld [vmem:[%s1 + $0x8] sm:$0xf]
      %v297 = vld [vmem:[%s1 + $0xc] sm:$0xf]
      %v298 = vld [vmem:[%s1 + $0x10] sm:$0xf]
      %v299 = vld [vmem:[%s1 + $0x14] sm:$0xf]
      %v300 = vld [vmem:[%s1 + $0x18] sm:$0xf]
      %v301 = vld [vmem:[%s1 + $0x1c] sm:$0xf]
      %s302 = scalar_lea.vmem %s273, 88
      %v303 = vld [vmem:[%s302] sm:$0xff]
      %v304 = vld [vmem:[%s302 + $0x8] sm:$0xff]
      %v305 = vld [vmem:[%s302 + $0x10] sm:$0xff]
      %v306 = vld [vmem:[%s302 + $0x18] sm:$0xff]
      %v307 = vld [vmem:[%s302 + $0x20] sm:$0xff]
      %v308 = vld [vmem:[%s302 + $0x28] sm:$0xff]
      %v309 = vld [vmem:[%s302 + $0x30] sm:$0xff]
      %v310 = vld [vmem:[%s302 + $0x38] sm:$0xff]
      %v311 = vld [vmem:[%s302 + $0x40] sm:$0x7f]
      %v312 = vpack.c.bf16 %v304, %v303
      %v313 = vpack.c.bf16 %v306, %v305
      %v314 = vpack.c.bf16 %v308, %v307
      %v315 = vpack.c.bf16 %v310, %v309
      %v316 = vpack.c.bf16 %v311, %v311
      %s317 = scalar_lea.vmem %s1, 32
      %v318 = vld [vmem:[%s317] sm:$0xf]
      %v319 = vld [vmem:[%s317 + $0x4] sm:$0xf]
      %v320 = vld [vmem:[%s317 + $0x8] sm:$0xf]
      %v321 = vld [vmem:[%s317 + $0xc] sm:$0xf]
      %v322 = vld [vmem:[%s317 + $0x10] sm:$0xf]
      %v323 = vld [vmem:[%s317 + $0x14] sm:$0xf]
      %v324 = vld [vmem:[%s317 + $0x18] sm:$0xf]
      %v325 = vld [vmem:[%s317 + $0x1c] sm:$0xf]
      %v334 = vunpack.c.l.b16 %v318
      %v335 = vunpack.c.l.b16 %v319
      %v336 = vunpack.c.l.b16 %v320
      %v337 = vunpack.c.l.b16 %v321
      %v338 = vunpack.c.l.b16 %v322
      %v339 = vunpack.c.l.b16 %v323
      %v340 = vunpack.c.l.b16 %v324
      %v341 = vunpack.c.l.b16 %v325
      %v342 = vpack.c.b16 %v335, %v334
      %v343 = vpack.c.b16 %v337, %v336
      %v344 = vpack.c.b16 %v339, %v338
      %v345 = vpack.c.b16 %v341, %v340
      %vm350 = vcmask 523264
      %v352 = vsel %vm350, %v312, 0
      %v355 = vsel %vm350, %v313, 0
      %v358 = vsel %vm350, %v314, 0
      %v361 = vsel %vm350, %v315, 0
      %v364 = vsel %vm350, %v316, 0
      %366 = vmatprep.subr.bf16.mxu0 0
      %367 = vmatpush1.bf16.msra.mxu0 %v342
      %368 = vmatprep.subr.bf16.mxu0 0
      %369 = vmatpush1.bf16.msra.mxu0 %v343
      %370 = vmatprep.subr.bf16.mxu0 0
      %371 = vmatpush1.bf16.msra.mxu0 %v344
      %372 = vmatprep.subr.bf16.mxu0 0
      %373 = vmatpush1.bf16.msra.mxu0 %v345
      %374 = vmatprep.subr.bf16.mxu0 0
      %375 = vmatpush1.bf16.msra.mxu0 0
      %376 = vmatprep.subr.bf16.mxu0 0
      %377 = vmatpush1.bf16.msra.mxu0 0
      %378 = vmatprep.subr.bf16.mxu0 0
      %379 = vmatpush1.bf16.msra.mxu0 0
      %380 = vmatprep.subr.bf16.mxu0 0
      %381 = vmatpush1.bf16.msra.mxu0 0
      %382 = vmatprep.subr.bf16.mxu0 0
      %383 = vmatpush1.bf16.msra.mxu0 0
      %384 = vmatprep.subr.bf16.mxu0 0
      %385 = vmatpush1.bf16.msra.mxu0 0
      %386 = vmatprep.subr.bf16.mxu0 0
      %387 = vmatpush1.bf16.msra.mxu0 0
      %388 = vmatprep.subr.bf16.mxu0 0
      %389 = vmatpush1.bf16.msra.mxu0 0
      %390 = vmatprep.subr.bf16.mxu0 0
      %391 = vmatpush1.bf16.msra.mxu0 0
      %392 = vmatprep.subr.bf16.mxu0 0
      %393 = vmatpush1.bf16.msra.mxu0 0
      %394 = vmatprep.subr.bf16.mxu0 0
      %395 = vmatpush1.bf16.msra.mxu0 0
      %396 = vmatprep.subr.bf16.mxu0 0
      %397 = vmatpush1.bf16.msra.mxu0 0
      %398 = vmatprep.mubr.bf16.mxu0 0
      %399 = vmatmul.mubr.bf16.gmra.mrb[0].mxu0 %v352
      %v400 = vpop.f32.mrb[0].mxu0
      %v401 = vadd.f32 0.0, %v400
      %v402 = vpop.f32.mrb[0].mxu0
      %v403 = vpop.f32.mrb[0].mxu0
      %v404 = vadd.f32 0.0, %v403
      %v405 = vpop.f32.mrb[0].mxu0
      %406 = vmatprep.mubr.bf16.mxu0 0
      %407 = vmatmul.mubr.bf16.gmra.mrb[0].mxu0 %v355
      %v408 = vpop.f32.mrb[0].mxu0
      %v409 = vadd.f32 0.0, %v408
      %v410 = vpop.f32.mrb[0].mxu0
      %v411 = vpop.f32.mrb[0].mxu0
      %v412 = vadd.f32 0.0, %v411
      %v413 = vpop.f32.mrb[0].mxu0
      %414 = vmatprep.mubr.bf16.mxu0 0
      %415 = vmatmul.mubr.bf16.gmra.mrb[0].mxu0 %v358
      %v416 = vpop.f32.mrb[0].mxu0
      %v417 = vadd.f32 0.0, %v416
      %v418 = vpop.f32.mrb[0].mxu0
      %v419 = vpop.f32.mrb[0].mxu0
      %v420 = vadd.f32 0.0, %v419
      %v421 = vpop.f32.mrb[0].mxu0
      %422 = vmatprep.mubr.bf16.mxu0 0
      %423 = vmatmul.mubr.bf16.gmra.mrb[0].mxu0 %v361
      %v424 = vpop.f32.mrb[0].mxu0
      %v425 = vadd.f32 0.0, %v424
      %v426 = vpop.f32.mrb[0].mxu0
      %v427 = vpop.f32.mrb[0].mxu0
      %v428 = vadd.f32 0.0, %v427
      %v429 = vpop.f32.mrb[0].mxu0
      %430 = vmatprep.mubr.bf16.mxu0 0
      %431 = vmatmul.mubr.bf16.gmra.mrb[0].mxu0 %v364
      %v432 = vpop.f32.mrb[0].mxu0
      %v433 = vadd.f32 0.0, %v432
      %v434 = vpop.f32.mrb[0].mxu0
      %v435 = vpop.f32.mrb[0].mxu0
      %v436 = vpop.f32.mrb[0].mxu0
      %437 = vdwg.mxu0
      %v446 = vunpack.c.l.b16 %v294
      %v447 = vunpack.c.l.b16 %v295
      %v448 = vunpack.c.l.b16 %v296
      %v449 = vunpack.c.l.b16 %v297
      %v450 = vunpack.c.l.b16 %v298
      %v451 = vunpack.c.l.b16 %v299
      %v452 = vunpack.c.l.b16 %v300
      %v453 = vunpack.c.l.b16 %v301
      %v454 = vpack.c.b16 %v447, %v446
      %v455 = vpack.c.b16 %v449, %v448
      %v456 = vpack.c.b16 %v451, %v450
      %v457 = vpack.c.b16 %v453, %v452
      %v463 = vsel %vm350, %v289, 0
      %v466 = vsel %vm350, %v290, 0
      %v469 = vsel %vm350, %v291, 0
      %v472 = vsel %vm350, %v292, 0
      %v475 = vsel %vm350, %v293, 0
      %477 = vmatprep.subr.bf16.mxu0 0
      %478 = vmatpush1.bf16.msra.mxu0 %v454
      %479 = vmatprep.subr.bf16.mxu0 0
      %480 = vmatpush1.bf16.msra.mxu0 %v455
      %481 = vmatprep.subr.bf16.mxu0 0
      %482 = vmatpush1.bf16.msra.mxu0 %v456
      %483 = vmatprep.subr.bf16.mxu0 0
      %484 = vmatpush1.bf16.msra.mxu0 %v457
      %485 = vmatprep.subr.bf16.mxu0 0
      %486 = vmatpush1.bf16.msra.mxu0 0
      %487 = vmatprep.subr.bf16.mxu0 0
      %488 = vmatpush1.bf16.msra.mxu0 0
      %489 = vmatprep.subr.bf16.mxu0 0
      %490 = vmatpush1.bf16.msra.mxu0 0
      %491 = vmatprep.subr.bf16.mxu0 0
      %492 = vmatpush1.bf16.msra.mxu0 0
      %493 = vmatprep.subr.bf16.mxu0 0
      %494 = vmatpush1.bf16.msra.mxu0 0
      %495 = vmatprep.subr.bf16.mxu0 0
      %496 = vmatpush1.bf16.msra.mxu0 0
      %497 = vmatprep.subr.bf16.mxu0 0
      %498 = vmatpush1.bf16.msra.mxu0 0
      %499 = vmatprep.subr.bf16.mxu0 0
      %500 = vmatpush1.bf16.msra.mxu0 0
      %501 = vmatprep.subr.bf16.mxu0 0
      %502 = vmatpush1.bf16.msra.mxu0 0
      %503 = vmatprep.subr.bf16.mxu0 0
      %504 = vmatpush1.bf16.msra.mxu0 0
      %505 = vmatprep.subr.bf16.mxu0 0
      %506 = vmatpush1.bf16.msra.mxu0 0
      %507 = vmatprep.subr.bf16.mxu0 0
      %508 = vmatpush1.bf16.msra.mxu0 0
      %509 = vmatprep.mubr.bf16.mxu0 0
      %510 = vmatmul.mubr.bf16.gmra.mrb[0].mxu0 %v463
      %v511 = vpop.f32.mrb[0].mxu0
      %v512 = vadd.f32 %v401, %v511
      %v513 = vpop.f32.mrb[0].mxu0
      %v514 = vpop.f32.mrb[0].mxu0
      %v515 = vadd.f32 %v404, %v514
      %v516 = vpop.f32.mrb[0].mxu0
      %517 = vmatprep.mubr.bf16.mxu0 0
      %518 = vmatmul.mubr.bf16.gmra.mrb[0].mxu0 %v466
      %v519 = vpop.f32.mrb[0].mxu0
      %v520 = vadd.f32 %v409, %v519
      %v521 = vpop.f32.mrb[0].mxu0
      %v522 = vpop.f32.mrb[0].mxu0
      %v523 = vadd.f32 %v412, %v522
      %v524 = vpop.f32.mrb[0].mxu0
      %525 = vmatprep.mubr.bf16.mxu0 0
      %526 = vmatmul.mubr.bf16.gmra.mrb[0].mxu0 %v469
      %v527 = vpop.f32.mrb[0].mxu0
      %v528 = vadd.f32 %v417, %v527
      %v529 = vpop.f32.mrb[0].mxu0
      %v530 = vpop.f32.mrb[0].mxu0
      %v531 = vadd.f32 %v420, %v530
      %v532 = vpop.f32.mrb[0].mxu0
      %533 = vmatprep.mubr.bf16.mxu0 0
      %534 = vmatmul.mubr.bf16.gmra.mrb[0].mxu0 %v472
      %v535 = vpop.f32.mrb[0].mxu0
      %v536 = vadd.f32 %v425, %v535
      %v537 = vpop.f32.mrb[0].mxu0
      %v538 = vpop.f32.mrb[0].mxu0
      %v539 = vadd.f32 %v428, %v538
      %v540 = vpop.f32.mrb[0].mxu0
      %541 = vmatprep.mubr.bf16.mxu0 0
      %542 = vmatmul.mubr.bf16.gmra.mrb[0].mxu0 %v475
      %v543 = vpop.f32.mrb[0].mxu0
      %v544 = vadd.f32 %v433, %v543
      %v545 = vpop.f32.mrb[0].mxu0
      %v546 = vpop.f32.mrb[0].mxu0
      %v547 = vpop.f32.mrb[0].mxu0
      %548 = vdwg.mxu0
      %v549 = vld [vmem:[%s273 + $0x1] sm:$0xff]
      %v550 = vld [vmem:[%s273 + $0x9] sm:$0xff]
      %v551 = vld [vmem:[%s273 + $0x11] sm:$0xff]
      %v552 = vld [vmem:[%s273 + $0x19] sm:$0xff]
      %v553 = vld [vmem:[%s273 + $0x21] sm:$0xff]
      %v554 = vld [vmem:[%s273 + $0x29] sm:$0xff]
      %v555 = vld [vmem:[%s273 + $0x31] sm:$0xff]
      %v556 = vld [vmem:[%s273 + $0x39] sm:$0xff]
      %v557 = vld [vmem:[%s273 + $0x41] sm:$0x7f]
      %v558 = vpack.c.bf16 %v550, %v549
      %v559 = vpack.c.bf16 %v552, %v551
      %v560 = vpack.c.bf16 %v554, %v553
      %v561 = vpack.c.bf16 %v556, %v555
      %v562 = vpack.c.bf16 %v557, %v557
      %s563 = scalar_lea.vmem %s1, 64
      %v564 = vld [vmem:[%s563] sm:$0xf]
      %v565 = vld [vmem:[%s563 + $0x4] sm:$0xf]
      %v566 = vld [vmem:[%s563 + $0x8] sm:$0xf]
      %v567 = vld [vmem:[%s563 + $0xc] sm:$0xf]
      %v568 = vld [vmem:[%s563 + $0x10] sm:$0xf]
      %v569 = vld [vmem:[%s563 + $0x14] sm:$0xf]
      %v570 = vld [vmem:[%s563 + $0x18] sm:$0xf]
      %v571 = vld [vmem:[%s563 + $0x1c] sm:$0xf]
      %v580 = vunpack.c.l.b16 %v564
      %v581 = vunpack.c.l.b16 %v565
      %v582 = vunpack.c.l.b16 %v566
      %v583 = vunpack.c.l.b16 %v567
      %v584 = vunpack.c.l.b16 %v568
      %v585 = vunpack.c.l.b16 %v569
      %v586 = vunpack.c.l.b16 %v570
      %v587 = vunpack.c.l.b16 %v571
      %v588 = vpack.c.b16 %v581, %v580
      %v589 = vpack.c.b16 %v583, %v582
      %v590 = vpack.c.b16 %v585, %v584
      %v591 = vpack.c.b16 %v587, %v586
      %v597 = vsel %vm350, %v558, 0
      %v600 = vsel %vm350, %v559, 0
      %v603 = vsel %vm350, %v560, 0
      %v606 = vsel %vm350, %v561, 0
      %v609 = vsel %vm350, %v562, 0
      %611 = vmatprep.subr.bf16.mxu0 0
      %612 = vmatpush1.bf16.msra.mxu0 %v588
      %613 = vmatprep.subr.bf16.mxu0 0
      %614 = vmatpush1.bf16.msra.mxu0 %v589
      %615 = vmatprep.subr.bf16.mxu0 0
      %616 = vmatpush1.bf16.msra.mxu0 %v590
      %617 = vmatprep.subr.bf16.mxu0 0
      %618 = vmatpush1.bf16.msra.mxu0 %v591
      %619 = vmatprep.subr.bf16.mxu0 0
      %620 = vmatpush1.bf16.msra.mxu0 0
      %621 = vmatprep.subr.bf16.mxu0 0
      %622 = vmatpush1.bf16.msra.mxu0 0
      %623 = vmatprep.subr.bf16.mxu0 0
      %624 = vmatpush1.bf16.msra.mxu0 0
      %625 = vmatprep.subr.bf16.mxu0 0
      %626 = vmatpush1.bf16.msra.mxu0 0
      %627 = vmatprep.subr.bf16.mxu0 0
      %628 = vmatpush1.bf16.msra.mxu0 0
      %629 = vmatprep.subr.bf16.mxu0 0
      %630 = vmatpush1.bf16.msra.mxu0 0
      %631 = vmatprep.subr.bf16.mxu0 0
      %632 = vmatpush1.bf16.msra.mxu0 0
      %633 = vmatprep.subr.bf16.mxu0 0
      %634 = vmatpush1.bf16.msra.mxu0 0
      %635 = vmatprep.subr.bf16.mxu0 0
      %636 = vmatpush1.bf16.msra.mxu0 0
      %637 = vmatprep.subr.bf16.mxu0 0
      %638 = vmatpush1.bf16.msra.mxu0 0
      %639 = vmatprep.subr.bf16.mxu0 0
      %640 = vmatpush1.bf16.msra.mxu0 0
      %641 = vmatprep.subr.bf16.mxu0 0
      %642 = vmatpush1.bf16.msra.mxu0 0
      %643 = vmatprep.mubr.bf16.mxu0 0
      %644 = vmatmul.mubr.bf16.gmra.mrb[0].mxu0 %v597
      %v645 = vpop.f32.mrb[0].mxu0
      %v646 = vadd.f32 0.0, %v645
      %v647 = vpop.f32.mrb[0].mxu0
      %v648 = vpop.f32.mrb[0].mxu0
      %v649 = vadd.f32 0.0, %v648
      %v650 = vpop.f32.mrb[0].mxu0
      %651 = vmatprep.mubr.bf16.mxu0 0
      %652 = vmatmul.mubr.bf16.gmra.mrb[0].mxu0 %v600
      %v653 = vpop.f32.mrb[0].mxu0
      %v654 = vadd.f32 0.0, %v653
      %v655 = vpop.f32.mrb[0].mxu0
      %v656 = vpop.f32.mrb[0].mxu0
      %v657 = vadd.f32 0.0, %v656
      %v658 = vpop.f32.mrb[0].mxu0
      %659 = vmatprep.mubr.bf16.mxu0 0
      %660 = vmatmul.mubr.bf16.gmra.mrb[0].mxu0 %v603
      %v661 = vpop.f32.mrb[0].mxu0
      %v662 = vadd.f32 0.0, %v661
      %v663 = vpop.f32.mrb[0].mxu0
      %v664 = vpop.f32.mrb[0].mxu0
      %v665 = vadd.f32 0.0, %v664
      %v666 = vpop.f32.mrb[0].mxu0
      %667 = vmatprep.mubr.bf16.mxu0 0
      %668 = vmatmul.mubr.bf16.gmra.mrb[0].mxu0 %v606
      %v669 = vpop.f32.mrb[0].mxu0
      %v670 = vadd.f32 0.0, %v669
      %v671 = vpop.f32.mrb[0].mxu0
      %v672 = vpop.f32.mrb[0].mxu0
      %v673 = vadd.f32 0.0, %v672
      %v674 = vpop.f32.mrb[0].mxu0
      %675 = vmatprep.mubr.bf16.mxu0 0
      %676 = vmatmul.mubr.bf16.gmra.mrb[0].mxu0 %v609
      %v677 = vpop.f32.mrb[0].mxu0
      %v678 = vadd.f32 0.0, %v677
      %v679 = vpop.f32.mrb[0].mxu0
      %v680 = vpop.f32.mrb[0].mxu0
      %v681 = vpop.f32.mrb[0].mxu0
      %682 = vdwg.mxu0
      %v683 = vadd.f32 %v512, %v646
      %v684 = vadd.f32 %v515, %v649
      %v685 = vadd.f32 %v520, %v654
      %v686 = vadd.f32 %v523, %v657
      %v687 = vadd.f32 %v528, %v662
      %v688 = vadd.f32 %v531, %v665
      %v689 = vadd.f32 %v536, %v670
      %v690 = vadd.f32 %v539, %v673
      %v691 = vadd.f32 %v544, %v678
      %s692 = scalar_lea.vmem %s273, 176
      %v693 = vld [vmem:[%s692] sm:$0xff]
      %v694 = vld [vmem:[%s692 + $0x8] sm:$0xff]
      %v695 = vld [vmem:[%s692 + $0x10] sm:$0xff]
      %v696 = vld [vmem:[%s692 + $0x18] sm:$0xff]
      %v697 = vld [vmem:[%s692 + $0x20] sm:$0xff]
      %v698 = vld [vmem:[%s692 + $0x28] sm:$0xff]
      %v699 = vld [vmem:[%s692 + $0x30] sm:$0xff]
      %v700 = vld [vmem:[%s692 + $0x38] sm:$0xff]
      %v701 = vld [vmem:[%s692 + $0x40] sm:$0x7f]
      %v702 = vpack.c.bf16 %v694, %v693
      %v703 = vpack.c.bf16 %v696, %v695
      %v704 = vpack.c.bf16 %v698, %v697
      %v705 = vpack.c.bf16 %v700, %v699
      %v706 = vpack.c.bf16 %v701, %v701
      %s707 = scalar_lea.vmem %s1, 96
      %v708 = vld [vmem:[%s707] sm:$0xf]
      %v709 = vld [vmem:[%s707 + $0x4] sm:$0xf]
      %v710 = vld [vmem:[%s707 + $0x8] sm:$0xf]
      %v711 = vld [vmem:[%s707 + $0xc] sm:$0xf]
      %v712 = vld [vmem:[%s707 + $0x10] sm:$0xf]
      %v713 = vld [vmem:[%s707 + $0x14] sm:$0xf]
      %v714 = vld [vmem:[%s707 + $0x18] sm:$0xf]
      %v715 = vld [vmem:[%s707 + $0x1c] sm:$0xf]
      %v724 = vunpack.c.l.b16 %v708
      %v725 = vunpack.c.l.b16 %v709
      %v726 = vunpack.c.l.b16 %v710
      %v727 = vunpack.c.l.b16 %v711
      %v728 = vunpack.c.l.b16 %v712
      %v729 = vunpack.c.l.b16 %v713
      %v730 = vunpack.c.l.b16 %v714
      %v731 = vunpack.c.l.b16 %v715
      %v732 = vpack.c.b16 %v725, %v724
      %v733 = vpack.c.b16 %v727, %v726
      %v734 = vpack.c.b16 %v729, %v728
      %v735 = vpack.c.b16 %v731, %v730
      %v741 = vsel %vm350, %v702, 0
      %v744 = vsel %vm350, %v703, 0
      %v747 = vsel %vm350, %v704, 0
      %v750 = vsel %vm350, %v705, 0
      %v753 = vsel %vm350, %v706, 0
      %755 = vmatprep.subr.bf16.mxu0 0
      %756 = vmatpush1.bf16.msra.mxu0 %v732
      %757 = vmatprep.subr.bf16.mxu0 0
      %758 = vmatpush1.bf16.msra.mxu0 %v733
      %759 = vmatprep.subr.bf16.mxu0 0
      %760 = vmatpush1.bf16.msra.mxu0 %v734
      %761 = vmatprep.subr.bf16.mxu0 0
      %762 = vmatpush1.bf16.msra.mxu0 %v735
      %763 = vmatprep.subr.bf16.mxu0 0
      %764 = vmatpush1.bf16.msra.mxu0 0
      %765 = vmatprep.subr.bf16.mxu0 0
      %766 = vmatpush1.bf16.msra.mxu0 0
      %767 = vmatprep.subr.bf16.mxu0 0
      %768 = vmatpush1.bf16.msra.mxu0 0
      %769 = vmatprep.subr.bf16.mxu0 0
      %770 = vmatpush1.bf16.msra.mxu0 0
      %771 = vmatprep.subr.bf16.mxu0 0
      %772 = vmatpush1.bf16.msra.mxu0 0
      %773 = vmatprep.subr.bf16.mxu0 0
      %774 = vmatpush1.bf16.msra.mxu0 0
      %775 = vmatprep.subr.bf16.mxu0 0
      %776 = vmatpush1.bf16.msra.mxu0 0
      %777 = vmatprep.subr.bf16.mxu0 0
      %778 = vmatpush1.bf16.msra.mxu0 0
      %779 = vmatprep.subr.bf16.mxu0 0
      %780 = vmatpush1.bf16.msra.mxu0 0
      %781 = vmatprep.subr.bf16.mxu0 0
      %782 = vmatpush1.bf16.msra.mxu0 0
      %783 = vmatprep.subr.bf16.mxu0 0
      %784 = vmatpush1.bf16.msra.mxu0 0
      %785 = vmatprep.subr.bf16.mxu0 0
      %786 = vmatpush1.bf16.msra.mxu0 0
      %787 = vmatprep.mubr.bf16.mxu0 0
      %788 = vmatmul.mubr.bf16.gmra.mrb[0].mxu0 %v741
      %v789 = vpop.f32.mrb[0].mxu0
      %v790 = vadd.f32 0.0, %v789
      %v791 = vpop.f32.mrb[0].mxu0
      %v792 = vpop.f32.mrb[0].mxu0
      %v793 = vadd.f32 0.0, %v792
      %v794 = vpop.f32.mrb[0].mxu0
      %795 = vmatprep.mubr.bf16.mxu0 0
      %796 = vmatmul.mubr.bf16.gmra.mrb[0].mxu0 %v744
      %v797 = vpop.f32.mrb[0].mxu0
      %v798 = vadd.f32 0.0, %v797
      %v799 = vpop.f32.mrb[0].mxu0
      %v800 = vpop.f32.mrb[0].mxu0
      %v801 = vadd.f32 0.0, %v800
      %v802 = vpop.f32.mrb[0].mxu0
      %803 = vmatprep.mubr.bf16.mxu0 0
      %804 = vmatmul.mubr.bf16.gmra.mrb[0].mxu0 %v747
      %v805 = vpop.f32.mrb[0].mxu0
      %v806 = vadd.f32 0.0, %v805
      %v807 = vpop.f32.mrb[0].mxu0
      %v808 = vpop.f32.mrb[0].mxu0
      %v809 = vadd.f32 0.0, %v808
      %v810 = vpop.f32.mrb[0].mxu0
      %811 = vmatprep.mubr.bf16.mxu0 0
      %812 = vmatmul.mubr.bf16.gmra.mrb[0].mxu0 %v750
      %v813 = vpop.f32.mrb[0].mxu0
      %v814 = vadd.f32 0.0, %v813
      %v815 = vpop.f32.mrb[0].mxu0
      %v816 = vpop.f32.mrb[0].mxu0
      %v817 = vadd.f32 0.0, %v816
      %v818 = vpop.f32.mrb[0].mxu0
      %819 = vmatprep.mubr.bf16.mxu0 0
      %820 = vmatmul.mubr.bf16.gmra.mrb[0].mxu0 %v753
      %v821 = vpop.f32.mrb[0].mxu0
      %v822 = vadd.f32 0.0, %v821
      %v823 = vpop.f32.mrb[0].mxu0
      %v824 = vpop.f32.mrb[0].mxu0
      %v825 = vpop.f32.mrb[0].mxu0
      %826 = vdwg.mxu0
      %v827 = vadd.f32 %v683, %v790
      %v828 = vadd.f32 %v684, %v793
      %v829 = vadd.f32 %v685, %v798
      %v830 = vadd.f32 %v686, %v801
      %v831 = vadd.f32 %v687, %v806
      %v832 = vadd.f32 %v688, %v809
      %v833 = vadd.f32 %v689, %v814
      %v834 = vadd.f32 %v690, %v817
      %v835 = vadd.f32 %v691, %v822
      %s836 = scalar_lea.vmem %s273, 264
      %v837 = vld [vmem:[%s836] sm:$0xff]
      %v838 = vld [vmem:[%s836 + $0x8] sm:$0xff]
      %v839 = vld [vmem:[%s836 + $0x10] sm:$0xff]
      %v840 = vld [vmem:[%s836 + $0x18] sm:$0xff]
      %v841 = vld [vmem:[%s836 + $0x20] sm:$0xff]
      %v842 = vld [vmem:[%s836 + $0x28] sm:$0xff]
      %v843 = vld [vmem:[%s836 + $0x30] sm:$0xff]
      %v844 = vld [vmem:[%s836 + $0x38] sm:$0xff]
      %v845 = vld [vmem:[%s836 + $0x40] sm:$0x7f]
      %v846 = vpack.c.bf16 %v838, %v837
      %v847 = vpack.c.bf16 %v840, %v839
      %v848 = vpack.c.bf16 %v842, %v841
      %v849 = vpack.c.bf16 %v844, %v843
      %v850 = vpack.c.bf16 %v845, %v845
      %s851 = scalar_lea.vmem %s1, 128
      %v852 = vld [vmem:[%s851] sm:$0xf]
      %v853 = vld [vmem:[%s851 + $0x4] sm:$0xf]
      %v854 = vld [vmem:[%s851 + $0x8] sm:$0xf]
      %v855 = vld [vmem:[%s851 + $0xc] sm:$0xf]
      %v856 = vld [vmem:[%s851 + $0x10] sm:$0xf]
      %v857 = vld [vmem:[%s851 + $0x14] sm:$0xf]
      %v858 = vld [vmem:[%s851 + $0x18] sm:$0xf]
      %v859 = vld [vmem:[%s851 + $0x1c] sm:$0xf]
      %v868 = vunpack.c.l.b16 %v852
      %v869 = vunpack.c.l.b16 %v853
      %v870 = vunpack.c.l.b16 %v854
      %v871 = vunpack.c.l.b16 %v855
      %v872 = vunpack.c.l.b16 %v856
      %v873 = vunpack.c.l.b16 %v857
      %v874 = vunpack.c.l.b16 %v858
      %v875 = vunpack.c.l.b16 %v859
      %v876 = vpack.c.b16 %v869, %v868
      %v877 = vpack.c.b16 %v871, %v870
      %v878 = vpack.c.b16 %v873, %v872
      %v879 = vpack.c.b16 %v875, %v874
      %v885 = vsel %vm350, %v846, 0
      %v888 = vsel %vm350, %v847, 0
      %v891 = vsel %vm350, %v848, 0
      %v894 = vsel %vm350, %v849, 0
      %v897 = vsel %vm350, %v850, 0
      %899 = vmatprep.subr.bf16.mxu0 0
      %900 = vmatpush1.bf16.msra.mxu0 %v876
      %901 = vmatprep.subr.bf16.mxu0 0
      %902 = vmatpush1.bf16.msra.mxu0 %v877
      %903 = vmatprep.subr.bf16.mxu0 0
      %904 = vmatpush1.bf16.msra.mxu0 %v878
      %905 = vmatprep.subr.bf16.mxu0 0
      %906 = vmatpush1.bf16.msra.mxu0 %v879
      %907 = vmatprep.subr.bf16.mxu0 0
      %908 = vmatpush1.bf16.msra.mxu0 0
      %909 = vmatprep.subr.bf16.mxu0 0
      %910 = vmatpush1.bf16.msra.mxu0 0
      %911 = vmatprep.subr.bf16.mxu0 0
      %912 = vmatpush1.bf16.msra.mxu0 0
      %913 = vmatprep.subr.bf16.mxu0 0
      %914 = vmatpush1.bf16.msra.mxu0 0
      %915 = vmatprep.subr.bf16.mxu0 0
      %916 = vmatpush1.bf16.msra.mxu0 0
      %917 = vmatprep.subr.bf16.mxu0 0
      %918 = vmatpush1.bf16.msra.mxu0 0
      %919 = vmatprep.subr.bf16.mxu0 0
      %920 = vmatpush1.bf16.msra.mxu0 0
      %921 = vmatprep.subr.bf16.mxu0 0
      %922 = vmatpush1.bf16.msra.mxu0 0
      %923 = vmatprep.subr.bf16.mxu0 0
      %924 = vmatpush1.bf16.msra.mxu0 0
      %925 = vmatprep.subr.bf16.mxu0 0
      %926 = vmatpush1.bf16.msra.mxu0 0
      %927 = vmatprep.subr.bf16.mxu0 0
      %928 = vmatpush1.bf16.msra.mxu0 0
      %929 = vmatprep.subr.bf16.mxu0 0
      %930 = vmatpush1.bf16.msra.mxu0 0
      %931 = vmatprep.mubr.bf16.mxu0 0
      %932 = vmatmul.mubr.bf16.gmra.mrb[0].mxu0 %v885
      %v933 = vpop.f32.mrb[0].mxu0
      %v934 = vadd.f32 0.0, %v933
      %v935 = vpop.f32.mrb[0].mxu0
      %v936 = vpop.f32.mrb[0].mxu0
      %v937 = vadd.f32 0.0, %v936
      %v938 = vpop.f32.mrb[0].mxu0
      %939 = vmatprep.mubr.bf16.mxu0 0
      %940 = vmatmul.mubr.bf16.gmra.mrb[0].mxu0 %v888
      %v941 = vpop.f32.mrb[0].mxu0
      %v942 = vadd.f32 0.0, %v941
      %v943 = vpop.f32.mrb[0].mxu0
      %v944 = vpop.f32.mrb[0].mxu0
      %v945 = vadd.f32 0.0, %v944
      %v946 = vpop.f32.mrb[0].mxu0
      %947 = vmatprep.mubr.bf16.mxu0 0
      %948 = vmatmul.mubr.bf16.gmra.mrb[0].mxu0 %v891
      %v949 = vpop.f32.mrb[0].mxu0
      %v950 = vadd.f32 0.0, %v949
      %v951 = vpop.f32.mrb[0].mxu0
      %v952 = vpop.f32.mrb[0].mxu0
      %v953 = vadd.f32 0.0, %v952
      %v954 = vpop.f32.mrb[0].mxu0
      %955 = vmatprep.mubr.bf16.mxu0 0
      %956 = vmatmul.mubr.bf16.gmra.mrb[0].mxu0 %v894
      %v957 = vpop.f32.mrb[0].mxu0
      %v958 = vadd.f32 0.0, %v957
      %v959 = vpop.f32.mrb[0].mxu0
      %v960 = vpop.f32.mrb[0].mxu0
      %v961 = vadd.f32 0.0, %v960
      %v962 = vpop.f32.mrb[0].mxu0
      %963 = vmatprep.mubr.bf16.mxu0 0
      %964 = vmatmul.mubr.bf16.gmra.mrb[0].mxu0 %v897
      %v965 = vpop.f32.mrb[0].mxu0
      %v966 = vadd.f32 0.0, %v965
      %v967 = vpop.f32.mrb[0].mxu0
      %v968 = vpop.f32.mrb[0].mxu0
      %v969 = vpop.f32.mrb[0].mxu0
      %970 = vdwg.mxu0
      %v971 = vadd.f32 %v827, %v934
      %v972 = vadd.f32 %v828, %v937
      %v973 = vadd.f32 %v829, %v942
      %v974 = vadd.f32 %v830, %v945
      %v975 = vadd.f32 %v831, %v950
      %v976 = vadd.f32 %v832, %v953
      %v977 = vadd.f32 %v833, %v958
      %v978 = vadd.f32 %v834, %v961
      %v979 = vadd.f32 %v835, %v966
      %v980 = vld [vmem:[%s692 + $0x1] sm:$0xff]
      %v981 = vld [vmem:[%s692 + $0x9] sm:$0xff]
      %v982 = vld [vmem:[%s692 + $0x11] sm:$0xff]
      %v983 = vld [vmem:[%s692 + $0x19] sm:$0xff]
      %v984 = vld [vmem:[%s692 + $0x21] sm:$0xff]
      %v985 = vld [vmem:[%s692 + $0x29] sm:$0xff]
      %v986 = vld [vmem:[%s692 + $0x31] sm:$0xff]
      %v987 = vld [vmem:[%s692 + $0x39] sm:$0xff]
      %v988 = vld [vmem:[%s692 + $0x41] sm:$0x7f]
      %v989 = vpack.c.bf16 %v981, %v980
      %v990 = vpack.c.bf16 %v983, %v982
      %v991 = vpack.c.bf16 %v985, %v984
      %v992 = vpack.c.bf16 %v987, %v986
      %v993 = vpack.c.bf16 %v988, %v988
      %s994 = scalar_lea.vmem %s1, 160
      %v995 = vld [vmem:[%s994] sm:$0xf]
      %v996 = vld [vmem:[%s994 + $0x4] sm:$0xf]
      %v997 = vld [vmem:[%s994 + $0x8] sm:$0xf]
      %v998 = vld [vmem:[%s994 + $0xc] sm:$0xf]
      %v999 = vld [vmem:[%s994 + $0x10] sm:$0xf]
      %v1000 = vld [vmem:[%s994 + $0x14] sm:$0xf]
      %v1001 = vld [vmem:[%s994 + $0x18] sm:$0xf]
      %v1002 = vld [vmem:[%s994 + $0x1c] sm:$0xf]
      %v1011 = vunpack.c.l.b16 %v995
      %v1012 = vunpack.c.l.b16 %v996
      %v1013 = vunpack.c.l.b16 %v997
      %v1014 = vunpack.c.l.b16 %v998
      %v1015 = vunpack.c.l.b16 %v999
      %v1016 = vunpack.c.l.b16 %v1000
      %v1017 = vunpack.c.l.b16 %v1001
      %v1018 = vunpack.c.l.b16 %v1002
      %v1019 = vpack.c.b16 %v1012, %v1011
      %v1020 = vpack.c.b16 %v1014, %v1013
      %v1021 = vpack.c.b16 %v1016, %v1015
      %v1022 = vpack.c.b16 %v1018, %v1017
      %v1028 = vsel %vm350, %v989, 0
      %v1031 = vsel %vm350, %v990, 0
      %v1034 = vsel %vm350, %v991, 0
      %v1037 = vsel %vm350, %v992, 0
      %v1040 = vsel %vm350, %v993, 0
      %1042 = vmatprep.subr.bf16.mxu0 0
      %1043 = vmatpush1.bf16.msra.mxu0 %v1019
      %1044 = vmatprep.subr.bf16.mxu0 0
      %1045 = vmatpush1.bf16.msra.mxu0 %v1020
      %1046 = vmatprep.subr.bf16.mxu0 0
      %1047 = vmatpush1.bf16.msra.mxu0 %v1021
      %1048 = vmatprep.subr.bf16.mxu0 0
      %1049 = vmatpush1.bf16.msra.mxu0 %v1022
      %1050 = vmatprep.subr.bf16.mxu0 0
      %1051 = vmatpush1.bf16.msra.mxu0 0
      %1052 = vmatprep.subr.bf16.mxu0 0
      %1053 = vmatpush1.bf16.msra.mxu0 0
      %1054 = vmatprep.subr.bf16.mxu0 0
      %1055 = vmatpush1.bf16.msra.mxu0 0
      %1056 = vmatprep.subr.bf16.mxu0 0
      %1057 = vmatpush1.bf16.msra.mxu0 0
      %1058 = vmatprep.subr.bf16.mxu0 0
      %1059 = vmatpush1.bf16.msra.mxu0 0
      %1060 = vmatprep.subr.bf16.mxu0 0
      %1061 = vmatpush1.bf16.msra.mxu0 0
      %1062 = vmatprep.subr.bf16.mxu0 0
      %1063 = vmatpush1.bf16.msra.mxu0 0
      %1064 = vmatprep.subr.bf16.mxu0 0
      %1065 = vmatpush1.bf16.msra.mxu0 0
      %1066 = vmatprep.subr.bf16.mxu0 0
      %1067 = vmatpush1.bf16.msra.mxu0 0
      %1068 = vmatprep.subr.bf16.mxu0 0
      %1069 = vmatpush1.bf16.msra.mxu0 0
      %1070 = vmatprep.subr.bf16.mxu0 0
      %1071 = vmatpush1.bf16.msra.mxu0 0
      %1072 = vmatprep.subr.bf16.mxu0 0
      %1073 = vmatpush1.bf16.msra.mxu0 0
      %1074 = vmatprep.mubr.bf16.mxu0 0
      %1075 = vmatmul.mubr.bf16.gmra.mrb[0].mxu0 %v1028
      %v1076 = vpop.f32.mrb[0].mxu0
      %v1077 = vadd.f32 0.0, %v1076
      %v1078 = vpop.f32.mrb[0].mxu0
      %v1079 = vpop.f32.mrb[0].mxu0
      %v1080 = vadd.f32 0.0, %v1079
      %v1081 = vpop.f32.mrb[0].mxu0
      %1082 = vmatprep.mubr.bf16.mxu0 0
      %1083 = vmatmul.mubr.bf16.gmra.mrb[0].mxu0 %v1031
      %v1084 = vpop.f32.mrb[0].mxu0
      %v1085 = vadd.f32 0.0, %v1084
      %v1086 = vpop.f32.mrb[0].mxu0
      %v1087 = vpop.f32.mrb[0].mxu0
      %v1088 = vadd.f32 0.0, %v1087
      %v1089 = vpop.f32.mrb[0].mxu0
      %1090 = vmatprep.mubr.bf16.mxu0 0
      %1091 = vmatmul.mubr.bf16.gmra.mrb[0].mxu0 %v1034
      %v1092 = vpop.f32.mrb[0].mxu0
      %v1093 = vadd.f32 0.0, %v1092
      %v1094 = vpop.f32.mrb[0].mxu0
      %v1095 = vpop.f32.mrb[0].mxu0
      %v1096 = vadd.f32 0.0, %v1095
      %v1097 = vpop.f32.mrb[0].mxu0
      %1098 = vmatprep.mubr.bf16.mxu0 0
      %1099 = vmatmul.mubr.bf16.gmra.mrb[0].mxu0 %v1037
      %v1100 = vpop.f32.mrb[0].mxu0
      %v1101 = vadd.f32 0.0, %v1100
      %v1102 = vpop.f32.mrb[0].mxu0
      %v1103 = vpop.f32.mrb[0].mxu0
      %v1104 = vadd.f32 0.0, %v1103
      %v1105 = vpop.f32.mrb[0].mxu0
      %1106 = vmatprep.mubr.bf16.mxu0 0
      %1107 = vmatmul.mubr.bf16.gmra.mrb[0].mxu0 %v1040
      %v1108 = vpop.f32.mrb[0].mxu0
      %v1109 = vadd.f32 0.0, %v1108
      %v1110 = vpop.f32.mrb[0].mxu0
      %v1111 = vpop.f32.mrb[0].mxu0
      %v1112 = vpop.f32.mrb[0].mxu0
      %1113 = vdwg.mxu0
      %v1114 = vadd.f32 %v971, %v1077
      %v1115 = vadd.f32 %v972, %v1080
      %v1116 = vadd.f32 %v973, %v1085
      %v1117 = vadd.f32 %v974, %v1088
      %v1118 = vadd.f32 %v975, %v1093
      %v1119 = vadd.f32 %v976, %v1096
      %v1120 = vadd.f32 %v977, %v1101
      %v1121 = vadd.f32 %v978, %v1104
      %v1122 = vadd.f32 %v979, %v1109
      %v1123 = vld [vmem:[%s273 + $0x9] sm:$0xff]
      %v1124 = vld [vmem:[%s273 + $0x11] sm:$0xff]
      %v1125 = vld [vmem:[%s273 + $0x19] sm:$0xff]
      %v1126 = vld [vmem:[%s273 + $0x21] sm:$0xff]
      %v1127 = vld [vmem:[%s273 + $0x29] sm:$0xff]
      %v1128 = vld [vmem:[%s273 + $0x31] sm:$0xff]
      %v1129 = vld [vmem:[%s273 + $0x39] sm:$0xff]
      %v1130 = vld [vmem:[%s273 + $0x41] sm:$0xff]
      %v1131 = vld [vmem:[%s273 + $0x49] sm:$0x7f]
      %v1132 = vpack.c.bf16 %v1124, %v1123
      %v1133 = vpack.c.bf16 %v1126, %v1125
      %v1134 = vpack.c.bf16 %v1128, %v1127
      %v1135 = vpack.c.bf16 %v1130, %v1129
      %v1136 = vpack.c.bf16 %v1131, %v1131
      %s1137 = scalar_lea.vmem %s1, 192
      %v1138 = vld [vmem:[%s1137] sm:$0xf]
      %v1139 = vld [vmem:[%s1137 + $0x4] sm:$0xf]
      %v1140 = vld [vmem:[%s1137 + $0x8] sm:$0xf]
      %v1141 = vld [vmem:[%s1137 + $0xc] sm:$0xf]
      %v1142 = vld [vmem:[%s1137 + $0x10] sm:$0xf]
      %v1143 = vld [vmem:[%s1137 + $0x14] sm:$0xf]
      %v1144 = vld [vmem:[%s1137 + $0x18] sm:$0xf]
      %v1145 = vld [vmem:[%s1137 + $0x1c] sm:$0xf]
      %v1154 = vunpack.c.l.b16 %v1138
      %v1155 = vunpack.c.l.b16 %v1139
      %v1156 = vunpack.c.l.b16 %v1140
      %v1157 = vunpack.c.l.b16 %v1141
      %v1158 = vunpack.c.l.b16 %v1142
      %v1159 = vunpack.c.l.b16 %v1143
      %v1160 = vunpack.c.l.b16 %v1144
      %v1161 = vunpack.c.l.b16 %v1145
      %v1162 = vpack.c.b16 %v1155, %v1154
      %v1163 = vpack.c.b16 %v1157, %v1156
      %v1164 = vpack.c.b16 %v1159, %v1158
      %v1165 = vpack.c.b16 %v1161, %v1160
      %v1171 = vsel %vm350, %v1132, 0
      %v1174 = vsel %vm350, %v1133, 0
      %v1177 = vsel %vm350, %v1134, 0
      %v1180 = vsel %vm350, %v1135, 0
      %v1183 = vsel %vm350, %v1136, 0
      %1185 = vmatprep.subr.bf16.mxu0 0
      %1186 = vmatpush1.bf16.msra.mxu0 %v1162
      %1187 = vmatprep.subr.bf16.mxu0 0
      %1188 = vmatpush1.bf16.msra.mxu0 %v1163
      %1189 = vmatprep.subr.bf16.mxu0 0
      %1190 = vmatpush1.bf16.msra.mxu0 %v1164
      %1191 = vmatprep.subr.bf16.mxu0 0
      %1192 = vmatpush1.bf16.msra.mxu0 %v1165
      %1193 = vmatprep.subr.bf16.mxu0 0
      %1194 = vmatpush1.bf16.msra.mxu0 0
      %1195 = vmatprep.subr.bf16.mxu0 0
      %1196 = vmatpush1.bf16.msra.mxu0 0
      %1197 = vmatprep.subr.bf16.mxu0 0
      %1198 = vmatpush1.bf16.msra.mxu0 0
      %1199 = vmatprep.subr.bf16.mxu0 0
      %1200 = vmatpush1.bf16.msra.mxu0 0
      %1201 = vmatprep.subr.bf16.mxu0 0
      %1202 = vmatpush1.bf16.msra.mxu0 0
      %1203 = vmatprep.subr.bf16.mxu0 0
      %1204 = vmatpush1.bf16.msra.mxu0 0
      %1205 = vmatprep.subr.bf16.mxu0 0
      %1206 = vmatpush1.bf16.msra.mxu0 0
      %1207 = vmatprep.subr.bf16.mxu0 0
      %1208 = vmatpush1.bf16.msra.mxu0 0
      %1209 = vmatprep.subr.bf16.mxu0 0
      %1210 = vmatpush1.bf16.msra.mxu0 0
      %1211 = vmatprep.subr.bf16.mxu0 0
      %1212 = vmatpush1.bf16.msra.mxu0 0
      %1213 = vmatprep.subr.bf16.mxu0 0
      %1214 = vmatpush1.bf16.msra.mxu0 0
      %1215 = vmatprep.subr.bf16.mxu0 0
      %1216 = vmatpush1.bf16.msra.mxu0 0
      %1217 = vmatprep.mubr.bf16.mxu0 0
      %1218 = vmatmul.mubr.bf16.gmra.mrb[0].mxu0 %v1171
      %v1219 = vpop.f32.mrb[0].mxu0
      %v1220 = vadd.f32 0.0, %v1219
      %v1221 = vpop.f32.mrb[0].mxu0
      %v1222 = vpop.f32.mrb[0].mxu0
      %v1223 = vadd.f32 0.0, %v1222
      %v1224 = vpop.f32.mrb[0].mxu0
      %1225 = vmatprep.mubr.bf16.mxu0 0
      %1226 = vmatmul.mubr.bf16.gmra.mrb[0].mxu0 %v1174
      %v1227 = vpop.f32.mrb[0].mxu0
      %v1228 = vadd.f32 0.0, %v1227
      %v1229 = vpop.f32.mrb[0].mxu0
      %v1230 = vpop.f32.mrb[0].mxu0
      %v1231 = vadd.f32 0.0, %v1230
      %v1232 = vpop.f32.mrb[0].mxu0
      %1233 = vmatprep.mubr.bf16.mxu0 0
      %1234 = vmatmul.mubr.bf16.gmra.mrb[0].mxu0 %v1177
      %v1235 = vpop.f32.mrb[0].mxu0
      %v1236 = vadd.f32 0.0, %v1235
      %v1237 = vpop.f32.mrb[0].mxu0
      %v1238 = vpop.f32.mrb[0].mxu0
      %v1239 = vadd.f32 0.0, %v1238
      %v1240 = vpop.f32.mrb[0].mxu0
      %1241 = vmatprep.mubr.bf16.mxu0 0
      %1242 = vmatmul.mubr.bf16.gmra.mrb[0].mxu0 %v1180
      %v1243 = vpop.f32.mrb[0].mxu0
      %v1244 = vadd.f32 0.0, %v1243
      %v1245 = vpop.f32.mrb[0].mxu0
      %v1246 = vpop.f32.mrb[0].mxu0
      %v1247 = vadd.f32 0.0, %v1246
      %v1248 = vpop.f32.mrb[0].mxu0
      %1249 = vmatprep.mubr.bf16.mxu0 0
      %1250 = vmatmul.mubr.bf16.gmra.mrb[0].mxu0 %v1183
      %v1251 = vpop.f32.mrb[0].mxu0
      %v1252 = vadd.f32 0.0, %v1251
      %v1253 = vpop.f32.mrb[0].mxu0
      %v1254 = vpop.f32.mrb[0].mxu0
      %v1255 = vpop.f32.mrb[0].mxu0
      %1256 = vdwg.mxu0
      %v1257 = vadd.f32 %v1114, %v1220
      %v1258 = vadd.f32 %v1115, %v1223
      %v1259 = vadd.f32 %v1116, %v1228
      %v1260 = vadd.f32 %v1117, %v1231
      %v1261 = vadd.f32 %v1118, %v1236
      %v1262 = vadd.f32 %v1119, %v1239
      %v1263 = vadd.f32 %v1120, %v1244
      %v1264 = vadd.f32 %v1121, %v1247
      %v1265 = vadd.f32 %v1122, %v1252
      %v1266 = vld [vmem:[%s302 + $0x9] sm:$0xff]
      %v1267 = vld [vmem:[%s302 + $0x11] sm:$0xff]
      %v1268 = vld [vmem:[%s302 + $0x19] sm:$0xff]
      %v1269 = vld [vmem:[%s302 + $0x21] sm:$0xff]
      %v1270 = vld [vmem:[%s302 + $0x29] sm:$0xff]
      %v1271 = vld [vmem:[%s302 + $0x31] sm:$0xff]
      %v1272 = vld [vmem:[%s302 + $0x39] sm:$0xff]
      %v1273 = vld [vmem:[%s302 + $0x41] sm:$0xff]
      %v1274 = vld [vmem:[%s302 + $0x49] sm:$0x7f]
      %v1275 = vpack.c.bf16 %v1267, %v1266
      %v1276 = vpack.c.bf16 %v1269, %v1268
      %v1277 = vpack.c.bf16 %v1271, %v1270
      %v1278 = vpack.c.bf16 %v1273, %v1272
      %v1279 = vpack.c.bf16 %v1274, %v1274
      %s1280 = scalar_lea.vmem %s1, 224
      %v1281 = vld [vmem:[%s1280] sm:$0xf]
      %v1282 = vld [vmem:[%s1280 + $0x4] sm:$0xf]
      %v1283 = vld [vmem:[%s1280 + $0x8] sm:$0xf]
      %v1284 = vld [vmem:[%s1280 + $0xc] sm:$0xf]
      %v1285 = vld [vmem:[%s1280 + $0x10] sm:$0xf]
      %v1286 = vld [vmem:[%s1280 + $0x14] sm:$0xf]
      %v1287 = vld [vmem:[%s1280 + $0x18] sm:$0xf]
      %v1288 = vld [vmem:[%s1280 + $0x1c] sm:$0xf]
      %v1297 = vunpack.c.l.b16 %v1281
      %v1298 = vunpack.c.l.b16 %v1282
      %v1299 = vunpack.c.l.b16 %v1283
      %v1300 = vunpack.c.l.b16 %v1284
      %v1301 = vunpack.c.l.b16 %v1285
      %v1302 = vunpack.c.l.b16 %v1286
      %v1303 = vunpack.c.l.b16 %v1287
      %v1304 = vunpack.c.l.b16 %v1288
      %v1305 = vpack.c.b16 %v1298, %v1297
      %v1306 = vpack.c.b16 %v1300, %v1299
      %v1307 = vpack.c.b16 %v1302, %v1301
      %v1308 = vpack.c.b16 %v1304, %v1303
      %v1314 = vsel %vm350, %v1275, 0
      %v1317 = vsel %vm350, %v1276, 0
      %v1320 = vsel %vm350, %v1277, 0
      %v1323 = vsel %vm350, %v1278, 0
      %v1326 = vsel %vm350, %v1279, 0
      %1328 = vmatprep.subr.bf16.mxu0 0
      %1329 = vmatpush1.bf16.msra.mxu0 %v1305
      %1330 = vmatprep.subr.bf16.mxu0 0
      %1331 = vmatpush1.bf16.msra.mxu0 %v1306
      %1332 = vmatprep.subr.bf16.mxu0 0
      %1333 = vmatpush1.bf16.msra.mxu0 %v1307
      %1334 = vmatprep.subr.bf16.mxu0 0
      %1335 = vmatpush1.bf16.msra.mxu0 %v1308
      %1336 = vmatprep.subr.bf16.mxu0 0
      %1337 = vmatpush1.bf16.msra.mxu0 0
      %1338 = vmatprep.subr.bf16.mxu0 0
      %1339 = vmatpush1.bf16.msra.mxu0 0
      %1340 = vmatprep.subr.bf16.mxu0 0
      %1341 = vmatpush1.bf16.msra.mxu0 0
      %1342 = vmatprep.subr.bf16.mxu0 0
      %1343 = vmatpush1.bf16.msra.mxu0 0
      %1344 = vmatprep.subr.bf16.mxu0 0
      %1345 = vmatpush1.bf16.msra.mxu0 0
      %1346 = vmatprep.subr.bf16.mxu0 0
      %1347 = vmatpush1.bf16.msra.mxu0 0
      %1348 = vmatprep.subr.bf16.mxu0 0
      %1349 = vmatpush1.bf16.msra.mxu0 0
      %1350 = vmatprep.subr.bf16.mxu0 0
      %1351 = vmatpush1.bf16.msra.mxu0 0
      %1352 = vmatprep.subr.bf16.mxu0 0
      %1353 = vmatpush1.bf16.msra.mxu0 0
      %1354 = vmatprep.subr.bf16.mxu0 0
      %1355 = vmatpush1.bf16.msra.mxu0 0
      %1356 = vmatprep.subr.bf16.mxu0 0
      %1357 = vmatpush1.bf16.msra.mxu0 0
      %1358 = vmatprep.subr.bf16.mxu0 0
      %1359 = vmatpush1.bf16.msra.mxu0 0
      %1360 = vmatprep.mubr.bf16.mxu0 0
      %1361 = vmatmul.mubr.bf16.gmra.mrb[0].mxu0 %v1314
      %v1362 = vpop.f32.mrb[0].mxu0
      %v1363 = vadd.f32 0.0, %v1362
      %v1364 = vpop.f32.mrb[0].mxu0
      %v1365 = vpop.f32.mrb[0].mxu0
      %v1366 = vadd.f32 0.0, %v1365
      %v1367 = vpop.f32.mrb[0].mxu0
      %1368 = vmatprep.mubr.bf16.mxu0 0
      %1369 = vmatmul.mubr.bf16.gmra.mrb[0].mxu0 %v1317
      %v1370 = vpop.f32.mrb[0].mxu0
      %v1371 = vadd.f32 0.0, %v1370
      %v1372 = vpop.f32.mrb[0].mxu0
      %v1373 = vpop.f32.mrb[0].mxu0
      %v1374 = vadd.f32 0.0, %v1373
      %v1375 = vpop.f32.mrb[0].mxu0
      %1376 = vmatprep.mubr.bf16.mxu0 0
      %1377 = vmatmul.mubr.bf16.gmra.mrb[0].mxu0 %v1320
      %v1378 = vpop.f32.mrb[0].mxu0
      %v1379 = vadd.f32 0.0, %v1378
      %v1380 = vpop.f32.mrb[0].mxu0
      %v1381 = vpop.f32.mrb[0].mxu0
      %v1382 = vadd.f32 0.0, %v1381
      %v1383 = vpop.f32.mrb[0].mxu0
      %1384 = vmatprep.mubr.bf16.mxu0 0
      %1385 = vmatmul.mubr.bf16.gmra.mrb[0].mxu0 %v1323
      %v1386 = vpop.f32.mrb[0].mxu0
      %v1387 = vadd.f32 0.0, %v1386
      %v1388 = vpop.f32.mrb[0].mxu0
      %v1389 = vpop.f32.mrb[0].mxu0
      %v1390 = vadd.f32 0.0, %v1389
      %v1391 = vpop.f32.mrb[0].mxu0
      %1392 = vmatprep.mubr.bf16.mxu0 0
      %1393 = vmatmul.mubr.bf16.gmra.mrb[0].mxu0 %v1326
      %v1394 = vpop.f32.mrb[0].mxu0
      %v1395 = vadd.f32 0.0, %v1394
      %v1396 = vpop.f32.mrb[0].mxu0
      %v1397 = vpop.f32.mrb[0].mxu0
      %v1398 = vpop.f32.mrb[0].mxu0
      %1399 = vdwg.mxu0
      %v1400 = vadd.f32 %v1257, %v1363
      %v1401 = vadd.f32 %v1258, %v1366
      %v1402 = vadd.f32 %v1259, %v1371
      %v1403 = vadd.f32 %v1260, %v1374
      %v1404 = vadd.f32 %v1261, %v1379
      %v1405 = vadd.f32 %v1262, %v1382
      %v1406 = vadd.f32 %v1263, %v1387
      %v1407 = vadd.f32 %v1264, %v1390
      %v1408 = vadd.f32 %v1265, %v1395
      %v1409 = vld [vmem:[%s273 + $0xa] sm:$0xff]
      %v1410 = vld [vmem:[%s273 + $0x12] sm:$0xff]
      %v1411 = vld [vmem:[%s273 + $0x1a] sm:$0xff]
      %v1412 = vld [vmem:[%s273 + $0x22] sm:$0xff]
      %v1413 = vld [vmem:[%s273 + $0x2a] sm:$0xff]
      %v1414 = vld [vmem:[%s273 + $0x32] sm:$0xff]
      %v1415 = vld [vmem:[%s273 + $0x3a] sm:$0xff]
      %v1416 = vld [vmem:[%s273 + $0x42] sm:$0xff]
      %v1417 = vld [vmem:[%s273 + $0x4a] sm:$0x7f]
      %v1418 = vpack.c.bf16 %v1410, %v1409
      %v1419 = vpack.c.bf16 %v1412, %v1411
      %v1420 = vpack.c.bf16 %v1414, %v1413
      %v1421 = vpack.c.bf16 %v1416, %v1415
      %v1422 = vpack.c.bf16 %v1417, %v1417
      %s1423 = scalar_lea.vmem %s1, 256
      %v1424 = vld [vmem:[%s1423] sm:$0xf]
      %v1425 = vld [vmem:[%s1423 + $0x4] sm:$0xf]
      %v1426 = vld [vmem:[%s1423 + $0x8] sm:$0xf]
      %v1427 = vld [vmem:[%s1423 + $0xc] sm:$0xf]
      %v1428 = vld [vmem:[%s1423 + $0x10] sm:$0xf]
      %v1429 = vld [vmem:[%s1423 + $0x14] sm:$0xf]
      %v1430 = vld [vmem:[%s1423 + $0x18] sm:$0xf]
      %v1431 = vld [vmem:[%s1423 + $0x1c] sm:$0xf]
      %v1440 = vunpack.c.l.b16 %v1424
      %v1441 = vunpack.c.l.b16 %v1425
      %v1442 = vunpack.c.l.b16 %v1426
      %v1443 = vunpack.c.l.b16 %v1427
      %v1444 = vunpack.c.l.b16 %v1428
      %v1445 = vunpack.c.l.b16 %v1429
      %v1446 = vunpack.c.l.b16 %v1430
      %v1447 = vunpack.c.l.b16 %v1431
      %v1448 = vpack.c.b16 %v1441, %v1440
      %v1449 = vpack.c.b16 %v1443, %v1442
      %v1450 = vpack.c.b16 %v1445, %v1444
      %v1451 = vpack.c.b16 %v1447, %v1446
      %v1457 = vsel %vm350, %v1418, 0
      %v1460 = vsel %vm350, %v1419, 0
      %v1463 = vsel %vm350, %v1420, 0
      %v1466 = vsel %vm350, %v1421, 0
      %v1469 = vsel %vm350, %v1422, 0
      %1471 = vmatprep.subr.bf16.mxu0 0
      %1472 = vmatpush1.bf16.msra.mxu0 %v1448
      %1473 = vmatprep.subr.bf16.mxu0 0
      %1474 = vmatpush1.bf16.msra.mxu0 %v1449
      %1475 = vmatprep.subr.bf16.mxu0 0
      %1476 = vmatpush1.bf16.msra.mxu0 %v1450
      %1477 = vmatprep.subr.bf16.mxu0 0
      %1478 = vmatpush1.bf16.msra.mxu0 %v1451
      %1479 = vmatprep.subr.bf16.mxu0 0
      %1480 = vmatpush1.bf16.msra.mxu0 0
      %1481 = vmatprep.subr.bf16.mxu0 0
      %1482 = vmatpush1.bf16.msra.mxu0 0
      %1483 = vmatprep.subr.bf16.mxu0 0
      %1484 = vmatpush1.bf16.msra.mxu0 0
      %1485 = vmatprep.subr.bf16.mxu0 0
      %1486 = vmatpush1.bf16.msra.mxu0 0
      %1487 = vmatprep.subr.bf16.mxu0 0
      %1488 = vmatpush1.bf16.msra.mxu0 0
      %1489 = vmatprep.subr.bf16.mxu0 0
      %1490 = vmatpush1.bf16.msra.mxu0 0
      %1491 = vmatprep.subr.bf16.mxu0 0
      %1492 = vmatpush1.bf16.msra.mxu0 0
      %1493 = vmatprep.subr.bf16.mxu0 0
      %1494 = vmatpush1.bf16.msra.mxu0 0
      %1495 = vmatprep.subr.bf16.mxu0 0
      %1496 = vmatpush1.bf16.msra.mxu0 0
      %1497 = vmatprep.subr.bf16.mxu0 0
      %1498 = vmatpush1.bf16.msra.mxu0 0
      %1499 = vmatprep.subr.bf16.mxu0 0
      %1500 = vmatpush1.bf16.msra.mxu0 0
      %1501 = vmatprep.subr.bf16.mxu0 0
      %1502 = vmatpush1.bf16.msra.mxu0 0
      %1503 = vmatprep.mubr.bf16.mxu0 0
      %1504 = vmatmul.mubr.bf16.gmra.mrb[0].mxu0 %v1457
      %v1505 = vpop.f32.mrb[0].mxu0
      %v1506 = vadd.f32 0.0, %v1505
      %v1507 = vpop.f32.mrb[0].mxu0
      %v1508 = vpop.f32.mrb[0].mxu0
      %v1509 = vadd.f32 0.0, %v1508
      %v1510 = vpop.f32.mrb[0].mxu0
      %1511 = vmatprep.mubr.bf16.mxu0 0
      %1512 = vmatmul.mubr.bf16.gmra.mrb[0].mxu0 %v1460
      %v1513 = vpop.f32.mrb[0].mxu0
      %v1514 = vadd.f32 0.0, %v1513
      %v1515 = vpop.f32.mrb[0].mxu0
      %v1516 = vpop.f32.mrb[0].mxu0
      %v1517 = vadd.f32 0.0, %v1516
      %v1518 = vpop.f32.mrb[0].mxu0
      %1519 = vmatprep.mubr.bf16.mxu0 0
      %1520 = vmatmul.mubr.bf16.gmra.mrb[0].mxu0 %v1463
      %v1521 = vpop.f32.mrb[0].mxu0
      %v1522 = vadd.f32 0.0, %v1521
      %v1523 = vpop.f32.mrb[0].mxu0
      %v1524 = vpop.f32.mrb[0].mxu0
      %v1525 = vadd.f32 0.0, %v1524
      %v1526 = vpop.f32.mrb[0].mxu0
      %1527 = vmatprep.mubr.bf16.mxu0 0
      %1528 = vmatmul.mubr.bf16.gmra.mrb[0].mxu0 %v1466
      %v1529 = vpop.f32.mrb[0].mxu0
      %v1530 = vadd.f32 0.0, %v1529
      %v1531 = vpop.f32.mrb[0].mxu0
      %v1532 = vpop.f32.mrb[0].mxu0
      %v1533 = vadd.f32 0.0, %v1532
      %v1534 = vpop.f32.mrb[0].mxu0
      %1535 = vmatprep.mubr.bf16.mxu0 0
      %1536 = vmatmul.mubr.bf16.gmra.mrb[0].mxu0 %v1469
      %v1537 = vpop.f32.mrb[0].mxu0
      %v1538 = vadd.f32 0.0, %v1537
      %v1539 = vpop.f32.mrb[0].mxu0
      %v1540 = vpop.f32.mrb[0].mxu0
      %v1541 = vpop.f32.mrb[0].mxu0
      %1542 = vdwg.mxu0
      %v1543 = vadd.f32 %v1400, %v1506
      %v1544 = vadd.f32 %v1401, %v1509
      %v1545 = vadd.f32 %v1402, %v1514
      %v1546 = vadd.f32 %v1403, %v1517
      %v1547 = vadd.f32 %v1404, %v1522
      %v1548 = vadd.f32 %v1405, %v1525
      %v1549 = vadd.f32 %v1406, %v1530
      %v1550 = vadd.f32 %v1407, %v1533
      %v1551 = vadd.f32 %v1408, %v1538
      %v1552 = vld [vmem:[%s2] sm:$0x1]
      %v1554 = vlaneseq
      %v1555 = vshrl.u32 %v1554, 7
      %v1556 = vsub.s32 0, %v1555
      %v1557 = vrot.slane %v1552, %v1556
      %v1559 = vadd.f32 %v1543, %v1557
      %v1560 = vadd.f32 %v1544, %v1557
      %v1561 = vadd.f32 %v1545, %v1557
      %v1562 = vadd.f32 %v1546, %v1557
      %v1563 = vadd.f32 %v1547, %v1557
      %v1564 = vadd.f32 %v1548, %v1557
      %v1565 = vadd.f32 %v1549, %v1557
      %v1566 = vadd.f32 %v1550, %v1557
      %v1567 = vadd.f32 %v1551, %v1557
      %vm1568 = vcmp.ge.f32.partialorder %v1559, 0.0
      %vm1569 = vcmp.ge.f32.partialorder %v1560, 0.0
      %vm1570 = vcmp.ge.f32.partialorder %v1561, 0.0
      %vm1571 = vcmp.ge.f32.partialorder %v1562, 0.0
      %vm1572 = vcmp.ge.f32.partialorder %v1563, 0.0
      %vm1573 = vcmp.ge.f32.partialorder %v1564, 0.0
      %vm1574 = vcmp.ge.f32.partialorder %v1565, 0.0
      %vm1575 = vcmp.ge.f32.partialorder %v1566, 0.0
      %vm1576 = vcmp.ge.f32.partialorder %v1567, 0.0
      %v1577 = vmul.f32 %v1559, 0.01
      %v1578 = vmul.f32 %v1560, 0.01
      %v1579 = vmul.f32 %v1561, 0.01
      %v1580 = vmul.f32 %v1562, 0.01
      %v1581 = vmul.f32 %v1563, 0.01
      %v1582 = vmul.f32 %v1564, 0.01
      %v1583 = vmul.f32 %v1565, 0.01
      %v1584 = vmul.f32 %v1566, 0.01
      %v1585 = vmul.f32 %v1567, 0.01
      %v1586 = vsel %vm1568, %v1559, %v1577
      %v1587 = vsel %vm1569, %v1560, %v1578
      %v1588 = vsel %vm1570, %v1561, %v1579
      %v1589 = vsel %vm1571, %v1562, %v1580
      %v1590 = vsel %vm1572, %v1563, %v1581
      %v1591 = vsel %vm1573, %v1564, %v1582
      %v1592 = vsel %vm1574, %v1565, %v1583
      %v1593 = vsel %vm1575, %v1566, %v1584
      %v1594 = vsel %vm1576, %v1567, %v1585
      %1595 = vst [vmem:[#allocation2] sm:$0xff] %v1586
      %1596 = vst [vmem:[#allocation2 + $0x8] sm:$0xff] %v1587
      %1597 = vst [vmem:[#allocation2 + $0x10] sm:$0xff] %v1588
      %1598 = vst [vmem:[#allocation2 + $0x18] sm:$0xff] %v1589
      %1599 = vst [vmem:[#allocation2 + $0x20] sm:$0xff] %v1590
      %1600 = vst [vmem:[#allocation2 + $0x28] sm:$0xff] %v1591
      %1601 = vst [vmem:[#allocation2 + $0x30] sm:$0xff] %v1592
      %1602 = vst [vmem:[#allocation2 + $0x38] sm:$0xff] %v1593
      %1603 = vst [vmem:[#allocation2 + $0x40] sm:$0x7f] %v1594
      %v1604 = vld [vmem:[%s836] sm:$0xff]
      %v1605 = vld [vmem:[%s836 + $0x8] sm:$0xff]
      %v1606 = vld [vmem:[%s836 + $0x10] sm:$0xff]
      %v1607 = vld [vmem:[%s836 + $0x18] sm:$0xff]
      %v1608 = vld [vmem:[%s836 + $0x20] sm:$0xff]
      %v1609 = vld [vmem:[%s836 + $0x28] sm:$0xff]
      %v1610 = vld [vmem:[%s836 + $0x30] sm:$0xff]
      %v1611 = vld [vmem:[%s836 + $0x38] sm:$0xff]
      %v1612 = vld [vmem:[%s836 + $0x40] sm:$0x7f]
      %v1613 = vpack.c.bf16 %v1605, %v1604
      %v1614 = vpack.c.bf16 %v1607, %v1606
      %v1615 = vpack.c.bf16 %v1609, %v1608
      %v1616 = vpack.c.bf16 %v1611, %v1610
      %v1617 = vpack.c.bf16 %v1612, %v1612
      %v1618 = vld [vmem:[%s5] sm:$0xf]
      %v1619 = vld [vmem:[%s5 + $0x4] sm:$0xf]
      %v1620 = vld [vmem:[%s5 + $0x8] sm:$0xf]
      %v1621 = vld [vmem:[%s5 + $0xc] sm:$0xf]
      %v1622 = vld [vmem:[%s5 + $0x10] sm:$0xf]
      %v1623 = vld [vmem:[%s5 + $0x14] sm:$0xf]
      %v1624 = vld [vmem:[%s5 + $0x18] sm:$0xf]
      %v1625 = vld [vmem:[%s5 + $0x1c] sm:$0xf]
      %v1626 = vld [vmem:[%s6] sm:$0x1]
      %v1628 = vlaneseq
      %v1629 = vshrl.u32 %v1628, 7
      %v1630 = vsub.s32 0, %v1629
      %v1631 = vrot.slane %v1626, %v1630
      %v1641 = vunpack.c.l.b16 %v1618
      %v1642 = vunpack.c.l.b16 %v1619
      %v1643 = vunpack.c.l.b16 %v1620
      %v1644 = vunpack.c.l.b16 %v1621
      %v1645 = vunpack.c.l.b16 %v1622
      %v1646 = vunpack.c.l.b16 %v1623
      %v1647 = vunpack.c.l.b16 %v1624
      %v1648 = vunpack.c.l.b16 %v1625
      %v1649 = vpack.c.b16 %v1642, %v1641
      %v1650 = vpack.c.b16 %v1644, %v1643
      %v1651 = vpack.c.b16 %v1646, %v1645
      %v1652 = vpack.c.b16 %v1648, %v1647
      %v1658 = vsel %vm350, %v1613, 0
      %v1661 = vsel %vm350, %v1614, 0
      %v1664 = vsel %vm350, %v1615, 0
      %v1667 = vsel %vm350, %v1616, 0
      %v1670 = vsel %vm350, %v1617, 0
      %1672 = vmatprep.subr.bf16.mxu0 0
      %1673 = vmatpush1.bf16.msra.mxu0 %v1649
      %1674 = vmatprep.subr.bf16.mxu0 0
      %1675 = vmatpush1.bf16.msra.mxu0 %v1650
      %1676 = vmatprep.subr.bf16.mxu0 0
      %1677 = vmatpush1.bf16.msra.mxu0 %v1651
      %1678 = vmatprep.subr.bf16.mxu0 0
      %1679 = vmatpush1.bf16.msra.mxu0 %v1652
      %1680 = vmatprep.subr.bf16.mxu0 0
      %1681 = vmatpush1.bf16.msra.mxu0 0
      %1682 = vmatprep.subr.bf16.mxu0 0
      %1683 = vmatpush1.bf16.msra.mxu0 0
      %1684 = vmatprep.subr.bf16.mxu0 0
      %1685 = vmatpush1.bf16.msra.mxu0 0
      %1686 = vmatprep.subr.bf16.mxu0 0
      %1687 = vmatpush1.bf16.msra.mxu0 0
      %1688 = vmatprep.subr.bf16.mxu0 0
      %1689 = vmatpush1.bf16.msra.mxu0 0
      %1690 = vmatprep.subr.bf16.mxu0 0
      %1691 = vmatpush1.bf16.msra.mxu0 0
      %1692 = vmatprep.subr.bf16.mxu0 0
      %1693 = vmatpush1.bf16.msra.mxu0 0
      %1694 = vmatprep.subr.bf16.mxu0 0
      %1695 = vmatpush1.bf16.msra.mxu0 0
      %1696 = vmatprep.subr.bf16.mxu0 0
      %1697 = vmatpush1.bf16.msra.mxu0 0
      %1698 = vmatprep.subr.bf16.mxu0 0
      %1699 = vmatpush1.bf16.msra.mxu0 0
      %1700 = vmatprep.subr.bf16.mxu0 0
      %1701 = vmatpush1.bf16.msra.mxu0 0
      %1702 = vmatprep.subr.bf16.mxu0 0
      %1703 = vmatpush1.bf16.msra.mxu0 0
      %1704 = vmatprep.mubr.bf16.mxu0 0
      %1705 = vmatmul.mubr.bf16.gmra.mrb[0].mxu0 %v1658
      %v1706 = vpop.f32.mrb[0].mxu0
      %v1707 = vadd.f32 %v1631, %v1706
      %v1708 = vpop.f32.mrb[0].mxu0
      %v1709 = vpop.f32.mrb[0].mxu0
      %v1710 = vadd.f32 %v1631, %v1709
      %v1711 = vpop.f32.mrb[0].mxu0
      %1712 = vmatprep.mubr.bf16.mxu0 0
      %1713 = vmatmul.mubr.bf16.gmra.mrb[0].mxu0 %v1661
      %v1714 = vpop.f32.mrb[0].mxu0
      %v1715 = vadd.f32 %v1631, %v1714
      %v1716 = vpop.f32.mrb[0].mxu0
      %v1717 = vpop.f32.mrb[0].mxu0
      %v1718 = vadd.f32 %v1631, %v1717
      %v1719 = vpop.f32.mrb[0].mxu0
      %1720 = vmatprep.mubr.bf16.mxu0 0
      %1721 = vmatmul.mubr.bf16.gmra.mrb[0].mxu0 %v1664
      %v1722 = vpop.f32.mrb[0].mxu0
      %v1723 = vadd.f32 %v1631, %v1722
      %v1724 = vpop.f32.mrb[0].mxu0
      %v1725 = vpop.f32.mrb[0].mxu0
      %v1726 = vadd.f32 %v1631, %v1725
      %v1727 = vpop.f32.mrb[0].mxu0
      %1728 = vmatprep.mubr.bf16.mxu0 0
      %1729 = vmatmul.mubr.bf16.gmra.mrb[0].mxu0 %v1667
      %v1730 = vpop.f32.mrb[0].mxu0
      %v1731 = vadd.f32 %v1631, %v1730
      %v1732 = vpop.f32.mrb[0].mxu0
      %v1733 = vpop.f32.mrb[0].mxu0
      %v1734 = vadd.f32 %v1631, %v1733
      %v1735 = vpop.f32.mrb[0].mxu0
      %1736 = vmatprep.mubr.bf16.mxu0 0
      %1737 = vmatmul.mubr.bf16.gmra.mrb[0].mxu0 %v1670
      %v1738 = vpop.f32.mrb[0].mxu0
      %v1739 = vadd.f32 %v1631, %v1738
      %v1740 = vpop.f32.mrb[0].mxu0
      %v1741 = vpop.f32.mrb[0].mxu0
      %v1742 = vpop.f32.mrb[0].mxu0
      %1743 = vdwg.mxu0
      %1744 = vst [vmem:[#allocation3] sm:$0xff] %v1707
      %1745 = vst [vmem:[#allocation3 + $0x8] sm:$0xff] %v1710
      %1746 = vst [vmem:[#allocation3 + $0x10] sm:$0xff] %v1715
      %1747 = vst [vmem:[#allocation3 + $0x18] sm:$0xff] %v1718
      %1748 = vst [vmem:[#allocation3 + $0x20] sm:$0xff] %v1723
      %1749 = vst [vmem:[#allocation3 + $0x28] sm:$0xff] %v1726
      %1750 = vst [vmem:[#allocation3 + $0x30] sm:$0xff] %v1731
      %1751 = vst [vmem:[#allocation3 + $0x38] sm:$0xff] %v1734
      %1752 = vst [vmem:[#allocation3 + $0x40] sm:$0x7f] %v1739
      %1753 = vst [vmem:[#allocation4] sm:$0xff] 0.0
      %1754 = vst [vmem:[#allocation4 + $0x8] sm:$0xff] 0.0
      %1755 = vst [vmem:[#allocation4 + $0x10] sm:$0xff] 0.0
      %1756 = vst [vmem:[#allocation4 + $0x18] sm:$0xff] 0.0
      %1757 = vst [vmem:[#allocation4 + $0x20] sm:$0xff] 0.0
      %1758 = vst [vmem:[#allocation4 + $0x28] sm:$0xff] 0.0
      %1759 = vst [vmem:[#allocation4 + $0x30] sm:$0xff] 0.0
      %1760 = vst [vmem:[#allocation4 + $0x38] sm:$0xff] 0.0
      %1761 = vst [vmem:[#allocation4 + $0x40] sm:$0xff] 0.0
      %1762 = vst [vmem:[#allocation4 + $0x48] sm:$0xff] 0.0
      %1763 = vst [vmem:[#allocation4 + $0x50] sm:$0xff] 0.0
      %1764 = vst [vmem:[#allocation4 + $0x58] sm:$0xff] 0.0
      %1765 = vst [vmem:[#allocation4 + $0x60] sm:$0xf] 0.0
      %v1766 = vld [vmem:[#allocation2] sm:$0xff]
      %1767 = vst [vmem:[#allocation4 + $0xb] sm:$0xff] %v1766
      %v1768 = vld [vmem:[#allocation2 + $0x9] sm:$0xff]
      %1769 = vst [vmem:[#allocation4 + $0x15] sm:$0xff] %v1768
      %v1770 = vld [vmem:[#allocation2 + $0x12] sm:$0xff]
      %1771 = vst [vmem:[#allocation4 + $0x1f] sm:$0xff] %v1770
      %v1772 = vld [vmem:[#allocation2 + $0x1b] sm:$0xff]
      %1773 = vst [vmem:[#allocation4 + $0x29] sm:$0xff] %v1772
      %v1774 = vld [vmem:[#allocation2 + $0x24] sm:$0xff]
      %1775 = vst [vmem:[#allocation4 + $0x33] sm:$0xff] %v1774
      %v1776 = vld [vmem:[#allocation2 + $0x2d] sm:$0xff]
      %1777 = vst [vmem:[#allocation4 + $0x3d] sm:$0xff] %v1776
      %v1778 = vld [vmem:[#allocation2 + $0x36] sm:$0xff]
      %1779 = vst [vmem:[#allocation4 + $0x47] sm:$0xff] %v1778
      %v1780 = vld [vmem:[#allocation2 + $0x3f] sm:$0xff]
      %1781 = vst [vmem:[#allocation4 + $0x51] sm:$0xff] %v1780
      %v1782 = vld [vmem:[#allocation4] sm:$0xff]
      %v1783 = vld [vmem:[#allocation4 + $0x8] sm:$0xff]
      %v1784 = vld [vmem:[#allocation4 + $0x10] sm:$0xff]
      %v1785 = vld [vmem:[#allocation4 + $0x18] sm:$0xff]
      %v1786 = vld [vmem:[#allocation4 + $0x20] sm:$0xff]
      %v1787 = vld [vmem:[#allocation4 + $0x28] sm:$0xff]
      %v1788 = vld [vmem:[#allocation4 + $0x30] sm:$0xff]
      %v1789 = vld [vmem:[#allocation4 + $0x38] sm:$0xff]
      %v1790 = vld [vmem:[#allocation4 + $0x40] sm:$0xff]
      %v1791 = vld [vmem:[#allocation4 + $0x48] sm:$0x3f]
      %v1792 = vpack.c.bf16 %v1783, %v1782
      %v1793 = vpack.c.bf16 %v1785, %v1784
      %v1794 = vpack.c.bf16 %v1787, %v1786
      %v1795 = vpack.c.bf16 %v1789, %v1788
      %v1796 = vpack.c.bf16 %v1791, %v1790
      %v1797 = vld [vmem:[%s3] sm:$0xf]
      %v1798 = vld [vmem:[%s3 + $0x4] sm:$0xf]
      %v1799 = vld [vmem:[%s3 + $0x8] sm:$0xf]
      %v1800 = vld [vmem:[%s3 + $0xc] sm:$0xf]
      %v1801 = vld [vmem:[%s3 + $0x10] sm:$0xf]
      %v1802 = vld [vmem:[%s3 + $0x14] sm:$0xf]
      %v1803 = vld [vmem:[%s3 + $0x18] sm:$0xf]
      %v1804 = vld [vmem:[%s3 + $0x1c] sm:$0xf]
      %v1805 = vld [vmem:[%s3 + $0x20] sm:$0xf]
      %v1806 = vld [vmem:[%s3 + $0x24] sm:$0xf]
      %v1807 = vld [vmem:[%s3 + $0x28] sm:$0xf]
      %v1808 = vld [vmem:[%s3 + $0x2c] sm:$0xf]
      %v1809 = vld [vmem:[%s3 + $0x30] sm:$0xf]
      %v1810 = vld [vmem:[%s3 + $0x34] sm:$0xf]
      %v1811 = vld [vmem:[%s3 + $0x38] sm:$0xf]
      %v1812 = vld [vmem:[%s3 + $0x3c] sm:$0xf]
      %v1813 = vld [vmem:[#allocation4 + $0x1] sm:$0xff]
      %v1814 = vld [vmem:[#allocation4 + $0x9] sm:$0xff]
      %v1815 = vld [vmem:[#allocation4 + $0x11] sm:$0xff]
      %v1816 = vld [vmem:[#allocation4 + $0x19] sm:$0xff]
      %v1817 = vld [vmem:[#allocation4 + $0x21] sm:$0xff]
      %v1818 = vld [vmem:[#allocation4 + $0x29] sm:$0xff]
      %v1819 = vld [vmem:[#allocation4 + $0x31] sm:$0xff]
      %v1820 = vld [vmem:[#allocation4 + $0x39] sm:$0xff]
      %v1821 = vld [vmem:[#allocation4 + $0x41] sm:$0xff]
      %v1822 = vld [vmem:[#allocation4 + $0x49] sm:$0x3f]
      %v1823 = vpack.c.bf16 %v1814, %v1813
      %v1824 = vpack.c.bf16 %v1816, %v1815
      %v1825 = vpack.c.bf16 %v1818, %v1817
      %v1826 = vpack.c.bf16 %v1820, %v1819
      %v1827 = vpack.c.bf16 %v1822, %v1821
      %s1828 = scalar_lea.vmem %s3, 64
      %v1829 = vld [vmem:[%s1828] sm:$0xf]
      %v1830 = vld [vmem:[%s1828 + $0x4] sm:$0xf]
      %v1831 = vld [vmem:[%s1828 + $0x8] sm:$0xf]
      %v1832 = vld [vmem:[%s1828 + $0xc] sm:$0xf]
      %v1833 = vld [vmem:[%s1828 + $0x10] sm:$0xf]
      %v1834 = vld [vmem:[%s1828 + $0x14] sm:$0xf]
      %v1835 = vld [vmem:[%s1828 + $0x18] sm:$0xf]
      %v1836 = vld [vmem:[%s1828 + $0x1c] sm:$0xf]
      %v1837 = vld [vmem:[%s1828 + $0x20] sm:$0xf]
      %v1838 = vld [vmem:[%s1828 + $0x24] sm:$0xf]
      %v1839 = vld [vmem:[%s1828 + $0x28] sm:$0xf]
      %v1840 = vld [vmem:[%s1828 + $0x2c] sm:$0xf]
      %v1841 = vld [vmem:[%s1828 + $0x30] sm:$0xf]
      %v1842 = vld [vmem:[%s1828 + $0x34] sm:$0xf]
      %v1843 = vld [vmem:[%s1828 + $0x38] sm:$0xf]
      %v1844 = vld [vmem:[%s1828 + $0x3c] sm:$0xf]
      %v1861 = vunpack.c.l.b16 %v1829
      %v1862 = vunpack.c.l.b16 %v1830
      %v1863 = vunpack.c.l.b16 %v1831
      %v1864 = vunpack.c.l.b16 %v1832
      %v1865 = vunpack.c.l.b16 %v1833
      %v1866 = vunpack.c.l.b16 %v1834
      %v1867 = vunpack.c.l.b16 %v1835
      %v1868 = vunpack.c.l.b16 %v1836
      %v1869 = vunpack.c.l.b16 %v1837
      %v1870 = vunpack.c.l.b16 %v1838
      %v1871 = vunpack.c.l.b16 %v1839
      %v1872 = vunpack.c.l.b16 %v1840
      %v1873 = vunpack.c.l.b16 %v1841
      %v1874 = vunpack.c.l.b16 %v1842
      %v1875 = vunpack.c.l.b16 %v1843
      %v1876 = vunpack.c.l.b16 %v1844
      %v1877 = vpack.c.b16 %v1862, %v1861
      %v1878 = vpack.c.b16 %v1864, %v1863
      %v1879 = vpack.c.b16 %v1866, %v1865
      %v1880 = vpack.c.b16 %v1868, %v1867
      %v1881 = vpack.c.b16 %v1870, %v1869
      %v1882 = vpack.c.b16 %v1872, %v1871
      %v1883 = vpack.c.b16 %v1874, %v1873
      %v1884 = vpack.c.b16 %v1876, %v1875
      %1893 = vmatprep.subr.bf16.mxu0 0
      %1894 = vmatpush1.bf16.msra.mxu0 %v1877
      %1895 = vmatprep.subr.bf16.mxu0 0
      %1896 = vmatpush1.bf16.msra.mxu0 %v1878
      %1897 = vmatprep.subr.bf16.mxu0 0
      %1898 = vmatpush1.bf16.msra.mxu0 %v1879
      %1899 = vmatprep.subr.bf16.mxu0 0
      %1900 = vmatpush1.bf16.msra.mxu0 %v1880
      %1901 = vmatprep.subr.bf16.mxu0 0
      %1902 = vmatpush1.bf16.msra.mxu0 %v1881
      %1903 = vmatprep.subr.bf16.mxu0 0
      %1904 = vmatpush1.bf16.msra.mxu0 %v1882
      %1905 = vmatprep.subr.bf16.mxu0 0
      %1906 = vmatpush1.bf16.msra.mxu0 %v1883
      %1907 = vmatprep.subr.bf16.mxu0 0
      %1908 = vmatpush1.bf16.msra.mxu0 %v1884
      %1909 = vmatprep.subr.bf16.mxu0 0
      %1910 = vmatpush1.bf16.msra.mxu0 0
      %1911 = vmatprep.subr.bf16.mxu0 0
      %1912 = vmatpush1.bf16.msra.mxu0 0
      %1913 = vmatprep.subr.bf16.mxu0 0
      %1914 = vmatpush1.bf16.msra.mxu0 0
      %1915 = vmatprep.subr.bf16.mxu0 0
      %1916 = vmatpush1.bf16.msra.mxu0 0
      %1917 = vmatprep.subr.bf16.mxu0 0
      %1918 = vmatpush1.bf16.msra.mxu0 0
      %1919 = vmatprep.subr.bf16.mxu0 0
      %1920 = vmatpush1.bf16.msra.mxu0 0
      %1921 = vmatprep.subr.bf16.mxu0 0
      %1922 = vmatpush1.bf16.msra.mxu0 0
      %1923 = vmatprep.subr.bf16.mxu0 0
      %1924 = vmatpush1.bf16.msra.mxu0 0
      %1925 = vmatprep.mubr.bf16.mxu0 0
      %1926 = vmatmul.mubr.bf16.gmra.mrb[0].mxu0 %v1823
      %v1927 = vpop.f32.mrb[0].mxu0
      %v1928 = vadd.f32 0.0, %v1927
      %v1929 = vpop.f32.mrb[0].mxu0
      %v1930 = vpop.f32.mrb[0].mxu0
      %v1931 = vadd.f32 0.0, %v1930
      %v1932 = vpop.f32.mrb[0].mxu0
      %1933 = vmatprep.mubr.bf16.mxu0 0
      %1934 = vmatmul.mubr.bf16.gmra.mrb[0].mxu0 %v1824
      %v1935 = vpop.f32.mrb[0].mxu0
      %v1936 = vadd.f32 0.0, %v1935
      %v1937 = vpop.f32.mrb[0].mxu0
      %v1938 = vpop.f32.mrb[0].mxu0
      %v1939 = vadd.f32 0.0, %v1938
      %v1940 = vpop.f32.mrb[0].mxu0
      %1941 = vmatprep.mubr.bf16.mxu0 0
      %1942 = vmatmul.mubr.bf16.gmra.mrb[0].mxu0 %v1825
      %v1943 = vpop.f32.mrb[0].mxu0
      %v1944 = vadd.f32 0.0, %v1943
      %v1945 = vpop.f32.mrb[0].mxu0
      %v1946 = vpop.f32.mrb[0].mxu0
      %v1947 = vadd.f32 0.0, %v1946
      %v1948 = vpop.f32.mrb[0].mxu0
      %1949 = vmatprep.mubr.bf16.mxu0 0
      %1950 = vmatmul.mubr.bf16.gmra.mrb[0].mxu0 %v1826
      %v1951 = vpop.f32.mrb[0].mxu0
      %v1952 = vadd.f32 0.0, %v1951
      %v1953 = vpop.f32.mrb[0].mxu0
      %v1954 = vpop.f32.mrb[0].mxu0
      %v1955 = vadd.f32 0.0, %v1954
      %v1956 = vpop.f32.mrb[0].mxu0
      %1957 = vmatprep.mubr.bf16.mxu0 0
      %1958 = vmatmul.mubr.bf16.gmra.mrb[0].mxu0 %v1827
      %v1959 = vpop.f32.mrb[0].mxu0
      %v1960 = vadd.f32 0.0, %v1959
      %v1961 = vpop.f32.mrb[0].mxu0
      %v1962 = vpop.f32.mrb[0].mxu0
      %v1963 = vadd.f32 0.0, %v1962
      %v1964 = vpop.f32.mrb[0].mxu0
      %1965 = vdwg.mxu0
      %v1982 = vunpack.c.l.b16 %v1797
      %v1983 = vunpack.c.l.b16 %v1798
      %v1984 = vunpack.c.l.b16 %v1799
      %v1985 = vunpack.c.l.b16 %v1800
      %v1986 = vunpack.c.l.b16 %v1801
      %v1987 = vunpack.c.l.b16 %v1802
      %v1988 = vunpack.c.l.b16 %v1803
      %v1989 = vunpack.c.l.b16 %v1804
      %v1990 = vunpack.c.l.b16 %v1805
      %v1991 = vunpack.c.l.b16 %v1806
      %v1992 = vunpack.c.l.b16 %v1807
      %v1993 = vunpack.c.l.b16 %v1808
      %v1994 = vunpack.c.l.b16 %v1809
      %v1995 = vunpack.c.l.b16 %v1810
      %v1996 = vunpack.c.l.b16 %v1811
      %v1997 = vunpack.c.l.b16 %v1812
      %v1998 = vpack.c.b16 %v1983, %v1982
      %v1999 = vpack.c.b16 %v1985, %v1984
      %v2000 = vpack.c.b16 %v1987, %v1986
      %v2001 = vpack.c.b16 %v1989, %v1988
      %v2002 = vpack.c.b16 %v1991, %v1990
      %v2003 = vpack.c.b16 %v1993, %v1992
      %v2004 = vpack.c.b16 %v1995, %v1994
      %v2005 = vpack.c.b16 %v1997, %v1996
      %2014 = vmatprep.subr.bf16.mxu0 0
      %2015 = vmatpush1.bf16.msra.mxu0 %v1998
      %2016 = vmatprep.subr.bf16.mxu0 0
      %2017 = vmatpush1.bf16.msra.mxu0 %v1999
      %2018 = vmatprep.subr.bf16.mxu0 0
      %2019 = vmatpush1.bf16.msra.mxu0 %v2000
      %2020 = vmatprep.subr.bf16.mxu0 0
      %2021 = vmatpush1.bf16.msra.mxu0 %v2001
      %2022 = vmatprep.subr.bf16.mxu0 0
      %2023 = vmatpush1.bf16.msra.mxu0 %v2002
      %2024 = vmatprep.subr.bf16.mxu0 0
      %2025 = vmatpush1.bf16.msra.mxu0 %v2003
      %2026 = vmatprep.subr.bf16.mxu0 0
      %2027 = vmatpush1.bf16.msra.mxu0 %v2004
      %2028 = vmatprep.subr.bf16.mxu0 0
      %2029 = vmatpush1.bf16.msra.mxu0 %v2005
      %2030 = vmatprep.subr.bf16.mxu0 0
      %2031 = vmatpush1.bf16.msra.mxu0 0
      %2032 = vmatprep.subr.bf16.mxu0 0
      %2033 = vmatpush1.bf16.msra.mxu0 0
      %2034 = vmatprep.subr.bf16.mxu0 0
      %2035 = vmatpush1.bf16.msra.mxu0 0
      %2036 = vmatprep.subr.bf16.mxu0 0
      %2037 = vmatpush1.bf16.msra.mxu0 0
      %2038 = vmatprep.subr.bf16.mxu0 0
      %2039 = vmatpush1.bf16.msra.mxu0 0
      %2040 = vmatprep.subr.bf16.mxu0 0
      %2041 = vmatpush1.bf16.msra.mxu0 0
      %2042 = vmatprep.subr.bf16.mxu0 0
      %2043 = vmatpush1.bf16.msra.mxu0 0
      %2044 = vmatprep.subr.bf16.mxu0 0
      %2045 = vmatpush1.bf16.msra.mxu0 0
      %2046 = vmatprep.mubr.bf16.mxu0 0
      %2047 = vmatmul.mubr.bf16.gmra.mrb[0].mxu0 %v1792
      %v2048 = vpop.f32.mrb[0].mxu0
      %v2049 = vadd.f32 %v1928, %v2048
      %v2050 = vpop.f32.mrb[0].mxu0
      %v2051 = vpop.f32.mrb[0].mxu0
      %v2052 = vadd.f32 %v1931, %v2051
      %v2053 = vpop.f32.mrb[0].mxu0
      %2054 = vmatprep.mubr.bf16.mxu0 0
      %2055 = vmatmul.mubr.bf16.gmra.mrb[0].mxu0 %v1793
      %v2056 = vpop.f32.mrb[0].mxu0
      %v2057 = vadd.f32 %v1936, %v2056
      %v2058 = vpop.f32.mrb[0].mxu0
      %v2059 = vpop.f32.mrb[0].mxu0
      %v2060 = vadd.f32 %v1939, %v2059
      %v2061 = vpop.f32.mrb[0].mxu0
      %2062 = vmatprep.mubr.bf16.mxu0 0
      %2063 = vmatmul.mubr.bf16.gmra.mrb[0].mxu0 %v1794
      %v2064 = vpop.f32.mrb[0].mxu0
      %v2065 = vadd.f32 %v1944, %v2064
      %v2066 = vpop.f32.mrb[0].mxu0
      %v2067 = vpop.f32.mrb[0].mxu0
      %v2068 = vadd.f32 %v1947, %v2067
      %v2069 = vpop.f32.mrb[0].mxu0
      %2070 = vmatprep.mubr.bf16.mxu0 0
      %2071 = vmatmul.mubr.bf16.gmra.mrb[0].mxu0 %v1795
      %v2072 = vpop.f32.mrb[0].mxu0
      %v2073 = vadd.f32 %v1952, %v2072
      %v2074 = vpop.f32.mrb[0].mxu0
      %v2075 = vpop.f32.mrb[0].mxu0
      %v2076 = vadd.f32 %v1955, %v2075
      %v2077 = vpop.f32.mrb[0].mxu0
      %2078 = vmatprep.mubr.bf16.mxu0 0
      %2079 = vmatmul.mubr.bf16.gmra.mrb[0].mxu0 %v1796
      %v2080 = vpop.f32.mrb[0].mxu0
      %v2081 = vadd.f32 %v1960, %v2080
      %v2082 = vpop.f32.mrb[0].mxu0
      %v2083 = vpop.f32.mrb[0].mxu0
      %v2084 = vadd.f32 %v1963, %v2083
      %v2085 = vpop.f32.mrb[0].mxu0
      %2086 = vdwg.mxu0
      %v2087 = vld [vmem:[#allocation4 + $0x2] sm:$0xff]
      %v2088 = vld [vmem:[#allocation4 + $0xa] sm:$0xff]
      %v2089 = vld [vmem:[#allocation4 + $0x12] sm:$0xff]
      %v2090 = vld [vmem:[#allocation4 + $0x1a] sm:$0xff]
      %v2091 = vld [vmem:[#allocation4 + $0x22] sm:$0xff]
      %v2092 = vld [vmem:[#allocation4 + $0x2a] sm:$0xff]
      %v2093 = vld [vmem:[#allocation4 + $0x32] sm:$0xff]
      %v2094 = vld [vmem:[#allocation4 + $0x3a] sm:$0xff]
      %v2095 = vld [vmem:[#allocation4 + $0x42] sm:$0xff]
      %v2096 = vld [vmem:[#allocation4 + $0x4a] sm:$0x3f]
      %v2097 = vpack.c.bf16 %v2088, %v2087
      %v2098 = vpack.c.bf16 %v2090, %v2089
      %v2099 = vpack.c.bf16 %v2092, %v2091
      %v2100 = vpack.c.bf16 %v2094, %v2093
      %v2101 = vpack.c.bf16 %v2096, %v2095
      %s2102 = scalar_lea.vmem %s3, 128
      %v2103 = vld [vmem:[%s2102] sm:$0xf]
      %v2104 = vld [vmem:[%s2102 + $0x4] sm:$0xf]
      %v2105 = vld [vmem:[%s2102 + $0x8] sm:$0xf]
      %v2106 = vld [vmem:[%s2102 + $0xc] sm:$0xf]
      %v2107 = vld [vmem:[%s2102 + $0x10] sm:$0xf]
      %v2108 = vld [vmem:[%s2102 + $0x14] sm:$0xf]
      %v2109 = vld [vmem:[%s2102 + $0x18] sm:$0xf]
      %v2110 = vld [vmem:[%s2102 + $0x1c] sm:$0xf]
      %v2111 = vld [vmem:[%s2102 + $0x20] sm:$0xf]
      %v2112 = vld [vmem:[%s2102 + $0x24] sm:$0xf]
      %v2113 = vld [vmem:[%s2102 + $0x28] sm:$0xf]
      %v2114 = vld [vmem:[%s2102 + $0x2c] sm:$0xf]
      %v2115 = vld [vmem:[%s2102 + $0x30] sm:$0xf]
      %v2116 = vld [vmem:[%s2102 + $0x34] sm:$0xf]
      %v2117 = vld [vmem:[%s2102 + $0x38] sm:$0xf]
      %v2118 = vld [vmem:[%s2102 + $0x3c] sm:$0xf]
      %v2135 = vunpack.c.l.b16 %v2103
      %v2136 = vunpack.c.l.b16 %v2104
      %v2137 = vunpack.c.l.b16 %v2105
      %v2138 = vunpack.c.l.b16 %v2106
      %v2139 = vunpack.c.l.b16 %v2107
      %v2140 = vunpack.c.l.b16 %v2108
      %v2141 = vunpack.c.l.b16 %v2109
      %v2142 = vunpack.c.l.b16 %v2110
      %v2143 = vunpack.c.l.b16 %v2111
      %v2144 = vunpack.c.l.b16 %v2112
      %v2145 = vunpack.c.l.b16 %v2113
      %v2146 = vunpack.c.l.b16 %v2114
      %v2147 = vunpack.c.l.b16 %v2115
      %v2148 = vunpack.c.l.b16 %v2116
      %v2149 = vunpack.c.l.b16 %v2117
      %v2150 = vunpack.c.l.b16 %v2118
      %v2151 = vpack.c.b16 %v2136, %v2135
      %v2152 = vpack.c.b16 %v2138, %v2137
      %v2153 = vpack.c.b16 %v2140, %v2139
      %v2154 = vpack.c.b16 %v2142, %v2141
      %v2155 = vpack.c.b16 %v2144, %v2143
      %v2156 = vpack.c.b16 %v2146, %v2145
      %v2157 = vpack.c.b16 %v2148, %v2147
      %v2158 = vpack.c.b16 %v2150, %v2149
      %2167 = vmatprep.subr.bf16.mxu0 0
      %2168 = vmatpush1.bf16.msra.mxu0 %v2151
      %2169 = vmatprep.subr.bf16.mxu0 0
      %2170 = vmatpush1.bf16.msra.mxu0 %v2152
      %2171 = vmatprep.subr.bf16.mxu0 0
      %2172 = vmatpush1.bf16.msra.mxu0 %v2153
      %2173 = vmatprep.subr.bf16.mxu0 0
      %2174 = vmatpush1.bf16.msra.mxu0 %v2154
      %2175 = vmatprep.subr.bf16.mxu0 0
      %2176 = vmatpush1.bf16.msra.mxu0 %v2155
      %2177 = vmatprep.subr.bf16.mxu0 0
      %2178 = vmatpush1.bf16.msra.mxu0 %v2156
      %2179 = vmatprep.subr.bf16.mxu0 0
      %2180 = vmatpush1.bf16.msra.mxu0 %v2157
      %2181 = vmatprep.subr.bf16.mxu0 0
      %2182 = vmatpush1.bf16.msra.mxu0 %v2158
      %2183 = vmatprep.subr.bf16.mxu0 0
      %2184 = vmatpush1.bf16.msra.mxu0 0
      %2185 = vmatprep.subr.bf16.mxu0 0
      %2186 = vmatpush1.bf16.msra.mxu0 0
      %2187 = vmatprep.subr.bf16.mxu0 0
      %2188 = vmatpush1.bf16.msra.mxu0 0
      %2189 = vmatprep.subr.bf16.mxu0 0
      %2190 = vmatpush1.bf16.msra.mxu0 0
      %2191 = vmatprep.subr.bf16.mxu0 0
      %2192 = vmatpush1.bf16.msra.mxu0 0
      %2193 = vmatprep.subr.bf16.mxu0 0
      %2194 = vmatpush1.bf16.msra.mxu0 0
      %2195 = vmatprep.subr.bf16.mxu0 0
      %2196 = vmatpush1.bf16.msra.mxu0 0
      %2197 = vmatprep.subr.bf16.mxu0 0
      %2198 = vmatpush1.bf16.msra.mxu0 0
      %2199 = vmatprep.mubr.bf16.mxu0 0
      %2200 = vmatmul.mubr.bf16.gmra.mrb[0].mxu0 %v2097
      %v2201 = vpop.f32.mrb[0].mxu0
      %v2202 = vadd.f32 0.0, %v2201
      %v2203 = vpop.f32.mrb[0].mxu0
      %v2204 = vpop.f32.mrb[0].mxu0
      %v2205 = vadd.f32 0.0, %v2204
      %v2206 = vpop.f32.mrb[0].mxu0
      %2207 = vmatprep.mubr.bf16.mxu0 0
      %2208 = vmatmul.mubr.bf16.gmra.mrb[0].mxu0 %v2098
      %v2209 = vpop.f32.mrb[0].mxu0
      %v2210 = vadd.f32 0.0, %v2209
      %v2211 = vpop.f32.mrb[0].mxu0
      %v2212 = vpop.f32.mrb[0].mxu0
      %v2213 = vadd.f32 0.0, %v2212
      %v2214 = vpop.f32.mrb[0].mxu0
      %2215 = vmatprep.mubr.bf16.mxu0 0
      %2216 = vmatmul.mubr.bf16.gmra.mrb[0].mxu0 %v2099
      %v2217 = vpop.f32.mrb[0].mxu0
      %v2218 = vadd.f32 0.0, %v2217
      %v2219 = vpop.f32.mrb[0].mxu0
      %v2220 = vpop.f32.mrb[0].mxu0
      %v2221 = vadd.f32 0.0, %v2220
      %v2222 = vpop.f32.mrb[0].mxu0
      %2223 = vmatprep.mubr.bf16.mxu0 0
      %2224 = vmatmul.mubr.bf16.gmra.mrb[0].mxu0 %v2100
      %v2225 = vpop.f32.mrb[0].mxu0
      %v2226 = vadd.f32 0.0, %v2225
      %v2227 = vpop.f32.mrb[0].mxu0
      %v2228 = vpop.f32.mrb[0].mxu0
      %v2229 = vadd.f32 0.0, %v2228
      %v2230 = vpop.f32.mrb[0].mxu0
      %2231 = vmatprep.mubr.bf16.mxu0 0
      %2232 = vmatmul.mubr.bf16.gmra.mrb[0].mxu0 %v2101
      %v2233 = vpop.f32.mrb[0].mxu0
      %v2234 = vadd.f32 0.0, %v2233
      %v2235 = vpop.f32.mrb[0].mxu0
      %v2236 = vpop.f32.mrb[0].mxu0
      %v2237 = vadd.f32 0.0, %v2236
      %v2238 = vpop.f32.mrb[0].mxu0
      %2239 = vdwg.mxu0
      %v2240 = vadd.f32 %v2049, %v2202
      %v2241 = vadd.f32 %v2052, %v2205
      %v2242 = vadd.f32 %v2057, %v2210
      %v2243 = vadd.f32 %v2060, %v2213
      %v2244 = vadd.f32 %v2065, %v2218
      %v2245 = vadd.f32 %v2068, %v2221
      %v2246 = vadd.f32 %v2073, %v2226
      %v2247 = vadd.f32 %v2076, %v2229
      %v2248 = vadd.f32 %v2081, %v2234
      %v2249 = vadd.f32 %v2084, %v2237
      %v2250 = vld [vmem:[#allocation4 + $0xa] sm:$0xff]
      %v2251 = vld [vmem:[#allocation4 + $0x12] sm:$0xff]
      %v2252 = vld [vmem:[#allocation4 + $0x1a] sm:$0xff]
      %v2253 = vld [vmem:[#allocation4 + $0x22] sm:$0xff]
      %v2254 = vld [vmem:[#allocation4 + $0x2a] sm:$0xff]
      %v2255 = vld [vmem:[#allocation4 + $0x32] sm:$0xff]
      %v2256 = vld [vmem:[#allocation4 + $0x3a] sm:$0xff]
      %v2257 = vld [vmem:[#allocation4 + $0x42] sm:$0xff]
      %v2258 = vld [vmem:[#allocation4 + $0x4a] sm:$0xff]
      %v2259 = vld [vmem:[#allocation4 + $0x52] sm:$0x3f]
      %v2260 = vpack.c.bf16 %v2251, %v2250
      %v2261 = vpack.c.bf16 %v2253, %v2252
      %v2262 = vpack.c.bf16 %v2255, %v2254
      %v2263 = vpack.c.bf16 %v2257, %v2256
      %v2264 = vpack.c.bf16 %v2259, %v2258
      %s2265 = scalar_lea.vmem %s3, 192
      %v2266 = vld [vmem:[%s2265] sm:$0xf]
      %v2267 = vld [vmem:[%s2265 + $0x4] sm:$0xf]
      %v2268 = vld [vmem:[%s2265 + $0x8] sm:$0xf]
      %v2269 = vld [vmem:[%s2265 + $0xc] sm:$0xf]
      %v2270 = vld [vmem:[%s2265 + $0x10] sm:$0xf]
      %v2271 = vld [vmem:[%s2265 + $0x14] sm:$0xf]
      %v2272 = vld [vmem:[%s2265 + $0x18] sm:$0xf]
      %v2273 = vld [vmem:[%s2265 + $0x1c] sm:$0xf]
      %v2274 = vld [vmem:[%s2265 + $0x20] sm:$0xf]
      %v2275 = vld [vmem:[%s2265 + $0x24] sm:$0xf]
      %v2276 = vld [vmem:[%s2265 + $0x28] sm:$0xf]
      %v2277 = vld [vmem:[%s2265 + $0x2c] sm:$0xf]
      %v2278 = vld [vmem:[%s2265 + $0x30] sm:$0xf]
      %v2279 = vld [vmem:[%s2265 + $0x34] sm:$0xf]
      %v2280 = vld [vmem:[%s2265 + $0x38] sm:$0xf]
      %v2281 = vld [vmem:[%s2265 + $0x3c] sm:$0xf]
      %v2298 = vunpack.c.l.b16 %v2266
      %v2299 = vunpack.c.l.b16 %v2267
      %v2300 = vunpack.c.l.b16 %v2268
      %v2301 = vunpack.c.l.b16 %v2269
      %v2302 = vunpack.c.l.b16 %v2270
      %v2303 = vunpack.c.l.b16 %v2271
      %v2304 = vunpack.c.l.b16 %v2272
      %v2305 = vunpack.c.l.b16 %v2273
      %v2306 = vunpack.c.l.b16 %v2274
      %v2307 = vunpack.c.l.b16 %v2275
      %v2308 = vunpack.c.l.b16 %v2276
      %v2309 = vunpack.c.l.b16 %v2277
      %v2310 = vunpack.c.l.b16 %v2278
      %v2311 = vunpack.c.l.b16 %v2279
      %v2312 = vunpack.c.l.b16 %v2280
      %v2313 = vunpack.c.l.b16 %v2281
      %v2314 = vpack.c.b16 %v2299, %v2298
      %v2315 = vpack.c.b16 %v2301, %v2300
      %v2316 = vpack.c.b16 %v2303, %v2302
      %v2317 = vpack.c.b16 %v2305, %v2304
      %v2318 = vpack.c.b16 %v2307, %v2306
      %v2319 = vpack.c.b16 %v2309, %v2308
      %v2320 = vpack.c.b16 %v2311, %v2310
      %v2321 = vpack.c.b16 %v2313, %v2312
      %2330 = vmatprep.subr.bf16.mxu0 0
      %2331 = vmatpush1.bf16.msra.mxu0 %v2314
      %2332 = vmatprep.subr.bf16.mxu0 0
      %2333 = vmatpush1.bf16.msra.mxu0 %v2315
      %2334 = vmatprep.subr.bf16.mxu0 0
      %2335 = vmatpush1.bf16.msra.mxu0 %v2316
      %2336 = vmatprep.subr.bf16.mxu0 0
      %2337 = vmatpush1.bf16.msra.mxu0 %v2317
      %2338 = vmatprep.subr.bf16.mxu0 0
      %2339 = vmatpush1.bf16.msra.mxu0 %v2318
      %2340 = vmatprep.subr.bf16.mxu0 0
      %2341 = vmatpush1.bf16.msra.mxu0 %v2319
      %2342 = vmatprep.subr.bf16.mxu0 0
      %2343 = vmatpush1.bf16.msra.mxu0 %v2320
      %2344 = vmatprep.subr.bf16.mxu0 0
      %2345 = vmatpush1.bf16.msra.mxu0 %v2321
      %2346 = vmatprep.subr.bf16.mxu0 0
      %2347 = vmatpush1.bf16.msra.mxu0 0
      %2348 = vmatprep.subr.bf16.mxu0 0
      %2349 = vmatpush1.bf16.msra.mxu0 0
      %2350 = vmatprep.subr.bf16.mxu0 0
      %2351 = vmatpush1.bf16.msra.mxu0 0
      %2352 = vmatprep.subr.bf16.mxu0 0
      %2353 = vmatpush1.bf16.msra.mxu0 0
      %2354 = vmatprep.subr.bf16.mxu0 0
      %2355 = vmatpush1.bf16.msra.mxu0 0
      %2356 = vmatprep.subr.bf16.mxu0 0
      %2357 = vmatpush1.bf16.msra.mxu0 0
      %2358 = vmatprep.subr.bf16.mxu0 0
      %2359 = vmatpush1.bf16.msra.mxu0 0
      %2360 = vmatprep.subr.bf16.mxu0 0
      %2361 = vmatpush1.bf16.msra.mxu0 0
      %2362 = vmatprep.mubr.bf16.mxu0 0
      %2363 = vmatmul.mubr.bf16.gmra.mrb[0].mxu0 %v2260
      %v2364 = vpop.f32.mrb[0].mxu0
      %v2365 = vadd.f32 0.0, %v2364
      %v2366 = vpop.f32.mrb[0].mxu0
      %v2367 = vpop.f32.mrb[0].mxu0
      %v2368 = vadd.f32 0.0, %v2367
      %v2369 = vpop.f32.mrb[0].mxu0
      %2370 = vmatprep.mubr.bf16.mxu0 0
      %2371 = vmatmul.mubr.bf16.gmra.mrb[0].mxu0 %v2261
      %v2372 = vpop.f32.mrb[0].mxu0
      %v2373 = vadd.f32 0.0, %v2372
      %v2374 = vpop.f32.mrb[0].mxu0
      %v2375 = vpop.f32.mrb[0].mxu0
      %v2376 = vadd.f32 0.0, %v2375
      %v2377 = vpop.f32.mrb[0].mxu0
      %2378 = vmatprep.mubr.bf16.mxu0 0
      %2379 = vmatmul.mubr.bf16.gmra.mrb[0].mxu0 %v2262
      %v2380 = vpop.f32.mrb[0].mxu0
      %v2381 = vadd.f32 0.0, %v2380
      %v2382 = vpop.f32.mrb[0].mxu0
      %v2383 = vpop.f32.mrb[0].mxu0
      %v2384 = vadd.f32 0.0, %v2383
      %v2385 = vpop.f32.mrb[0].mxu0
      %2386 = vmatprep.mubr.bf16.mxu0 0
      %2387 = vmatmul.mubr.bf16.gmra.mrb[0].mxu0 %v2263
      %v2388 = vpop.f32.mrb[0].mxu0
      %v2389 = vadd.f32 0.0, %v2388
      %v2390 = vpop.f32.mrb[0].mxu0
      %v2391 = vpop.f32.mrb[0].mxu0
      %v2392 = vadd.f32 0.0, %v2391
      %v2393 = vpop.f32.mrb[0].mxu0
      %2394 = vmatprep.mubr.bf16.mxu0 0
      %2395 = vmatmul.mubr.bf16.gmra.mrb[0].mxu0 %v2264
      %v2396 = vpop.f32.mrb[0].mxu0
      %v2397 = vadd.f32 0.0, %v2396
      %v2398 = vpop.f32.mrb[0].mxu0
      %v2399 = vpop.f32.mrb[0].mxu0
      %v2400 = vadd.f32 0.0, %v2399
      %v2401 = vpop.f32.mrb[0].mxu0
      %2402 = vdwg.mxu0
      %v2403 = vadd.f32 %v2240, %v2365
      %v2404 = vadd.f32 %v2241, %v2368
      %v2405 = vadd.f32 %v2242, %v2373
      %v2406 = vadd.f32 %v2243, %v2376
      %v2407 = vadd.f32 %v2244, %v2381
      %v2408 = vadd.f32 %v2245, %v2384
      %v2409 = vadd.f32 %v2246, %v2389
      %v2410 = vadd.f32 %v2247, %v2392
      %v2411 = vadd.f32 %v2248, %v2397
      %v2412 = vadd.f32 %v2249, %v2400
      %v2413 = vld [vmem:[#allocation4 + $0xb] sm:$0xff]
      %v2414 = vld [vmem:[#allocation4 + $0x13] sm:$0xff]
      %v2415 = vld [vmem:[#allocation4 + $0x1b] sm:$0xff]
      %v2416 = vld [vmem:[#allocation4 + $0x23] sm:$0xff]
      %v2417 = vld [vmem:[#allocation4 + $0x2b] sm:$0xff]
      %v2418 = vld [vmem:[#allocation4 + $0x33] sm:$0xff]
      %v2419 = vld [vmem:[#allocation4 + $0x3b] sm:$0xff]
      %v2420 = vld [vmem:[#allocation4 + $0x43] sm:$0xff]
      %v2421 = vld [vmem:[#allocation4 + $0x4b] sm:$0xff]
      %v2422 = vld [vmem:[#allocation4 + $0x53] sm:$0x3f]
      %v2423 = vpack.c.bf16 %v2414, %v2413
      %v2424 = vpack.c.bf16 %v2416, %v2415
      %v2425 = vpack.c.bf16 %v2418, %v2417
      %v2426 = vpack.c.bf16 %v2420, %v2419
      %v2427 = vpack.c.bf16 %v2422, %v2421
      %s2428 = scalar_lea.vmem %s3, 256
      %v2429 = vld [vmem:[%s2428] sm:$0xf]
      %v2430 = vld [vmem:[%s2428 + $0x4] sm:$0xf]
      %v2431 = vld [vmem:[%s2428 + $0x8] sm:$0xf]
      %v2432 = vld [vmem:[%s2428 + $0xc] sm:$0xf]
      %v2433 = vld [vmem:[%s2428 + $0x10] sm:$0xf]
      %v2434 = vld [vmem:[%s2428 + $0x14] sm:$0xf]
      %v2435 = vld [vmem:[%s2428 + $0x18] sm:$0xf]
      %v2436 = vld [vmem:[%s2428 + $0x1c] sm:$0xf]
      %v2437 = vld [vmem:[%s2428 + $0x20] sm:$0xf]
      %v2438 = vld [vmem:[%s2428 + $0x24] sm:$0xf]
      %v2439 = vld [vmem:[%s2428 + $0x28] sm:$0xf]
      %v2440 = vld [vmem:[%s2428 + $0x2c] sm:$0xf]
      %v2441 = vld [vmem:[%s2428 + $0x30] sm:$0xf]
      %v2442 = vld [vmem:[%s2428 + $0x34] sm:$0xf]
      %v2443 = vld [vmem:[%s2428 + $0x38] sm:$0xf]
      %v2444 = vld [vmem:[%s2428 + $0x3c] sm:$0xf]
      %v2461 = vunpack.c.l.b16 %v2429
      %v2462 = vunpack.c.l.b16 %v2430
      %v2463 = vunpack.c.l.b16 %v2431
      %v2464 = vunpack.c.l.b16 %v2432
      %v2465 = vunpack.c.l.b16 %v2433
      %v2466 = vunpack.c.l.b16 %v2434
      %v2467 = vunpack.c.l.b16 %v2435
      %v2468 = vunpack.c.l.b16 %v2436
      %v2469 = vunpack.c.l.b16 %v2437
      %v2470 = vunpack.c.l.b16 %v2438
      %v2471 = vunpack.c.l.b16 %v2439
      %v2472 = vunpack.c.l.b16 %v2440
      %v2473 = vunpack.c.l.b16 %v2441
      %v2474 = vunpack.c.l.b16 %v2442
      %v2475 = vunpack.c.l.b16 %v2443
      %v2476 = vunpack.c.l.b16 %v2444
      %v2477 = vpack.c.b16 %v2462, %v2461
      %v2478 = vpack.c.b16 %v2464, %v2463
      %v2479 = vpack.c.b16 %v2466, %v2465
      %v2480 = vpack.c.b16 %v2468, %v2467
      %v2481 = vpack.c.b16 %v2470, %v2469
      %v2482 = vpack.c.b16 %v2472, %v2471
      %v2483 = vpack.c.b16 %v2474, %v2473
      %v2484 = vpack.c.b16 %v2476, %v2475
      %2493 = vmatprep.subr.bf16.mxu0 0
      %2494 = vmatpush1.bf16.msra.mxu0 %v2477
      %2495 = vmatprep.subr.bf16.mxu0 0
      %2496 = vmatpush1.bf16.msra.mxu0 %v2478
      %2497 = vmatprep.subr.bf16.mxu0 0
      %2498 = vmatpush1.bf16.msra.mxu0 %v2479
      %2499 = vmatprep.subr.bf16.mxu0 0
      %2500 = vmatpush1.bf16.msra.mxu0 %v2480
      %2501 = vmatprep.subr.bf16.mxu0 0
      %2502 = vmatpush1.bf16.msra.mxu0 %v2481
      %2503 = vmatprep.subr.bf16.mxu0 0
      %2504 = vmatpush1.bf16.msra.mxu0 %v2482
      %2505 = vmatprep.subr.bf16.mxu0 0
      %2506 = vmatpush1.bf16.msra.mxu0 %v2483
      %2507 = vmatprep.subr.bf16.mxu0 0
      %2508 = vmatpush1.bf16.msra.mxu0 %v2484
      %2509 = vmatprep.subr.bf16.mxu0 0
      %2510 = vmatpush1.bf16.msra.mxu0 0
      %2511 = vmatprep.subr.bf16.mxu0 0
      %2512 = vmatpush1.bf16.msra.mxu0 0
      %2513 = vmatprep.subr.bf16.mxu0 0
      %2514 = vmatpush1.bf16.msra.mxu0 0
      %2515 = vmatprep.subr.bf16.mxu0 0
      %2516 = vmatpush1.bf16.msra.mxu0 0
      %2517 = vmatprep.subr.bf16.mxu0 0
      %2518 = vmatpush1.bf16.msra.mxu0 0
      %2519 = vmatprep.subr.bf16.mxu0 0
      %2520 = vmatpush1.bf16.msra.mxu0 0
      %2521 = vmatprep.subr.bf16.mxu0 0
      %2522 = vmatpush1.bf16.msra.mxu0 0
      %2523 = vmatprep.subr.bf16.mxu0 0
      %2524 = vmatpush1.bf16.msra.mxu0 0
      %2525 = vmatprep.mubr.bf16.mxu0 0
      %2526 = vmatmul.mubr.bf16.gmra.mrb[0].mxu0 %v2423
      %v2527 = vpop.f32.mrb[0].mxu0
      %v2528 = vadd.f32 0.0, %v2527
      %v2529 = vpop.f32.mrb[0].mxu0
      %v2530 = vpop.f32.mrb[0].mxu0
      %v2531 = vadd.f32 0.0, %v2530
      %v2532 = vpop.f32.mrb[0].mxu0
      %2533 = vmatprep.mubr.bf16.mxu0 0
      %2534 = vmatmul.mubr.bf16.gmra.mrb[0].mxu0 %v2424
      %v2535 = vpop.f32.mrb[0].mxu0
      %v2536 = vadd.f32 0.0, %v2535
      %v2537 = vpop.f32.mrb[0].mxu0
      %v2538 = vpop.f32.mrb[0].mxu0
      %v2539 = vadd.f32 0.0, %v2538
      %v2540 = vpop.f32.mrb[0].mxu0
      %2541 = vmatprep.mubr.bf16.mxu0 0
      %2542 = vmatmul.mubr.bf16.gmra.mrb[0].mxu0 %v2425
      %v2543 = vpop.f32.mrb[0].mxu0
      %v2544 = vadd.f32 0.0, %v2543
      %v2545 = vpop.f32.mrb[0].mxu0
      %v2546 = vpop.f32.mrb[0].mxu0
      %v2547 = vadd.f32 0.0, %v2546
      %v2548 = vpop.f32.mrb[0].mxu0
      %2549 = vmatprep.mubr.bf16.mxu0 0
      %2550 = vmatmul.mubr.bf16.gmra.mrb[0].mxu0 %v2426
      %v2551 = vpop.f32.mrb[0].mxu0
      %v2552 = vadd.f32 0.0, %v2551
      %v2553 = vpop.f32.mrb[0].mxu0
      %v2554 = vpop.f32.mrb[0].mxu0
      %v2555 = vadd.f32 0.0, %v2554
      %v2556 = vpop.f32.mrb[0].mxu0
      %2557 = vmatprep.mubr.bf16.mxu0 0
      %2558 = vmatmul.mubr.bf16.gmra.mrb[0].mxu0 %v2427
      %v2559 = vpop.f32.mrb[0].mxu0
      %v2560 = vadd.f32 0.0, %v2559
      %v2561 = vpop.f32.mrb[0].mxu0
      %v2562 = vpop.f32.mrb[0].mxu0
      %v2563 = vadd.f32 0.0, %v2562
      %v2564 = vpop.f32.mrb[0].mxu0
      %2565 = vdwg.mxu0
      %v2566 = vadd.f32 %v2403, %v2528
      %v2567 = vadd.f32 %v2404, %v2531
      %v2568 = vadd.f32 %v2405, %v2536
      %v2569 = vadd.f32 %v2406, %v2539
      %v2570 = vadd.f32 %v2407, %v2544
      %v2571 = vadd.f32 %v2408, %v2547
      %v2572 = vadd.f32 %v2409, %v2552
      %v2573 = vadd.f32 %v2410, %v2555
      %v2574 = vadd.f32 %v2411, %v2560
      %v2575 = vadd.f32 %v2412, %v2563
      %v2576 = vld [vmem:[#allocation4 + $0xc] sm:$0xff]
      %v2577 = vld [vmem:[#allocation4 + $0x14] sm:$0xff]
      %v2578 = vld [vmem:[#allocation4 + $0x1c] sm:$0xff]
      %v2579 = vld [vmem:[#allocation4 + $0x24] sm:$0xff]
      %v2580 = vld [vmem:[#allocation4 + $0x2c] sm:$0xff]
      %v2581 = vld [vmem:[#allocation4 + $0x34] sm:$0xff]
      %v2582 = vld [vmem:[#allocation4 + $0x3c] sm:$0xff]
      %v2583 = vld [vmem:[#allocation4 + $0x44] sm:$0xff]
      %v2584 = vld [vmem:[#allocation4 + $0x4c] sm:$0xff]
      %v2585 = vld [vmem:[#allocation4 + $0x54] sm:$0x3f]
      %v2586 = vpack.c.bf16 %v2577, %v2576
      %v2587 = vpack.c.bf16 %v2579, %v2578
      %v2588 = vpack.c.bf16 %v2581, %v2580
      %v2589 = vpack.c.bf16 %v2583, %v2582
      %v2590 = vpack.c.bf16 %v2585, %v2584
      %s2591 = scalar_lea.vmem %s3, 320
      %v2592 = vld [vmem:[%s2591] sm:$0xf]
      %v2593 = vld [vmem:[%s2591 + $0x4] sm:$0xf]
      %v2594 = vld [vmem:[%s2591 + $0x8] sm:$0xf]
      %v2595 = vld [vmem:[%s2591 + $0xc] sm:$0xf]
      %v2596 = vld [vmem:[%s2591 + $0x10] sm:$0xf]
      %v2597 = vld [vmem:[%s2591 + $0x14] sm:$0xf]
      %v2598 = vld [vmem:[%s2591 + $0x18] sm:$0xf]
      %v2599 = vld [vmem:[%s2591 + $0x1c] sm:$0xf]
      %v2600 = vld [vmem:[%s2591 + $0x20] sm:$0xf]
      %v2601 = vld [vmem:[%s2591 + $0x24] sm:$0xf]
      %v2602 = vld [vmem:[%s2591 + $0x28] sm:$0xf]
      %v2603 = vld [vmem:[%s2591 + $0x2c] sm:$0xf]
      %v2604 = vld [vmem:[%s2591 + $0x30] sm:$0xf]
      %v2605 = vld [vmem:[%s2591 + $0x34] sm:$0xf]
      %v2606 = vld [vmem:[%s2591 + $0x38] sm:$0xf]
      %v2607 = vld [vmem:[%s2591 + $0x3c] sm:$0xf]
      %v2624 = vunpack.c.l.b16 %v2592
      %v2625 = vunpack.c.l.b16 %v2593
      %v2626 = vunpack.c.l.b16 %v2594
      %v2627 = vunpack.c.l.b16 %v2595
      %v2628 = vunpack.c.l.b16 %v2596
      %v2629 = vunpack.c.l.b16 %v2597
      %v2630 = vunpack.c.l.b16 %v2598
      %v2631 = vunpack.c.l.b16 %v2599
      %v2632 = vunpack.c.l.b16 %v2600
      %v2633 = vunpack.c.l.b16 %v2601
      %v2634 = vunpack.c.l.b16 %v2602
      %v2635 = vunpack.c.l.b16 %v2603
      %v2636 = vunpack.c.l.b16 %v2604
      %v2637 = vunpack.c.l.b16 %v2605
      %v2638 = vunpack.c.l.b16 %v2606
      %v2639 = vunpack.c.l.b16 %v2607
      %v2640 = vpack.c.b16 %v2625, %v2624
      %v2641 = vpack.c.b16 %v2627, %v2626
      %v2642 = vpack.c.b16 %v2629, %v2628
      %v2643 = vpack.c.b16 %v2631, %v2630
      %v2644 = vpack.c.b16 %v2633, %v2632
      %v2645 = vpack.c.b16 %v2635, %v2634
      %v2646 = vpack.c.b16 %v2637, %v2636
      %v2647 = vpack.c.b16 %v2639, %v2638
      %2656 = vmatprep.subr.bf16.mxu0 0
      %2657 = vmatpush1.bf16.msra.mxu0 %v2640
      %2658 = vmatprep.subr.bf16.mxu0 0
      %2659 = vmatpush1.bf16.msra.mxu0 %v2641
      %2660 = vmatprep.subr.bf16.mxu0 0
      %2661 = vmatpush1.bf16.msra.mxu0 %v2642
      %2662 = vmatprep.subr.bf16.mxu0 0
      %2663 = vmatpush1.bf16.msra.mxu0 %v2643
      %2664 = vmatprep.subr.bf16.mxu0 0
      %2665 = vmatpush1.bf16.msra.mxu0 %v2644
      %2666 = vmatprep.subr.bf16.mxu0 0
      %2667 = vmatpush1.bf16.msra.mxu0 %v2645
      %2668 = vmatprep.subr.bf16.mxu0 0
      %2669 = vmatpush1.bf16.msra.mxu0 %v2646
      %2670 = vmatprep.subr.bf16.mxu0 0
      %2671 = vmatpush1.bf16.msra.mxu0 %v2647
      %2672 = vmatprep.subr.bf16.mxu0 0
      %2673 = vmatpush1.bf16.msra.mxu0 0
      %2674 = vmatprep.subr.bf16.mxu0 0
      %2675 = vmatpush1.bf16.msra.mxu0 0
      %2676 = vmatprep.subr.bf16.mxu0 0
      %2677 = vmatpush1.bf16.msra.mxu0 0
      %2678 = vmatprep.subr.bf16.mxu0 0
      %2679 = vmatpush1.bf16.msra.mxu0 0
      %2680 = vmatprep.subr.bf16.mxu0 0
      %2681 = vmatpush1.bf16.msra.mxu0 0
      %2682 = vmatprep.subr.bf16.mxu0 0
      %2683 = vmatpush1.bf16.msra.mxu0 0
      %2684 = vmatprep.subr.bf16.mxu0 0
      %2685 = vmatpush1.bf16.msra.mxu0 0
      %2686 = vmatprep.subr.bf16.mxu0 0
      %2687 = vmatpush1.bf16.msra.mxu0 0
      %2688 = vmatprep.mubr.bf16.mxu0 0
      %2689 = vmatmul.mubr.bf16.gmra.mrb[0].mxu0 %v2586
      %v2690 = vpop.f32.mrb[0].mxu0
      %v2691 = vadd.f32 0.0, %v2690
      %v2692 = vpop.f32.mrb[0].mxu0
      %v2693 = vpop.f32.mrb[0].mxu0
      %v2694 = vadd.f32 0.0, %v2693
      %v2695 = vpop.f32.mrb[0].mxu0
      %2696 = vmatprep.mubr.bf16.mxu0 0
      %2697 = vmatmul.mubr.bf16.gmra.mrb[0].mxu0 %v2587
      %v2698 = vpop.f32.mrb[0].mxu0
      %v2699 = vadd.f32 0.0, %v2698
      %v2700 = vpop.f32.mrb[0].mxu0
      %v2701 = vpop.f32.mrb[0].mxu0
      %v2702 = vadd.f32 0.0, %v2701
      %v2703 = vpop.f32.mrb[0].mxu0
      %2704 = vmatprep.mubr.bf16.mxu0 0
      %2705 = vmatmul.mubr.bf16.gmra.mrb[0].mxu0 %v2588
      %v2706 = vpop.f32.mrb[0].mxu0
      %v2707 = vadd.f32 0.0, %v2706
      %v2708 = vpop.f32.mrb[0].mxu0
      %v2709 = vpop.f32.mrb[0].mxu0
      %v2710 = vadd.f32 0.0, %v2709
      %v2711 = vpop.f32.mrb[0].mxu0
      %2712 = vmatprep.mubr.bf16.mxu0 0
      %2713 = vmatmul.mubr.bf16.gmra.mrb[0].mxu0 %v2589
      %v2714 = vpop.f32.mrb[0].mxu0
      %v2715 = vadd.f32 0.0, %v2714
      %v2716 = vpop.f32.mrb[0].mxu0
      %v2717 = vpop.f32.mrb[0].mxu0
      %v2718 = vadd.f32 0.0, %v2717
      %v2719 = vpop.f32.mrb[0].mxu0
      %2720 = vmatprep.mubr.bf16.mxu0 0
      %2721 = vmatmul.mubr.bf16.gmra.mrb[0].mxu0 %v2590
      %v2722 = vpop.f32.mrb[0].mxu0
      %v2723 = vadd.f32 0.0, %v2722
      %v2724 = vpop.f32.mrb[0].mxu0
      %v2725 = vpop.f32.mrb[0].mxu0
      %v2726 = vadd.f32 0.0, %v2725
      %v2727 = vpop.f32.mrb[0].mxu0
      %2728 = vdwg.mxu0
      %v2729 = vadd.f32 %v2566, %v2691
      %v2730 = vadd.f32 %v2567, %v2694
      %v2731 = vadd.f32 %v2568, %v2699
      %v2732 = vadd.f32 %v2569, %v2702
      %v2733 = vadd.f32 %v2570, %v2707
      %v2734 = vadd.f32 %v2571, %v2710
      %v2735 = vadd.f32 %v2572, %v2715
      %v2736 = vadd.f32 %v2573, %v2718
      %v2737 = vadd.f32 %v2574, %v2723
      %v2738 = vadd.f32 %v2575, %v2726
      %v2739 = vld [vmem:[#allocation4 + $0x14] sm:$0xff]
      %v2740 = vld [vmem:[#allocation4 + $0x1c] sm:$0xff]
      %v2741 = vld [vmem:[#allocation4 + $0x24] sm:$0xff]
      %v2742 = vld [vmem:[#allocation4 + $0x2c] sm:$0xff]
      %v2743 = vld [vmem:[#allocation4 + $0x34] sm:$0xff]
      %v2744 = vld [vmem:[#allocation4 + $0x3c] sm:$0xff]
      %v2745 = vld [vmem:[#allocation4 + $0x44] sm:$0xff]
      %v2746 = vld [vmem:[#allocation4 + $0x4c] sm:$0xff]
      %v2747 = vld [vmem:[#allocation4 + $0x54] sm:$0xff]
      %v2748 = vld [vmem:[#allocation4 + $0x5c] sm:$0x3f]
      %v2749 = vpack.c.bf16 %v2740, %v2739
      %v2750 = vpack.c.bf16 %v2742, %v2741
      %v2751 = vpack.c.bf16 %v2744, %v2743
      %v2752 = vpack.c.bf16 %v2746, %v2745
      %v2753 = vpack.c.bf16 %v2748, %v2747
      %s2754 = scalar_lea.vmem %s3, 384
      %v2755 = vld [vmem:[%s2754] sm:$0xf]
      %v2756 = vld [vmem:[%s2754 + $0x4] sm:$0xf]
      %v2757 = vld [vmem:[%s2754 + $0x8] sm:$0xf]
      %v2758 = vld [vmem:[%s2754 + $0xc] sm:$0xf]
      %v2759 = vld [vmem:[%s2754 + $0x10] sm:$0xf]
      %v2760 = vld [vmem:[%s2754 + $0x14] sm:$0xf]
      %v2761 = vld [vmem:[%s2754 + $0x18] sm:$0xf]
      %v2762 = vld [vmem:[%s2754 + $0x1c] sm:$0xf]
      %v2763 = vld [vmem:[%s2754 + $0x20] sm:$0xf]
      %v2764 = vld [vmem:[%s2754 + $0x24] sm:$0xf]
      %v2765 = vld [vmem:[%s2754 + $0x28] sm:$0xf]
      %v2766 = vld [vmem:[%s2754 + $0x2c] sm:$0xf]
      %v2767 = vld [vmem:[%s2754 + $0x30] sm:$0xf]
      %v2768 = vld [vmem:[%s2754 + $0x34] sm:$0xf]
      %v2769 = vld [vmem:[%s2754 + $0x38] sm:$0xf]
      %v2770 = vld [vmem:[%s2754 + $0x3c] sm:$0xf]
      %v2787 = vunpack.c.l.b16 %v2755
      %v2788 = vunpack.c.l.b16 %v2756
      %v2789 = vunpack.c.l.b16 %v2757
      %v2790 = vunpack.c.l.b16 %v2758
      %v2791 = vunpack.c.l.b16 %v2759
      %v2792 = vunpack.c.l.b16 %v2760
      %v2793 = vunpack.c.l.b16 %v2761
      %v2794 = vunpack.c.l.b16 %v2762
      %v2795 = vunpack.c.l.b16 %v2763
      %v2796 = vunpack.c.l.b16 %v2764
      %v2797 = vunpack.c.l.b16 %v2765
      %v2798 = vunpack.c.l.b16 %v2766
      %v2799 = vunpack.c.l.b16 %v2767
      %v2800 = vunpack.c.l.b16 %v2768
      %v2801 = vunpack.c.l.b16 %v2769
      %v2802 = vunpack.c.l.b16 %v2770
      %v2803 = vpack.c.b16 %v2788, %v2787
      %v2804 = vpack.c.b16 %v2790, %v2789
      %v2805 = vpack.c.b16 %v2792, %v2791
      %v2806 = vpack.c.b16 %v2794, %v2793
      %v2807 = vpack.c.b16 %v2796, %v2795
      %v2808 = vpack.c.b16 %v2798, %v2797
      %v2809 = vpack.c.b16 %v2800, %v2799
      %v2810 = vpack.c.b16 %v2802, %v2801
      %2819 = vmatprep.subr.bf16.mxu0 0
      %2820 = vmatpush1.bf16.msra.mxu0 %v2803
      %2821 = vmatprep.subr.bf16.mxu0 0
      %2822 = vmatpush1.bf16.msra.mxu0 %v2804
      %2823 = vmatprep.subr.bf16.mxu0 0
      %2824 = vmatpush1.bf16.msra.mxu0 %v2805
      %2825 = vmatprep.subr.bf16.mxu0 0
      %2826 = vmatpush1.bf16.msra.mxu0 %v2806
      %2827 = vmatprep.subr.bf16.mxu0 0
      %2828 = vmatpush1.bf16.msra.mxu0 %v2807
      %2829 = vmatprep.subr.bf16.mxu0 0
      %2830 = vmatpush1.bf16.msra.mxu0 %v2808
      %2831 = vmatprep.subr.bf16.mxu0 0
      %2832 = vmatpush1.bf16.msra.mxu0 %v2809
      %2833 = vmatprep.subr.bf16.mxu0 0
      %2834 = vmatpush1.bf16.msra.mxu0 %v2810
      %2835 = vmatprep.subr.bf16.mxu0 0
      %2836 = vmatpush1.bf16.msra.mxu0 0
      %2837 = vmatprep.subr.bf16.mxu0 0
      %2838 = vmatpush1.bf16.msra.mxu0 0
      %2839 = vmatprep.subr.bf16.mxu0 0
      %2840 = vmatpush1.bf16.msra.mxu0 0
      %2841 = vmatprep.subr.bf16.mxu0 0
      %2842 = vmatpush1.bf16.msra.mxu0 0
      %2843 = vmatprep.subr.bf16.mxu0 0
      %2844 = vmatpush1.bf16.msra.mxu0 0
      %2845 = vmatprep.subr.bf16.mxu0 0
      %2846 = vmatpush1.bf16.msra.mxu0 0
      %2847 = vmatprep.subr.bf16.mxu0 0
      %2848 = vmatpush1.bf16.msra.mxu0 0
      %2849 = vmatprep.subr.bf16.mxu0 0
      %2850 = vmatpush1.bf16.msra.mxu0 0
      %2851 = vmatprep.mubr.bf16.mxu0 0
      %2852 = vmatmul.mubr.bf16.gmra.mrb[0].mxu0 %v2749
      %v2853 = vpop.f32.mrb[0].mxu0
      %v2854 = vadd.f32 0.0, %v2853
      %v2855 = vpop.f32.mrb[0].mxu0
      %v2856 = vpop.f32.mrb[0].mxu0
      %v2857 = vadd.f32 0.0, %v2856
      %v2858 = vpop.f32.mrb[0].mxu0
      %2859 = vmatprep.mubr.bf16.mxu0 0
      %2860 = vmatmul.mubr.bf16.gmra.mrb[0].mxu0 %v2750
      %v2861 = vpop.f32.mrb[0].mxu0
      %v2862 = vadd.f32 0.0, %v2861
      %v2863 = vpop.f32.mrb[0].mxu0
      %v2864 = vpop.f32.mrb[0].mxu0
      %v2865 = vadd.f32 0.0, %v2864
      %v2866 = vpop.f32.mrb[0].mxu0
      %2867 = vmatprep.mubr.bf16.mxu0 0
      %2868 = vmatmul.mubr.bf16.gmra.mrb[0].mxu0 %v2751
      %v2869 = vpop.f32.mrb[0].mxu0
      %v2870 = vadd.f32 0.0, %v2869
      %v2871 = vpop.f32.mrb[0].mxu0
      %v2872 = vpop.f32.mrb[0].mxu0
      %v2873 = vadd.f32 0.0, %v2872
      %v2874 = vpop.f32.mrb[0].mxu0
      %2875 = vmatprep.mubr.bf16.mxu0 0
      %2876 = vmatmul.mubr.bf16.gmra.mrb[0].mxu0 %v2752
      %v2877 = vpop.f32.mrb[0].mxu0
      %v2878 = vadd.f32 0.0, %v2877
      %v2879 = vpop.f32.mrb[0].mxu0
      %v2880 = vpop.f32.mrb[0].mxu0
      %v2881 = vadd.f32 0.0, %v2880
      %v2882 = vpop.f32.mrb[0].mxu0
      %2883 = vmatprep.mubr.bf16.mxu0 0
      %2884 = vmatmul.mubr.bf16.gmra.mrb[0].mxu0 %v2753
      %v2885 = vpop.f32.mrb[0].mxu0
      %v2886 = vadd.f32 0.0, %v2885
      %v2887 = vpop.f32.mrb[0].mxu0
      %v2888 = vpop.f32.mrb[0].mxu0
      %v2889 = vadd.f32 0.0, %v2888
      %v2890 = vpop.f32.mrb[0].mxu0
      %2891 = vdwg.mxu0
      %v2892 = vadd.f32 %v2729, %v2854
      %v2893 = vadd.f32 %v2730, %v2857
      %v2894 = vadd.f32 %v2731, %v2862
      %v2895 = vadd.f32 %v2732, %v2865
      %v2896 = vadd.f32 %v2733, %v2870
      %v2897 = vadd.f32 %v2734, %v2873
      %v2898 = vadd.f32 %v2735, %v2878
      %v2899 = vadd.f32 %v2736, %v2881
      %v2900 = vadd.f32 %v2737, %v2886
      %v2901 = vadd.f32 %v2738, %v2889
      %v2902 = vld [vmem:[#allocation4 + $0x15] sm:$0xff]
      %v2903 = vld [vmem:[#allocation4 + $0x1d] sm:$0xff]
      %v2904 = vld [vmem:[#allocation4 + $0x25] sm:$0xff]
      %v2905 = vld [vmem:[#allocation4 + $0x2d] sm:$0xff]
      %v2906 = vld [vmem:[#allocation4 + $0x35] sm:$0xff]
      %v2907 = vld [vmem:[#allocation4 + $0x3d] sm:$0xff]
      %v2908 = vld [vmem:[#allocation4 + $0x45] sm:$0xff]
      %v2909 = vld [vmem:[#allocation4 + $0x4d] sm:$0xff]
      %v2910 = vld [vmem:[#allocation4 + $0x55] sm:$0xff]
      %v2911 = vld [vmem:[#allocation4 + $0x5d] sm:$0x3f]
      %v2912 = vpack.c.bf16 %v2903, %v2902
      %v2913 = vpack.c.bf16 %v2905, %v2904
      %v2914 = vpack.c.bf16 %v2907, %v2906
      %v2915 = vpack.c.bf16 %v2909, %v2908
      %v2916 = vpack.c.bf16 %v2911, %v2910
      %s2917 = scalar_lea.vmem %s3, 448
      %v2918 = vld [vmem:[%s2917] sm:$0xf]
      %v2919 = vld [vmem:[%s2917 + $0x4] sm:$0xf]
      %v2920 = vld [vmem:[%s2917 + $0x8] sm:$0xf]
      %v2921 = vld [vmem:[%s2917 + $0xc] sm:$0xf]
      %v2922 = vld [vmem:[%s2917 + $0x10] sm:$0xf]
      %v2923 = vld [vmem:[%s2917 + $0x14] sm:$0xf]
      %v2924 = vld [vmem:[%s2917 + $0x18] sm:$0xf]
      %v2925 = vld [vmem:[%s2917 + $0x1c] sm:$0xf]
      %v2926 = vld [vmem:[%s2917 + $0x20] sm:$0xf]
      %v2927 = vld [vmem:[%s2917 + $0x24] sm:$0xf]
      %v2928 = vld [vmem:[%s2917 + $0x28] sm:$0xf]
      %v2929 = vld [vmem:[%s2917 + $0x2c] sm:$0xf]
      %v2930 = vld [vmem:[%s2917 + $0x30] sm:$0xf]
      %v2931 = vld [vmem:[%s2917 + $0x34] sm:$0xf]
      %v2932 = vld [vmem:[%s2917 + $0x38] sm:$0xf]
      %v2933 = vld [vmem:[%s2917 + $0x3c] sm:$0xf]
      %v2950 = vunpack.c.l.b16 %v2918
      %v2951 = vunpack.c.l.b16 %v2919
      %v2952 = vunpack.c.l.b16 %v2920
      %v2953 = vunpack.c.l.b16 %v2921
      %v2954 = vunpack.c.l.b16 %v2922
      %v2955 = vunpack.c.l.b16 %v2923
      %v2956 = vunpack.c.l.b16 %v2924
      %v2957 = vunpack.c.l.b16 %v2925
      %v2958 = vunpack.c.l.b16 %v2926
      %v2959 = vunpack.c.l.b16 %v2927
      %v2960 = vunpack.c.l.b16 %v2928
      %v2961 = vunpack.c.l.b16 %v2929
      %v2962 = vunpack.c.l.b16 %v2930
      %v2963 = vunpack.c.l.b16 %v2931
      %v2964 = vunpack.c.l.b16 %v2932
      %v2965 = vunpack.c.l.b16 %v2933
      %v2966 = vpack.c.b16 %v2951, %v2950
      %v2967 = vpack.c.b16 %v2953, %v2952
      %v2968 = vpack.c.b16 %v2955, %v2954
      %v2969 = vpack.c.b16 %v2957, %v2956
      %v2970 = vpack.c.b16 %v2959, %v2958
      %v2971 = vpack.c.b16 %v2961, %v2960
      %v2972 = vpack.c.b16 %v2963, %v2962
      %v2973 = vpack.c.b16 %v2965, %v2964
      %2982 = vmatprep.subr.bf16.mxu0 0
      %2983 = vmatpush1.bf16.msra.mxu0 %v2966
      %2984 = vmatprep.subr.bf16.mxu0 0
      %2985 = vmatpush1.bf16.msra.mxu0 %v2967
      %2986 = vmatprep.subr.bf16.mxu0 0
      %2987 = vmatpush1.bf16.msra.mxu0 %v2968
      %2988 = vmatprep.subr.bf16.mxu0 0
      %2989 = vmatpush1.bf16.msra.mxu0 %v2969
      %2990 = vmatprep.subr.bf16.mxu0 0
      %2991 = vmatpush1.bf16.msra.mxu0 %v2970
      %2992 = vmatprep.subr.bf16.mxu0 0
      %2993 = vmatpush1.bf16.msra.mxu0 %v2971
      %2994 = vmatprep.subr.bf16.mxu0 0
      %2995 = vmatpush1.bf16.msra.mxu0 %v2972
      %2996 = vmatprep.subr.bf16.mxu0 0
      %2997 = vmatpush1.bf16.msra.mxu0 %v2973
      %2998 = vmatprep.subr.bf16.mxu0 0
      %2999 = vmatpush1.bf16.msra.mxu0 0
      %3000 = vmatprep.subr.bf16.mxu0 0
      %3001 = vmatpush1.bf16.msra.mxu0 0
      %3002 = vmatprep.subr.bf16.mxu0 0
      %3003 = vmatpush1.bf16.msra.mxu0 0
      %3004 = vmatprep.subr.bf16.mxu0 0
      %3005 = vmatpush1.bf16.msra.mxu0 0
      %3006 = vmatprep.subr.bf16.mxu0 0
      %3007 = vmatpush1.bf16.msra.mxu0 0
      %3008 = vmatprep.subr.bf16.mxu0 0
      %3009 = vmatpush1.bf16.msra.mxu0 0
      %3010 = vmatprep.subr.bf16.mxu0 0
      %3011 = vmatpush1.bf16.msra.mxu0 0
      %3012 = vmatprep.subr.bf16.mxu0 0
      %3013 = vmatpush1.bf16.msra.mxu0 0
      %3014 = vmatprep.mubr.bf16.mxu0 0
      %3015 = vmatmul.mubr.bf16.gmra.mrb[0].mxu0 %v2912
      %v3016 = vpop.f32.mrb[0].mxu0
      %v3017 = vadd.f32 0.0, %v3016
      %v3018 = vpop.f32.mrb[0].mxu0
      %v3019 = vpop.f32.mrb[0].mxu0
      %v3020 = vadd.f32 0.0, %v3019
      %v3021 = vpop.f32.mrb[0].mxu0
      %3022 = vmatprep.mubr.bf16.mxu0 0
      %3023 = vmatmul.mubr.bf16.gmra.mrb[0].mxu0 %v2913
      %v3024 = vpop.f32.mrb[0].mxu0
      %v3025 = vadd.f32 0.0, %v3024
      %v3026 = vpop.f32.mrb[0].mxu0
      %v3027 = vpop.f32.mrb[0].mxu0
      %v3028 = vadd.f32 0.0, %v3027
      %v3029 = vpop.f32.mrb[0].mxu0
      %3030 = vmatprep.mubr.bf16.mxu0 0
      %3031 = vmatmul.mubr.bf16.gmra.mrb[0].mxu0 %v2914
      %v3032 = vpop.f32.mrb[0].mxu0
      %v3033 = vadd.f32 0.0, %v3032
      %v3034 = vpop.f32.mrb[0].mxu0
      %v3035 = vpop.f32.mrb[0].mxu0
      %v3036 = vadd.f32 0.0, %v3035
      %v3037 = vpop.f32.mrb[0].mxu0
      %3038 = vmatprep.mubr.bf16.mxu0 0
      %3039 = vmatmul.mubr.bf16.gmra.mrb[0].mxu0 %v2915
      %v3040 = vpop.f32.mrb[0].mxu0
      %v3041 = vadd.f32 0.0, %v3040
      %v3042 = vpop.f32.mrb[0].mxu0
      %v3043 = vpop.f32.mrb[0].mxu0
      %v3044 = vadd.f32 0.0, %v3043
      %v3045 = vpop.f32.mrb[0].mxu0
      %3046 = vmatprep.mubr.bf16.mxu0 0
      %3047 = vmatmul.mubr.bf16.gmra.mrb[0].mxu0 %v2916
      %v3048 = vpop.f32.mrb[0].mxu0
      %v3049 = vadd.f32 0.0, %v3048
      %v3050 = vpop.f32.mrb[0].mxu0
      %v3051 = vpop.f32.mrb[0].mxu0
      %v3052 = vadd.f32 0.0, %v3051
      %v3053 = vpop.f32.mrb[0].mxu0
      %3054 = vdwg.mxu0
      %v3055 = vadd.f32 %v2892, %v3017
      %v3056 = vadd.f32 %v2893, %v3020
      %v3057 = vadd.f32 %v2894, %v3025
      %v3058 = vadd.f32 %v2895, %v3028
      %v3059 = vadd.f32 %v2896, %v3033
      %v3060 = vadd.f32 %v2897, %v3036
      %v3061 = vadd.f32 %v2898, %v3041
      %v3062 = vadd.f32 %v2899, %v3044
      %v3063 = vadd.f32 %v2900, %v3049
      %v3064 = vadd.f32 %v2901, %v3052
      %v3065 = vld [vmem:[#allocation4 + $0x16] sm:$0xff]
      %v3066 = vld [vmem:[#allocation4 + $0x1e] sm:$0xff]
      %v3067 = vld [vmem:[#allocation4 + $0x26] sm:$0xff]
      %v3068 = vld [vmem:[#allocation4 + $0x2e] sm:$0xff]
      %v3069 = vld [vmem:[#allocation4 + $0x36] sm:$0xff]
      %v3070 = vld [vmem:[#allocation4 + $0x3e] sm:$0xff]
      %v3071 = vld [vmem:[#allocation4 + $0x46] sm:$0xff]
      %v3072 = vld [vmem:[#allocation4 + $0x4e] sm:$0xff]
      %v3073 = vld [vmem:[#allocation4 + $0x56] sm:$0xff]
      %v3074 = vld [vmem:[#allocation4 + $0x5e] sm:$0x3f]
      %v3075 = vpack.c.bf16 %v3066, %v3065
      %v3076 = vpack.c.bf16 %v3068, %v3067
      %v3077 = vpack.c.bf16 %v3070, %v3069
      %v3078 = vpack.c.bf16 %v3072, %v3071
      %v3079 = vpack.c.bf16 %v3074, %v3073
      %s3080 = scalar_lea.vmem %s3, 512
      %v3081 = vld [vmem:[%s3080] sm:$0xf]
      %v3082 = vld [vmem:[%s3080 + $0x4] sm:$0xf]
      %v3083 = vld [vmem:[%s3080 + $0x8] sm:$0xf]
      %v3084 = vld [vmem:[%s3080 + $0xc] sm:$0xf]
      %v3085 = vld [vmem:[%s3080 + $0x10] sm:$0xf]
      %v3086 = vld [vmem:[%s3080 + $0x14] sm:$0xf]
      %v3087 = vld [vmem:[%s3080 + $0x18] sm:$0xf]
      %v3088 = vld [vmem:[%s3080 + $0x1c] sm:$0xf]
      %v3089 = vld [vmem:[%s3080 + $0x20] sm:$0xf]
      %v3090 = vld [vmem:[%s3080 + $0x24] sm:$0xf]
      %v3091 = vld [vmem:[%s3080 + $0x28] sm:$0xf]
      %v3092 = vld [vmem:[%s3080 + $0x2c] sm:$0xf]
      %v3093 = vld [vmem:[%s3080 + $0x30] sm:$0xf]
      %v3094 = vld [vmem:[%s3080 + $0x34] sm:$0xf]
      %v3095 = vld [vmem:[%s3080 + $0x38] sm:$0xf]
      %v3096 = vld [vmem:[%s3080 + $0x3c] sm:$0xf]
      %v3113 = vunpack.c.l.b16 %v3081
      %v3114 = vunpack.c.l.b16 %v3082
      %v3115 = vunpack.c.l.b16 %v3083
      %v3116 = vunpack.c.l.b16 %v3084
      %v3117 = vunpack.c.l.b16 %v3085
      %v3118 = vunpack.c.l.b16 %v3086
      %v3119 = vunpack.c.l.b16 %v3087
      %v3120 = vunpack.c.l.b16 %v3088
      %v3121 = vunpack.c.l.b16 %v3089
      %v3122 = vunpack.c.l.b16 %v3090
      %v3123 = vunpack.c.l.b16 %v3091
      %v3124 = vunpack.c.l.b16 %v3092
      %v3125 = vunpack.c.l.b16 %v3093
      %v3126 = vunpack.c.l.b16 %v3094
      %v3127 = vunpack.c.l.b16 %v3095
      %v3128 = vunpack.c.l.b16 %v3096
      %v3129 = vpack.c.b16 %v3114, %v3113
      %v3130 = vpack.c.b16 %v3116, %v3115
      %v3131 = vpack.c.b16 %v3118, %v3117
      %v3132 = vpack.c.b16 %v3120, %v3119
      %v3133 = vpack.c.b16 %v3122, %v3121
      %v3134 = vpack.c.b16 %v3124, %v3123
      %v3135 = vpack.c.b16 %v3126, %v3125
      %v3136 = vpack.c.b16 %v3128, %v3127
      %3145 = vmatprep.subr.bf16.mxu0 0
      %3146 = vmatpush1.bf16.msra.mxu0 %v3129
      %3147 = vmatprep.subr.bf16.mxu0 0
      %3148 = vmatpush1.bf16.msra.mxu0 %v3130
      %3149 = vmatprep.subr.bf16.mxu0 0
      %3150 = vmatpush1.bf16.msra.mxu0 %v3131
      %3151 = vmatprep.subr.bf16.mxu0 0
      %3152 = vmatpush1.bf16.msra.mxu0 %v3132
      %3153 = vmatprep.subr.bf16.mxu0 0
      %3154 = vmatpush1.bf16.msra.mxu0 %v3133
      %3155 = vmatprep.subr.bf16.mxu0 0
      %3156 = vmatpush1.bf16.msra.mxu0 %v3134
      %3157 = vmatprep.subr.bf16.mxu0 0
      %3158 = vmatpush1.bf16.msra.mxu0 %v3135
      %3159 = vmatprep.subr.bf16.mxu0 0
      %3160 = vmatpush1.bf16.msra.mxu0 %v3136
      %3161 = vmatprep.subr.bf16.mxu0 0
      %3162 = vmatpush1.bf16.msra.mxu0 0
      %3163 = vmatprep.subr.bf16.mxu0 0
      %3164 = vmatpush1.bf16.msra.mxu0 0
      %3165 = vmatprep.subr.bf16.mxu0 0
      %3166 = vmatpush1.bf16.msra.mxu0 0
      %3167 = vmatprep.subr.bf16.mxu0 0
      %3168 = vmatpush1.bf16.msra.mxu0 0
      %3169 = vmatprep.subr.bf16.mxu0 0
      %3170 = vmatpush1.bf16.msra.mxu0 0
      %3171 = vmatprep.subr.bf16.mxu0 0
      %3172 = vmatpush1.bf16.msra.mxu0 0
      %3173 = vmatprep.subr.bf16.mxu0 0
      %3174 = vmatpush1.bf16.msra.mxu0 0
      %3175 = vmatprep.subr.bf16.mxu0 0
      %3176 = vmatpush1.bf16.msra.mxu0 0
      %3177 = vmatprep.mubr.bf16.mxu0 0
      %3178 = vmatmul.mubr.bf16.gmra.mrb[0].mxu0 %v3075
      %v3179 = vpop.f32.mrb[0].mxu0
      %v3180 = vadd.f32 0.0, %v3179
      %v3181 = vpop.f32.mrb[0].mxu0
      %v3182 = vpop.f32.mrb[0].mxu0
      %v3183 = vadd.f32 0.0, %v3182
      %v3184 = vpop.f32.mrb[0].mxu0
      %3185 = vmatprep.mubr.bf16.mxu0 0
      %3186 = vmatmul.mubr.bf16.gmra.mrb[0].mxu0 %v3076
      %v3187 = vpop.f32.mrb[0].mxu0
      %v3188 = vadd.f32 0.0, %v3187
      %v3189 = vpop.f32.mrb[0].mxu0
      %v3190 = vpop.f32.mrb[0].mxu0
      %v3191 = vadd.f32 0.0, %v3190
      %v3192 = vpop.f32.mrb[0].mxu0
      %3193 = vmatprep.mubr.bf16.mxu0 0
      %3194 = vmatmul.mubr.bf16.gmra.mrb[0].mxu0 %v3077
      %v3195 = vpop.f32.mrb[0].mxu0
      %v3196 = vadd.f32 0.0, %v3195
      %v3197 = vpop.f32.mrb[0].mxu0
      %v3198 = vpop.f32.mrb[0].mxu0
      %v3199 = vadd.f32 0.0, %v3198
      %v3200 = vpop.f32.mrb[0].mxu0
      %3201 = vmatprep.mubr.bf16.mxu0 0
      %3202 = vmatmul.mubr.bf16.gmra.mrb[0].mxu0 %v3078
      %v3203 = vpop.f32.mrb[0].mxu0
      %v3204 = vadd.f32 0.0, %v3203
      %v3205 = vpop.f32.mrb[0].mxu0
      %v3206 = vpop.f32.mrb[0].mxu0
      %v3207 = vadd.f32 0.0, %v3206
      %v3208 = vpop.f32.mrb[0].mxu0
      %3209 = vmatprep.mubr.bf16.mxu0 0
      %3210 = vmatmul.mubr.bf16.gmra.mrb[0].mxu0 %v3079
      %v3211 = vpop.f32.mrb[0].mxu0
      %v3212 = vadd.f32 0.0, %v3211
      %v3213 = vpop.f32.mrb[0].mxu0
      %v3214 = vpop.f32.mrb[0].mxu0
      %v3215 = vadd.f32 0.0, %v3214
      %v3216 = vpop.f32.mrb[0].mxu0
      %3217 = vdwg.mxu0
      %v3218 = vadd.f32 %v3055, %v3180
      %v3219 = vadd.f32 %v3056, %v3183
      %v3220 = vadd.f32 %v3057, %v3188
      %v3221 = vadd.f32 %v3058, %v3191
      %v3222 = vadd.f32 %v3059, %v3196
      %v3223 = vadd.f32 %v3060, %v3199
      %v3224 = vadd.f32 %v3061, %v3204
      %v3225 = vadd.f32 %v3062, %v3207
      %v3226 = vadd.f32 %v3063, %v3212
      %v3227 = vadd.f32 %v3064, %v3215
      %v3228 = vld [vmem:[%s4] sm:$0x1]
      %v3230 = vlaneseq
      %v3231 = vshrl.u32 %v3230, 7
      %v3232 = vsub.s32 0, %v3231
      %v3233 = vrot.slane %v3228, %v3232
      %v3235 = vadd.f32 %v3218, %v3233
      %v3236 = vadd.f32 %v3219, %v3233
      %v3237 = vadd.f32 %v3220, %v3233
      %v3238 = vadd.f32 %v3221, %v3233
      %v3239 = vadd.f32 %v3222, %v3233
      %v3240 = vadd.f32 %v3223, %v3233
      %v3241 = vadd.f32 %v3224, %v3233
      %v3242 = vadd.f32 %v3225, %v3233
      %v3243 = vadd.f32 %v3226, %v3233
      %v3244 = vadd.f32 %v3227, %v3233
      %3245 = vst [vmem:[#allocation5] sm:$0xff] %v3235
      %3246 = vst [vmem:[#allocation5 + $0x8] sm:$0xff] %v3236
      %3247 = vst [vmem:[#allocation5 + $0x10] sm:$0xff] %v3237
      %3248 = vst [vmem:[#allocation5 + $0x18] sm:$0xff] %v3238
      %3249 = vst [vmem:[#allocation5 + $0x20] sm:$0xff] %v3239
      %3250 = vst [vmem:[#allocation5 + $0x28] sm:$0xff] %v3240
      %3251 = vst [vmem:[#allocation5 + $0x30] sm:$0xff] %v3241
      %3252 = vst [vmem:[#allocation5 + $0x38] sm:$0xff] %v3242
      %3253 = vst [vmem:[#allocation5 + $0x40] sm:$0xff] %v3243
      %3254 = vst [vmem:[#allocation5 + $0x48] sm:$0x3f] %v3244
      %v3255 = vld [vmem:[#allocation5] sm:$0xff]
      %v3256 = vld [vmem:[#allocation3] sm:$0xff]
      %v3257 = vadd.f32 %v3255, %v3256
      %vm3258 = vcmp.ge.f32.partialorder %v3257, 0.0
      %v3259 = vmul.f32 %v3257, 0.01
      %v3260 = vsel %vm3258, %v3257, %v3259
      %3261 = vst [vmem:[%s278] sm:$0xff] %v3260
      %v3262 = vld [vmem:[#allocation5 + $0xa] sm:$0xff]
      %v3263 = vld [vmem:[#allocation3 + $0x9] sm:$0xff]
      %v3264 = vadd.f32 %v3262, %v3263
      %vm3265 = vcmp.ge.f32.partialorder %v3264, 0.0
      %v3266 = vmul.f32 %v3264, 0.01
      %v3267 = vsel %vm3265, %v3264, %v3266
      %3268 = vst [vmem:[%s278 + $0x8] sm:$0xff] %v3267
      %v3269 = vld [vmem:[#allocation5 + $0x14] sm:$0xff]
      %v3270 = vld [vmem:[#allocation3 + $0x12] sm:$0xff]
      %v3271 = vadd.f32 %v3269, %v3270
      %vm3272 = vcmp.ge.f32.partialorder %v3271, 0.0
      %v3273 = vmul.f32 %v3271, 0.01
      %v3274 = vsel %vm3272, %v3271, %v3273
      %3275 = vst [vmem:[%s278 + $0x10] sm:$0xff] %v3274
      %v3276 = vld [vmem:[#allocation5 + $0x1e] sm:$0xff]
      %v3277 = vld [vmem:[#allocation3 + $0x1b] sm:$0xff]
      %v3278 = vadd.f32 %v3276, %v3277
      %vm3279 = vcmp.ge.f32.partialorder %v3278, 0.0
      %v3280 = vmul.f32 %v3278, 0.01
      %v3281 = vsel %vm3279, %v3278, %v3280
      %3282 = vst [vmem:[%s278 + $0x18] sm:$0xff] %v3281
      %v3283 = vld [vmem:[#allocation5 + $0x28] sm:$0xff]
      %v3284 = vld [vmem:[#allocation3 + $0x24] sm:$0xff]
      %v3285 = vadd.f32 %v3283, %v3284
      %vm3286 = vcmp.ge.f32.partialorder %v3285, 0.0
      %v3287 = vmul.f32 %v3285, 0.01
      %v3288 = vsel %vm3286, %v3285, %v3287
      %3289 = vst [vmem:[%s278 + $0x20] sm:$0xff] %v3288
      %v3290 = vld [vmem:[#allocation5 + $0x32] sm:$0xff]
      %v3291 = vld [vmem:[#allocation3 + $0x2d] sm:$0xff]
      %v3292 = vadd.f32 %v3290, %v3291
      %vm3293 = vcmp.ge.f32.partialorder %v3292, 0.0
      %v3294 = vmul.f32 %v3292, 0.01
      %v3295 = vsel %vm3293, %v3292, %v3294
      %3296 = vst [vmem:[%s278 + $0x28] sm:$0xff] %v3295
      %v3297 = vld [vmem:[#allocation5 + $0x3c] sm:$0xff]
      %v3298 = vld [vmem:[#allocation3 + $0x36] sm:$0xff]
      %v3299 = vadd.f32 %v3297, %v3298
      %vm3300 = vcmp.ge.f32.partialorder %v3299, 0.0
      %v3301 = vmul.f32 %v3299, 0.01
      %v3302 = vsel %vm3300, %v3299, %v3301
      %3303 = vst [vmem:[%s278 + $0x30] sm:$0xff] %v3302
      %v3304 = vld [vmem:[#allocation5 + $0x46] sm:$0xff]
      %v3305 = vld [vmem:[#allocation3 + $0x3f] sm:$0xff]
      %v3306 = vadd.f32 %v3304, %v3305
      %vm3307 = vcmp.ge.f32.partialorder %v3306, 0.0
      %v3308 = vmul.f32 %v3306, 0.01
      %v3309 = vsel %vm3307, %v3306, %v3308
      %3310 = vst [vmem:[%s278 + $0x38] sm:$0xff] %v3309
      %p3311 = scmp.lt.s32.totalorder %s18, 1
      %s3312 = scalar_select %p3311, %s18, 1
      %s3313 = smul.addr %s3312, 8
      %s3314 = smul.addr %s3313, 8
      %s3315 = scalar_lea.vmem %s7, %s3314
      // Predicated region
      $region49: #{_lambda_.2} parent=47 // pred_check
        %p3316 = pneg %p188
      $region50: #{_lambda_.2} parent=47 // pred_check_branch
        %3318 = sbr.rel (%p3316) target = $region52
      $region51: #{_lambda_.2} parent=47 // pred_region
        _
      $region52: #{_lambda_.2} parent=47 // pred_fallthru
        _
    $region48: #{_lambda_.2} parent=5 // pred_fallthru
      _
    %p3319 = scmp.le.s32.totalorder 2, %s13
    // Predicated region
    $region53: #{_lambda_.2} parent=5 // pred_check
      %p3320 = pneg %p3319
    $region54: #{_lambda_.2} parent=5 // pred_check_branch
      %3322 = sbr.rel (%p3320) target = $region56
    $region55: #{_lambda_.2} parent=5 // pred_region
      %s3323 = ssub.s32 %s13, 2
      // Predicated region
      $region57: #{_lambda_.2} parent=55 // pred_check
        %p3324 = pneg %p194
      $region58: #{_lambda_.2} parent=55 // pred_check_branch
        %3326 = sbr.rel (%p3324) target = $region60
      $region59: #{_lambda_.2} parent=55 // pred_region
        %p3327 = scmp.lt.s32.totalorder %s19, 1
        %s3328 = scalar_select %p3327, %s19, 1
        %s3329 = smul.addr %s3328, 8
        %s3330 = smul.addr %s3329, 8
        %s3331 = scalar_lea.vmem %s7, %s3330
      $region60: #{_lambda_.2} parent=55 // pred_fallthru
        _
    $region56: #{_lambda_.2} parent=5 // pred_fallthru
      _
  $region6: #{_lambda_.2} parent=0 // loop_footer
    %s17 = sadd.s32 1, %s13
  $region7: #{_lambda_.2} parent=0 // loop_footer_branch
    %12 = sbr.rel target = $region3
  $region8: #{_lambda_.2} parent=0 // loop_exit
    _

// kernel: _lambda_.3
$region0: #{_lambda_.3}
  #allocation0 [shape = 'u32[]', space=smem, size = 0x4, offset = 0x4, fixed_abs, tag = 'smem constant byte address 0x4 - core index']
  #allocation1 [shape = 'u32[144,128]{1,0:T(1,128)}', space=vmem, size = 0x12000, scoped, tag = 'internal scratch']
  #allocation2 [shape = 'f32[78,128]{1,0:T(8,128)}', space=vmem, size = 0xa000, scoped, tag = 'scratch operand']
  #allocation3 [shape = 'f32[78,128]{1,0:T(8,128)}', space=vmem, size = 0xa000, scoped, tag = 'scratch operand']
  #allocation4 [shape = 'f32[100,128]{1,0:T(8,128)}', space=vmem, size = 0xd000, scoped, tag = 'scratch operand']
  #allocation5 [shape = 'f32[78,128]{1,0:T(8,128)}', space=vmem, size = 0xa000, scoped, tag = 'scratch operand']
  %s0 = inlined_call_operand.vmem [shape: f32[2,1,1,100,128], index: 0, kind: input, shape index: {}]
  %s1 = inlined_call_operand.vmem [shape: bf16[9,128,128], index: 1, kind: input, shape index: {}]
  %s2 = inlined_call_operand.vmem [shape: f32[1,128], index: 2, kind: input, shape index: {}]
  %s3 = inlined_call_operand.vmem [shape: bf16[9,128,128], index: 3, kind: input, shape index: {}]
  %s4 = inlined_call_operand.vmem [shape: f32[1,128], index: 4, kind: input, shape index: {}]
  %s5 = inlined_call_operand.hbm [shape: f32[2,64,128], index: 5, kind: output, shape index: {}]
  %s6 = sld [smem:[#allocation0]]
  $region53: #{_lambda_.3} parent=0
    _
  %s8 = ssub.s32 1, %s6
  %s9 = scalar_select 0, %s8, %s6
  $region1: #{_lambda_.3} parent=0
    #allocation6 [shape = 'u8[65536]{0}', space=vmem, size = 0x10000, scoped, tag = 'output window, operand 0']
    #allocation7 [shape = 's32[2]{0}', space=sflag, size = 0x8, scoped, tag = 'scoped memory for _lambda_.3']
    %10 = vsyncpa [#allocation7], 0
    %s11 = scalar_lea.sflag [#allocation7], 1
    %12 = vsyncpa %s11, 0
    loop: start=0, step=1, limit=4
    $region2: #{_lambda_.3} parent=1 // loop_pre_header
      _
    $region3: #{_lambda_.3} parent=1 // loop_header
      %s14 = sphi 0, %s18
      %p15 = scmp.ge.s32.totalorder %s14, 4
      %s24 = sphi 0, %s26
      %s27 = sphi 0, %s24
      %s28 = sphi 0, %s27
      %s44 = sphi 0, %s28
      %s48 = sphi 0, %s48
      %s50 = sphi 0, %s48
      %s51 = sphi 0, %s50
      %s65 = sphi 0, %s51
      %s69 = sphi 0, %s69
      %s71 = sphi 0, %s69
      %s72 = sphi 0, %s71
      %s86 = sphi 0, %s72
      %s90 = sphi 0, %s90
      %s92 = sphi 0, %s90
      %s93 = sphi 0, %s92
      %s107 = sphi 0, %s93
      %s111 = sphi 0, %s111
      %s113 = sphi 0, %s111
      %s114 = sphi 0, %s113
      %s128 = sphi 0, %s114
      %s134 = sphi 0, %s136
      %s137 = sphi 0, %s134
      %s138 = sphi 0, %s137
      %s154 = sphi 0, %s138
    $region4: #{_lambda_.3} parent=1 // loop_header_branch
      %17 = sbr.rel (%p15) target = $region8
    $region5: #{_lambda_.3} parent=1 // loop_body
      %s19 = ssub.s32 %s14, 1
      %s20 = ssub.s32 %s14, 2
      %s21 = sadd.s32 %s14, 1
      %s22 = ssub.s32 %s14, %s21
      %p23 = scmp.eq.s32.totalorder %s22, 0
      %s25 = sadd.s32 %s24, 1
      %s26 = scalar_select %p23, %s24, %s25
      %p29 = pneg %p23
      %p30 = scmp.eq.s32.totalorder %s14, 1
      %p31 = por %p29, %p30
      %p32 = scmp.ne.s32.totalorder %s24, %s27
      %p33 = scmp.eq.s32.totalorder %s14, 0
      %p34 = por %p32, %p33
      %p35 = scmp.ne.s32.totalorder %s24, %s27
      %p36 = scmp.eq.s32.totalorder %s19, 1
      %p37 = por %p35, %p36
      %p38 = scmp.ne.s32.totalorder %s27, %s28
      %p39 = scmp.eq.s32.totalorder %s19, 0
      %p40 = por %p38, %p39
      %p41 = scmp.ne.s32.totalorder %s27, %s28
      %p42 = scmp.eq.s32.totalorder %s20, 1
      %p43 = por %p41, %p42
      %p45 = scmp.ne.s32.totalorder %s28, %s44
      %p46 = scmp.eq.s32.totalorder %s20, 0
      %p47 = por %p45, %p46
      %s49 = sadd.s32 %s48, 1
      %p52 = scmp.eq.s32.totalorder %s14, 1
      %p53 = scmp.ne.s32.totalorder %s48, %s50
      %p54 = scmp.eq.s32.totalorder %s14, 0
      %p55 = por %p53, %p54
      %p56 = scmp.ne.s32.totalorder %s48, %s50
      %p57 = scmp.eq.s32.totalorder %s19, 1
      %p58 = por %p56, %p57
      %p59 = scmp.ne.s32.totalorder %s50, %s51
      %p60 = scmp.eq.s32.totalorder %s19, 0
      %p61 = por %p59, %p60
      %p62 = scmp.ne.s32.totalorder %s50, %s51
      %p63 = scmp.eq.s32.totalorder %s20, 1
      %p64 = por %p62, %p63
      %p66 = scmp.ne.s32.totalorder %s51, %s65
      %p67 = scmp.eq.s32.totalorder %s20, 0
      %p68 = por %p66, %p67
      %s70 = sadd.s32 %s69, 1
      %p73 = scmp.eq.s32.totalorder %s14, 1
      %p74 = scmp.ne.s32.totalorder %s69, %s71
      %p75 = scmp.eq.s32.totalorder %s14, 0
      %p76 = por %p74, %p75
      %p77 = scmp.ne.s32.totalorder %s69, %s71
      %p78 = scmp.eq.s32.totalorder %s19, 1
      %p79 = por %p77, %p78
      %p80 = scmp.ne.s32.totalorder %s71, %s72
      %p81 = scmp.eq.s32.totalorder %s19, 0
      %p82 = por %p80, %p81
      %p83 = scmp.ne.s32.totalorder %s71, %s72
      %p84 = scmp.eq.s32.totalorder %s20, 1
      %p85 = por %p83, %p84
      %p87 = scmp.ne.s32.totalorder %s72, %s86
      %p88 = scmp.eq.s32.totalorder %s20, 0
      %p89 = por %p87, %p88
      %s91 = sadd.s32 %s90, 1
      %p94 = scmp.eq.s32.totalorder %s14, 1
      %p95 = scmp.ne.s32.totalorder %s90, %s92
      %p96 = scmp.eq.s32.totalorder %s14, 0
      %p97 = por %p95, %p96
      %p98 = scmp.ne.s32.totalorder %s90, %s92
      %p99 = scmp.eq.s32.totalorder %s19, 1
      %p100 = por %p98, %p99
      %p101 = scmp.ne.s32.totalorder %s92, %s93
      %p102 = scmp.eq.s32.totalorder %s19, 0
      %p103 = por %p101, %p102
      %p104 = scmp.ne.s32.totalorder %s92, %s93
      %p105 = scmp.eq.s32.totalorder %s20, 1
      %p106 = por %p104, %p105
      %p108 = scmp.ne.s32.totalorder %s93, %s107
      %p109 = scmp.eq.s32.totalorder %s20, 0
      %p110 = por %p108, %p109
      %s112 = sadd.s32 %s111, 1
      %p115 = scmp.eq.s32.totalorder %s14, 1
      %p116 = scmp.ne.s32.totalorder %s111, %s113
      %p117 = scmp.eq.s32.totalorder %s14, 0
      %p118 = por %p116, %p117
      %p119 = scmp.ne.s32.totalorder %s111, %s113
      %p120 = scmp.eq.s32.totalorder %s19, 1
      %p121 = por %p119, %p120
      %p122 = scmp.ne.s32.totalorder %s113, %s114
      %p123 = scmp.eq.s32.totalorder %s19, 0
      %p124 = por %p122, %p123
      %p125 = scmp.ne.s32.totalorder %s113, %s114
      %p126 = scmp.eq.s32.totalorder %s20, 1
      %p127 = por %p125, %p126
      %p129 = scmp.ne.s32.totalorder %s114, %s128
      %p130 = scmp.eq.s32.totalorder %s20, 0
      %p131 = por %p129, %p130
      %s132 = ssub.s32 %s14, %s21
      %p133 = scmp.eq.s32.totalorder %s132, 0
      %s135 = sadd.s32 %s134, 1
      %s136 = scalar_select %p133, %s134, %s135
      %p139 = pneg %p133
      %p140 = scmp.eq.s32.totalorder %s14, 1
      %p141 = por %p139, %p140
      %p142 = scmp.ne.s32.totalorder %s134, %s137
      %p143 = scmp.eq.s32.totalorder %s14, 0
      %p144 = por %p142, %p143
      %p145 = scmp.ne.s32.totalorder %s134, %s137
      %p146 = scmp.eq.s32.totalorder %s19, 1
      %p147 = por %p145, %p146
      %p148 = scmp.ne.s32.totalorder %s137, %s138
      %p149 = scmp.eq.s32.totalorder %s19, 0
      %p150 = por %p148, %p149
      %p151 = scmp.ne.s32.totalorder %s137, %s138
      %p152 = scmp.eq.s32.totalorder %s20, 1
      %p153 = por %p151, %p152
      %p155 = scmp.ne.s32.totalorder %s138, %s154
      %p156 = scmp.eq.s32.totalorder %s20, 0
      %p157 = por %p155, %p156
      %p158 = scmp.le.s32.totalorder 1, %s14
      %p159 = scmp.lt.s32.totalorder %s14, 3
      %p160 = pnand %p158, %p159
      %p161 = pneg %p160
      // Predicated region
      $region9: #{_lambda_.3} parent=5 // pred_check
        _
      $region10: #{_lambda_.3} parent=5 // pred_check_branch
        %163 = sbr.rel (%p160) target = $region12
      $region11: #{_lambda_.3} parent=5 // pred_region
        %s164 = ssub.s32 %s14, 1
        // Predicated region
        $region13: #{_lambda_.3} parent=11 // pred_check
          %p165 = pneg %p61
        $region14: #{_lambda_.3} parent=11 // pred_check_branch
          %167 = sbr.rel (%p165) target = $region16
        $region15: #{_lambda_.3} parent=11 // pred_region
          _
        $region16: #{_lambda_.3} parent=11 // pred_fallthru
          _
        // Predicated region
        $region17: #{_lambda_.3} parent=11 // pred_check
          %p168 = pneg %p82
        $region18: #{_lambda_.3} parent=11 // pred_check_branch
          %170 = sbr.rel (%p168) target = $region20
        $region19: #{_lambda_.3} parent=11 // pred_region
          _
        $region20: #{_lambda_.3} parent=11 // pred_fallthru
          _
        // Predicated region
        $region21: #{_lambda_.3} parent=11 // pred_check
          %p171 = pneg %p103
        $region22: #{_lambda_.3} parent=11 // pred_check_branch
          %173 = sbr.rel (%p171) target = $region24
        $region23: #{_lambda_.3} parent=11 // pred_region
          _
        $region24: #{_lambda_.3} parent=11 // pred_fallthru
          _
        // Predicated region
        $region25: #{_lambda_.3} parent=11 // pred_check
          %p174 = pneg %p124
        $region26: #{_lambda_.3} parent=11 // pred_check_branch
          %176 = sbr.rel (%p174) target = $region28
        $region27: #{_lambda_.3} parent=11 // pred_region
          _
        $region28: #{_lambda_.3} parent=11 // pred_fallthru
          _
      $region12: #{_lambda_.3} parent=5 // pred_fallthru
        _
      %p177 = scmp.lt.s32.totalorder %s14, 2
      // Predicated region
      $region29: #{_lambda_.3} parent=5 // pred_check
        %p178 = pneg %p177
      $region30: #{_lambda_.3} parent=5 // pred_check_branch
        %180 = sbr.rel (%p178) target = $region32
      $region31: #{_lambda_.3} parent=5 // pred_region
        // Predicated region
        $region33: #{_lambda_.3} parent=31 // pred_check
          %p181 = pneg %p34
        $region34: #{_lambda_.3} parent=31 // pred_check_branch
          %183 = sbr.rel (%p181) target = $region36
        $region35: #{_lambda_.3} parent=31 // pred_region
          %p184 = scmp.lt.s32.totalorder %s14, 1
          %s185 = scalar_select %p184, %s14, 1
          %s186 = smul.addr %s185, 13
          %s187 = smul.addr %s186, 8
          %s188 = scalar_lea.vmem %s0, %s187
        $region36: #{_lambda_.3} parent=31 // pred_fallthru
          _
      $region32: #{_lambda_.3} parent=5 // pred_fallthru
        _
      %p189 = scmp.le.s32.totalorder 1, %s14
      %p190 = scmp.lt.s32.totalorder %s14, 3
      %p191 = pnand %p189, %p190
      %p192 = pneg %p191
      // Predicated region
      $region37: #{_lambda_.3} parent=5 // pred_check
        _
      $region38: #{_lambda_.3} parent=5 // pred_check_branch
        %194 = sbr.rel (%p191) target = $region40
      $region39: #{_lambda_.3} parent=5 // pred_region
        %s195 = ssub.s32 %s14, 1
        %p196 = scmp.lt.s32.totalorder %s19, 1
        %s197 = scalar_select %p196, %s19, 1
        %s198 = smul.addr %s197, 13
        %s199 = smul.addr %s198, 8
        %s200 = scalar_lea.vmem %s0, %s199
        %p201 = pneg %p40
        %p202 = pneg %p37
        %p203 = pneg %p61
        %p204 = pneg %p58
        %p205 = pneg %p82
        %p206 = pneg %p79
        %p207 = pneg %p103
        %p208 = pneg %p100
        %p209 = pneg %p124
        %p210 = pneg %p121
        %p211 = pneg %p150
        %p212 = pneg %p147
        %s213 = sand.u32 %s137, 1
        %s214 = scalar_lea.sflag [#allocation7], %s213
        %s215 = sand.u32 %s137, 1
        %s216 = smul.addr %s215, 64
        %s217 = scalar_lea.vmem [#allocation6], %s216
        %p218 = scmp.lt.s32.totalorder %s19, 1
        %s219 = scalar_select %p218, %s19, 1
        %s220 = smul.addr %s219, 13
        %s221 = smul.addr %s220, 8
        %s222 = scalar_lea.vmem %s0, %s221
        %v224 = vld [vmem:[%s222] sm:$0xff]
        %v225 = vld [vmem:[%s222 + $0x8] sm:$0xff]
        %v226 = vld [vmem:[%s222 + $0x10] sm:$0xff]
        %v227 = vld [vmem:[%s222 + $0x18] sm:$0xff]
        %v228 = vld [vmem:[%s222 + $0x20] sm:$0xff]
        %v229 = vld [vmem:[%s222 + $0x28] sm:$0xff]
        %v230 = vld [vmem:[%s222 + $0x30] sm:$0xff]
        %v231 = vld [vmem:[%s222 + $0x38] sm:$0xff]
        %v232 = vld [vmem:[%s222 + $0x40] sm:$0xff]
        %v233 = vld [vmem:[%s222 + $0x48] sm:$0x3f]
        %v234 = vpack.c.bf16 %v225, %v224
        %v235 = vpack.c.bf16 %v227, %v226
        %v236 = vpack.c.bf16 %v229, %v228
        %v237 = vpack.c.bf16 %v231, %v230
        %v238 = vpack.c.bf16 %v233, %v232
        %v239 = vld [vmem:[%s1] sm:$0xf]
        %v240 = vld [vmem:[%s1 + $0x4] sm:$0xf]
        %v241 = vld [vmem:[%s1 + $0x8] sm:$0xf]
        %v242 = vld [vmem:[%s1 + $0xc] sm:$0xf]
        %v243 = vld [vmem:[%s1 + $0x10] sm:$0xf]
        %v244 = vld [vmem:[%s1 + $0x14] sm:$0xf]
        %v245 = vld [vmem:[%s1 + $0x18] sm:$0xf]
        %v246 = vld [vmem:[%s1 + $0x1c] sm:$0xf]
        %v247 = vld [vmem:[%s1 + $0x20] sm:$0xf]
        %v248 = vld [vmem:[%s1 + $0x24] sm:$0xf]
        %v249 = vld [vmem:[%s1 + $0x28] sm:$0xf]
        %v250 = vld [vmem:[%s1 + $0x2c] sm:$0xf]
        %v251 = vld [vmem:[%s1 + $0x30] sm:$0xf]
        %v252 = vld [vmem:[%s1 + $0x34] sm:$0xf]
        %v253 = vld [vmem:[%s1 + $0x38] sm:$0xf]
        %v254 = vld [vmem:[%s1 + $0x3c] sm:$0xf]
        %v255 = vld [vmem:[%s222 + $0x1] sm:$0xff]
        %v256 = vld [vmem:[%s222 + $0x9] sm:$0xff]
        %v257 = vld [vmem:[%s222 + $0x11] sm:$0xff]
        %v258 = vld [vmem:[%s222 + $0x19] sm:$0xff]
        %v259 = vld [vmem:[%s222 + $0x21] sm:$0xff]
        %v260 = vld [vmem:[%s222 + $0x29] sm:$0xff]
        %v261 = vld [vmem:[%s222 + $0x31] sm:$0xff]
        %v262 = vld [vmem:[%s222 + $0x39] sm:$0xff]
        %v263 = vld [vmem:[%s222 + $0x41] sm:$0xff]
        %v264 = vld [vmem:[%s222 + $0x49] sm:$0x3f]
        %v265 = vpack.c.bf16 %v256, %v255
        %v266 = vpack.c.bf16 %v258, %v257
        %v267 = vpack.c.bf16 %v260, %v259
        %v268 = vpack.c.bf16 %v262, %v261
        %v269 = vpack.c.bf16 %v264, %v263
        %s270 = scalar_lea.vmem %s1, 64
        %v271 = vld [vmem:[%s270] sm:$0xf]
        %v272 = vld [vmem:[%s270 + $0x4] sm:$0xf]
        %v273 = vld [vmem:[%s270 + $0x8] sm:$0xf]
        %v274 = vld [vmem:[%s270 + $0xc] sm:$0xf]
        %v275 = vld [vmem:[%s270 + $0x10] sm:$0xf]
        %v276 = vld [vmem:[%s270 + $0x14] sm:$0xf]
        %v277 = vld [vmem:[%s270 + $0x18] sm:$0xf]
        %v278 = vld [vmem:[%s270 + $0x1c] sm:$0xf]
        %v279 = vld [vmem:[%s270 + $0x20] sm:$0xf]
        %v280 = vld [vmem:[%s270 + $0x24] sm:$0xf]
        %v281 = vld [vmem:[%s270 + $0x28] sm:$0xf]
        %v282 = vld [vmem:[%s270 + $0x2c] sm:$0xf]
        %v283 = vld [vmem:[%s270 + $0x30] sm:$0xf]
        %v284 = vld [vmem:[%s270 + $0x34] sm:$0xf]
        %v285 = vld [vmem:[%s270 + $0x38] sm:$0xf]
        %v286 = vld [vmem:[%s270 + $0x3c] sm:$0xf]
        %v303 = vunpack.c.l.b16 %v271
        %v304 = vunpack.c.l.b16 %v272
        %v305 = vunpack.c.l.b16 %v273
        %v306 = vunpack.c.l.b16 %v274
        %v307 = vunpack.c.l.b16 %v275
        %v308 = vunpack.c.l.b16 %v276
        %v309 = vunpack.c.l.b16 %v277
        %v310 = vunpack.c.l.b16 %v278
        %v311 = vunpack.c.l.b16 %v279
        %v312 = vunpack.c.l.b16 %v280
        %v313 = vunpack.c.l.b16 %v281
        %v314 = vunpack.c.l.b16 %v282
        %v315 = vunpack.c.l.b16 %v283
        %v316 = vunpack.c.l.b16 %v284
        %v317 = vunpack.c.l.b16 %v285
        %v318 = vunpack.c.l.b16 %v286
        %v319 = vpack.c.b16 %v304, %v303
        %v320 = vpack.c.b16 %v306, %v305
        %v321 = vpack.c.b16 %v308, %v307
        %v322 = vpack.c.b16 %v310, %v309
        %v323 = vpack.c.b16 %v312, %v311
        %v324 = vpack.c.b16 %v314, %v313
        %v325 = vpack.c.b16 %v316, %v315
        %v326 = vpack.c.b16 %v318, %v317
        %335 = vmatprep.subr.bf16.mxu0 0
        %336 = vmatpush1.bf16.msra.mxu0 %v319
        %337 = vmatprep.subr.bf16.mxu0 0
        %338 = vmatpush1.bf16.msra.mxu0 %v320
        %339 = vmatprep.subr.bf16.mxu0 0
        %340 = vmatpush1.bf16.msra.mxu0 %v321
        %341 = vmatprep.subr.bf16.mxu0 0
        %342 = vmatpush1.bf16.msra.mxu0 %v322
        %343 = vmatprep.subr.bf16.mxu0 0
        %344 = vmatpush1.bf16.msra.mxu0 %v323
        %345 = vmatprep.subr.bf16.mxu0 0
        %346 = vmatpush1.bf16.msra.mxu0 %v324
        %347 = vmatprep.subr.bf16.mxu0 0
        %348 = vmatpush1.bf16.msra.mxu0 %v325
        %349 = vmatprep.subr.bf16.mxu0 0
        %350 = vmatpush1.bf16.msra.mxu0 %v326
        %351 = vmatprep.subr.bf16.mxu0 0
        %352 = vmatpush1.bf16.msra.mxu0 0
        %353 = vmatprep.subr.bf16.mxu0 0
        %354 = vmatpush1.bf16.msra.mxu0 0
        %355 = vmatprep.subr.bf16.mxu0 0
        %356 = vmatpush1.bf16.msra.mxu0 0
        %357 = vmatprep.subr.bf16.mxu0 0
        %358 = vmatpush1.bf16.msra.mxu0 0
        %359 = vmatprep.subr.bf16.mxu0 0
        %360 = vmatpush1.bf16.msra.mxu0 0
        %361 = vmatprep.subr.bf16.mxu0 0
        %362 = vmatpush1.bf16.msra.mxu0 0
        %363 = vmatprep.subr.bf16.mxu0 0
        %364 = vmatpush1.bf16.msra.mxu0 0
        %365 = vmatprep.subr.bf16.mxu0 0
        %366 = vmatpush1.bf16.msra.mxu0 0
        %367 = vmatprep.mubr.bf16.mxu0 0
        %368 = vmatmul.mubr.bf16.gmra.mrb[0].mxu0 %v265
        %v369 = vpop.f32.mrb[0].mxu0
        %v370 = vadd.f32 0.0, %v369
        %v371 = vpop.f32.mrb[0].mxu0
        %v372 = vpop.f32.mrb[0].mxu0
        %v373 = vadd.f32 0.0, %v372
        %v374 = vpop.f32.mrb[0].mxu0
        %375 = vmatprep.mubr.bf16.mxu0 0
        %376 = vmatmul.mubr.bf16.gmra.mrb[0].mxu0 %v266
        %v377 = vpop.f32.mrb[0].mxu0
        %v378 = vadd.f32 0.0, %v377
        %v379 = vpop.f32.mrb[0].mxu0
        %v380 = vpop.f32.mrb[0].mxu0
        %v381 = vadd.f32 0.0, %v380
        %v382 = vpop.f32.mrb[0].mxu0
        %383 = vmatprep.mubr.bf16.mxu0 0
        %384 = vmatmul.mubr.bf16.gmra.mrb[0].mxu0 %v267
        %v385 = vpop.f32.mrb[0].mxu0
        %v386 = vadd.f32 0.0, %v385
        %v387 = vpop.f32.mrb[0].mxu0
        %v388 = vpop.f32.mrb[0].mxu0
        %v389 = vadd.f32 0.0, %v388
        %v390 = vpop.f32.mrb[0].mxu0
        %391 = vmatprep.mubr.bf16.mxu0 0
        %392 = vmatmul.mubr.bf16.gmra.mrb[0].mxu0 %v268
        %v393 = vpop.f32.mrb[0].mxu0
        %v394 = vadd.f32 0.0, %v393
        %v395 = vpop.f32.mrb[0].mxu0
        %v396 = vpop.f32.mrb[0].mxu0
        %v397 = vadd.f32 0.0, %v396
        %v398 = vpop.f32.mrb[0].mxu0
        %399 = vmatprep.mubr.bf16.mxu0 0
        %400 = vmatmul.mubr.bf16.gmra.mrb[0].mxu0 %v269
        %v401 = vpop.f32.mrb[0].mxu0
        %v402 = vadd.f32 0.0, %v401
        %v403 = vpop.f32.mrb[0].mxu0
        %v404 = vpop.f32.mrb[0].mxu0
        %v405 = vadd.f32 0.0, %v404
        %v406 = vpop.f32.mrb[0].mxu0
        %407 = vdwg.mxu0
        %v424 = vunpack.c.l.b16 %v239
        %v425 = vunpack.c.l.b16 %v240
        %v426 = vunpack.c.l.b16 %v241
        %v427 = vunpack.c.l.b16 %v242
        %v428 = vunpack.c.l.b16 %v243
        %v429 = vunpack.c.l.b16 %v244
        %v430 = vunpack.c.l.b16 %v245
        %v431 = vunpack.c.l.b16 %v246
        %v432 = vunpack.c.l.b16 %v247
        %v433 = vunpack.c.l.b16 %v248
        %v434 = vunpack.c.l.b16 %v249
        %v435 = vunpack.c.l.b16 %v250
        %v436 = vunpack.c.l.b16 %v251
        %v437 = vunpack.c.l.b16 %v252
        %v438 = vunpack.c.l.b16 %v253
        %v439 = vunpack.c.l.b16 %v254
        %v440 = vpack.c.b16 %v425, %v424
        %v441 = vpack.c.b16 %v427, %v426
        %v442 = vpack.c.b16 %v429, %v428
        %v443 = vpack.c.b16 %v431, %v430
        %v444 = vpack.c.b16 %v433, %v432
        %v445 = vpack.c.b16 %v435, %v434
        %v446 = vpack.c.b16 %v437, %v436
        %v447 = vpack.c.b16 %v439, %v438
        %456 = vmatprep.subr.bf16.mxu0 0
        %457 = vmatpush1.bf16.msra.mxu0 %v440
        %458 = vmatprep.subr.bf16.mxu0 0
        %459 = vmatpush1.bf16.msra.mxu0 %v441
        %460 = vmatprep.subr.bf16.mxu0 0
        %461 = vmatpush1.bf16.msra.mxu0 %v442
        %462 = vmatprep.subr.bf16.mxu0 0
        %463 = vmatpush1.bf16.msra.mxu0 %v443
        %464 = vmatprep.subr.bf16.mxu0 0
        %465 = vmatpush1.bf16.msra.mxu0 %v444
        %466 = vmatprep.subr.bf16.mxu0 0
        %467 = vmatpush1.bf16.msra.mxu0 %v445
        %468 = vmatprep.subr.bf16.mxu0 0
        %469 = vmatpush1.bf16.msra.mxu0 %v446
        %470 = vmatprep.subr.bf16.mxu0 0
        %471 = vmatpush1.bf16.msra.mxu0 %v447
        %472 = vmatprep.subr.bf16.mxu0 0
        %473 = vmatpush1.bf16.msra.mxu0 0
        %474 = vmatprep.subr.bf16.mxu0 0
        %475 = vmatpush1.bf16.msra.mxu0 0
        %476 = vmatprep.subr.bf16.mxu0 0
        %477 = vmatpush1.bf16.msra.mxu0 0
        %478 = vmatprep.subr.bf16.mxu0 0
        %479 = vmatpush1.bf16.msra.mxu0 0
        %480 = vmatprep.subr.bf16.mxu0 0
        %481 = vmatpush1.bf16.msra.mxu0 0
        %482 = vmatprep.subr.bf16.mxu0 0
        %483 = vmatpush1.bf16.msra.mxu0 0
        %484 = vmatprep.subr.bf16.mxu0 0
        %485 = vmatpush1.bf16.msra.mxu0 0
        %486 = vmatprep.subr.bf16.mxu0 0
        %487 = vmatpush1.bf16.msra.mxu0 0
        %488 = vmatprep.mubr.bf16.mxu0 0
        %489 = vmatmul.mubr.bf16.gmra.mrb[0].mxu0 %v234
        %v490 = vpop.f32.mrb[0].mxu0
        %v491 = vadd.f32 %v370, %v490
        %v492 = vpop.f32.mrb[0].mxu0
        %v493 = vpop.f32.mrb[0].mxu0
        %v494 = vadd.f32 %v373, %v493
        %v495 = vpop.f32.mrb[0].mxu0
        %496 = vmatprep.mubr.bf16.mxu0 0
        %497 = vmatmul.mubr.bf16.gmra.mrb[0].mxu0 %v235
        %v498 = vpop.f32.mrb[0].mxu0
        %v499 = vadd.f32 %v378, %v498
        %v500 = vpop.f32.mrb[0].mxu0
        %v501 = vpop.f32.mrb[0].mxu0
        %v502 = vadd.f32 %v381, %v501
        %v503 = vpop.f32.mrb[0].mxu0
        %504 = vmatprep.mubr.bf16.mxu0 0
        %505 = vmatmul.mubr.bf16.gmra.mrb[0].mxu0 %v236
        %v506 = vpop.f32.mrb[0].mxu0
        %v507 = vadd.f32 %v386, %v506
        %v508 = vpop.f32.mrb[0].mxu0
        %v509 = vpop.f32.mrb[0].mxu0
        %v510 = vadd.f32 %v389, %v509
        %v511 = vpop.f32.mrb[0].mxu0
        %512 = vmatprep.mubr.bf16.mxu0 0
        %513 = vmatmul.mubr.bf16.gmra.mrb[0].mxu0 %v237
        %v514 = vpop.f32.mrb[0].mxu0
        %v515 = vadd.f32 %v394, %v514
        %v516 = vpop.f32.mrb[0].mxu0
        %v517 = vpop.f32.mrb[0].mxu0
        %v518 = vadd.f32 %v397, %v517
        %v519 = vpop.f32.mrb[0].mxu0
        %520 = vmatprep.mubr.bf16.mxu0 0
        %521 = vmatmul.mubr.bf16.gmra.mrb[0].mxu0 %v238
        %v522 = vpop.f32.mrb[0].mxu0
        %v523 = vadd.f32 %v402, %v522
        %v524 = vpop.f32.mrb[0].mxu0
        %v525 = vpop.f32.mrb[0].mxu0
        %v526 = vadd.f32 %v405, %v525
        %v527 = vpop.f32.mrb[0].mxu0
        %528 = vdwg.mxu0
        %v529 = vld [vmem:[%s222 + $0x2] sm:$0xff]
        %v530 = vld [vmem:[%s222 + $0xa] sm:$0xff]
        %v531 = vld [vmem:[%s222 + $0x12] sm:$0xff]
        %v532 = vld [vmem:[%s222 + $0x1a] sm:$0xff]
        %v533 = vld [vmem:[%s222 + $0x22] sm:$0xff]
        %v534 = vld [vmem:[%s222 + $0x2a] sm:$0xff]
        %v535 = vld [vmem:[%s222 + $0x32] sm:$0xff]
        %v536 = vld [vmem:[%s222 + $0x3a] sm:$0xff]
        %v537 = vld [vmem:[%s222 + $0x42] sm:$0xff]
        %v538 = vld [vmem:[%s222 + $0x4a] sm:$0x3f]
        %v539 = vpack.c.bf16 %v530, %v529
        %v540 = vpack.c.bf16 %v532, %v531
        %v541 = vpack.c.bf16 %v534, %v533
        %v542 = vpack.c.bf16 %v536, %v535
        %v543 = vpack.c.bf16 %v538, %v537
        %s544 = scalar_lea.vmem %s1, 128
        %v545 = vld [vmem:[%s544] sm:$0xf]
        %v546 = vld [vmem:[%s544 + $0x4] sm:$0xf]
        %v547 = vld [vmem:[%s544 + $0x8] sm:$0xf]
        %v548 = vld [vmem:[%s544 + $0xc] sm:$0xf]
        %v549 = vld [vmem:[%s544 + $0x10] sm:$0xf]
        %v550 = vld [vmem:[%s544 + $0x14] sm:$0xf]
        %v551 = vld [vmem:[%s544 + $0x18] sm:$0xf]
        %v552 = vld [vmem:[%s544 + $0x1c] sm:$0xf]
        %v553 = vld [vmem:[%s544 + $0x20] sm:$0xf]
        %v554 = vld [vmem:[%s544 + $0x24] sm:$0xf]
        %v555 = vld [vmem:[%s544 + $0x28] sm:$0xf]
        %v556 = vld [vmem:[%s544 + $0x2c] sm:$0xf]
        %v557 = vld [vmem:[%s544 + $0x30] sm:$0xf]
        %v558 = vld [vmem:[%s544 + $0x34] sm:$0xf]
        %v559 = vld [vmem:[%s544 + $0x38] sm:$0xf]
        %v560 = vld [vmem:[%s544 + $0x3c] sm:$0xf]
        %v577 = vunpack.c.l.b16 %v545
        %v578 = vunpack.c.l.b16 %v546
        %v579 = vunpack.c.l.b16 %v547
        %v580 = vunpack.c.l.b16 %v548
        %v581 = vunpack.c.l.b16 %v549
        %v582 = vunpack.c.l.b16 %v550
        %v583 = vunpack.c.l.b16 %v551
        %v584 = vunpack.c.l.b16 %v552
        %v585 = vunpack.c.l.b16 %v553
        %v586 = vunpack.c.l.b16 %v554
        %v587 = vunpack.c.l.b16 %v555
        %v588 = vunpack.c.l.b16 %v556
        %v589 = vunpack.c.l.b16 %v557
        %v590 = vunpack.c.l.b16 %v558
        %v591 = vunpack.c.l.b16 %v559
        %v592 = vunpack.c.l.b16 %v560
        %v593 = vpack.c.b16 %v578, %v577
        %v594 = vpack.c.b16 %v580, %v579
        %v595 = vpack.c.b16 %v582, %v581
        %v596 = vpack.c.b16 %v584, %v583
        %v597 = vpack.c.b16 %v586, %v585
        %v598 = vpack.c.b16 %v588, %v587
        %v599 = vpack.c.b16 %v590, %v589
        %v600 = vpack.c.b16 %v592, %v591
        %609 = vmatprep.subr.bf16.mxu0 0
        %610 = vmatpush1.bf16.msra.mxu0 %v593
        %611 = vmatprep.subr.bf16.mxu0 0
        %612 = vmatpush1.bf16.msra.mxu0 %v594
        %613 = vmatprep.subr.bf16.mxu0 0
        %614 = vmatpush1.bf16.msra.mxu0 %v595
        %615 = vmatprep.subr.bf16.mxu0 0
        %616 = vmatpush1.bf16.msra.mxu0 %v596
        %617 = vmatprep.subr.bf16.mxu0 0
        %618 = vmatpush1.bf16.msra.mxu0 %v597
        %619 = vmatprep.subr.bf16.mxu0 0
        %620 = vmatpush1.bf16.msra.mxu0 %v598
        %621 = vmatprep.subr.bf16.mxu0 0
        %622 = vmatpush1.bf16.msra.mxu0 %v599
        %623 = vmatprep.subr.bf16.mxu0 0
        %624 = vmatpush1.bf16.msra.mxu0 %v600
        %625 = vmatprep.subr.bf16.mxu0 0
        %626 = vmatpush1.bf16.msra.mxu0 0
        %627 = vmatprep.subr.bf16.mxu0 0
        %628 = vmatpush1.bf16.msra.mxu0 0
        %629 = vmatprep.subr.bf16.mxu0 0
        %630 = vmatpush1.bf16.msra.mxu0 0
        %631 = vmatprep.subr.bf16.mxu0 0
        %632 = vmatpush1.bf16.msra.mxu0 0
        %633 = vmatprep.subr.bf16.mxu0 0
        %634 = vmatpush1.bf16.msra.mxu0 0
        %635 = vmatprep.subr.bf16.mxu0 0
        %636 = vmatpush1.bf16.msra.mxu0 0
        %637 = vmatprep.subr.bf16.mxu0 0
        %638 = vmatpush1.bf16.msra.mxu0 0
        %639 = vmatprep.subr.bf16.mxu0 0
        %640 = vmatpush1.bf16.msra.mxu0 0
        %641 = vmatprep.mubr.bf16.mxu0 0
        %642 = vmatmul.mubr.bf16.gmra.mrb[0].mxu0 %v539
        %v643 = vpop.f32.mrb[0].mxu0
        %v644 = vadd.f32 0.0, %v643
        %v645 = vpop.f32.mrb[0].mxu0
        %v646 = vpop.f32.mrb[0].mxu0
        %v647 = vadd.f32 0.0, %v646
        %v648 = vpop.f32.mrb[0].mxu0
        %649 = vmatprep.mubr.bf16.mxu0 0
        %650 = vmatmul.mubr.bf16.gmra.mrb[0].mxu0 %v540
        %v651 = vpop.f32.mrb[0].mxu0
        %v652 = vadd.f32 0.0, %v651
        %v653 = vpop.f32.mrb[0].mxu0
        %v654 = vpop.f32.mrb[0].mxu0
        %v655 = vadd.f32 0.0, %v654
        %v656 = vpop.f32.mrb[0].mxu0
        %657 = vmatprep.mubr.bf16.mxu0 0
        %658 = vmatmul.mubr.bf16.gmra.mrb[0].mxu0 %v541
        %v659 = vpop.f32.mrb[0].mxu0
        %v660 = vadd.f32 0.0, %v659
        %v661 = vpop.f32.mrb[0].mxu0
        %v662 = vpop.f32.mrb[0].mxu0
        %v663 = vadd.f32 0.0, %v662
        %v664 = vpop.f32.mrb[0].mxu0
        %665 = vmatprep.mubr.bf16.mxu0 0
        %666 = vmatmul.mubr.bf16.gmra.mrb[0].mxu0 %v542
        %v667 = vpop.f32.mrb[0].mxu0
        %v668 = vadd.f32 0.0, %v667
        %v669 = vpop.f32.mrb[0].mxu0
        %v670 = vpop.f32.mrb[0].mxu0
        %v671 = vadd.f32 0.0, %v670
        %v672 = vpop.f32.mrb[0].mxu0
        %673 = vmatprep.mubr.bf16.mxu0 0
        %674 = vmatmul.mubr.bf16.gmra.mrb[0].mxu0 %v543
        %v675 = vpop.f32.mrb[0].mxu0
        %v676 = vadd.f32 0.0, %v675
        %v677 = vpop.f32.mrb[0].mxu0
        %v678 = vpop.f32.mrb[0].mxu0
        %v679 = vadd.f32 0.0, %v678
        %v680 = vpop.f32.mrb[0].mxu0
        %681 = vdwg.mxu0
        %v682 = vadd.f32 %v491, %v644
        %v683 = vadd.f32 %v494, %v647
        %v684 = vadd.f32 %v499, %v652
        %v685 = vadd.f32 %v502, %v655
        %v686 = vadd.f32 %v507, %v660
        %v687 = vadd.f32 %v510, %v663
        %v688 = vadd.f32 %v515, %v668
        %v689 = vadd.f32 %v518, %v671
        %v690 = vadd.f32 %v523, %v676
        %v691 = vadd.f32 %v526, %v679
        %v692 = vld [vmem:[%s222 + $0xa] sm:$0xff]
        %v693 = vld [vmem:[%s222 + $0x12] sm:$0xff]
        %v694 = vld [vmem:[%s222 + $0x1a] sm:$0xff]
        %v695 = vld [vmem:[%s222 + $0x22] sm:$0xff]
        %v696 = vld [vmem:[%s222 + $0x2a] sm:$0xff]
        %v697 = vld [vmem:[%s222 + $0x32] sm:$0xff]
        %v698 = vld [vmem:[%s222 + $0x3a] sm:$0xff]
        %v699 = vld [vmem:[%s222 + $0x42] sm:$0xff]
        %v700 = vld [vmem:[%s222 + $0x4a] sm:$0xff]
        %v701 = vld [vmem:[%s222 + $0x52] sm:$0x3f]
        %v702 = vpack.c.bf16 %v693, %v692
        %v703 = vpack.c.bf16 %v695, %v694
        %v704 = vpack.c.bf16 %v697, %v696
        %v705 = vpack.c.bf16 %v699, %v698
        %v706 = vpack.c.bf16 %v701, %v700
        %s707 = scalar_lea.vmem %s1, 192
        %v708 = vld [vmem:[%s707] sm:$0xf]
        %v709 = vld [vmem:[%s707 + $0x4] sm:$0xf]
        %v710 = vld [vmem:[%s707 + $0x8] sm:$0xf]
        %v711 = vld [vmem:[%s707 + $0xc] sm:$0xf]
        %v712 = vld [vmem:[%s707 + $0x10] sm:$0xf]
        %v713 = vld [vmem:[%s707 + $0x14] sm:$0xf]
        %v714 = vld [vmem:[%s707 + $0x18] sm:$0xf]
        %v715 = vld [vmem:[%s707 + $0x1c] sm:$0xf]
        %v716 = vld [vmem:[%s707 + $0x20] sm:$0xf]
        %v717 = vld [vmem:[%s707 + $0x24] sm:$0xf]
        %v718 = vld [vmem:[%s707 + $0x28] sm:$0xf]
        %v719 = vld [vmem:[%s707 + $0x2c] sm:$0xf]
        %v720 = vld [vmem:[%s707 + $0x30] sm:$0xf]
        %v721 = vld [vmem:[%s707 + $0x34] sm:$0xf]
        %v722 = vld [vmem:[%s707 + $0x38] sm:$0xf]
        %v723 = vld [vmem:[%s707 + $0x3c] sm:$0xf]
        %v740 = vunpack.c.l.b16 %v708
        %v741 = vunpack.c.l.b16 %v709
        %v742 = vunpack.c.l.b16 %v710
        %v743 = vunpack.c.l.b16 %v711
        %v744 = vunpack.c.l.b16 %v712
        %v745 = vunpack.c.l.b16 %v713
        %v746 = vunpack.c.l.b16 %v714
        %v747 = vunpack.c.l.b16 %v715
        %v748 = vunpack.c.l.b16 %v716
        %v749 = vunpack.c.l.b16 %v717
        %v750 = vunpack.c.l.b16 %v718
        %v751 = vunpack.c.l.b16 %v719
        %v752 = vunpack.c.l.b16 %v720
        %v753 = vunpack.c.l.b16 %v721
        %v754 = vunpack.c.l.b16 %v722
        %v755 = vunpack.c.l.b16 %v723
        %v756 = vpack.c.b16 %v741, %v740
        %v757 = vpack.c.b16 %v743, %v742
        %v758 = vpack.c.b16 %v745, %v744
        %v759 = vpack.c.b16 %v747, %v746
        %v760 = vpack.c.b16 %v749, %v748
        %v761 = vpack.c.b16 %v751, %v750
        %v762 = vpack.c.b16 %v753, %v752
        %v763 = vpack.c.b16 %v755, %v754
        %772 = vmatprep.subr.bf16.mxu0 0
        %773 = vmatpush1.bf16.msra.mxu0 %v756
        %774 = vmatprep.subr.bf16.mxu0 0
        %775 = vmatpush1.bf16.msra.mxu0 %v757
        %776 = vmatprep.subr.bf16.mxu0 0
        %777 = vmatpush1.bf16.msra.mxu0 %v758
        %778 = vmatprep.subr.bf16.mxu0 0
        %779 = vmatpush1.bf16.msra.mxu0 %v759
        %780 = vmatprep.subr.bf16.mxu0 0
        %781 = vmatpush1.bf16.msra.mxu0 %v760
        %782 = vmatprep.subr.bf16.mxu0 0
        %783 = vmatpush1.bf16.msra.mxu0 %v761
        %784 = vmatprep.subr.bf16.mxu0 0
        %785 = vmatpush1.bf16.msra.mxu0 %v762
        %786 = vmatprep.subr.bf16.mxu0 0
        %787 = vmatpush1.bf16.msra.mxu0 %v763
        %788 = vmatprep.subr.bf16.mxu0 0
        %789 = vmatpush1.bf16.msra.mxu0 0
        %790 = vmatprep.subr.bf16.mxu0 0
        %791 = vmatpush1.bf16.msra.mxu0 0
        %792 = vmatprep.subr.bf16.mxu0 0
        %793 = vmatpush1.bf16.msra.mxu0 0
        %794 = vmatprep.subr.bf16.mxu0 0
        %795 = vmatpush1.bf16.msra.mxu0 0
        %796 = vmatprep.subr.bf16.mxu0 0
        %797 = vmatpush1.bf16.msra.mxu0 0
        %798 = vmatprep.subr.bf16.mxu0 0
        %799 = vmatpush1.bf16.msra.mxu0 0
        %800 = vmatprep.subr.bf16.mxu0 0
        %801 = vmatpush1.bf16.msra.mxu0 0
        %802 = vmatprep.subr.bf16.mxu0 0
        %803 = vmatpush1.bf16.msra.mxu0 0
        %804 = vmatprep.mubr.bf16.mxu0 0
        %805 = vmatmul.mubr.bf16.gmra.mrb[0].mxu0 %v702
        %v806 = vpop.f32.mrb[0].mxu0
        %v807 = vadd.f32 0.0, %v806
        %v808 = vpop.f32.mrb[0].mxu0
        %v809 = vpop.f32.mrb[0].mxu0
        %v810 = vadd.f32 0.0, %v809
        %v811 = vpop.f32.mrb[0].mxu0
        %812 = vmatprep.mubr.bf16.mxu0 0
        %813 = vmatmul.mubr.bf16.gmra.mrb[0].mxu0 %v703
        %v814 = vpop.f32.mrb[0].mxu0
        %v815 = vadd.f32 0.0, %v814
        %v816 = vpop.f32.mrb[0].mxu0
        %v817 = vpop.f32.mrb[0].mxu0
        %v818 = vadd.f32 0.0, %v817
        %v819 = vpop.f32.mrb[0].mxu0
        %820 = vmatprep.mubr.bf16.mxu0 0
        %821 = vmatmul.mubr.bf16.gmra.mrb[0].mxu0 %v704
        %v822 = vpop.f32.mrb[0].mxu0
        %v823 = vadd.f32 0.0, %v822
        %v824 = vpop.f32.mrb[0].mxu0
        %v825 = vpop.f32.mrb[0].mxu0
        %v826 = vadd.f32 0.0, %v825
        %v827 = vpop.f32.mrb[0].mxu0
        %828 = vmatprep.mubr.bf16.mxu0 0
        %829 = vmatmul.mubr.bf16.gmra.mrb[0].mxu0 %v705
        %v830 = vpop.f32.mrb[0].mxu0
        %v831 = vadd.f32 0.0, %v830
        %v832 = vpop.f32.mrb[0].mxu0
        %v833 = vpop.f32.mrb[0].mxu0
        %v834 = vadd.f32 0.0, %v833
        %v835 = vpop.f32.mrb[0].mxu0
        %836 = vmatprep.mubr.bf16.mxu0 0
        %837 = vmatmul.mubr.bf16.gmra.mrb[0].mxu0 %v706
        %v838 = vpop.f32.mrb[0].mxu0
        %v839 = vadd.f32 0.0, %v838
        %v840 = vpop.f32.mrb[0].mxu0
        %v841 = vpop.f32.mrb[0].mxu0
        %v842 = vadd.f32 0.0, %v841
        %v843 = vpop.f32.mrb[0].mxu0
        %844 = vdwg.mxu0
        %v845 = vadd.f32 %v682, %v807
        %v846 = vadd.f32 %v683, %v810
        %v847 = vadd.f32 %v684, %v815
        %v848 = vadd.f32 %v685, %v818
        %v849 = vadd.f32 %v686, %v823
        %v850 = vadd.f32 %v687, %v826
        %v851 = vadd.f32 %v688, %v831
        %v852 = vadd.f32 %v689, %v834
        %v853 = vadd.f32 %v690, %v839
        %v854 = vadd.f32 %v691, %v842
        %v855 = vld [vmem:[%s222 + $0xb] sm:$0xff]
        %v856 = vld [vmem:[%s222 + $0x13] sm:$0xff]
        %v857 = vld [vmem:[%s222 + $0x1b] sm:$0xff]
        %v858 = vld [vmem:[%s222 + $0x23] sm:$0xff]
        %v859 = vld [vmem:[%s222 + $0x2b] sm:$0xff]
        %v860 = vld [vmem:[%s222 + $0x33] sm:$0xff]
        %v861 = vld [vmem:[%s222 + $0x3b] sm:$0xff]
        %v862 = vld [vmem:[%s222 + $0x43] sm:$0xff]
        %v863 = vld [vmem:[%s222 + $0x4b] sm:$0xff]
        %v864 = vld [vmem:[%s222 + $0x53] sm:$0x3f]
        %v865 = vpack.c.bf16 %v856, %v855
        %v866 = vpack.c.bf16 %v858, %v857
        %v867 = vpack.c.bf16 %v860, %v859
        %v868 = vpack.c.bf16 %v862, %v861
        %v869 = vpack.c.bf16 %v864, %v863
        %s870 = scalar_lea.vmem %s1, 256
        %v871 = vld [vmem:[%s870] sm:$0xf]
        %v872 = vld [vmem:[%s870 + $0x4] sm:$0xf]
        %v873 = vld [vmem:[%s870 + $0x8] sm:$0xf]
        %v874 = vld [vmem:[%s870 + $0xc] sm:$0xf]
        %v875 = vld [vmem:[%s870 + $0x10] sm:$0xf]
        %v876 = vld [vmem:[%s870 + $0x14] sm:$0xf]
        %v877 = vld [vmem:[%s870 + $0x18] sm:$0xf]
        %v878 = vld [vmem:[%s870 + $0x1c] sm:$0xf]
        %v879 = vld [vmem:[%s870 + $0x20] sm:$0xf]
        %v880 = vld [vmem:[%s870 + $0x24] sm:$0xf]
        %v881 = vld [vmem:[%s870 + $0x28] sm:$0xf]
        %v882 = vld [vmem:[%s870 + $0x2c] sm:$0xf]
        %v883 = vld [vmem:[%s870 + $0x30] sm:$0xf]
        %v884 = vld [vmem:[%s870 + $0x34] sm:$0xf]
        %v885 = vld [vmem:[%s870 + $0x38] sm:$0xf]
        %v886 = vld [vmem:[%s870 + $0x3c] sm:$0xf]
        %v903 = vunpack.c.l.b16 %v871
        %v904 = vunpack.c.l.b16 %v872
        %v905 = vunpack.c.l.b16 %v873
        %v906 = vunpack.c.l.b16 %v874
        %v907 = vunpack.c.l.b16 %v875
        %v908 = vunpack.c.l.b16 %v876
        %v909 = vunpack.c.l.b16 %v877
        %v910 = vunpack.c.l.b16 %v878
        %v911 = vunpack.c.l.b16 %v879
        %v912 = vunpack.c.l.b16 %v880
        %v913 = vunpack.c.l.b16 %v881
        %v914 = vunpack.c.l.b16 %v882
        %v915 = vunpack.c.l.b16 %v883
        %v916 = vunpack.c.l.b16 %v884
        %v917 = vunpack.c.l.b16 %v885
        %v918 = vunpack.c.l.b16 %v886
        %v919 = vpack.c.b16 %v904, %v903
        %v920 = vpack.c.b16 %v906, %v905
        %v921 = vpack.c.b16 %v908, %v907
        %v922 = vpack.c.b16 %v910, %v909
        %v923 = vpack.c.b16 %v912, %v911
        %v924 = vpack.c.b16 %v914, %v913
        %v925 = vpack.c.b16 %v916, %v915
        %v926 = vpack.c.b16 %v918, %v917
        %935 = vmatprep.subr.bf16.mxu0 0
        %936 = vmatpush1.bf16.msra.mxu0 %v919
        %937 = vmatprep.subr.bf16.mxu0 0
        %938 = vmatpush1.bf16.msra.mxu0 %v920
        %939 = vmatprep.subr.bf16.mxu0 0
        %940 = vmatpush1.bf16.msra.mxu0 %v921
        %941 = vmatprep.subr.bf16.mxu0 0
        %942 = vmatpush1.bf16.msra.mxu0 %v922
        %943 = vmatprep.subr.bf16.mxu0 0
        %944 = vmatpush1.bf16.msra.mxu0 %v923
        %945 = vmatprep.subr.bf16.mxu0 0
        %946 = vmatpush1.bf16.msra.mxu0 %v924
        %947 = vmatprep.subr.bf16.mxu0 0
        %948 = vmatpush1.bf16.msra.mxu0 %v925
        %949 = vmatprep.subr.bf16.mxu0 0
        %950 = vmatpush1.bf16.msra.mxu0 %v926
        %951 = vmatprep.subr.bf16.mxu0 0
        %952 = vmatpush1.bf16.msra.mxu0 0
        %953 = vmatprep.subr.bf16.mxu0 0
        %954 = vmatpush1.bf16.msra.mxu0 0
        %955 = vmatprep.subr.bf16.mxu0 0
        %956 = vmatpush1.bf16.msra.mxu0 0
        %957 = vmatprep.subr.bf16.mxu0 0
        %958 = vmatpush1.bf16.msra.mxu0 0
        %959 = vmatprep.subr.bf16.mxu0 0
        %960 = vmatpush1.bf16.msra.mxu0 0
        %961 = vmatprep.subr.bf16.mxu0 0
        %962 = vmatpush1.bf16.msra.mxu0 0
        %963 = vmatprep.subr.bf16.mxu0 0
        %964 = vmatpush1.bf16.msra.mxu0 0
        %965 = vmatprep.subr.bf16.mxu0 0
        %966 = vmatpush1.bf16.msra.mxu0 0
        %967 = vmatprep.mubr.bf16.mxu0 0
        %968 = vmatmul.mubr.bf16.gmra.mrb[0].mxu0 %v865
        %v969 = vpop.f32.mrb[0].mxu0
        %v970 = vadd.f32 0.0, %v969
        %v971 = vpop.f32.mrb[0].mxu0
        %v972 = vpop.f32.mrb[0].mxu0
        %v973 = vadd.f32 0.0, %v972
        %v974 = vpop.f32.mrb[0].mxu0
        %975 = vmatprep.mubr.bf16.mxu0 0
        %976 = vmatmul.mubr.bf16.gmra.mrb[0].mxu0 %v866
        %v977 = vpop.f32.mrb[0].mxu0
        %v978 = vadd.f32 0.0, %v977
        %v979 = vpop.f32.mrb[0].mxu0
        %v980 = vpop.f32.mrb[0].mxu0
        %v981 = vadd.f32 0.0, %v980
        %v982 = vpop.f32.mrb[0].mxu0
        %983 = vmatprep.mubr.bf16.mxu0 0
        %984 = vmatmul.mubr.bf16.gmra.mrb[0].mxu0 %v867
        %v985 = vpop.f32.mrb[0].mxu0
        %v986 = vadd.f32 0.0, %v985
        %v987 = vpop.f32.mrb[0].mxu0
        %v988 = vpop.f32.mrb[0].mxu0
        %v989 = vadd.f32 0.0, %v988
        %v990 = vpop.f32.mrb[0].mxu0
        %991 = vmatprep.mubr.bf16.mxu0 0
        %992 = vmatmul.mubr.bf16.gmra.mrb[0].mxu0 %v868
        %v993 = vpop.f32.mrb[0].mxu0
        %v994 = vadd.f32 0.0, %v993
        %v995 = vpop.f32.mrb[0].mxu0
        %v996 = vpop.f32.mrb[0].mxu0
        %v997 = vadd.f32 0.0, %v996
        %v998 = vpop.f32.mrb[0].mxu0
        %999 = vmatprep.mubr.bf16.mxu0 0
        %1000 = vmatmul.mubr.bf16.gmra.mrb[0].mxu0 %v869
        %v1001 = vpop.f32.mrb[0].mxu0
        %v1002 = vadd.f32 0.0, %v1001
        %v1003 = vpop.f32.mrb[0].mxu0
        %v1004 = vpop.f32.mrb[0].mxu0
        %v1005 = vadd.f32 0.0, %v1004
        %v1006 = vpop.f32.mrb[0].mxu0
        %1007 = vdwg.mxu0
        %v1008 = vadd.f32 %v845, %v970
        %v1009 = vadd.f32 %v846, %v973
        %v1010 = vadd.f32 %v847, %v978
        %v1011 = vadd.f32 %v848, %v981
        %v1012 = vadd.f32 %v849, %v986
        %v1013 = vadd.f32 %v850, %v989
        %v1014 = vadd.f32 %v851, %v994
        %v1015 = vadd.f32 %v852, %v997
        %v1016 = vadd.f32 %v853, %v1002
        %v1017 = vadd.f32 %v854, %v1005
        %v1018 = vld [vmem:[%s222 + $0xc] sm:$0xff]
        %v1019 = vld [vmem:[%s222 + $0x14] sm:$0xff]
        %v1020 = vld [vmem:[%s222 + $0x1c] sm:$0xff]
        %v1021 = vld [vmem:[%s222 + $0x24] sm:$0xff]
        %v1022 = vld [vmem:[%s222 + $0x2c] sm:$0xff]
        %v1023 = vld [vmem:[%s222 + $0x34] sm:$0xff]
        %v1024 = vld [vmem:[%s222 + $0x3c] sm:$0xff]
        %v1025 = vld [vmem:[%s222 + $0x44] sm:$0xff]
        %v1026 = vld [vmem:[%s222 + $0x4c] sm:$0xff]
        %v1027 = vld [vmem:[%s222 + $0x54] sm:$0x3f]
        %v1028 = vpack.c.bf16 %v1019, %v1018
        %v1029 = vpack.c.bf16 %v1021, %v1020
        %v1030 = vpack.c.bf16 %v1023, %v1022
        %v1031 = vpack.c.bf16 %v1025, %v1024
        %v1032 = vpack.c.bf16 %v1027, %v1026
        %s1033 = scalar_lea.vmem %s1, 320
        %v1034 = vld [vmem:[%s1033] sm:$0xf]
        %v1035 = vld [vmem:[%s1033 + $0x4] sm:$0xf]
        %v1036 = vld [vmem:[%s1033 + $0x8] sm:$0xf]
        %v1037 = vld [vmem:[%s1033 + $0xc] sm:$0xf]
        %v1038 = vld [vmem:[%s1033 + $0x10] sm:$0xf]
        %v1039 = vld [vmem:[%s1033 + $0x14] sm:$0xf]
        %v1040 = vld [vmem:[%s1033 + $0x18] sm:$0xf]
        %v1041 = vld [vmem:[%s1033 + $0x1c] sm:$0xf]
        %v1042 = vld [vmem:[%s1033 + $0x20] sm:$0xf]
        %v1043 = vld [vmem:[%s1033 + $0x24] sm:$0xf]
        %v1044 = vld [vmem:[%s1033 + $0x28] sm:$0xf]
        %v1045 = vld [vmem:[%s1033 + $0x2c] sm:$0xf]
        %v1046 = vld [vmem:[%s1033 + $0x30] sm:$0xf]
        %v1047 = vld [vmem:[%s1033 + $0x34] sm:$0xf]
        %v1048 = vld [vmem:[%s1033 + $0x38] sm:$0xf]
        %v1049 = vld [vmem:[%s1033 + $0x3c] sm:$0xf]
        %v1066 = vunpack.c.l.b16 %v1034
        %v1067 = vunpack.c.l.b16 %v1035
        %v1068 = vunpack.c.l.b16 %v1036
        %v1069 = vunpack.c.l.b16 %v1037
        %v1070 = vunpack.c.l.b16 %v1038
        %v1071 = vunpack.c.l.b16 %v1039
        %v1072 = vunpack.c.l.b16 %v1040
        %v1073 = vunpack.c.l.b16 %v1041
        %v1074 = vunpack.c.l.b16 %v1042
        %v1075 = vunpack.c.l.b16 %v1043
        %v1076 = vunpack.c.l.b16 %v1044
        %v1077 = vunpack.c.l.b16 %v1045
        %v1078 = vunpack.c.l.b16 %v1046
        %v1079 = vunpack.c.l.b16 %v1047
        %v1080 = vunpack.c.l.b16 %v1048
        %v1081 = vunpack.c.l.b16 %v1049
        %v1082 = vpack.c.b16 %v1067, %v1066
        %v1083 = vpack.c.b16 %v1069, %v1068
        %v1084 = vpack.c.b16 %v1071, %v1070
        %v1085 = vpack.c.b16 %v1073, %v1072
        %v1086 = vpack.c.b16 %v1075, %v1074
        %v1087 = vpack.c.b16 %v1077, %v1076
        %v1088 = vpack.c.b16 %v1079, %v1078
        %v1089 = vpack.c.b16 %v1081, %v1080
        %1098 = vmatprep.subr.bf16.mxu0 0
        %1099 = vmatpush1.bf16.msra.mxu0 %v1082
        %1100 = vmatprep.subr.bf16.mxu0 0
        %1101 = vmatpush1.bf16.msra.mxu0 %v1083
        %1102 = vmatprep.subr.bf16.mxu0 0
        %1103 = vmatpush1.bf16.msra.mxu0 %v1084
        %1104 = vmatprep.subr.bf16.mxu0 0
        %1105 = vmatpush1.bf16.msra.mxu0 %v1085
        %1106 = vmatprep.subr.bf16.mxu0 0
        %1107 = vmatpush1.bf16.msra.mxu0 %v1086
        %1108 = vmatprep.subr.bf16.mxu0 0
        %1109 = vmatpush1.bf16.msra.mxu0 %v1087
        %1110 = vmatprep.subr.bf16.mxu0 0
        %1111 = vmatpush1.bf16.msra.mxu0 %v1088
        %1112 = vmatprep.subr.bf16.mxu0 0
        %1113 = vmatpush1.bf16.msra.mxu0 %v1089
        %1114 = vmatprep.subr.bf16.mxu0 0
        %1115 = vmatpush1.bf16.msra.mxu0 0
        %1116 = vmatprep.subr.bf16.mxu0 0
        %1117 = vmatpush1.bf16.msra.mxu0 0
        %1118 = vmatprep.subr.bf16.mxu0 0
        %1119 = vmatpush1.bf16.msra.mxu0 0
        %1120 = vmatprep.subr.bf16.mxu0 0
        %1121 = vmatpush1.bf16.msra.mxu0 0
        %1122 = vmatprep.subr.bf16.mxu0 0
        %1123 = vmatpush1.bf16.msra.mxu0 0
        %1124 = vmatprep.subr.bf16.mxu0 0
        %1125 = vmatpush1.bf16.msra.mxu0 0
        %1126 = vmatprep.subr.bf16.mxu0 0
        %1127 = vmatpush1.bf16.msra.mxu0 0
        %1128 = vmatprep.subr.bf16.mxu0 0
        %1129 = vmatpush1.bf16.msra.mxu0 0
        %1130 = vmatprep.mubr.bf16.mxu0 0
        %1131 = vmatmul.mubr.bf16.gmra.mrb[0].mxu0 %v1028
        %v1132 = vpop.f32.mrb[0].mxu0
        %v1133 = vadd.f32 0.0, %v1132
        %v1134 = vpop.f32.mrb[0].mxu0
        %v1135 = vpop.f32.mrb[0].mxu0
        %v1136 = vadd.f32 0.0, %v1135
        %v1137 = vpop.f32.mrb[0].mxu0
        %1138 = vmatprep.mubr.bf16.mxu0 0
        %1139 = vmatmul.mubr.bf16.gmra.mrb[0].mxu0 %v1029
        %v1140 = vpop.f32.mrb[0].mxu0
        %v1141 = vadd.f32 0.0, %v1140
        %v1142 = vpop.f32.mrb[0].mxu0
        %v1143 = vpop.f32.mrb[0].mxu0
        %v1144 = vadd.f32 0.0, %v1143
        %v1145 = vpop.f32.mrb[0].mxu0
        %1146 = vmatprep.mubr.bf16.mxu0 0
        %1147 = vmatmul.mubr.bf16.gmra.mrb[0].mxu0 %v1030
        %v1148 = vpop.f32.mrb[0].mxu0
        %v1149 = vadd.f32 0.0, %v1148
        %v1150 = vpop.f32.mrb[0].mxu0
        %v1151 = vpop.f32.mrb[0].mxu0
        %v1152 = vadd.f32 0.0, %v1151
        %v1153 = vpop.f32.mrb[0].mxu0
        %1154 = vmatprep.mubr.bf16.mxu0 0
        %1155 = vmatmul.mubr.bf16.gmra.mrb[0].mxu0 %v1031
        %v1156 = vpop.f32.mrb[0].mxu0
        %v1157 = vadd.f32 0.0, %v1156
        %v1158 = vpop.f32.mrb[0].mxu0
        %v1159 = vpop.f32.mrb[0].mxu0
        %v1160 = vadd.f32 0.0, %v1159
        %v1161 = vpop.f32.mrb[0].mxu0
        %1162 = vmatprep.mubr.bf16.mxu0 0
        %1163 = vmatmul.mubr.bf16.gmra.mrb[0].mxu0 %v1032
        %v1164 = vpop.f32.mrb[0].mxu0
        %v1165 = vadd.f32 0.0, %v1164
        %v1166 = vpop.f32.mrb[0].mxu0
        %v1167 = vpop.f32.mrb[0].mxu0
        %v1168 = vadd.f32 0.0, %v1167
        %v1169 = vpop.f32.mrb[0].mxu0
        %1170 = vdwg.mxu0
        %v1171 = vadd.f32 %v1008, %v1133
        %v1172 = vadd.f32 %v1009, %v1136
        %v1173 = vadd.f32 %v1010, %v1141
        %v1174 = vadd.f32 %v1011, %v1144
        %v1175 = vadd.f32 %v1012, %v1149
        %v1176 = vadd.f32 %v1013, %v1152
        %v1177 = vadd.f32 %v1014, %v1157
        %v1178 = vadd.f32 %v1015, %v1160
        %v1179 = vadd.f32 %v1016, %v1165
        %v1180 = vadd.f32 %v1017, %v1168
        %v1181 = vld [vmem:[%s222 + $0x14] sm:$0xff]
        %v1182 = vld [vmem:[%s222 + $0x1c] sm:$0xff]
        %v1183 = vld [vmem:[%s222 + $0x24] sm:$0xff]
        %v1184 = vld [vmem:[%s222 + $0x2c] sm:$0xff]
        %v1185 = vld [vmem:[%s222 + $0x34] sm:$0xff]
        %v1186 = vld [vmem:[%s222 + $0x3c] sm:$0xff]
        %v1187 = vld [vmem:[%s222 + $0x44] sm:$0xff]
        %v1188 = vld [vmem:[%s222 + $0x4c] sm:$0xff]
        %v1189 = vld [vmem:[%s222 + $0x54] sm:$0xff]
        %v1190 = vld [vmem:[%s222 + $0x5c] sm:$0x3f]
        %v1191 = vpack.c.bf16 %v1182, %v1181
        %v1192 = vpack.c.bf16 %v1184, %v1183
        %v1193 = vpack.c.bf16 %v1186, %v1185
        %v1194 = vpack.c.bf16 %v1188, %v1187
        %v1195 = vpack.c.bf16 %v1190, %v1189
        %s1196 = scalar_lea.vmem %s1, 384
        %v1197 = vld [vmem:[%s1196] sm:$0xf]
        %v1198 = vld [vmem:[%s1196 + $0x4] sm:$0xf]
        %v1199 = vld [vmem:[%s1196 + $0x8] sm:$0xf]
        %v1200 = vld [vmem:[%s1196 + $0xc] sm:$0xf]
        %v1201 = vld [vmem:[%s1196 + $0x10] sm:$0xf]
        %v1202 = vld [vmem:[%s1196 + $0x14] sm:$0xf]
        %v1203 = vld [vmem:[%s1196 + $0x18] sm:$0xf]
        %v1204 = vld [vmem:[%s1196 + $0x1c] sm:$0xf]
        %v1205 = vld [vmem:[%s1196 + $0x20] sm:$0xf]
        %v1206 = vld [vmem:[%s1196 + $0x24] sm:$0xf]
        %v1207 = vld [vmem:[%s1196 + $0x28] sm:$0xf]
        %v1208 = vld [vmem:[%s1196 + $0x2c] sm:$0xf]
        %v1209 = vld [vmem:[%s1196 + $0x30] sm:$0xf]
        %v1210 = vld [vmem:[%s1196 + $0x34] sm:$0xf]
        %v1211 = vld [vmem:[%s1196 + $0x38] sm:$0xf]
        %v1212 = vld [vmem:[%s1196 + $0x3c] sm:$0xf]
        %v1229 = vunpack.c.l.b16 %v1197
        %v1230 = vunpack.c.l.b16 %v1198
        %v1231 = vunpack.c.l.b16 %v1199
        %v1232 = vunpack.c.l.b16 %v1200
        %v1233 = vunpack.c.l.b16 %v1201
        %v1234 = vunpack.c.l.b16 %v1202
        %v1235 = vunpack.c.l.b16 %v1203
        %v1236 = vunpack.c.l.b16 %v1204
        %v1237 = vunpack.c.l.b16 %v1205
        %v1238 = vunpack.c.l.b16 %v1206
        %v1239 = vunpack.c.l.b16 %v1207
        %v1240 = vunpack.c.l.b16 %v1208
        %v1241 = vunpack.c.l.b16 %v1209
        %v1242 = vunpack.c.l.b16 %v1210
        %v1243 = vunpack.c.l.b16 %v1211
        %v1244 = vunpack.c.l.b16 %v1212
        %v1245 = vpack.c.b16 %v1230, %v1229
        %v1246 = vpack.c.b16 %v1232, %v1231
        %v1247 = vpack.c.b16 %v1234, %v1233
        %v1248 = vpack.c.b16 %v1236, %v1235
        %v1249 = vpack.c.b16 %v1238, %v1237
        %v1250 = vpack.c.b16 %v1240, %v1239
        %v1251 = vpack.c.b16 %v1242, %v1241
        %v1252 = vpack.c.b16 %v1244, %v1243
        %1261 = vmatprep.subr.bf16.mxu0 0
        %1262 = vmatpush1.bf16.msra.mxu0 %v1245
        %1263 = vmatprep.subr.bf16.mxu0 0
        %1264 = vmatpush1.bf16.msra.mxu0 %v1246
        %1265 = vmatprep.subr.bf16.mxu0 0
        %1266 = vmatpush1.bf16.msra.mxu0 %v1247
        %1267 = vmatprep.subr.bf16.mxu0 0
        %1268 = vmatpush1.bf16.msra.mxu0 %v1248
        %1269 = vmatprep.subr.bf16.mxu0 0
        %1270 = vmatpush1.bf16.msra.mxu0 %v1249
        %1271 = vmatprep.subr.bf16.mxu0 0
        %1272 = vmatpush1.bf16.msra.mxu0 %v1250
        %1273 = vmatprep.subr.bf16.mxu0 0
        %1274 = vmatpush1.bf16.msra.mxu0 %v1251
        %1275 = vmatprep.subr.bf16.mxu0 0
        %1276 = vmatpush1.bf16.msra.mxu0 %v1252
        %1277 = vmatprep.subr.bf16.mxu0 0
        %1278 = vmatpush1.bf16.msra.mxu0 0
        %1279 = vmatprep.subr.bf16.mxu0 0
        %1280 = vmatpush1.bf16.msra.mxu0 0
        %1281 = vmatprep.subr.bf16.mxu0 0
        %1282 = vmatpush1.bf16.msra.mxu0 0
        %1283 = vmatprep.subr.bf16.mxu0 0
        %1284 = vmatpush1.bf16.msra.mxu0 0
        %1285 = vmatprep.subr.bf16.mxu0 0
        %1286 = vmatpush1.bf16.msra.mxu0 0
        %1287 = vmatprep.subr.bf16.mxu0 0
        %1288 = vmatpush1.bf16.msra.mxu0 0
        %1289 = vmatprep.subr.bf16.mxu0 0
        %1290 = vmatpush1.bf16.msra.mxu0 0
        %1291 = vmatprep.subr.bf16.mxu0 0
        %1292 = vmatpush1.bf16.msra.mxu0 0
        %1293 = vmatprep.mubr.bf16.mxu0 0
        %1294 = vmatmul.mubr.bf16.gmra.mrb[0].mxu0 %v1191
        %v1295 = vpop.f32.mrb[0].mxu0
        %v1296 = vadd.f32 0.0, %v1295
        %v1297 = vpop.f32.mrb[0].mxu0
        %v1298 = vpop.f32.mrb[0].mxu0
        %v1299 = vadd.f32 0.0, %v1298
        %v1300 = vpop.f32.mrb[0].mxu0
        %1301 = vmatprep.mubr.bf16.mxu0 0
        %1302 = vmatmul.mubr.bf16.gmra.mrb[0].mxu0 %v1192
        %v1303 = vpop.f32.mrb[0].mxu0
        %v1304 = vadd.f32 0.0, %v1303
        %v1305 = vpop.f32.mrb[0].mxu0
        %v1306 = vpop.f32.mrb[0].mxu0
        %v1307 = vadd.f32 0.0, %v1306
        %v1308 = vpop.f32.mrb[0].mxu0
        %1309 = vmatprep.mubr.bf16.mxu0 0
        %1310 = vmatmul.mubr.bf16.gmra.mrb[0].mxu0 %v1193
        %v1311 = vpop.f32.mrb[0].mxu0
        %v1312 = vadd.f32 0.0, %v1311
        %v1313 = vpop.f32.mrb[0].mxu0
        %v1314 = vpop.f32.mrb[0].mxu0
        %v1315 = vadd.f32 0.0, %v1314
        %v1316 = vpop.f32.mrb[0].mxu0
        %1317 = vmatprep.mubr.bf16.mxu0 0
        %1318 = vmatmul.mubr.bf16.gmra.mrb[0].mxu0 %v1194
        %v1319 = vpop.f32.mrb[0].mxu0
        %v1320 = vadd.f32 0.0, %v1319
        %v1321 = vpop.f32.mrb[0].mxu0
        %v1322 = vpop.f32.mrb[0].mxu0
        %v1323 = vadd.f32 0.0, %v1322
        %v1324 = vpop.f32.mrb[0].mxu0
        %1325 = vmatprep.mubr.bf16.mxu0 0
        %1326 = vmatmul.mubr.bf16.gmra.mrb[0].mxu0 %v1195
        %v1327 = vpop.f32.mrb[0].mxu0
        %v1328 = vadd.f32 0.0, %v1327
        %v1329 = vpop.f32.mrb[0].mxu0
        %v1330 = vpop.f32.mrb[0].mxu0
        %v1331 = vadd.f32 0.0, %v1330
        %v1332 = vpop.f32.mrb[0].mxu0
        %1333 = vdwg.mxu0
        %v1334 = vadd.f32 %v1171, %v1296
        %v1335 = vadd.f32 %v1172, %v1299
        %v1336 = vadd.f32 %v1173, %v1304
        %v1337 = vadd.f32 %v1174, %v1307
        %v1338 = vadd.f32 %v1175, %v1312
        %v1339 = vadd.f32 %v1176, %v1315
        %v1340 = vadd.f32 %v1177, %v1320
        %v1341 = vadd.f32 %v1178, %v1323
        %v1342 = vadd.f32 %v1179, %v1328
        %v1343 = vadd.f32 %v1180, %v1331
        %v1344 = vld [vmem:[%s222 + $0x15] sm:$0xff]
        %v1345 = vld [vmem:[%s222 + $0x1d] sm:$0xff]
        %v1346 = vld [vmem:[%s222 + $0x25] sm:$0xff]
        %v1347 = vld [vmem:[%s222 + $0x2d] sm:$0xff]
        %v1348 = vld [vmem:[%s222 + $0x35] sm:$0xff]
        %v1349 = vld [vmem:[%s222 + $0x3d] sm:$0xff]
        %v1350 = vld [vmem:[%s222 + $0x45] sm:$0xff]
        %v1351 = vld [vmem:[%s222 + $0x4d] sm:$0xff]
        %v1352 = vld [vmem:[%s222 + $0x55] sm:$0xff]
        %v1353 = vld [vmem:[%s222 + $0x5d] sm:$0x3f]
        %v1354 = vpack.c.bf16 %v1345, %v1344
        %v1355 = vpack.c.bf16 %v1347, %v1346
        %v1356 = vpack.c.bf16 %v1349, %v1348
        %v1357 = vpack.c.bf16 %v1351, %v1350
        %v1358 = vpack.c.bf16 %v1353, %v1352
        %s1359 = scalar_lea.vmem %s1, 448
        %v1360 = vld [vmem:[%s1359] sm:$0xf]
        %v1361 = vld [vmem:[%s1359 + $0x4] sm:$0xf]
        %v1362 = vld [vmem:[%s1359 + $0x8] sm:$0xf]
        %v1363 = vld [vmem:[%s1359 + $0xc] sm:$0xf]
        %v1364 = vld [vmem:[%s1359 + $0x10] sm:$0xf]
        %v1365 = vld [vmem:[%s1359 + $0x14] sm:$0xf]
        %v1366 = vld [vmem:[%s1359 + $0x18] sm:$0xf]
        %v1367 = vld [vmem:[%s1359 + $0x1c] sm:$0xf]
        %v1368 = vld [vmem:[%s1359 + $0x20] sm:$0xf]
        %v1369 = vld [vmem:[%s1359 + $0x24] sm:$0xf]
        %v1370 = vld [vmem:[%s1359 + $0x28] sm:$0xf]
        %v1371 = vld [vmem:[%s1359 + $0x2c] sm:$0xf]
        %v1372 = vld [vmem:[%s1359 + $0x30] sm:$0xf]
        %v1373 = vld [vmem:[%s1359 + $0x34] sm:$0xf]
        %v1374 = vld [vmem:[%s1359 + $0x38] sm:$0xf]
        %v1375 = vld [vmem:[%s1359 + $0x3c] sm:$0xf]
        %v1392 = vunpack.c.l.b16 %v1360
        %v1393 = vunpack.c.l.b16 %v1361
        %v1394 = vunpack.c.l.b16 %v1362
        %v1395 = vunpack.c.l.b16 %v1363
        %v1396 = vunpack.c.l.b16 %v1364
        %v1397 = vunpack.c.l.b16 %v1365
        %v1398 = vunpack.c.l.b16 %v1366
        %v1399 = vunpack.c.l.b16 %v1367
        %v1400 = vunpack.c.l.b16 %v1368
        %v1401 = vunpack.c.l.b16 %v1369
        %v1402 = vunpack.c.l.b16 %v1370
        %v1403 = vunpack.c.l.b16 %v1371
        %v1404 = vunpack.c.l.b16 %v1372
        %v1405 = vunpack.c.l.b16 %v1373
        %v1406 = vunpack.c.l.b16 %v1374
        %v1407 = vunpack.c.l.b16 %v1375
        %v1408 = vpack.c.b16 %v1393, %v1392
        %v1409 = vpack.c.b16 %v1395, %v1394
        %v1410 = vpack.c.b16 %v1397, %v1396
        %v1411 = vpack.c.b16 %v1399, %v1398
        %v1412 = vpack.c.b16 %v1401, %v1400
        %v1413 = vpack.c.b16 %v1403, %v1402
        %v1414 = vpack.c.b16 %v1405, %v1404
        %v1415 = vpack.c.b16 %v1407, %v1406
        %1424 = vmatprep.subr.bf16.mxu0 0
        %1425 = vmatpush1.bf16.msra.mxu0 %v1408
        %1426 = vmatprep.subr.bf16.mxu0 0
        %1427 = vmatpush1.bf16.msra.mxu0 %v1409
        %1428 = vmatprep.subr.bf16.mxu0 0
        %1429 = vmatpush1.bf16.msra.mxu0 %v1410
        %1430 = vmatprep.subr.bf16.mxu0 0
        %1431 = vmatpush1.bf16.msra.mxu0 %v1411
        %1432 = vmatprep.subr.bf16.mxu0 0
        %1433 = vmatpush1.bf16.msra.mxu0 %v1412
        %1434 = vmatprep.subr.bf16.mxu0 0
        %1435 = vmatpush1.bf16.msra.mxu0 %v1413
        %1436 = vmatprep.subr.bf16.mxu0 0
        %1437 = vmatpush1.bf16.msra.mxu0 %v1414
        %1438 = vmatprep.subr.bf16.mxu0 0
        %1439 = vmatpush1.bf16.msra.mxu0 %v1415
        %1440 = vmatprep.subr.bf16.mxu0 0
        %1441 = vmatpush1.bf16.msra.mxu0 0
        %1442 = vmatprep.subr.bf16.mxu0 0
        %1443 = vmatpush1.bf16.msra.mxu0 0
        %1444 = vmatprep.subr.bf16.mxu0 0
        %1445 = vmatpush1.bf16.msra.mxu0 0
        %1446 = vmatprep.subr.bf16.mxu0 0
        %1447 = vmatpush1.bf16.msra.mxu0 0
        %1448 = vmatprep.subr.bf16.mxu0 0
        %1449 = vmatpush1.bf16.msra.mxu0 0
        %1450 = vmatprep.subr.bf16.mxu0 0
        %1451 = vmatpush1.bf16.msra.mxu0 0
        %1452 = vmatprep.subr.bf16.mxu0 0
        %1453 = vmatpush1.bf16.msra.mxu0 0
        %1454 = vmatprep.subr.bf16.mxu0 0
        %1455 = vmatpush1.bf16.msra.mxu0 0
        %1456 = vmatprep.mubr.bf16.mxu0 0
        %1457 = vmatmul.mubr.bf16.gmra.mrb[0].mxu0 %v1354
        %v1458 = vpop.f32.mrb[0].mxu0
        %v1459 = vadd.f32 0.0, %v1458
        %v1460 = vpop.f32.mrb[0].mxu0
        %v1461 = vpop.f32.mrb[0].mxu0
        %v1462 = vadd.f32 0.0, %v1461
        %v1463 = vpop.f32.mrb[0].mxu0
        %1464 = vmatprep.mubr.bf16.mxu0 0
        %1465 = vmatmul.mubr.bf16.gmra.mrb[0].mxu0 %v1355
        %v1466 = vpop.f32.mrb[0].mxu0
        %v1467 = vadd.f32 0.0, %v1466
        %v1468 = vpop.f32.mrb[0].mxu0
        %v1469 = vpop.f32.mrb[0].mxu0
        %v1470 = vadd.f32 0.0, %v1469
        %v1471 = vpop.f32.mrb[0].mxu0
        %1472 = vmatprep.mubr.bf16.mxu0 0
        %1473 = vmatmul.mubr.bf16.gmra.mrb[0].mxu0 %v1356
        %v1474 = vpop.f32.mrb[0].mxu0
        %v1475 = vadd.f32 0.0, %v1474
        %v1476 = vpop.f32.mrb[0].mxu0
        %v1477 = vpop.f32.mrb[0].mxu0
        %v1478 = vadd.f32 0.0, %v1477
        %v1479 = vpop.f32.mrb[0].mxu0
        %1480 = vmatprep.mubr.bf16.mxu0 0
        %1481 = vmatmul.mubr.bf16.gmra.mrb[0].mxu0 %v1357
        %v1482 = vpop.f32.mrb[0].mxu0
        %v1483 = vadd.f32 0.0, %v1482
        %v1484 = vpop.f32.mrb[0].mxu0
        %v1485 = vpop.f32.mrb[0].mxu0
        %v1486 = vadd.f32 0.0, %v1485
        %v1487 = vpop.f32.mrb[0].mxu0
        %1488 = vmatprep.mubr.bf16.mxu0 0
        %1489 = vmatmul.mubr.bf16.gmra.mrb[0].mxu0 %v1358
        %v1490 = vpop.f32.mrb[0].mxu0
        %v1491 = vadd.f32 0.0, %v1490
        %v1492 = vpop.f32.mrb[0].mxu0
        %v1493 = vpop.f32.mrb[0].mxu0
        %v1494 = vadd.f32 0.0, %v1493
        %v1495 = vpop.f32.mrb[0].mxu0
        %1496 = vdwg.mxu0
        %v1497 = vadd.f32 %v1334, %v1459
        %v1498 = vadd.f32 %v1335, %v1462
        %v1499 = vadd.f32 %v1336, %v1467
        %v1500 = vadd.f32 %v1337, %v1470
        %v1501 = vadd.f32 %v1338, %v1475
        %v1502 = vadd.f32 %v1339, %v1478
        %v1503 = vadd.f32 %v1340, %v1483
        %v1504 = vadd.f32 %v1341, %v1486
        %v1505 = vadd.f32 %v1342, %v1491
        %v1506 = vadd.f32 %v1343, %v1494
        %v1507 = vld [vmem:[%s222 + $0x16] sm:$0xff]
        %v1508 = vld [vmem:[%s222 + $0x1e] sm:$0xff]
        %v1509 = vld [vmem:[%s222 + $0x26] sm:$0xff]
        %v1510 = vld [vmem:[%s222 + $0x2e] sm:$0xff]
        %v1511 = vld [vmem:[%s222 + $0x36] sm:$0xff]
        %v1512 = vld [vmem:[%s222 + $0x3e] sm:$0xff]
        %v1513 = vld [vmem:[%s222 + $0x46] sm:$0xff]
        %v1514 = vld [vmem:[%s222 + $0x4e] sm:$0xff]
        %v1515 = vld [vmem:[%s222 + $0x56] sm:$0xff]
        %v1516 = vld [vmem:[%s222 + $0x5e] sm:$0x3f]
        %v1517 = vpack.c.bf16 %v1508, %v1507
        %v1518 = vpack.c.bf16 %v1510, %v1509
        %v1519 = vpack.c.bf16 %v1512, %v1511
        %v1520 = vpack.c.bf16 %v1514, %v1513
        %v1521 = vpack.c.bf16 %v1516, %v1515
        %s1522 = scalar_lea.vmem %s1, 512
        %v1523 = vld [vmem:[%s1522] sm:$0xf]
        %v1524 = vld [vmem:[%s1522 + $0x4] sm:$0xf]
        %v1525 = vld [vmem:[%s1522 + $0x8] sm:$0xf]
        %v1526 = vld [vmem:[%s1522 + $0xc] sm:$0xf]
        %v1527 = vld [vmem:[%s1522 + $0x10] sm:$0xf]
        %v1528 = vld [vmem:[%s1522 + $0x14] sm:$0xf]
        %v1529 = vld [vmem:[%s1522 + $0x18] sm:$0xf]
        %v1530 = vld [vmem:[%s1522 + $0x1c] sm:$0xf]
        %v1531 = vld [vmem:[%s1522 + $0x20] sm:$0xf]
        %v1532 = vld [vmem:[%s1522 + $0x24] sm:$0xf]
        %v1533 = vld [vmem:[%s1522 + $0x28] sm:$0xf]
        %v1534 = vld [vmem:[%s1522 + $0x2c] sm:$0xf]
        %v1535 = vld [vmem:[%s1522 + $0x30] sm:$0xf]
        %v1536 = vld [vmem:[%s1522 + $0x34] sm:$0xf]
        %v1537 = vld [vmem:[%s1522 + $0x38] sm:$0xf]
        %v1538 = vld [vmem:[%s1522 + $0x3c] sm:$0xf]
        %v1555 = vunpack.c.l.b16 %v1523
        %v1556 = vunpack.c.l.b16 %v1524
        %v1557 = vunpack.c.l.b16 %v1525
        %v1558 = vunpack.c.l.b16 %v1526
        %v1559 = vunpack.c.l.b16 %v1527
        %v1560 = vunpack.c.l.b16 %v1528
        %v1561 = vunpack.c.l.b16 %v1529
        %v1562 = vunpack.c.l.b16 %v1530
        %v1563 = vunpack.c.l.b16 %v1531
        %v1564 = vunpack.c.l.b16 %v1532
        %v1565 = vunpack.c.l.b16 %v1533
        %v1566 = vunpack.c.l.b16 %v1534
        %v1567 = vunpack.c.l.b16 %v1535
        %v1568 = vunpack.c.l.b16 %v1536
        %v1569 = vunpack.c.l.b16 %v1537
        %v1570 = vunpack.c.l.b16 %v1538
        %v1571 = vpack.c.b16 %v1556, %v1555
        %v1572 = vpack.c.b16 %v1558, %v1557
        %v1573 = vpack.c.b16 %v1560, %v1559
        %v1574 = vpack.c.b16 %v1562, %v1561
        %v1575 = vpack.c.b16 %v1564, %v1563
        %v1576 = vpack.c.b16 %v1566, %v1565
        %v1577 = vpack.c.b16 %v1568, %v1567
        %v1578 = vpack.c.b16 %v1570, %v1569
        %1587 = vmatprep.subr.bf16.mxu0 0
        %1588 = vmatpush1.bf16.msra.mxu0 %v1571
        %1589 = vmatprep.subr.bf16.mxu0 0
        %1590 = vmatpush1.bf16.msra.mxu0 %v1572
        %1591 = vmatprep.subr.bf16.mxu0 0
        %1592 = vmatpush1.bf16.msra.mxu0 %v1573
        %1593 = vmatprep.subr.bf16.mxu0 0
        %1594 = vmatpush1.bf16.msra.mxu0 %v1574
        %1595 = vmatprep.subr.bf16.mxu0 0
        %1596 = vmatpush1.bf16.msra.mxu0 %v1575
        %1597 = vmatprep.subr.bf16.mxu0 0
        %1598 = vmatpush1.bf16.msra.mxu0 %v1576
        %1599 = vmatprep.subr.bf16.mxu0 0
        %1600 = vmatpush1.bf16.msra.mxu0 %v1577
        %1601 = vmatprep.subr.bf16.mxu0 0
        %1602 = vmatpush1.bf16.msra.mxu0 %v1578
        %1603 = vmatprep.subr.bf16.mxu0 0
        %1604 = vmatpush1.bf16.msra.mxu0 0
        %1605 = vmatprep.subr.bf16.mxu0 0
        %1606 = vmatpush1.bf16.msra.mxu0 0
        %1607 = vmatprep.subr.bf16.mxu0 0
        %1608 = vmatpush1.bf16.msra.mxu0 0
        %1609 = vmatprep.subr.bf16.mxu0 0
        %1610 = vmatpush1.bf16.msra.mxu0 0
        %1611 = vmatprep.subr.bf16.mxu0 0
        %1612 = vmatpush1.bf16.msra.mxu0 0
        %1613 = vmatprep.subr.bf16.mxu0 0
        %1614 = vmatpush1.bf16.msra.mxu0 0
        %1615 = vmatprep.subr.bf16.mxu0 0
        %1616 = vmatpush1.bf16.msra.mxu0 0
        %1617 = vmatprep.subr.bf16.mxu0 0
        %1618 = vmatpush1.bf16.msra.mxu0 0
        %1619 = vmatprep.mubr.bf16.mxu0 0
        %1620 = vmatmul.mubr.bf16.gmra.mrb[0].mxu0 %v1517
        %v1621 = vpop.f32.mrb[0].mxu0
        %v1622 = vadd.f32 0.0, %v1621
        %v1623 = vpop.f32.mrb[0].mxu0
        %v1624 = vpop.f32.mrb[0].mxu0
        %v1625 = vadd.f32 0.0, %v1624
        %v1626 = vpop.f32.mrb[0].mxu0
        %1627 = vmatprep.mubr.bf16.mxu0 0
        %1628 = vmatmul.mubr.bf16.gmra.mrb[0].mxu0 %v1518
        %v1629 = vpop.f32.mrb[0].mxu0
        %v1630 = vadd.f32 0.0, %v1629
        %v1631 = vpop.f32.mrb[0].mxu0
        %v1632 = vpop.f32.mrb[0].mxu0
        %v1633 = vadd.f32 0.0, %v1632
        %v1634 = vpop.f32.mrb[0].mxu0
        %1635 = vmatprep.mubr.bf16.mxu0 0
        %1636 = vmatmul.mubr.bf16.gmra.mrb[0].mxu0 %v1519
        %v1637 = vpop.f32.mrb[0].mxu0
        %v1638 = vadd.f32 0.0, %v1637
        %v1639 = vpop.f32.mrb[0].mxu0
        %v1640 = vpop.f32.mrb[0].mxu0
        %v1641 = vadd.f32 0.0, %v1640
        %v1642 = vpop.f32.mrb[0].mxu0
        %1643 = vmatprep.mubr.bf16.mxu0 0
        %1644 = vmatmul.mubr.bf16.gmra.mrb[0].mxu0 %v1520
        %v1645 = vpop.f32.mrb[0].mxu0
        %v1646 = vadd.f32 0.0, %v1645
        %v1647 = vpop.f32.mrb[0].mxu0
        %v1648 = vpop.f32.mrb[0].mxu0
        %v1649 = vadd.f32 0.0, %v1648
        %v1650 = vpop.f32.mrb[0].mxu0
        %1651 = vmatprep.mubr.bf16.mxu0 0
        %1652 = vmatmul.mubr.bf16.gmra.mrb[0].mxu0 %v1521
        %v1653 = vpop.f32.mrb[0].mxu0
        %v1654 = vadd.f32 0.0, %v1653
        %v1655 = vpop.f32.mrb[0].mxu0
        %v1656 = vpop.f32.mrb[0].mxu0
        %v1657 = vadd.f32 0.0, %v1656
        %v1658 = vpop.f32.mrb[0].mxu0
        %1659 = vdwg.mxu0
        %v1660 = vadd.f32 %v1497, %v1622
        %v1661 = vadd.f32 %v1498, %v1625
        %v1662 = vadd.f32 %v1499, %v1630
        %v1663 = vadd.f32 %v1500, %v1633
        %v1664 = vadd.f32 %v1501, %v1638
        %v1665 = vadd.f32 %v1502, %v1641
        %v1666 = vadd.f32 %v1503, %v1646
        %v1667 = vadd.f32 %v1504, %v1649
        %v1668 = vadd.f32 %v1505, %v1654
        %v1669 = vadd.f32 %v1506, %v1657
        %v1670 = vld [vmem:[%s2] sm:$0x1]
        %v1672 = vlaneseq
        %v1673 = vshrl.u32 %v1672, 7
        %v1674 = vsub.s32 0, %v1673
        %v1675 = vrot.slane %v1670, %v1674
        %v1677 = vadd.f32 %v1660, %v1675
        %v1678 = vadd.f32 %v1661, %v1675
        %v1679 = vadd.f32 %v1662, %v1675
        %v1680 = vadd.f32 %v1663, %v1675
        %v1681 = vadd.f32 %v1664, %v1675
        %v1682 = vadd.f32 %v1665, %v1675
        %v1683 = vadd.f32 %v1666, %v1675
        %v1684 = vadd.f32 %v1667, %v1675
        %v1685 = vadd.f32 %v1668, %v1675
        %v1686 = vadd.f32 %v1669, %v1675
        %vm1687 = vcmp.ge.f32.partialorder %v1677, 0.0
        %vm1688 = vcmp.ge.f32.partialorder %v1678, 0.0
        %vm1689 = vcmp.ge.f32.partialorder %v1679, 0.0
        %vm1690 = vcmp.ge.f32.partialorder %v1680, 0.0
        %vm1691 = vcmp.ge.f32.partialorder %v1681, 0.0
        %vm1692 = vcmp.ge.f32.partialorder %v1682, 0.0
        %vm1693 = vcmp.ge.f32.partialorder %v1683, 0.0
        %vm1694 = vcmp.ge.f32.partialorder %v1684, 0.0
        %vm1695 = vcmp.ge.f32.partialorder %v1685, 0.0
        %vm1696 = vcmp.ge.f32.partialorder %v1686, 0.0
        %v1697 = vmul.f32 %v1677, 0.01
        %v1698 = vmul.f32 %v1678, 0.01
        %v1699 = vmul.f32 %v1679, 0.01
        %v1700 = vmul.f32 %v1680, 0.01
        %v1701 = vmul.f32 %v1681, 0.01
        %v1702 = vmul.f32 %v1682, 0.01
        %v1703 = vmul.f32 %v1683, 0.01
        %v1704 = vmul.f32 %v1684, 0.01
        %v1705 = vmul.f32 %v1685, 0.01
        %v1706 = vmul.f32 %v1686, 0.01
        %v1707 = vsel %vm1687, %v1677, %v1697
        %v1708 = vsel %vm1688, %v1678, %v1698
        %v1709 = vsel %vm1689, %v1679, %v1699
        %v1710 = vsel %vm1690, %v1680, %v1700
        %v1711 = vsel %vm1691, %v1681, %v1701
        %v1712 = vsel %vm1692, %v1682, %v1702
        %v1713 = vsel %vm1693, %v1683, %v1703
        %v1714 = vsel %vm1694, %v1684, %v1704
        %v1715 = vsel %vm1695, %v1685, %v1705
        %v1716 = vsel %vm1696, %v1686, %v1706
        %1717 = vst [vmem:[#allocation2] sm:$0xff] %v1707
        %1718 = vst [vmem:[#allocation2 + $0x8] sm:$0xff] %v1708
        %1719 = vst [vmem:[#allocation2 + $0x10] sm:$0xff] %v1709
        %1720 = vst [vmem:[#allocation2 + $0x18] sm:$0xff] %v1710
        %1721 = vst [vmem:[#allocation2 + $0x20] sm:$0xff] %v1711
        %1722 = vst [vmem:[#allocation2 + $0x28] sm:$0xff] %v1712
        %1723 = vst [vmem:[#allocation2 + $0x30] sm:$0xff] %v1713
        %1724 = vst [vmem:[#allocation2 + $0x38] sm:$0xff] %v1714
        %1725 = vst [vmem:[#allocation2 + $0x40] sm:$0xff] %v1715
        %1726 = vst [vmem:[#allocation2 + $0x48] sm:$0x3f] %v1716
        %v1727 = vld [vmem:[%s222 + $0xb] sm:$0xff]
        %v1728 = vld [vmem:[%s222 + $0x13] sm:$0xff]
        %v1729 = vld [vmem:[%s222 + $0x1b] sm:$0xff]
        %v1730 = vld [vmem:[%s222 + $0x23] sm:$0xff]
        %v1731 = vld [vmem:[%s222 + $0x2b] sm:$0xff]
        %v1732 = vld [vmem:[%s222 + $0x33] sm:$0xff]
        %v1733 = vld [vmem:[%s222 + $0x3b] sm:$0xff]
        %v1734 = vld [vmem:[%s222 + $0x43] sm:$0xff]
        %v1735 = vld [vmem:[%s222 + $0x4b] sm:$0xff]
        %v1736 = vld [vmem:[%s222 + $0x53] sm:$0x3f]
        %1737 = vst [vmem:[#allocation3] sm:$0xff] %v1727
        %1738 = vst [vmem:[#allocation3 + $0x8] sm:$0xff] %v1728
        %1739 = vst [vmem:[#allocation3 + $0x10] sm:$0xff] %v1729
        %1740 = vst [vmem:[#allocation3 + $0x18] sm:$0xff] %v1730
        %1741 = vst [vmem:[#allocation3 + $0x20] sm:$0xff] %v1731
        %1742 = vst [vmem:[#allocation3 + $0x28] sm:$0xff] %v1732
        %1743 = vst [vmem:[#allocation3 + $0x30] sm:$0xff] %v1733
        %1744 = vst [vmem:[#allocation3 + $0x38] sm:$0xff] %v1734
        %1745 = vst [vmem:[#allocation3 + $0x40] sm:$0xff] %v1735
        %1746 = vst [vmem:[#allocation3 + $0x48] sm:$0x3f] %v1736
        %1747 = vst [vmem:[#allocation4] sm:$0xff] 0.0
        %1748 = vst [vmem:[#allocation4 + $0x8] sm:$0xff] 0.0
        %1749 = vst [vmem:[#allocation4 + $0x10] sm:$0xff] 0.0
        %1750 = vst [vmem:[#allocation4 + $0x18] sm:$0xff] 0.0
        %1751 = vst [vmem:[#allocation4 + $0x20] sm:$0xff] 0.0
        %1752 = vst [vmem:[#allocation4 + $0x28] sm:$0xff] 0.0
        %1753 = vst [vmem:[#allocation4 + $0x30] sm:$0xff] 0.0
        %1754 = vst [vmem:[#allocation4 + $0x38] sm:$0xff] 0.0
        %1755 = vst [vmem:[#allocation4 + $0x40] sm:$0xff] 0.0
        %1756 = vst [vmem:[#allocation4 + $0x48] sm:$0xff] 0.0
        %1757 = vst [vmem:[#allocation4 + $0x50] sm:$0xff] 0.0
        %1758 = vst [vmem:[#allocation4 + $0x58] sm:$0xff] 0.0
        %1759 = vst [vmem:[#allocation4 + $0x60] sm:$0xf] 0.0
        %v1760 = vld [vmem:[#allocation2] sm:$0xff]
        %1761 = vst [vmem:[#allocation4 + $0xb] sm:$0xff] %v1760
        %v1762 = vld [vmem:[#allocation2 + $0xa] sm:$0xff]
        %1763 = vst [vmem:[#allocation4 + $0x15] sm:$0xff] %v1762
        %v1764 = vld [vmem:[#allocation2 + $0x14] sm:$0xff]
        %1765 = vst [vmem:[#allocation4 + $0x1f] sm:$0xff] %v1764
        %v1766 = vld [vmem:[#allocation2 + $0x1e] sm:$0xff]
        %1767 = vst [vmem:[#allocation4 + $0x29] sm:$0xff] %v1766
        %v1768 = vld [vmem:[#allocation2 + $0x28] sm:$0xff]
        %1769 = vst [vmem:[#allocation4 + $0x33] sm:$0xff] %v1768
        %v1770 = vld [vmem:[#allocation2 + $0x32] sm:$0xff]
        %1771 = vst [vmem:[#allocation4 + $0x3d] sm:$0xff] %v1770
        %v1772 = vld [vmem:[#allocation2 + $0x3c] sm:$0xff]
        %1773 = vst [vmem:[#allocation4 + $0x47] sm:$0xff] %v1772
        %v1774 = vld [vmem:[#allocation2 + $0x46] sm:$0xff]
        %1775 = vst [vmem:[#allocation4 + $0x51] sm:$0xff] %v1774
        %v1776 = vld [vmem:[#allocation4] sm:$0xff]
        %v1777 = vld [vmem:[#allocation4 + $0x8] sm:$0xff]
        %v1778 = vld [vmem:[#allocation4 + $0x10] sm:$0xff]
        %v1779 = vld [vmem:[#allocation4 + $0x18] sm:$0xff]
        %v1780 = vld [vmem:[#allocation4 + $0x20] sm:$0xff]
        %v1781 = vld [vmem:[#allocation4 + $0x28] sm:$0xff]
        %v1782 = vld [vmem:[#allocation4 + $0x30] sm:$0xff]
        %v1783 = vld [vmem:[#allocation4 + $0x38] sm:$0xff]
        %v1784 = vld [vmem:[#allocation4 + $0x40] sm:$0xff]
        %v1785 = vld [vmem:[#allocation4 + $0x48] sm:$0x3f]
        %v1786 = vpack.c.bf16 %v1777, %v1776
        %v1787 = vpack.c.bf16 %v1779, %v1778
        %v1788 = vpack.c.bf16 %v1781, %v1780
        %v1789 = vpack.c.bf16 %v1783, %v1782
        %v1790 = vpack.c.bf16 %v1785, %v1784
        %v1791 = vld [vmem:[%s3] sm:$0xf]
        %v1792 = vld [vmem:[%s3 + $0x4] sm:$0xf]
        %v1793 = vld [vmem:[%s3 + $0x8] sm:$0xf]
        %v1794 = vld [vmem:[%s3 + $0xc] sm:$0xf]
        %v1795 = vld [vmem:[%s3 + $0x10] sm:$0xf]
        %v1796 = vld [vmem:[%s3 + $0x14] sm:$0xf]
        %v1797 = vld [vmem:[%s3 + $0x18] sm:$0xf]
        %v1798 = vld [vmem:[%s3 + $0x1c] sm:$0xf]
        %v1799 = vld [vmem:[%s3 + $0x20] sm:$0xf]
        %v1800 = vld [vmem:[%s3 + $0x24] sm:$0xf]
        %v1801 = vld [vmem:[%s3 + $0x28] sm:$0xf]
        %v1802 = vld [vmem:[%s3 + $0x2c] sm:$0xf]
        %v1803 = vld [vmem:[%s3 + $0x30] sm:$0xf]
        %v1804 = vld [vmem:[%s3 + $0x34] sm:$0xf]
        %v1805 = vld [vmem:[%s3 + $0x38] sm:$0xf]
        %v1806 = vld [vmem:[%s3 + $0x3c] sm:$0xf]
        %v1807 = vld [vmem:[#allocation4 + $0x1] sm:$0xff]
        %v1808 = vld [vmem:[#allocation4 + $0x9] sm:$0xff]
        %v1809 = vld [vmem:[#allocation4 + $0x11] sm:$0xff]
        %v1810 = vld [vmem:[#allocation4 + $0x19] sm:$0xff]
        %v1811 = vld [vmem:[#allocation4 + $0x21] sm:$0xff]
        %v1812 = vld [vmem:[#allocation4 + $0x29] sm:$0xff]
        %v1813 = vld [vmem:[#allocation4 + $0x31] sm:$0xff]
        %v1814 = vld [vmem:[#allocation4 + $0x39] sm:$0xff]
        %v1815 = vld [vmem:[#allocation4 + $0x41] sm:$0xff]
        %v1816 = vld [vmem:[#allocation4 + $0x49] sm:$0x3f]
        %v1817 = vpack.c.bf16 %v1808, %v1807
        %v1818 = vpack.c.bf16 %v1810, %v1809
        %v1819 = vpack.c.bf16 %v1812, %v1811
        %v1820 = vpack.c.bf16 %v1814, %v1813
        %v1821 = vpack.c.bf16 %v1816, %v1815
        %s1822 = scalar_lea.vmem %s3, 64
        %v1823 = vld [vmem:[%s1822] sm:$0xf]
        %v1824 = vld [vmem:[%s1822 + $0x4] sm:$0xf]
        %v1825 = vld [vmem:[%s1822 + $0x8] sm:$0xf]
        %v1826 = vld [vmem:[%s1822 + $0xc] sm:$0xf]
        %v1827 = vld [vmem:[%s1822 + $0x10] sm:$0xf]
        %v1828 = vld [vmem:[%s1822 + $0x14] sm:$0xf]
        %v1829 = vld [vmem:[%s1822 + $0x18] sm:$0xf]
        %v1830 = vld [vmem:[%s1822 + $0x1c] sm:$0xf]
        %v1831 = vld [vmem:[%s1822 + $0x20] sm:$0xf]
        %v1832 = vld [vmem:[%s1822 + $0x24] sm:$0xf]
        %v1833 = vld [vmem:[%s1822 + $0x28] sm:$0xf]
        %v1834 = vld [vmem:[%s1822 + $0x2c] sm:$0xf]
        %v1835 = vld [vmem:[%s1822 + $0x30] sm:$0xf]
        %v1836 = vld [vmem:[%s1822 + $0x34] sm:$0xf]
        %v1837 = vld [vmem:[%s1822 + $0x38] sm:$0xf]
        %v1838 = vld [vmem:[%s1822 + $0x3c] sm:$0xf]
        %v1855 = vunpack.c.l.b16 %v1823
        %v1856 = vunpack.c.l.b16 %v1824
        %v1857 = vunpack.c.l.b16 %v1825
        %v1858 = vunpack.c.l.b16 %v1826
        %v1859 = vunpack.c.l.b16 %v1827
        %v1860 = vunpack.c.l.b16 %v1828
        %v1861 = vunpack.c.l.b16 %v1829
        %v1862 = vunpack.c.l.b16 %v1830
        %v1863 = vunpack.c.l.b16 %v1831
        %v1864 = vunpack.c.l.b16 %v1832
        %v1865 = vunpack.c.l.b16 %v1833
        %v1866 = vunpack.c.l.b16 %v1834
        %v1867 = vunpack.c.l.b16 %v1835
        %v1868 = vunpack.c.l.b16 %v1836
        %v1869 = vunpack.c.l.b16 %v1837
        %v1870 = vunpack.c.l.b16 %v1838
        %v1871 = vpack.c.b16 %v1856, %v1855
        %v1872 = vpack.c.b16 %v1858, %v1857
        %v1873 = vpack.c.b16 %v1860, %v1859
        %v1874 = vpack.c.b16 %v1862, %v1861
        %v1875 = vpack.c.b16 %v1864, %v1863
        %v1876 = vpack.c.b16 %v1866, %v1865
        %v1877 = vpack.c.b16 %v1868, %v1867
        %v1878 = vpack.c.b16 %v1870, %v1869
        %1887 = vmatprep.subr.bf16.mxu0 0
        %1888 = vmatpush1.bf16.msra.mxu0 %v1871
        %1889 = vmatprep.subr.bf16.mxu0 0
        %1890 = vmatpush1.bf16.msra.mxu0 %v1872
        %1891 = vmatprep.subr.bf16.mxu0 0
        %1892 = vmatpush1.bf16.msra.mxu0 %v1873
        %1893 = vmatprep.subr.bf16.mxu0 0
        %1894 = vmatpush1.bf16.msra.mxu0 %v1874
        %1895 = vmatprep.subr.bf16.mxu0 0
        %1896 = vmatpush1.bf16.msra.mxu0 %v1875
        %1897 = vmatprep.subr.bf16.mxu0 0
        %1898 = vmatpush1.bf16.msra.mxu0 %v1876
        %1899 = vmatprep.subr.bf16.mxu0 0
        %1900 = vmatpush1.bf16.msra.mxu0 %v1877
        %1901 = vmatprep.subr.bf16.mxu0 0
        %1902 = vmatpush1.bf16.msra.mxu0 %v1878
        %1903 = vmatprep.subr.bf16.mxu0 0
        %1904 = vmatpush1.bf16.msra.mxu0 0
        %1905 = vmatprep.subr.bf16.mxu0 0
        %1906 = vmatpush1.bf16.msra.mxu0 0
        %1907 = vmatprep.subr.bf16.mxu0 0
        %1908 = vmatpush1.bf16.msra.mxu0 0
        %1909 = vmatprep.subr.bf16.mxu0 0
        %1910 = vmatpush1.bf16.msra.mxu0 0
        %1911 = vmatprep.subr.bf16.mxu0 0
        %1912 = vmatpush1.bf16.msra.mxu0 0
        %1913 = vmatprep.subr.bf16.mxu0 0
        %1914 = vmatpush1.bf16.msra.mxu0 0
        %1915 = vmatprep.subr.bf16.mxu0 0
        %1916 = vmatpush1.bf16.msra.mxu0 0
        %1917 = vmatprep.subr.bf16.mxu0 0
        %1918 = vmatpush1.bf16.msra.mxu0 0
        %1919 = vmatprep.mubr.bf16.mxu0 0
        %1920 = vmatmul.mubr.bf16.gmra.mrb[0].mxu0 %v1817
        %v1921 = vpop.f32.mrb[0].mxu0
        %v1922 = vadd.f32 0.0, %v1921
        %v1923 = vpop.f32.mrb[0].mxu0
        %v1924 = vpop.f32.mrb[0].mxu0
        %v1925 = vadd.f32 0.0, %v1924
        %v1926 = vpop.f32.mrb[0].mxu0
        %1927 = vmatprep.mubr.bf16.mxu0 0
        %1928 = vmatmul.mubr.bf16.gmra.mrb[0].mxu0 %v1818
        %v1929 = vpop.f32.mrb[0].mxu0
        %v1930 = vadd.f32 0.0, %v1929
        %v1931 = vpop.f32.mrb[0].mxu0
        %v1932 = vpop.f32.mrb[0].mxu0
        %v1933 = vadd.f32 0.0, %v1932
        %v1934 = vpop.f32.mrb[0].mxu0
        %1935 = vmatprep.mubr.bf16.mxu0 0
        %1936 = vmatmul.mubr.bf16.gmra.mrb[0].mxu0 %v1819
        %v1937 = vpop.f32.mrb[0].mxu0
        %v1938 = vadd.f32 0.0, %v1937
        %v1939 = vpop.f32.mrb[0].mxu0
        %v1940 = vpop.f32.mrb[0].mxu0
        %v1941 = vadd.f32 0.0, %v1940
        %v1942 = vpop.f32.mrb[0].mxu0
        %1943 = vmatprep.mubr.bf16.mxu0 0
        %1944 = vmatmul.mubr.bf16.gmra.mrb[0].mxu0 %v1820
        %v1945 = vpop.f32.mrb[0].mxu0
        %v1946 = vadd.f32 0.0, %v1945
        %v1947 = vpop.f32.mrb[0].mxu0
        %v1948 = vpop.f32.mrb[0].mxu0
        %v1949 = vadd.f32 0.0, %v1948
        %v1950 = vpop.f32.mrb[0].mxu0
        %1951 = vmatprep.mubr.bf16.mxu0 0
        %1952 = vmatmul.mubr.bf16.gmra.mrb[0].mxu0 %v1821
        %v1953 = vpop.f32.mrb[0].mxu0
        %v1954 = vadd.f32 0.0, %v1953
        %v1955 = vpop.f32.mrb[0].mxu0
        %v1956 = vpop.f32.mrb[0].mxu0
        %v1957 = vadd.f32 0.0, %v1956
        %v1958 = vpop.f32.mrb[0].mxu0
        %1959 = vdwg.mxu0
        %v1976 = vunpack.c.l.b16 %v1791
        %v1977 = vunpack.c.l.b16 %v1792
        %v1978 = vunpack.c.l.b16 %v1793
        %v1979 = vunpack.c.l.b16 %v1794
        %v1980 = vunpack.c.l.b16 %v1795
        %v1981 = vunpack.c.l.b16 %v1796
        %v1982 = vunpack.c.l.b16 %v1797
        %v1983 = vunpack.c.l.b16 %v1798
        %v1984 = vunpack.c.l.b16 %v1799
        %v1985 = vunpack.c.l.b16 %v1800
        %v1986 = vunpack.c.l.b16 %v1801
        %v1987 = vunpack.c.l.b16 %v1802
        %v1988 = vunpack.c.l.b16 %v1803
        %v1989 = vunpack.c.l.b16 %v1804
        %v1990 = vunpack.c.l.b16 %v1805
        %v1991 = vunpack.c.l.b16 %v1806
        %v1992 = vpack.c.b16 %v1977, %v1976
        %v1993 = vpack.c.b16 %v1979, %v1978
        %v1994 = vpack.c.b16 %v1981, %v1980
        %v1995 = vpack.c.b16 %v1983, %v1982
        %v1996 = vpack.c.b16 %v1985, %v1984
        %v1997 = vpack.c.b16 %v1987, %v1986
        %v1998 = vpack.c.b16 %v1989, %v1988
        %v1999 = vpack.c.b16 %v1991, %v1990
        %2008 = vmatprep.subr.bf16.mxu0 0
        %2009 = vmatpush1.bf16.msra.mxu0 %v1992
        %2010 = vmatprep.subr.bf16.mxu0 0
        %2011 = vmatpush1.bf16.msra.mxu0 %v1993
        %2012 = vmatprep.subr.bf16.mxu0 0
        %2013 = vmatpush1.bf16.msra.mxu0 %v1994
        %2014 = vmatprep.subr.bf16.mxu0 0
        %2015 = vmatpush1.bf16.msra.mxu0 %v1995
        %2016 = vmatprep.subr.bf16.mxu0 0
        %2017 = vmatpush1.bf16.msra.mxu0 %v1996
        %2018 = vmatprep.subr.bf16.mxu0 0
        %2019 = vmatpush1.bf16.msra.mxu0 %v1997
        %2020 = vmatprep.subr.bf16.mxu0 0
        %2021 = vmatpush1.bf16.msra.mxu0 %v1998
        %2022 = vmatprep.subr.bf16.mxu0 0
        %2023 = vmatpush1.bf16.msra.mxu0 %v1999
        %2024 = vmatprep.subr.bf16.mxu0 0
        %2025 = vmatpush1.bf16.msra.mxu0 0
        %2026 = vmatprep.subr.bf16.mxu0 0
        %2027 = vmatpush1.bf16.msra.mxu0 0
        %2028 = vmatprep.subr.bf16.mxu0 0
        %2029 = vmatpush1.bf16.msra.mxu0 0
        %2030 = vmatprep.subr.bf16.mxu0 0
        %2031 = vmatpush1.bf16.msra.mxu0 0
        %2032 = vmatprep.subr.bf16.mxu0 0
        %2033 = vmatpush1.bf16.msra.mxu0 0
        %2034 = vmatprep.subr.bf16.mxu0 0
        %2035 = vmatpush1.bf16.msra.mxu0 0
        %2036 = vmatprep.subr.bf16.mxu0 0
        %2037 = vmatpush1.bf16.msra.mxu0 0
        %2038 = vmatprep.subr.bf16.mxu0 0
        %2039 = vmatpush1.bf16.msra.mxu0 0
        %2040 = vmatprep.mubr.bf16.mxu0 0
        %2041 = vmatmul.mubr.bf16.gmra.mrb[0].mxu0 %v1786
        %v2042 = vpop.f32.mrb[0].mxu0
        %v2043 = vadd.f32 %v1922, %v2042
        %v2044 = vpop.f32.mrb[0].mxu0
        %v2045 = vpop.f32.mrb[0].mxu0
        %v2046 = vadd.f32 %v1925, %v2045
        %v2047 = vpop.f32.mrb[0].mxu0
        %2048 = vmatprep.mubr.bf16.mxu0 0
        %2049 = vmatmul.mubr.bf16.gmra.mrb[0].mxu0 %v1787
        %v2050 = vpop.f32.mrb[0].mxu0
        %v2051 = vadd.f32 %v1930, %v2050
        %v2052 = vpop.f32.mrb[0].mxu0
        %v2053 = vpop.f32.mrb[0].mxu0
        %v2054 = vadd.f32 %v1933, %v2053
        %v2055 = vpop.f32.mrb[0].mxu0
        %2056 = vmatprep.mubr.bf16.mxu0 0
        %2057 = vmatmul.mubr.bf16.gmra.mrb[0].mxu0 %v1788
        %v2058 = vpop.f32.mrb[0].mxu0
        %v2059 = vadd.f32 %v1938, %v2058
        %v2060 = vpop.f32.mrb[0].mxu0
        %v2061 = vpop.f32.mrb[0].mxu0
        %v2062 = vadd.f32 %v1941, %v2061
        %v2063 = vpop.f32.mrb[0].mxu0
        %2064 = vmatprep.mubr.bf16.mxu0 0
        %2065 = vmatmul.mubr.bf16.gmra.mrb[0].mxu0 %v1789
        %v2066 = vpop.f32.mrb[0].mxu0
        %v2067 = vadd.f32 %v1946, %v2066
        %v2068 = vpop.f32.mrb[0].mxu0
        %v2069 = vpop.f32.mrb[0].mxu0
        %v2070 = vadd.f32 %v1949, %v2069
        %v2071 = vpop.f32.mrb[0].mxu0
        %2072 = vmatprep.mubr.bf16.mxu0 0
        %2073 = vmatmul.mubr.bf16.gmra.mrb[0].mxu0 %v1790
        %v2074 = vpop.f32.mrb[0].mxu0
        %v2075 = vadd.f32 %v1954, %v2074
        %v2076 = vpop.f32.mrb[0].mxu0
        %v2077 = vpop.f32.mrb[0].mxu0
        %v2078 = vadd.f32 %v1957, %v2077
        %v2079 = vpop.f32.mrb[0].mxu0
        %2080 = vdwg.mxu0
        %v2081 = vld [vmem:[#allocation4 + $0x2] sm:$0xff]
        %v2082 = vld [vmem:[#allocation4 + $0xa] sm:$0xff]
        %v2083 = vld [vmem:[#allocation4 + $0x12] sm:$0xff]
        %v2084 = vld [vmem:[#allocation4 + $0x1a] sm:$0xff]
        %v2085 = vld [vmem:[#allocation4 + $0x22] sm:$0xff]
        %v2086 = vld [vmem:[#allocation4 + $0x2a] sm:$0xff]
        %v2087 = vld [vmem:[#allocation4 + $0x32] sm:$0xff]
        %v2088 = vld [vmem:[#allocation4 + $0x3a] sm:$0xff]
        %v2089 = vld [vmem:[#allocation4 + $0x42] sm:$0xff]
        %v2090 = vld [vmem:[#allocation4 + $0x4a] sm:$0x3f]
        %v2091 = vpack.c.bf16 %v2082, %v2081
        %v2092 = vpack.c.bf16 %v2084, %v2083
        %v2093 = vpack.c.bf16 %v2086, %v2085
        %v2094 = vpack.c.bf16 %v2088, %v2087
        %v2095 = vpack.c.bf16 %v2090, %v2089
        %s2096 = scalar_lea.vmem %s3, 128
        %v2097 = vld [vmem:[%s2096] sm:$0xf]
        %v2098 = vld [vmem:[%s2096 + $0x4] sm:$0xf]
        %v2099 = vld [vmem:[%s2096 + $0x8] sm:$0xf]
        %v2100 = vld [vmem:[%s2096 + $0xc] sm:$0xf]
        %v2101 = vld [vmem:[%s2096 + $0x10] sm:$0xf]
        %v2102 = vld [vmem:[%s2096 + $0x14] sm:$0xf]
        %v2103 = vld [vmem:[%s2096 + $0x18] sm:$0xf]
        %v2104 = vld [vmem:[%s2096 + $0x1c] sm:$0xf]
        %v2105 = vld [vmem:[%s2096 + $0x20] sm:$0xf]
        %v2106 = vld [vmem:[%s2096 + $0x24] sm:$0xf]
        %v2107 = vld [vmem:[%s2096 + $0x28] sm:$0xf]
        %v2108 = vld [vmem:[%s2096 + $0x2c] sm:$0xf]
        %v2109 = vld [vmem:[%s2096 + $0x30] sm:$0xf]
        %v2110 = vld [vmem:[%s2096 + $0x34] sm:$0xf]
        %v2111 = vld [vmem:[%s2096 + $0x38] sm:$0xf]
        %v2112 = vld [vmem:[%s2096 + $0x3c] sm:$0xf]
        %v2129 = vunpack.c.l.b16 %v2097
        %v2130 = vunpack.c.l.b16 %v2098
        %v2131 = vunpack.c.l.b16 %v2099
        %v2132 = vunpack.c.l.b16 %v2100
        %v2133 = vunpack.c.l.b16 %v2101
        %v2134 = vunpack.c.l.b16 %v2102
        %v2135 = vunpack.c.l.b16 %v2103
        %v2136 = vunpack.c.l.b16 %v2104
        %v2137 = vunpack.c.l.b16 %v2105
        %v2138 = vunpack.c.l.b16 %v2106
        %v2139 = vunpack.c.l.b16 %v2107
        %v2140 = vunpack.c.l.b16 %v2108
        %v2141 = vunpack.c.l.b16 %v2109
        %v2142 = vunpack.c.l.b16 %v2110
        %v2143 = vunpack.c.l.b16 %v2111
        %v2144 = vunpack.c.l.b16 %v2112
        %v2145 = vpack.c.b16 %v2130, %v2129
        %v2146 = vpack.c.b16 %v2132, %v2131
        %v2147 = vpack.c.b16 %v2134, %v2133
        %v2148 = vpack.c.b16 %v2136, %v2135
        %v2149 = vpack.c.b16 %v2138, %v2137
        %v2150 = vpack.c.b16 %v2140, %v2139
        %v2151 = vpack.c.b16 %v2142, %v2141
        %v2152 = vpack.c.b16 %v2144, %v2143
        %2161 = vmatprep.subr.bf16.mxu0 0
        %2162 = vmatpush1.bf16.msra.mxu0 %v2145
        %2163 = vmatprep.subr.bf16.mxu0 0
        %2164 = vmatpush1.bf16.msra.mxu0 %v2146
        %2165 = vmatprep.subr.bf16.mxu0 0
        %2166 = vmatpush1.bf16.msra.mxu0 %v2147
        %2167 = vmatprep.subr.bf16.mxu0 0
        %2168 = vmatpush1.bf16.msra.mxu0 %v2148
        %2169 = vmatprep.subr.bf16.mxu0 0
        %2170 = vmatpush1.bf16.msra.mxu0 %v2149
        %2171 = vmatprep.subr.bf16.mxu0 0
        %2172 = vmatpush1.bf16.msra.mxu0 %v2150
        %2173 = vmatprep.subr.bf16.mxu0 0
        %2174 = vmatpush1.bf16.msra.mxu0 %v2151
        %2175 = vmatprep.subr.bf16.mxu0 0
        %2176 = vmatpush1.bf16.msra.mxu0 %v2152
        %2177 = vmatprep.subr.bf16.mxu0 0
        %2178 = vmatpush1.bf16.msra.mxu0 0
        %2179 = vmatprep.subr.bf16.mxu0 0
        %2180 = vmatpush1.bf16.msra.mxu0 0
        %2181 = vmatprep.subr.bf16.mxu0 0
        %2182 = vmatpush1.bf16.msra.mxu0 0
        %2183 = vmatprep.subr.bf16.mxu0 0
        %2184 = vmatpush1.bf16.msra.mxu0 0
        %2185 = vmatprep.subr.bf16.mxu0 0
        %2186 = vmatpush1.bf16.msra.mxu0 0
        %2187 = vmatprep.subr.bf16.mxu0 0
        %2188 = vmatpush1.bf16.msra.mxu0 0
        %2189 = vmatprep.subr.bf16.mxu0 0
        %2190 = vmatpush1.bf16.msra.mxu0 0
        %2191 = vmatprep.subr.bf16.mxu0 0
        %2192 = vmatpush1.bf16.msra.mxu0 0
        %2193 = vmatprep.mubr.bf16.mxu0 0
        %2194 = vmatmul.mubr.bf16.gmra.mrb[0].mxu0 %v2091
        %v2195 = vpop.f32.mrb[0].mxu0
        %v2196 = vadd.f32 0.0, %v2195
        %v2197 = vpop.f32.mrb[0].mxu0
        %v2198 = vpop.f32.mrb[0].mxu0
        %v2199 = vadd.f32 0.0, %v2198
        %v2200 = vpop.f32.mrb[0].mxu0
        %2201 = vmatprep.mubr.bf16.mxu0 0
        %2202 = vmatmul.mubr.bf16.gmra.mrb[0].mxu0 %v2092
        %v2203 = vpop.f32.mrb[0].mxu0
        %v2204 = vadd.f32 0.0, %v2203
        %v2205 = vpop.f32.mrb[0].mxu0
        %v2206 = vpop.f32.mrb[0].mxu0
        %v2207 = vadd.f32 0.0, %v2206
        %v2208 = vpop.f32.mrb[0].mxu0
        %2209 = vmatprep.mubr.bf16.mxu0 0
        %2210 = vmatmul.mubr.bf16.gmra.mrb[0].mxu0 %v2093
        %v2211 = vpop.f32.mrb[0].mxu0
        %v2212 = vadd.f32 0.0, %v2211
        %v2213 = vpop.f32.mrb[0].mxu0
        %v2214 = vpop.f32.mrb[0].mxu0
        %v2215 = vadd.f32 0.0, %v2214
        %v2216 = vpop.f32.mrb[0].mxu0
        %2217 = vmatprep.mubr.bf16.mxu0 0
        %2218 = vmatmul.mubr.bf16.gmra.mrb[0].mxu0 %v2094
        %v2219 = vpop.f32.mrb[0].mxu0
        %v2220 = vadd.f32 0.0, %v2219
        %v2221 = vpop.f32.mrb[0].mxu0
        %v2222 = vpop.f32.mrb[0].mxu0
        %v2223 = vadd.f32 0.0, %v2222
        %v2224 = vpop.f32.mrb[0].mxu0
        %2225 = vmatprep.mubr.bf16.mxu0 0
        %2226 = vmatmul.mubr.bf16.gmra.mrb[0].mxu0 %v2095
        %v2227 = vpop.f32.mrb[0].mxu0
        %v2228 = vadd.f32 0.0, %v2227
        %v2229 = vpop.f32.mrb[0].mxu0
        %v2230 = vpop.f32.mrb[0].mxu0
        %v2231 = vadd.f32 0.0, %v2230
        %v2232 = vpop.f32.mrb[0].mxu0
        %2233 = vdwg.mxu0
        %v2234 = vadd.f32 %v2043, %v2196
        %v2235 = vadd.f32 %v2046, %v2199
        %v2236 = vadd.f32 %v2051, %v2204
        %v2237 = vadd.f32 %v2054, %v2207
        %v2238 = vadd.f32 %v2059, %v2212
        %v2239 = vadd.f32 %v2062, %v2215
        %v2240 = vadd.f32 %v2067, %v2220
        %v2241 = vadd.f32 %v2070, %v2223
        %v2242 = vadd.f32 %v2075, %v2228
        %v2243 = vadd.f32 %v2078, %v2231
        %v2244 = vld [vmem:[#allocation4 + $0xa] sm:$0xff]
        %v2245 = vld [vmem:[#allocation4 + $0x12] sm:$0xff]
        %v2246 = vld [vmem:[#allocation4 + $0x1a] sm:$0xff]
        %v2247 = vld [vmem:[#allocation4 + $0x22] sm:$0xff]
        %v2248 = vld [vmem:[#allocation4 + $0x2a] sm:$0xff]
        %v2249 = vld [vmem:[#allocation4 + $0x32] sm:$0xff]
        %v2250 = vld [vmem:[#allocation4 + $0x3a] sm:$0xff]
        %v2251 = vld [vmem:[#allocation4 + $0x42] sm:$0xff]
        %v2252 = vld [vmem:[#allocation4 + $0x4a] sm:$0xff]
        %v2253 = vld [vmem:[#allocation4 + $0x52] sm:$0x3f]
        %v2254 = vpack.c.bf16 %v2245, %v2244
        %v2255 = vpack.c.bf16 %v2247, %v2246
        %v2256 = vpack.c.bf16 %v2249, %v2248
        %v2257 = vpack.c.bf16 %v2251, %v2250
        %v2258 = vpack.c.bf16 %v2253, %v2252
        %s2259 = scalar_lea.vmem %s3, 192
        %v2260 = vld [vmem:[%s2259] sm:$0xf]
        %v2261 = vld [vmem:[%s2259 + $0x4] sm:$0xf]
        %v2262 = vld [vmem:[%s2259 + $0x8] sm:$0xf]
        %v2263 = vld [vmem:[%s2259 + $0xc] sm:$0xf]
        %v2264 = vld [vmem:[%s2259 + $0x10] sm:$0xf]
        %v2265 = vld [vmem:[%s2259 + $0x14] sm:$0xf]
        %v2266 = vld [vmem:[%s2259 + $0x18] sm:$0xf]
        %v2267 = vld [vmem:[%s2259 + $0x1c] sm:$0xf]
        %v2268 = vld [vmem:[%s2259 + $0x20] sm:$0xf]
        %v2269 = vld [vmem:[%s2259 + $0x24] sm:$0xf]
        %v2270 = vld [vmem:[%s2259 + $0x28] sm:$0xf]
        %v2271 = vld [vmem:[%s2259 + $0x2c] sm:$0xf]
        %v2272 = vld [vmem:[%s2259 + $0x30] sm:$0xf]
        %v2273 = vld [vmem:[%s2259 + $0x34] sm:$0xf]
        %v2274 = vld [vmem:[%s2259 + $0x38] sm:$0xf]
        %v2275 = vld [vmem:[%s2259 + $0x3c] sm:$0xf]
        %v2292 = vunpack.c.l.b16 %v2260
        %v2293 = vunpack.c.l.b16 %v2261
        %v2294 = vunpack.c.l.b16 %v2262
        %v2295 = vunpack.c.l.b16 %v2263
        %v2296 = vunpack.c.l.b16 %v2264
        %v2297 = vunpack.c.l.b16 %v2265
        %v2298 = vunpack.c.l.b16 %v2266
        %v2299 = vunpack.c.l.b16 %v2267
        %v2300 = vunpack.c.l.b16 %v2268
        %v2301 = vunpack.c.l.b16 %v2269
        %v2302 = vunpack.c.l.b16 %v2270
        %v2303 = vunpack.c.l.b16 %v2271
        %v2304 = vunpack.c.l.b16 %v2272
        %v2305 = vunpack.c.l.b16 %v2273
        %v2306 = vunpack.c.l.b16 %v2274
        %v2307 = vunpack.c.l.b16 %v2275
        %v2308 = vpack.c.b16 %v2293, %v2292
        %v2309 = vpack.c.b16 %v2295, %v2294
        %v2310 = vpack.c.b16 %v2297, %v2296
        %v2311 = vpack.c.b16 %v2299, %v2298
        %v2312 = vpack.c.b16 %v2301, %v2300
        %v2313 = vpack.c.b16 %v2303, %v2302
        %v2314 = vpack.c.b16 %v2305, %v2304
        %v2315 = vpack.c.b16 %v2307, %v2306
        %2324 = vmatprep.subr.bf16.mxu0 0
        %2325 = vmatpush1.bf16.msra.mxu0 %v2308
        %2326 = vmatprep.subr.bf16.mxu0 0
        %2327 = vmatpush1.bf16.msra.mxu0 %v2309
        %2328 = vmatprep.subr.bf16.mxu0 0
        %2329 = vmatpush1.bf16.msra.mxu0 %v2310
        %2330 = vmatprep.subr.bf16.mxu0 0
        %2331 = vmatpush1.bf16.msra.mxu0 %v2311
        %2332 = vmatprep.subr.bf16.mxu0 0
        %2333 = vmatpush1.bf16.msra.mxu0 %v2312
        %2334 = vmatprep.subr.bf16.mxu0 0
        %2335 = vmatpush1.bf16.msra.mxu0 %v2313
        %2336 = vmatprep.subr.bf16.mxu0 0
        %2337 = vmatpush1.bf16.msra.mxu0 %v2314
        %2338 = vmatprep.subr.bf16.mxu0 0
        %2339 = vmatpush1.bf16.msra.mxu0 %v2315
        %2340 = vmatprep.subr.bf16.mxu0 0
        %2341 = vmatpush1.bf16.msra.mxu0 0
        %2342 = vmatprep.subr.bf16.mxu0 0
        %2343 = vmatpush1.bf16.msra.mxu0 0
        %2344 = vmatprep.subr.bf16.mxu0 0
        %2345 = vmatpush1.bf16.msra.mxu0 0
        %2346 = vmatprep.subr.bf16.mxu0 0
        %2347 = vmatpush1.bf16.msra.mxu0 0
        %2348 = vmatprep.subr.bf16.mxu0 0
        %2349 = vmatpush1.bf16.msra.mxu0 0
        %2350 = vmatprep.subr.bf16.mxu0 0
        %2351 = vmatpush1.bf16.msra.mxu0 0
        %2352 = vmatprep.subr.bf16.mxu0 0
        %2353 = vmatpush1.bf16.msra.mxu0 0
        %2354 = vmatprep.subr.bf16.mxu0 0
        %2355 = vmatpush1.bf16.msra.mxu0 0
        %2356 = vmatprep.mubr.bf16.mxu0 0
        %2357 = vmatmul.mubr.bf16.gmra.mrb[0].mxu0 %v2254
        %v2358 = vpop.f32.mrb[0].mxu0
        %v2359 = vadd.f32 0.0, %v2358
        %v2360 = vpop.f32.mrb[0].mxu0
        %v2361 = vpop.f32.mrb[0].mxu0
        %v2362 = vadd.f32 0.0, %v2361
        %v2363 = vpop.f32.mrb[0].mxu0
        %2364 = vmatprep.mubr.bf16.mxu0 0
        %2365 = vmatmul.mubr.bf16.gmra.mrb[0].mxu0 %v2255
        %v2366 = vpop.f32.mrb[0].mxu0
        %v2367 = vadd.f32 0.0, %v2366
        %v2368 = vpop.f32.mrb[0].mxu0
        %v2369 = vpop.f32.mrb[0].mxu0
        %v2370 = vadd.f32 0.0, %v2369
        %v2371 = vpop.f32.mrb[0].mxu0
        %2372 = vmatprep.mubr.bf16.mxu0 0
        %2373 = vmatmul.mubr.bf16.gmra.mrb[0].mxu0 %v2256
        %v2374 = vpop.f32.mrb[0].mxu0
        %v2375 = vadd.f32 0.0, %v2374
        %v2376 = vpop.f32.mrb[0].mxu0
        %v2377 = vpop.f32.mrb[0].mxu0
        %v2378 = vadd.f32 0.0, %v2377
        %v2379 = vpop.f32.mrb[0].mxu0
        %2380 = vmatprep.mubr.bf16.mxu0 0
        %2381 = vmatmul.mubr.bf16.gmra.mrb[0].mxu0 %v2257
        %v2382 = vpop.f32.mrb[0].mxu0
        %v2383 = vadd.f32 0.0, %v2382
        %v2384 = vpop.f32.mrb[0].mxu0
        %v2385 = vpop.f32.mrb[0].mxu0
        %v2386 = vadd.f32 0.0, %v2385
        %v2387 = vpop.f32.mrb[0].mxu0
        %2388 = vmatprep.mubr.bf16.mxu0 0
        %2389 = vmatmul.mubr.bf16.gmra.mrb[0].mxu0 %v2258
        %v2390 = vpop.f32.mrb[0].mxu0
        %v2391 = vadd.f32 0.0, %v2390
        %v2392 = vpop.f32.mrb[0].mxu0
        %v2393 = vpop.f32.mrb[0].mxu0
        %v2394 = vadd.f32 0.0, %v2393
        %v2395 = vpop.f32.mrb[0].mxu0
        %2396 = vdwg.mxu0
        %v2397 = vadd.f32 %v2234, %v2359
        %v2398 = vadd.f32 %v2235, %v2362
        %v2399 = vadd.f32 %v2236, %v2367
        %v2400 = vadd.f32 %v2237, %v2370
        %v2401 = vadd.f32 %v2238, %v2375
        %v2402 = vadd.f32 %v2239, %v2378
        %v2403 = vadd.f32 %v2240, %v2383
        %v2404 = vadd.f32 %v2241, %v2386
        %v2405 = vadd.f32 %v2242, %v2391
        %v2406 = vadd.f32 %v2243, %v2394
        %v2407 = vld [vmem:[#allocation4 + $0xb] sm:$0xff]
        %v2408 = vld [vmem:[#allocation4 + $0x13] sm:$0xff]
        %v2409 = vld [vmem:[#allocation4 + $0x1b] sm:$0xff]
        %v2410 = vld [vmem:[#allocation4 + $0x23] sm:$0xff]
        %v2411 = vld [vmem:[#allocation4 + $0x2b] sm:$0xff]
        %v2412 = vld [vmem:[#allocation4 + $0x33] sm:$0xff]
        %v2413 = vld [vmem:[#allocation4 + $0x3b] sm:$0xff]
        %v2414 = vld [vmem:[#allocation4 + $0x43] sm:$0xff]
        %v2415 = vld [vmem:[#allocation4 + $0x4b] sm:$0xff]
        %v2416 = vld [vmem:[#allocation4 + $0x53] sm:$0x3f]
        %v2417 = vpack.c.bf16 %v2408, %v2407
        %v2418 = vpack.c.bf16 %v2410, %v2409
        %v2419 = vpack.c.bf16 %v2412, %v2411
        %v2420 = vpack.c.bf16 %v2414, %v2413
        %v2421 = vpack.c.bf16 %v2416, %v2415
        %s2422 = scalar_lea.vmem %s3, 256
        %v2423 = vld [vmem:[%s2422] sm:$0xf]
        %v2424 = vld [vmem:[%s2422 + $0x4] sm:$0xf]
        %v2425 = vld [vmem:[%s2422 + $0x8] sm:$0xf]
        %v2426 = vld [vmem:[%s2422 + $0xc] sm:$0xf]
        %v2427 = vld [vmem:[%s2422 + $0x10] sm:$0xf]
        %v2428 = vld [vmem:[%s2422 + $0x14] sm:$0xf]
        %v2429 = vld [vmem:[%s2422 + $0x18] sm:$0xf]
        %v2430 = vld [vmem:[%s2422 + $0x1c] sm:$0xf]
        %v2431 = vld [vmem:[%s2422 + $0x20] sm:$0xf]
        %v2432 = vld [vmem:[%s2422 + $0x24] sm:$0xf]
        %v2433 = vld [vmem:[%s2422 + $0x28] sm:$0xf]
        %v2434 = vld [vmem:[%s2422 + $0x2c] sm:$0xf]
        %v2435 = vld [vmem:[%s2422 + $0x30] sm:$0xf]
        %v2436 = vld [vmem:[%s2422 + $0x34] sm:$0xf]
        %v2437 = vld [vmem:[%s2422 + $0x38] sm:$0xf]
        %v2438 = vld [vmem:[%s2422 + $0x3c] sm:$0xf]
        %v2455 = vunpack.c.l.b16 %v2423
        %v2456 = vunpack.c.l.b16 %v2424
        %v2457 = vunpack.c.l.b16 %v2425
        %v2458 = vunpack.c.l.b16 %v2426
        %v2459 = vunpack.c.l.b16 %v2427
        %v2460 = vunpack.c.l.b16 %v2428
        %v2461 = vunpack.c.l.b16 %v2429
        %v2462 = vunpack.c.l.b16 %v2430
        %v2463 = vunpack.c.l.b16 %v2431
        %v2464 = vunpack.c.l.b16 %v2432
        %v2465 = vunpack.c.l.b16 %v2433
        %v2466 = vunpack.c.l.b16 %v2434
        %v2467 = vunpack.c.l.b16 %v2435
        %v2468 = vunpack.c.l.b16 %v2436
        %v2469 = vunpack.c.l.b16 %v2437
        %v2470 = vunpack.c.l.b16 %v2438
        %v2471 = vpack.c.b16 %v2456, %v2455
        %v2472 = vpack.c.b16 %v2458, %v2457
        %v2473 = vpack.c.b16 %v2460, %v2459
        %v2474 = vpack.c.b16 %v2462, %v2461
        %v2475 = vpack.c.b16 %v2464, %v2463
        %v2476 = vpack.c.b16 %v2466, %v2465
        %v2477 = vpack.c.b16 %v2468, %v2467
        %v2478 = vpack.c.b16 %v2470, %v2469
        %2487 = vmatprep.subr.bf16.mxu0 0
        %2488 = vmatpush1.bf16.msra.mxu0 %v2471
        %2489 = vmatprep.subr.bf16.mxu0 0
        %2490 = vmatpush1.bf16.msra.mxu0 %v2472
        %2491 = vmatprep.subr.bf16.mxu0 0
        %2492 = vmatpush1.bf16.msra.mxu0 %v2473
        %2493 = vmatprep.subr.bf16.mxu0 0
        %2494 = vmatpush1.bf16.msra.mxu0 %v2474
        %2495 = vmatprep.subr.bf16.mxu0 0
        %2496 = vmatpush1.bf16.msra.mxu0 %v2475
        %2497 = vmatprep.subr.bf16.mxu0 0
        %2498 = vmatpush1.bf16.msra.mxu0 %v2476
        %2499 = vmatprep.subr.bf16.mxu0 0
        %2500 = vmatpush1.bf16.msra.mxu0 %v2477
        %2501 = vmatprep.subr.bf16.mxu0 0
        %2502 = vmatpush1.bf16.msra.mxu0 %v2478
        %2503 = vmatprep.subr.bf16.mxu0 0
        %2504 = vmatpush1.bf16.msra.mxu0 0
        %2505 = vmatprep.subr.bf16.mxu0 0
        %2506 = vmatpush1.bf16.msra.mxu0 0
        %2507 = vmatprep.subr.bf16.mxu0 0
        %2508 = vmatpush1.bf16.msra.mxu0 0
        %2509 = vmatprep.subr.bf16.mxu0 0
        %2510 = vmatpush1.bf16.msra.mxu0 0
        %2511 = vmatprep.subr.bf16.mxu0 0
        %2512 = vmatpush1.bf16.msra.mxu0 0
        %2513 = vmatprep.subr.bf16.mxu0 0
        %2514 = vmatpush1.bf16.msra.mxu0 0
        %2515 = vmatprep.subr.bf16.mxu0 0
        %2516 = vmatpush1.bf16.msra.mxu0 0
        %2517 = vmatprep.subr.bf16.mxu0 0
        %2518 = vmatpush1.bf16.msra.mxu0 0
        %2519 = vmatprep.mubr.bf16.mxu0 0
        %2520 = vmatmul.mubr.bf16.gmra.mrb[0].mxu0 %v2417
        %v2521 = vpop.f32.mrb[0].mxu0
        %v2522 = vadd.f32 0.0, %v2521
        %v2523 = vpop.f32.mrb[0].mxu0
        %v2524 = vpop.f32.mrb[0].mxu0
        %v2525 = vadd.f32 0.0, %v2524
        %v2526 = vpop.f32.mrb[0].mxu0
        %2527 = vmatprep.mubr.bf16.mxu0 0
        %2528 = vmatmul.mubr.bf16.gmra.mrb[0].mxu0 %v2418
        %v2529 = vpop.f32.mrb[0].mxu0
        %v2530 = vadd.f32 0.0, %v2529
        %v2531 = vpop.f32.mrb[0].mxu0
        %v2532 = vpop.f32.mrb[0].mxu0
        %v2533 = vadd.f32 0.0, %v2532
        %v2534 = vpop.f32.mrb[0].mxu0
        %2535 = vmatprep.mubr.bf16.mxu0 0
        %2536 = vmatmul.mubr.bf16.gmra.mrb[0].mxu0 %v2419
        %v2537 = vpop.f32.mrb[0].mxu0
        %v2538 = vadd.f32 0.0, %v2537
        %v2539 = vpop.f32.mrb[0].mxu0
        %v2540 = vpop.f32.mrb[0].mxu0
        %v2541 = vadd.f32 0.0, %v2540
        %v2542 = vpop.f32.mrb[0].mxu0
        %2543 = vmatprep.mubr.bf16.mxu0 0
        %2544 = vmatmul.mubr.bf16.gmra.mrb[0].mxu0 %v2420
        %v2545 = vpop.f32.mrb[0].mxu0
        %v2546 = vadd.f32 0.0, %v2545
        %v2547 = vpop.f32.mrb[0].mxu0
        %v2548 = vpop.f32.mrb[0].mxu0
        %v2549 = vadd.f32 0.0, %v2548
        %v2550 = vpop.f32.mrb[0].mxu0
        %2551 = vmatprep.mubr.bf16.mxu0 0
        %2552 = vmatmul.mubr.bf16.gmra.mrb[0].mxu0 %v2421
        %v2553 = vpop.f32.mrb[0].mxu0
        %v2554 = vadd.f32 0.0, %v2553
        %v2555 = vpop.f32.mrb[0].mxu0
        %v2556 = vpop.f32.mrb[0].mxu0
        %v2557 = vadd.f32 0.0, %v2556
        %v2558 = vpop.f32.mrb[0].mxu0
        %2559 = vdwg.mxu0
        %v2560 = vadd.f32 %v2397, %v2522
        %v2561 = vadd.f32 %v2398, %v2525
        %v2562 = vadd.f32 %v2399, %v2530
        %v2563 = vadd.f32 %v2400, %v2533
        %v2564 = vadd.f32 %v2401, %v2538
        %v2565 = vadd.f32 %v2402, %v2541
        %v2566 = vadd.f32 %v2403, %v2546
        %v2567 = vadd.f32 %v2404, %v2549
        %v2568 = vadd.f32 %v2405, %v2554
        %v2569 = vadd.f32 %v2406, %v2557
        %v2570 = vld [vmem:[#allocation4 + $0xc] sm:$0xff]
        %v2571 = vld [vmem:[#allocation4 + $0x14] sm:$0xff]
        %v2572 = vld [vmem:[#allocation4 + $0x1c] sm:$0xff]
        %v2573 = vld [vmem:[#allocation4 + $0x24] sm:$0xff]
        %v2574 = vld [vmem:[#allocation4 + $0x2c] sm:$0xff]
        %v2575 = vld [vmem:[#allocation4 + $0x34] sm:$0xff]
        %v2576 = vld [vmem:[#allocation4 + $0x3c] sm:$0xff]
        %v2577 = vld [vmem:[#allocation4 + $0x44] sm:$0xff]
        %v2578 = vld [vmem:[#allocation4 + $0x4c] sm:$0xff]
        %v2579 = vld [vmem:[#allocation4 + $0x54] sm:$0x3f]
        %v2580 = vpack.c.bf16 %v2571, %v2570
        %v2581 = vpack.c.bf16 %v2573, %v2572
        %v2582 = vpack.c.bf16 %v2575, %v2574
        %v2583 = vpack.c.bf16 %v2577, %v2576
        %v2584 = vpack.c.bf16 %v2579, %v2578
        %s2585 = scalar_lea.vmem %s3, 320
        %v2586 = vld [vmem:[%s2585] sm:$0xf]
        %v2587 = vld [vmem:[%s2585 + $0x4] sm:$0xf]
        %v2588 = vld [vmem:[%s2585 + $0x8] sm:$0xf]
        %v2589 = vld [vmem:[%s2585 + $0xc] sm:$0xf]
        %v2590 = vld [vmem:[%s2585 + $0x10] sm:$0xf]
        %v2591 = vld [vmem:[%s2585 + $0x14] sm:$0xf]
        %v2592 = vld [vmem:[%s2585 + $0x18] sm:$0xf]
        %v2593 = vld [vmem:[%s2585 + $0x1c] sm:$0xf]
        %v2594 = vld [vmem:[%s2585 + $0x20] sm:$0xf]
        %v2595 = vld [vmem:[%s2585 + $0x24] sm:$0xf]
        %v2596 = vld [vmem:[%s2585 + $0x28] sm:$0xf]
        %v2597 = vld [vmem:[%s2585 + $0x2c] sm:$0xf]
        %v2598 = vld [vmem:[%s2585 + $0x30] sm:$0xf]
        %v2599 = vld [vmem:[%s2585 + $0x34] sm:$0xf]
        %v2600 = vld [vmem:[%s2585 + $0x38] sm:$0xf]
        %v2601 = vld [vmem:[%s2585 + $0x3c] sm:$0xf]
        %v2618 = vunpack.c.l.b16 %v2586
        %v2619 = vunpack.c.l.b16 %v2587
        %v2620 = vunpack.c.l.b16 %v2588
        %v2621 = vunpack.c.l.b16 %v2589
        %v2622 = vunpack.c.l.b16 %v2590
        %v2623 = vunpack.c.l.b16 %v2591
        %v2624 = vunpack.c.l.b16 %v2592
        %v2625 = vunpack.c.l.b16 %v2593
        %v2626 = vunpack.c.l.b16 %v2594
        %v2627 = vunpack.c.l.b16 %v2595
        %v2628 = vunpack.c.l.b16 %v2596
        %v2629 = vunpack.c.l.b16 %v2597
        %v2630 = vunpack.c.l.b16 %v2598
        %v2631 = vunpack.c.l.b16 %v2599
        %v2632 = vunpack.c.l.b16 %v2600
        %v2633 = vunpack.c.l.b16 %v2601
        %v2634 = vpack.c.b16 %v2619, %v2618
        %v2635 = vpack.c.b16 %v2621, %v2620
        %v2636 = vpack.c.b16 %v2623, %v2622
        %v2637 = vpack.c.b16 %v2625, %v2624
        %v2638 = vpack.c.b16 %v2627, %v2626
        %v2639 = vpack.c.b16 %v2629, %v2628
        %v2640 = vpack.c.b16 %v2631, %v2630
        %v2641 = vpack.c.b16 %v2633, %v2632
        %2650 = vmatprep.subr.bf16.mxu0 0
        %2651 = vmatpush1.bf16.msra.mxu0 %v2634
        %2652 = vmatprep.subr.bf16.mxu0 0
        %2653 = vmatpush1.bf16.msra.mxu0 %v2635
        %2654 = vmatprep.subr.bf16.mxu0 0
        %2655 = vmatpush1.bf16.msra.mxu0 %v2636
        %2656 = vmatprep.subr.bf16.mxu0 0
        %2657 = vmatpush1.bf16.msra.mxu0 %v2637
        %2658 = vmatprep.subr.bf16.mxu0 0
        %2659 = vmatpush1.bf16.msra.mxu0 %v2638
        %2660 = vmatprep.subr.bf16.mxu0 0
        %2661 = vmatpush1.bf16.msra.mxu0 %v2639
        %2662 = vmatprep.subr.bf16.mxu0 0
        %2663 = vmatpush1.bf16.msra.mxu0 %v2640
        %2664 = vmatprep.subr.bf16.mxu0 0
        %2665 = vmatpush1.bf16.msra.mxu0 %v2641
        %2666 = vmatprep.subr.bf16.mxu0 0
        %2667 = vmatpush1.bf16.msra.mxu0 0
        %2668 = vmatprep.subr.bf16.mxu0 0
        %2669 = vmatpush1.bf16.msra.mxu0 0
        %2670 = vmatprep.subr.bf16.mxu0 0
        %2671 = vmatpush1.bf16.msra.mxu0 0
        %2672 = vmatprep.subr.bf16.mxu0 0
        %2673 = vmatpush1.bf16.msra.mxu0 0
        %2674 = vmatprep.subr.bf16.mxu0 0
        %2675 = vmatpush1.bf16.msra.mxu0 0
        %2676 = vmatprep.subr.bf16.mxu0 0
        %2677 = vmatpush1.bf16.msra.mxu0 0
        %2678 = vmatprep.subr.bf16.mxu0 0
        %2679 = vmatpush1.bf16.msra.mxu0 0
        %2680 = vmatprep.subr.bf16.mxu0 0
        %2681 = vmatpush1.bf16.msra.mxu0 0
        %2682 = vmatprep.mubr.bf16.mxu0 0
        %2683 = vmatmul.mubr.bf16.gmra.mrb[0].mxu0 %v2580
        %v2684 = vpop.f32.mrb[0].mxu0
        %v2685 = vadd.f32 0.0, %v2684
        %v2686 = vpop.f32.mrb[0].mxu0
        %v2687 = vpop.f32.mrb[0].mxu0
        %v2688 = vadd.f32 0.0, %v2687
        %v2689 = vpop.f32.mrb[0].mxu0
        %2690 = vmatprep.mubr.bf16.mxu0 0
        %2691 = vmatmul.mubr.bf16.gmra.mrb[0].mxu0 %v2581
        %v2692 = vpop.f32.mrb[0].mxu0
        %v2693 = vadd.f32 0.0, %v2692
        %v2694 = vpop.f32.mrb[0].mxu0
        %v2695 = vpop.f32.mrb[0].mxu0
        %v2696 = vadd.f32 0.0, %v2695
        %v2697 = vpop.f32.mrb[0].mxu0
        %2698 = vmatprep.mubr.bf16.mxu0 0
        %2699 = vmatmul.mubr.bf16.gmra.mrb[0].mxu0 %v2582
        %v2700 = vpop.f32.mrb[0].mxu0
        %v2701 = vadd.f32 0.0, %v2700
        %v2702 = vpop.f32.mrb[0].mxu0
        %v2703 = vpop.f32.mrb[0].mxu0
        %v2704 = vadd.f32 0.0, %v2703
        %v2705 = vpop.f32.mrb[0].mxu0
        %2706 = vmatprep.mubr.bf16.mxu0 0
        %2707 = vmatmul.mubr.bf16.gmra.mrb[0].mxu0 %v2583
        %v2708 = vpop.f32.mrb[0].mxu0
        %v2709 = vadd.f32 0.0, %v2708
        %v2710 = vpop.f32.mrb[0].mxu0
        %v2711 = vpop.f32.mrb[0].mxu0
        %v2712 = vadd.f32 0.0, %v2711
        %v2713 = vpop.f32.mrb[0].mxu0
        %2714 = vmatprep.mubr.bf16.mxu0 0
        %2715 = vmatmul.mubr.bf16.gmra.mrb[0].mxu0 %v2584
        %v2716 = vpop.f32.mrb[0].mxu0
        %v2717 = vadd.f32 0.0, %v2716
        %v2718 = vpop.f32.mrb[0].mxu0
        %v2719 = vpop.f32.mrb[0].mxu0
        %v2720 = vadd.f32 0.0, %v2719
        %v2721 = vpop.f32.mrb[0].mxu0
        %2722 = vdwg.mxu0
        %v2723 = vadd.f32 %v2560, %v2685
        %v2724 = vadd.f32 %v2561, %v2688
        %v2725 = vadd.f32 %v2562, %v2693
        %v2726 = vadd.f32 %v2563, %v2696
        %v2727 = vadd.f32 %v2564, %v2701
        %v2728 = vadd.f32 %v2565, %v2704
        %v2729 = vadd.f32 %v2566, %v2709
        %v2730 = vadd.f32 %v2567, %v2712
        %v2731 = vadd.f32 %v2568, %v2717
        %v2732 = vadd.f32 %v2569, %v2720
        %v2733 = vld [vmem:[#allocation4 + $0x14] sm:$0xff]
        %v2734 = vld [vmem:[#allocation4 + $0x1c] sm:$0xff]
        %v2735 = vld [vmem:[#allocation4 + $0x24] sm:$0xff]
        %v2736 = vld [vmem:[#allocation4 + $0x2c] sm:$0xff]
        %v2737 = vld [vmem:[#allocation4 + $0x34] sm:$0xff]
        %v2738 = vld [vmem:[#allocation4 + $0x3c] sm:$0xff]
        %v2739 = vld [vmem:[#allocation4 + $0x44] sm:$0xff]
        %v2740 = vld [vmem:[#allocation4 + $0x4c] sm:$0xff]
        %v2741 = vld [vmem:[#allocation4 + $0x54] sm:$0xff]
        %v2742 = vld [vmem:[#allocation4 + $0x5c] sm:$0x3f]
        %v2743 = vpack.c.bf16 %v2734, %v2733
        %v2744 = vpack.c.bf16 %v2736, %v2735
        %v2745 = vpack.c.bf16 %v2738, %v2737
        %v2746 = vpack.c.bf16 %v2740, %v2739
        %v2747 = vpack.c.bf16 %v2742, %v2741
        %s2748 = scalar_lea.vmem %s3, 384
        %v2749 = vld [vmem:[%s2748] sm:$0xf]
        %v2750 = vld [vmem:[%s2748 + $0x4] sm:$0xf]
        %v2751 = vld [vmem:[%s2748 + $0x8] sm:$0xf]
        %v2752 = vld [vmem:[%s2748 + $0xc] sm:$0xf]
        %v2753 = vld [vmem:[%s2748 + $0x10] sm:$0xf]
        %v2754 = vld [vmem:[%s2748 + $0x14] sm:$0xf]
        %v2755 = vld [vmem:[%s2748 + $0x18] sm:$0xf]
        %v2756 = vld [vmem:[%s2748 + $0x1c] sm:$0xf]
        %v2757 = vld [vmem:[%s2748 + $0x20] sm:$0xf]
        %v2758 = vld [vmem:[%s2748 + $0x24] sm:$0xf]
        %v2759 = vld [vmem:[%s2748 + $0x28] sm:$0xf]
        %v2760 = vld [vmem:[%s2748 + $0x2c] sm:$0xf]
        %v2761 = vld [vmem:[%s2748 + $0x30] sm:$0xf]
        %v2762 = vld [vmem:[%s2748 + $0x34] sm:$0xf]
        %v2763 = vld [vmem:[%s2748 + $0x38] sm:$0xf]
        %v2764 = vld [vmem:[%s2748 + $0x3c] sm:$0xf]
        %v2781 = vunpack.c.l.b16 %v2749
        %v2782 = vunpack.c.l.b16 %v2750
        %v2783 = vunpack.c.l.b16 %v2751
        %v2784 = vunpack.c.l.b16 %v2752
        %v2785 = vunpack.c.l.b16 %v2753
        %v2786 = vunpack.c.l.b16 %v2754
        %v2787 = vunpack.c.l.b16 %v2755
        %v2788 = vunpack.c.l.b16 %v2756
        %v2789 = vunpack.c.l.b16 %v2757
        %v2790 = vunpack.c.l.b16 %v2758
        %v2791 = vunpack.c.l.b16 %v2759
        %v2792 = vunpack.c.l.b16 %v2760
        %v2793 = vunpack.c.l.b16 %v2761
        %v2794 = vunpack.c.l.b16 %v2762
        %v2795 = vunpack.c.l.b16 %v2763
        %v2796 = vunpack.c.l.b16 %v2764
        %v2797 = vpack.c.b16 %v2782, %v2781
        %v2798 = vpack.c.b16 %v2784, %v2783
        %v2799 = vpack.c.b16 %v2786, %v2785
        %v2800 = vpack.c.b16 %v2788, %v2787
        %v2801 = vpack.c.b16 %v2790, %v2789
        %v2802 = vpack.c.b16 %v2792, %v2791
        %v2803 = vpack.c.b16 %v2794, %v2793
        %v2804 = vpack.c.b16 %v2796, %v2795
        %2813 = vmatprep.subr.bf16.mxu0 0
        %2814 = vmatpush1.bf16.msra.mxu0 %v2797
        %2815 = vmatprep.subr.bf16.mxu0 0
        %2816 = vmatpush1.bf16.msra.mxu0 %v2798
        %2817 = vmatprep.subr.bf16.mxu0 0
        %2818 = vmatpush1.bf16.msra.mxu0 %v2799
        %2819 = vmatprep.subr.bf16.mxu0 0
        %2820 = vmatpush1.bf16.msra.mxu0 %v2800
        %2821 = vmatprep.subr.bf16.mxu0 0
        %2822 = vmatpush1.bf16.msra.mxu0 %v2801
        %2823 = vmatprep.subr.bf16.mxu0 0
        %2824 = vmatpush1.bf16.msra.mxu0 %v2802
        %2825 = vmatprep.subr.bf16.mxu0 0
        %2826 = vmatpush1.bf16.msra.mxu0 %v2803
        %2827 = vmatprep.subr.bf16.mxu0 0
        %2828 = vmatpush1.bf16.msra.mxu0 %v2804
        %2829 = vmatprep.subr.bf16.mxu0 0
        %2830 = vmatpush1.bf16.msra.mxu0 0
        %2831 = vmatprep.subr.bf16.mxu0 0
        %2832 = vmatpush1.bf16.msra.mxu0 0
        %2833 = vmatprep.subr.bf16.mxu0 0
        %2834 = vmatpush1.bf16.msra.mxu0 0
        %2835 = vmatprep.subr.bf16.mxu0 0
        %2836 = vmatpush1.bf16.msra.mxu0 0
        %2837 = vmatprep.subr.bf16.mxu0 0
        %2838 = vmatpush1.bf16.msra.mxu0 0
        %2839 = vmatprep.subr.bf16.mxu0 0
        %2840 = vmatpush1.bf16.msra.mxu0 0
        %2841 = vmatprep.subr.bf16.mxu0 0
        %2842 = vmatpush1.bf16.msra.mxu0 0
        %2843 = vmatprep.subr.bf16.mxu0 0
        %2844 = vmatpush1.bf16.msra.mxu0 0
        %2845 = vmatprep.mubr.bf16.mxu0 0
        %2846 = vmatmul.mubr.bf16.gmra.mrb[0].mxu0 %v2743
        %v2847 = vpop.f32.mrb[0].mxu0
        %v2848 = vadd.f32 0.0, %v2847
        %v2849 = vpop.f32.mrb[0].mxu0
        %v2850 = vpop.f32.mrb[0].mxu0
        %v2851 = vadd.f32 0.0, %v2850
        %v2852 = vpop.f32.mrb[0].mxu0
        %2853 = vmatprep.mubr.bf16.mxu0 0
        %2854 = vmatmul.mubr.bf16.gmra.mrb[0].mxu0 %v2744
        %v2855 = vpop.f32.mrb[0].mxu0
        %v2856 = vadd.f32 0.0, %v2855
        %v2857 = vpop.f32.mrb[0].mxu0
        %v2858 = vpop.f32.mrb[0].mxu0
        %v2859 = vadd.f32 0.0, %v2858
        %v2860 = vpop.f32.mrb[0].mxu0
        %2861 = vmatprep.mubr.bf16.mxu0 0
        %2862 = vmatmul.mubr.bf16.gmra.mrb[0].mxu0 %v2745
        %v2863 = vpop.f32.mrb[0].mxu0
        %v2864 = vadd.f32 0.0, %v2863
        %v2865 = vpop.f32.mrb[0].mxu0
        %v2866 = vpop.f32.mrb[0].mxu0
        %v2867 = vadd.f32 0.0, %v2866
        %v2868 = vpop.f32.mrb[0].mxu0
        %2869 = vmatprep.mubr.bf16.mxu0 0
        %2870 = vmatmul.mubr.bf16.gmra.mrb[0].mxu0 %v2746
        %v2871 = vpop.f32.mrb[0].mxu0
        %v2872 = vadd.f32 0.0, %v2871
        %v2873 = vpop.f32.mrb[0].mxu0
        %v2874 = vpop.f32.mrb[0].mxu0
        %v2875 = vadd.f32 0.0, %v2874
        %v2876 = vpop.f32.mrb[0].mxu0
        %2877 = vmatprep.mubr.bf16.mxu0 0
        %2878 = vmatmul.mubr.bf16.gmra.mrb[0].mxu0 %v2747
        %v2879 = vpop.f32.mrb[0].mxu0
        %v2880 = vadd.f32 0.0, %v2879
        %v2881 = vpop.f32.mrb[0].mxu0
        %v2882 = vpop.f32.mrb[0].mxu0
        %v2883 = vadd.f32 0.0, %v2882
        %v2884 = vpop.f32.mrb[0].mxu0
        %2885 = vdwg.mxu0
        %v2886 = vadd.f32 %v2723, %v2848
        %v2887 = vadd.f32 %v2724, %v2851
        %v2888 = vadd.f32 %v2725, %v2856
        %v2889 = vadd.f32 %v2726, %v2859
        %v2890 = vadd.f32 %v2727, %v2864
        %v2891 = vadd.f32 %v2728, %v2867
        %v2892 = vadd.f32 %v2729, %v2872
        %v2893 = vadd.f32 %v2730, %v2875
        %v2894 = vadd.f32 %v2731, %v2880
        %v2895 = vadd.f32 %v2732, %v2883
        %v2896 = vld [vmem:[#allocation4 + $0x15] sm:$0xff]
        %v2897 = vld [vmem:[#allocation4 + $0x1d] sm:$0xff]
        %v2898 = vld [vmem:[#allocation4 + $0x25] sm:$0xff]
        %v2899 = vld [vmem:[#allocation4 + $0x2d] sm:$0xff]
        %v2900 = vld [vmem:[#allocation4 + $0x35] sm:$0xff]
        %v2901 = vld [vmem:[#allocation4 + $0x3d] sm:$0xff]
        %v2902 = vld [vmem:[#allocation4 + $0x45] sm:$0xff]
        %v2903 = vld [vmem:[#allocation4 + $0x4d] sm:$0xff]
        %v2904 = vld [vmem:[#allocation4 + $0x55] sm:$0xff]
        %v2905 = vld [vmem:[#allocation4 + $0x5d] sm:$0x3f]
        %v2906 = vpack.c.bf16 %v2897, %v2896
        %v2907 = vpack.c.bf16 %v2899, %v2898
        %v2908 = vpack.c.bf16 %v2901, %v2900
        %v2909 = vpack.c.bf16 %v2903, %v2902
        %v2910 = vpack.c.bf16 %v2905, %v2904
        %s2911 = scalar_lea.vmem %s3, 448
        %v2912 = vld [vmem:[%s2911] sm:$0xf]
        %v2913 = vld [vmem:[%s2911 + $0x4] sm:$0xf]
        %v2914 = vld [vmem:[%s2911 + $0x8] sm:$0xf]
        %v2915 = vld [vmem:[%s2911 + $0xc] sm:$0xf]
        %v2916 = vld [vmem:[%s2911 + $0x10] sm:$0xf]
        %v2917 = vld [vmem:[%s2911 + $0x14] sm:$0xf]
        %v2918 = vld [vmem:[%s2911 + $0x18] sm:$0xf]
        %v2919 = vld [vmem:[%s2911 + $0x1c] sm:$0xf]
        %v2920 = vld [vmem:[%s2911 + $0x20] sm:$0xf]
        %v2921 = vld [vmem:[%s2911 + $0x24] sm:$0xf]
        %v2922 = vld [vmem:[%s2911 + $0x28] sm:$0xf]
        %v2923 = vld [vmem:[%s2911 + $0x2c] sm:$0xf]
        %v2924 = vld [vmem:[%s2911 + $0x30] sm:$0xf]
        %v2925 = vld [vmem:[%s2911 + $0x34] sm:$0xf]
        %v2926 = vld [vmem:[%s2911 + $0x38] sm:$0xf]
        %v2927 = vld [vmem:[%s2911 + $0x3c] sm:$0xf]
        %v2944 = vunpack.c.l.b16 %v2912
        %v2945 = vunpack.c.l.b16 %v2913
        %v2946 = vunpack.c.l.b16 %v2914
        %v2947 = vunpack.c.l.b16 %v2915
        %v2948 = vunpack.c.l.b16 %v2916
        %v2949 = vunpack.c.l.b16 %v2917
        %v2950 = vunpack.c.l.b16 %v2918
        %v2951 = vunpack.c.l.b16 %v2919
        %v2952 = vunpack.c.l.b16 %v2920
        %v2953 = vunpack.c.l.b16 %v2921
        %v2954 = vunpack.c.l.b16 %v2922
        %v2955 = vunpack.c.l.b16 %v2923
        %v2956 = vunpack.c.l.b16 %v2924
        %v2957 = vunpack.c.l.b16 %v2925
        %v2958 = vunpack.c.l.b16 %v2926
        %v2959 = vunpack.c.l.b16 %v2927
        %v2960 = vpack.c.b16 %v2945, %v2944
        %v2961 = vpack.c.b16 %v2947, %v2946
        %v2962 = vpack.c.b16 %v2949, %v2948
        %v2963 = vpack.c.b16 %v2951, %v2950
        %v2964 = vpack.c.b16 %v2953, %v2952
        %v2965 = vpack.c.b16 %v2955, %v2954
        %v2966 = vpack.c.b16 %v2957, %v2956
        %v2967 = vpack.c.b16 %v2959, %v2958
        %2976 = vmatprep.subr.bf16.mxu0 0
        %2977 = vmatpush1.bf16.msra.mxu0 %v2960
        %2978 = vmatprep.subr.bf16.mxu0 0
        %2979 = vmatpush1.bf16.msra.mxu0 %v2961
        %2980 = vmatprep.subr.bf16.mxu0 0
        %2981 = vmatpush1.bf16.msra.mxu0 %v2962
        %2982 = vmatprep.subr.bf16.mxu0 0
        %2983 = vmatpush1.bf16.msra.mxu0 %v2963
        %2984 = vmatprep.subr.bf16.mxu0 0
        %2985 = vmatpush1.bf16.msra.mxu0 %v2964
        %2986 = vmatprep.subr.bf16.mxu0 0
        %2987 = vmatpush1.bf16.msra.mxu0 %v2965
        %2988 = vmatprep.subr.bf16.mxu0 0
        %2989 = vmatpush1.bf16.msra.mxu0 %v2966
        %2990 = vmatprep.subr.bf16.mxu0 0
        %2991 = vmatpush1.bf16.msra.mxu0 %v2967
        %2992 = vmatprep.subr.bf16.mxu0 0
        %2993 = vmatpush1.bf16.msra.mxu0 0
        %2994 = vmatprep.subr.bf16.mxu0 0
        %2995 = vmatpush1.bf16.msra.mxu0 0
        %2996 = vmatprep.subr.bf16.mxu0 0
        %2997 = vmatpush1.bf16.msra.mxu0 0
        %2998 = vmatprep.subr.bf16.mxu0 0
        %2999 = vmatpush1.bf16.msra.mxu0 0
        %3000 = vmatprep.subr.bf16.mxu0 0
        %3001 = vmatpush1.bf16.msra.mxu0 0
        %3002 = vmatprep.subr.bf16.mxu0 0
        %3003 = vmatpush1.bf16.msra.mxu0 0
        %3004 = vmatprep.subr.bf16.mxu0 0
        %3005 = vmatpush1.bf16.msra.mxu0 0
        %3006 = vmatprep.subr.bf16.mxu0 0
        %3007 = vmatpush1.bf16.msra.mxu0 0
        %3008 = vmatprep.mubr.bf16.mxu0 0
        %3009 = vmatmul.mubr.bf16.gmra.mrb[0].mxu0 %v2906
        %v3010 = vpop.f32.mrb[0].mxu0
        %v3011 = vadd.f32 0.0, %v3010
        %v3012 = vpop.f32.mrb[0].mxu0
        %v3013 = vpop.f32.mrb[0].mxu0
        %v3014 = vadd.f32 0.0, %v3013
        %v3015 = vpop.f32.mrb[0].mxu0
        %3016 = vmatprep.mubr.bf16.mxu0 0
        %3017 = vmatmul.mubr.bf16.gmra.mrb[0].mxu0 %v2907
        %v3018 = vpop.f32.mrb[0].mxu0
        %v3019 = vadd.f32 0.0, %v3018
        %v3020 = vpop.f32.mrb[0].mxu0
        %v3021 = vpop.f32.mrb[0].mxu0
        %v3022 = vadd.f32 0.0, %v3021
        %v3023 = vpop.f32.mrb[0].mxu0
        %3024 = vmatprep.mubr.bf16.mxu0 0
        %3025 = vmatmul.mubr.bf16.gmra.mrb[0].mxu0 %v2908
        %v3026 = vpop.f32.mrb[0].mxu0
        %v3027 = vadd.f32 0.0, %v3026
        %v3028 = vpop.f32.mrb[0].mxu0
        %v3029 = vpop.f32.mrb[0].mxu0
        %v3030 = vadd.f32 0.0, %v3029
        %v3031 = vpop.f32.mrb[0].mxu0
        %3032 = vmatprep.mubr.bf16.mxu0 0
        %3033 = vmatmul.mubr.bf16.gmra.mrb[0].mxu0 %v2909
        %v3034 = vpop.f32.mrb[0].mxu0
        %v3035 = vadd.f32 0.0, %v3034
        %v3036 = vpop.f32.mrb[0].mxu0
        %v3037 = vpop.f32.mrb[0].mxu0
        %v3038 = vadd.f32 0.0, %v3037
        %v3039 = vpop.f32.mrb[0].mxu0
        %3040 = vmatprep.mubr.bf16.mxu0 0
        %3041 = vmatmul.mubr.bf16.gmra.mrb[0].mxu0 %v2910
        %v3042 = vpop.f32.mrb[0].mxu0
        %v3043 = vadd.f32 0.0, %v3042
        %v3044 = vpop.f32.mrb[0].mxu0
        %v3045 = vpop.f32.mrb[0].mxu0
        %v3046 = vadd.f32 0.0, %v3045
        %v3047 = vpop.f32.mrb[0].mxu0
        %3048 = vdwg.mxu0
        %v3049 = vadd.f32 %v2886, %v3011
        %v3050 = vadd.f32 %v2887, %v3014
        %v3051 = vadd.f32 %v2888, %v3019
        %v3052 = vadd.f32 %v2889, %v3022
        %v3053 = vadd.f32 %v2890, %v3027
        %v3054 = vadd.f32 %v2891, %v3030
        %v3055 = vadd.f32 %v2892, %v3035
        %v3056 = vadd.f32 %v2893, %v3038
        %v3057 = vadd.f32 %v2894, %v3043
        %v3058 = vadd.f32 %v2895, %v3046
        %v3059 = vld [vmem:[#allocation4 + $0x16] sm:$0xff]
        %v3060 = vld [vmem:[#allocation4 + $0x1e] sm:$0xff]
        %v3061 = vld [vmem:[#allocation4 + $0x26] sm:$0xff]
        %v3062 = vld [vmem:[#allocation4 + $0x2e] sm:$0xff]
        %v3063 = vld [vmem:[#allocation4 + $0x36] sm:$0xff]
        %v3064 = vld [vmem:[#allocation4 + $0x3e] sm:$0xff]
        %v3065 = vld [vmem:[#allocation4 + $0x46] sm:$0xff]
        %v3066 = vld [vmem:[#allocation4 + $0x4e] sm:$0xff]
        %v3067 = vld [vmem:[#allocation4 + $0x56] sm:$0xff]
        %v3068 = vld [vmem:[#allocation4 + $0x5e] sm:$0x3f]
        %v3069 = vpack.c.bf16 %v3060, %v3059
        %v3070 = vpack.c.bf16 %v3062, %v3061
        %v3071 = vpack.c.bf16 %v3064, %v3063
        %v3072 = vpack.c.bf16 %v3066, %v3065
        %v3073 = vpack.c.bf16 %v3068, %v3067
        %s3074 = scalar_lea.vmem %s3, 512
        %v3075 = vld [vmem:[%s3074] sm:$0xf]
        %v3076 = vld [vmem:[%s3074 + $0x4] sm:$0xf]
        %v3077 = vld [vmem:[%s3074 + $0x8] sm:$0xf]
        %v3078 = vld [vmem:[%s3074 + $0xc] sm:$0xf]
        %v3079 = vld [vmem:[%s3074 + $0x10] sm:$0xf]
        %v3080 = vld [vmem:[%s3074 + $0x14] sm:$0xf]
        %v3081 = vld [vmem:[%s3074 + $0x18] sm:$0xf]
        %v3082 = vld [vmem:[%s3074 + $0x1c] sm:$0xf]
        %v3083 = vld [vmem:[%s3074 + $0x20] sm:$0xf]
        %v3084 = vld [vmem:[%s3074 + $0x24] sm:$0xf]
        %v3085 = vld [vmem:[%s3074 + $0x28] sm:$0xf]
        %v3086 = vld [vmem:[%s3074 + $0x2c] sm:$0xf]
        %v3087 = vld [vmem:[%s3074 + $0x30] sm:$0xf]
        %v3088 = vld [vmem:[%s3074 + $0x34] sm:$0xf]
        %v3089 = vld [vmem:[%s3074 + $0x38] sm:$0xf]
        %v3090 = vld [vmem:[%s3074 + $0x3c] sm:$0xf]
        %v3107 = vunpack.c.l.b16 %v3075
        %v3108 = vunpack.c.l.b16 %v3076
        %v3109 = vunpack.c.l.b16 %v3077
        %v3110 = vunpack.c.l.b16 %v3078
        %v3111 = vunpack.c.l.b16 %v3079
        %v3112 = vunpack.c.l.b16 %v3080
        %v3113 = vunpack.c.l.b16 %v3081
        %v3114 = vunpack.c.l.b16 %v3082
        %v3115 = vunpack.c.l.b16 %v3083
        %v3116 = vunpack.c.l.b16 %v3084
        %v3117 = vunpack.c.l.b16 %v3085
        %v3118 = vunpack.c.l.b16 %v3086
        %v3119 = vunpack.c.l.b16 %v3087
        %v3120 = vunpack.c.l.b16 %v3088
        %v3121 = vunpack.c.l.b16 %v3089
        %v3122 = vunpack.c.l.b16 %v3090
        %v3123 = vpack.c.b16 %v3108, %v3107
        %v3124 = vpack.c.b16 %v3110, %v3109
        %v3125 = vpack.c.b16 %v3112, %v3111
        %v3126 = vpack.c.b16 %v3114, %v3113
        %v3127 = vpack.c.b16 %v3116, %v3115
        %v3128 = vpack.c.b16 %v3118, %v3117
        %v3129 = vpack.c.b16 %v3120, %v3119
        %v3130 = vpack.c.b16 %v3122, %v3121
        %3139 = vmatprep.subr.bf16.mxu0 0
        %3140 = vmatpush1.bf16.msra.mxu0 %v3123
        %3141 = vmatprep.subr.bf16.mxu0 0
        %3142 = vmatpush1.bf16.msra.mxu0 %v3124
        %3143 = vmatprep.subr.bf16.mxu0 0
        %3144 = vmatpush1.bf16.msra.mxu0 %v3125
        %3145 = vmatprep.subr.bf16.mxu0 0
        %3146 = vmatpush1.bf16.msra.mxu0 %v3126
        %3147 = vmatprep.subr.bf16.mxu0 0
        %3148 = vmatpush1.bf16.msra.mxu0 %v3127
        %3149 = vmatprep.subr.bf16.mxu0 0
        %3150 = vmatpush1.bf16.msra.mxu0 %v3128
        %3151 = vmatprep.subr.bf16.mxu0 0
        %3152 = vmatpush1.bf16.msra.mxu0 %v3129
        %3153 = vmatprep.subr.bf16.mxu0 0
        %3154 = vmatpush1.bf16.msra.mxu0 %v3130
        %3155 = vmatprep.subr.bf16.mxu0 0
        %3156 = vmatpush1.bf16.msra.mxu0 0
        %3157 = vmatprep.subr.bf16.mxu0 0
        %3158 = vmatpush1.bf16.msra.mxu0 0
        %3159 = vmatprep.subr.bf16.mxu0 0
        %3160 = vmatpush1.bf16.msra.mxu0 0
        %3161 = vmatprep.subr.bf16.mxu0 0
        %3162 = vmatpush1.bf16.msra.mxu0 0
        %3163 = vmatprep.subr.bf16.mxu0 0
        %3164 = vmatpush1.bf16.msra.mxu0 0
        %3165 = vmatprep.subr.bf16.mxu0 0
        %3166 = vmatpush1.bf16.msra.mxu0 0
        %3167 = vmatprep.subr.bf16.mxu0 0
        %3168 = vmatpush1.bf16.msra.mxu0 0
        %3169 = vmatprep.subr.bf16.mxu0 0
        %3170 = vmatpush1.bf16.msra.mxu0 0
        %3171 = vmatprep.mubr.bf16.mxu0 0
        %3172 = vmatmul.mubr.bf16.gmra.mrb[0].mxu0 %v3069
        %v3173 = vpop.f32.mrb[0].mxu0
        %v3174 = vadd.f32 0.0, %v3173
        %v3175 = vpop.f32.mrb[0].mxu0
        %v3176 = vpop.f32.mrb[0].mxu0
        %v3177 = vadd.f32 0.0, %v3176
        %v3178 = vpop.f32.mrb[0].mxu0
        %3179 = vmatprep.mubr.bf16.mxu0 0
        %3180 = vmatmul.mubr.bf16.gmra.mrb[0].mxu0 %v3070
        %v3181 = vpop.f32.mrb[0].mxu0
        %v3182 = vadd.f32 0.0, %v3181
        %v3183 = vpop.f32.mrb[0].mxu0
        %v3184 = vpop.f32.mrb[0].mxu0
        %v3185 = vadd.f32 0.0, %v3184
        %v3186 = vpop.f32.mrb[0].mxu0
        %3187 = vmatprep.mubr.bf16.mxu0 0
        %3188 = vmatmul.mubr.bf16.gmra.mrb[0].mxu0 %v3071
        %v3189 = vpop.f32.mrb[0].mxu0
        %v3190 = vadd.f32 0.0, %v3189
        %v3191 = vpop.f32.mrb[0].mxu0
        %v3192 = vpop.f32.mrb[0].mxu0
        %v3193 = vadd.f32 0.0, %v3192
        %v3194 = vpop.f32.mrb[0].mxu0
        %3195 = vmatprep.mubr.bf16.mxu0 0
        %3196 = vmatmul.mubr.bf16.gmra.mrb[0].mxu0 %v3072
        %v3197 = vpop.f32.mrb[0].mxu0
        %v3198 = vadd.f32 0.0, %v3197
        %v3199 = vpop.f32.mrb[0].mxu0
        %v3200 = vpop.f32.mrb[0].mxu0
        %v3201 = vadd.f32 0.0, %v3200
        %v3202 = vpop.f32.mrb[0].mxu0
        %3203 = vmatprep.mubr.bf16.mxu0 0
        %3204 = vmatmul.mubr.bf16.gmra.mrb[0].mxu0 %v3073
        %v3205 = vpop.f32.mrb[0].mxu0
        %v3206 = vadd.f32 0.0, %v3205
        %v3207 = vpop.f32.mrb[0].mxu0
        %v3208 = vpop.f32.mrb[0].mxu0
        %v3209 = vadd.f32 0.0, %v3208
        %v3210 = vpop.f32.mrb[0].mxu0
        %3211 = vdwg.mxu0
        %v3212 = vadd.f32 %v3049, %v3174
        %v3213 = vadd.f32 %v3050, %v3177
        %v3214 = vadd.f32 %v3051, %v3182
        %v3215 = vadd.f32 %v3052, %v3185
        %v3216 = vadd.f32 %v3053, %v3190
        %v3217 = vadd.f32 %v3054, %v3193
        %v3218 = vadd.f32 %v3055, %v3198
        %v3219 = vadd.f32 %v3056, %v3201
        %v3220 = vadd.f32 %v3057, %v3206
        %v3221 = vadd.f32 %v3058, %v3209
        %v3222 = vld [vmem:[%s4] sm:$0x1]
        %v3224 = vlaneseq
        %v3225 = vshrl.u32 %v3224, 7
        %v3226 = vsub.s32 0, %v3225
        %v3227 = vrot.slane %v3222, %v3226
        %v3229 = vadd.f32 %v3212, %v3227
        %v3230 = vadd.f32 %v3213, %v3227
        %v3231 = vadd.f32 %v3214, %v3227
        %v3232 = vadd.f32 %v3215, %v3227
        %v3233 = vadd.f32 %v3216, %v3227
        %v3234 = vadd.f32 %v3217, %v3227
        %v3235 = vadd.f32 %v3218, %v3227
        %v3236 = vadd.f32 %v3219, %v3227
        %v3237 = vadd.f32 %v3220, %v3227
        %v3238 = vadd.f32 %v3221, %v3227
        %3239 = vst [vmem:[#allocation5] sm:$0xff] %v3229
        %3240 = vst [vmem:[#allocation5 + $0x8] sm:$0xff] %v3230
        %3241 = vst [vmem:[#allocation5 + $0x10] sm:$0xff] %v3231
        %3242 = vst [vmem:[#allocation5 + $0x18] sm:$0xff] %v3232
        %3243 = vst [vmem:[#allocation5 + $0x20] sm:$0xff] %v3233
        %3244 = vst [vmem:[#allocation5 + $0x28] sm:$0xff] %v3234
        %3245 = vst [vmem:[#allocation5 + $0x30] sm:$0xff] %v3235
        %3246 = vst [vmem:[#allocation5 + $0x38] sm:$0xff] %v3236
        %3247 = vst [vmem:[#allocation5 + $0x40] sm:$0xff] %v3237
        %3248 = vst [vmem:[#allocation5 + $0x48] sm:$0x3f] %v3238
        %v3249 = vld [vmem:[#allocation5] sm:$0xff]
        %v3250 = vld [vmem:[#allocation3] sm:$0xff]
        %v3251 = vadd.f32 %v3249, %v3250
        %vm3252 = vcmp.ge.f32.partialorder %v3251, 0.0
        %v3253 = vmul.f32 %v3251, 0.01
        %v3254 = vsel %vm3252, %v3251, %v3253
        %3255 = vst [vmem:[%s217] sm:$0xff] %v3254
        %v3256 = vld [vmem:[#allocation5 + $0xa] sm:$0xff]
        %v3257 = vld [vmem:[#allocation3 + $0xa] sm:$0xff]
        %v3258 = vadd.f32 %v3256, %v3257
        %vm3259 = vcmp.ge.f32.partialorder %v3258, 0.0
        %v3260 = vmul.f32 %v3258, 0.01
        %v3261 = vsel %vm3259, %v3258, %v3260
        %3262 = vst [vmem:[%s217 + $0x8] sm:$0xff] %v3261
        %v3263 = vld [vmem:[#allocation5 + $0x14] sm:$0xff]
        %v3264 = vld [vmem:[#allocation3 + $0x14] sm:$0xff]
        %v3265 = vadd.f32 %v3263, %v3264
        %vm3266 = vcmp.ge.f32.partialorder %v3265, 0.0
        %v3267 = vmul.f32 %v3265, 0.01
        %v3268 = vsel %vm3266, %v3265, %v3267
        %3269 = vst [vmem:[%s217 + $0x10] sm:$0xff] %v3268
        %v3270 = vld [vmem:[#allocation5 + $0x1e] sm:$0xff]
        %v3271 = vld [vmem:[#allocation3 + $0x1e] sm:$0xff]
        %v3272 = vadd.f32 %v3270, %v3271
        %vm3273 = vcmp.ge.f32.partialorder %v3272, 0.0
        %v3274 = vmul.f32 %v3272, 0.01
        %v3275 = vsel %vm3273, %v3272, %v3274
        %3276 = vst [vmem:[%s217 + $0x18] sm:$0xff] %v3275
        %v3277 = vld [vmem:[#allocation5 + $0x28] sm:$0xff]
        %v3278 = vld [vmem:[#allocation3 + $0x28] sm:$0xff]
        %v3279 = vadd.f32 %v3277, %v3278
        %vm3280 = vcmp.ge.f32.partialorder %v3279, 0.0
        %v3281 = vmul.f32 %v3279, 0.01
        %v3282 = vsel %vm3280, %v3279, %v3281
        %3283 = vst [vmem:[%s217 + $0x20] sm:$0xff] %v3282
        %v3284 = vld [vmem:[#allocation5 + $0x32] sm:$0xff]
        %v3285 = vld [vmem:[#allocation3 + $0x32] sm:$0xff]
        %v3286 = vadd.f32 %v3284, %v3285
        %vm3287 = vcmp.ge.f32.partialorder %v3286, 0.0
        %v3288 = vmul.f32 %v3286, 0.01
        %v3289 = vsel %vm3287, %v3286, %v3288
        %3290 = vst [vmem:[%s217 + $0x28] sm:$0xff] %v3289
        %v3291 = vld [vmem:[#allocation5 + $0x3c] sm:$0xff]
        %v3292 = vld [vmem:[#allocation3 + $0x3c] sm:$0xff]
        %v3293 = vadd.f32 %v3291, %v3292
        %vm3294 = vcmp.ge.f32.partialorder %v3293, 0.0
        %v3295 = vmul.f32 %v3293, 0.01
        %v3296 = vsel %vm3294, %v3293, %v3295
        %3297 = vst [vmem:[%s217 + $0x30] sm:$0xff] %v3296
        %v3298 = vld [vmem:[#allocation5 + $0x46] sm:$0xff]
        %v3299 = vld [vmem:[#allocation3 + $0x46] sm:$0xff]
        %v3300 = vadd.f32 %v3298, %v3299
        %vm3301 = vcmp.ge.f32.partialorder %v3300, 0.0
        %v3302 = vmul.f32 %v3300, 0.01
        %v3303 = vsel %vm3301, %v3300, %v3302
        %3304 = vst [vmem:[%s217 + $0x38] sm:$0xff] %v3303
        %s3305 = sand.u32 %s137, 1
        %s3306 = scalar_lea.sflag [#allocation7], %s3305
        %s3307 = sand.u32 %s137, 1
        %s3308 = smul.addr %s3307, 64
        %s3309 = scalar_lea.vmem [#allocation6], %s3308
        // Predicated region
        $region41: #{_lambda_.3} parent=39 // pred_check
          %p3310 = pneg %p147
        $region42: #{_lambda_.3} parent=39 // pred_check_branch
          %3312 = sbr.rel (%p3310) target = $region44
        $region43: #{_lambda_.3} parent=39 // pred_region
          %s3314 = ssub.s32 1024, 1024
          %3315 = vsyncadd %s3306, %s3314
          %s3316 = smul.addr %s19, 8
          %s3317 = smul.addr %s3316, 128
          %s3318 = scalar_lea.hbm %s5, %s3317
          %s3319 = sshll.u32 %s3309, 4
          %s3320 = int_to_ptr.vmem [resolvable:$true] %s3319
          %3325 = dma.vmem_to_hbm [thread:$0]  %s3320, 1024, %s3318, %s3306, 128, 128, 8
        $region44: #{_lambda_.3} parent=39 // pred_fallthru
          _
      $region40: #{_lambda_.3} parent=5 // pred_fallthru
        _
      %p3326 = scmp.le.s32.totalorder 2, %s14
      // Predicated region
      $region45: #{_lambda_.3} parent=5 // pred_check
        %p3327 = pneg %p3326
      $region46: #{_lambda_.3} parent=5 // pred_check_branch
        %3329 = sbr.rel (%p3327) target = $region48
      $region47: #{_lambda_.3} parent=5 // pred_region
        %s3330 = ssub.s32 %s14, 2
        // Predicated region
        $region49: #{_lambda_.3} parent=47 // pred_check
          %p3331 = pneg %p153
        $region50: #{_lambda_.3} parent=47 // pred_check_branch
          %3333 = sbr.rel (%p3331) target = $region52
        $region51: #{_lambda_.3} parent=47 // pred_region
          %s3334 = sand.u32 %s138, 1
          %s3335 = scalar_lea.sflag [#allocation7], %s3334
          %s3336 = sand.u32 %s138, 1
          %s3337 = smul.addr %s3336, 64
          %s3338 = scalar_lea.vmem [#allocation6], %s3337
          %3339 = dma.done %s3335, 1024
        $region52: #{_lambda_.3} parent=47 // pred_fallthru
          _
      $region48: #{_lambda_.3} parent=5 // pred_fallthru
        _
    $region6: #{_lambda_.3} parent=1 // loop_footer
      %s18 = sadd.s32 1, %s14
    $region7: #{_lambda_.3} parent=1 // loop_footer_branch
      %13 = sbr.rel target = $region3
    $region8: #{_lambda_.3} parent=1 // loop_exit
      _
    %3340 = vsyncpa [#allocation7], 1
    %s3341 = scalar_lea.sflag [#allocation7], 1
    %3342 = vsyncpa %s3341, 1

</llo_original>
